<compile_context>
chip_gen: v5e
topology: v5e:2x2
jax: 0.10.0
libtpu: 0.0.40
codegen_flags: <defaults>
</compile_context>

<pallas_src>
import functools

import numpy as np

import jax
import jax.numpy as jnp
from jax import lax
from jax.experimental import pallas as pl
from jax.experimental.pallas import tpu as pltpu


# ---------------------------------------------------------------------------
# Pallas kernel: fused upsample + reflection pad + Conv3d for one batch element
# and `td` consecutive output depth slices.
# ---------------------------------------------------------------------------
def _fused_upconv_kernel(sd_ref, x_ref, g_ref, w_ref, b_ref, o_ref, rs_ref, *,
                         td, stride, k, ho_wo):
    """
    sd_ref : SMEM (Dp,) int32          padded-depth -> original-depth table
    x_ref  : VMEM (1, D, Cin, H*W)     original input, one batch element
    g_ref  : VMEM (H*W, k*k*Ho*Wo)     0/1 gather (upsample+reflect+taps, H/W)
    w_ref  : VMEM (Cout, Cin*k^3)      folded conv weights
    b_ref  : VMEM (Cout, 1) f32        bias
    o_ref  : VMEM (1, Cout, td*Ho*Wo)  output block, flat over (od, oh, ow)
    rs_ref : VMEM (dpb, Cin, k*k*Ho*Wo) f32 scratch: gathered per-depth planes
    """
    j = pl.program_id(1)
    dpb = (td - 1) * stride + k            # padded depths needed by this block
    dp0 = j * (td * stride)                # first padded depth of this block

    g = g_ref[...]
    # (1) For each needed padded depth: pick its source original depth slice
    #     (dynamic slice on a leading dim) and apply the H/W gather -- nearest
    #     upsample + reflection pad + stride + all k*k in-plane tap windows --
    #     as a single small MXU matmul.
    for i in range(dpb):
        d_src = sd_ref[dp0 + i]
        plane = x_ref[0, d_src]            # (Cin, H*W)
        rs_ref[i] = jnp.dot(plane, g, preferred_element_type=jnp.float32)

    # (2) Per output depth slice: assemble the im2col block (rows ordered
    #     (ci, kd, kh, kw) -- a pure row-major reshape, no transpose) and do ONE
    #     deep-K MXU matmul, then a lane-dense store.
    w2 = w_ref[...].astype(jnp.float32)    # (Cout, Cin*k^3)
    bias = b_ref[...]                      # (Cout, 1) f32
    kck = w2.shape[1]
    for od in range(td):
        b_od = jnp.concatenate(
            [rs_ref[od * stride + kd] for kd in range(k)], axis=-1)
        b_od = b_od.reshape(kck, ho_wo)    # (Cin*k^3, Ho*Wo)
        acc = jnp.dot(w2, b_od, preferred_element_type=jnp.float32) + bias
        o_ref[0, :, od * ho_wo:(od + 1) * ho_wo] = acc.astype(o_ref.dtype)


# ---------------------------------------------------------------------------
# Forward pass of UpsampleConvLayer_3D
# ---------------------------------------------------------------------------
def upsample_conv_layer_3d(x, weight, bias, *, kernel_size, stride=1,
                           upsample=None, storage_dtype=None,
                           max_block_lanes=2048):
    """x: (N, Cin, D, H, W); weight: (Cout, Cin, k, k, k); bias: (Cout,)."""
    k = int(kernel_size)
    s = int(stride)
    u = int(upsample) if upsample else 1
    p = k // 2

    N, Cin, D, H, W = x.shape
    Cout = weight.shape[0]
    Dup, Hup, Wup = D * u, H * u, W * u
    assert p < Dup and p < Hup and p < Wup, "ReflectionPad3d needs pad < dim"
    Dp, Hp, Wp = Dup + 2 * p, Hup + 2 * p, Wup + 2 * p
    Do, Ho, Wo = (Dp - k) // s + 1, (Hp - k) // s + 1, (Wp - k) // s + 1
    HoWo = Ho * Wo

    # padded index -> original index (nearest upsample then reflection pad),
    # all resolved at trace time.
    def src(q, n_up):
        r = q - p
        if r < 0:
            r = -r
        elif r >= n_up:
            r = 2 * (n_up - 1) - r
        return r // u

    sd_tab = jnp.asarray([src(q, Dup) for q in range(Dp)], dtype=jnp.int32)

    # 0/1 gather matrix: original (h, w) -> (kh, kw, oh, ow).  Folds the nearest
    # upsample, reflection pad, conv stride and every (kh, kw) tap window so the
    # kernel never touches an upsampled/padded volume in HBM.
    g2 = np.zeros((H * W, k * k * HoWo), np.float32)
    for kh in range(k):
        for kw_ in range(k):
            col0 = (kh * k + kw_) * HoWo
            for oh in range(Ho):
                h_src = src(oh * s + kh, Hup)
                for ow in range(Wo):
                    w_src = src(ow * s + kw_, Wup)
                    g2[h_src * W + w_src, col0 + oh * Wo + ow] = 1.0

    # Output-depth tile: largest divisor of Do whose flat block is lane-dense
    # (multiple of 128 lanes) and within the lane budget; Td == Do always legal.
    cands = [t for t in range(1, Do + 1)
             if Do % t == 0 and ((t * HoWo) % 128 == 0 or t == Do)]
    fitting = [t for t in cands if t * HoWo <= max_block_lanes]
    td = max(fitting) if fitting else min(cands)
    nblk = Do // td
    dpb = (td - 1) * s + k

    in_dtype = x.dtype
    st_dtype = storage_dtype if storage_dtype is not None else in_dtype

    # (N, Cin, D, H, W) -> (N, D, Cin, H*W): one small HBM copy of the ORIGINAL
    # (not upsampled) input so depth is a cheap leading-dim dynamic slice and
    # (Cin, H*W) lands directly in the (sublane, lane) matmul layout.
    x2 = jnp.transpose(x.reshape(N, Cin, D, H * W), (0, 2, 1, 3)).astype(st_dtype)
    gmat = jnp.asarray(g2, dtype=st_dtype)
    w2 = weight.reshape(Cout, Cin * k ** 3).astype(st_dtype)
    b2 = bias.reshape(Cout, 1).astype(jnp.float32)

    kernel = functools.partial(_fused_upconv_kernel, td=td, stride=s, k=k,
                               ho_wo=HoWo)

    yflat = pl.pallas_call(
        kernel,
        out_shape=jax.ShapeDtypeStruct((N, Cout, Do * HoWo), in_dtype),
        grid_spec=pltpu.PrefetchScalarGridSpec(
            num_scalar_prefetch=1,
            grid=(N, nblk),
            in_specs=[
                # whole original input for batch n: fetched ONCE per batch
                pl.BlockSpec((1, D, Cin, H * W), lambda n, j, sd: (n, 0, 0, 0)),
                pl.BlockSpec((H * W, k * k * HoWo), lambda n, j, sd: (0, 0)),
                pl.BlockSpec((Cout, Cin * k ** 3), lambda n, j, sd: (0, 0)),
                pl.BlockSpec((Cout, 1), lambda n, j, sd: (0, 0)),
            ],
            out_specs=pl.BlockSpec((1, Cout, td * HoWo),
                                   lambda n, j, sd: (n, 0, j)),
            scratch_shapes=[
                pltpu.VMEM((dpb, Cin, k * k * HoWo), jnp.float32)],
        ),
        compiler_params=pltpu.CompilerParams(
            dimension_semantics=("parallel", "parallel")),
    )(sd_tab, x2, gmat, w2, b2)

    # Splits the last axis only -> no data movement, no post-kernel crop.
    return yflat.reshape(N, Cout, Do, Ho, Wo)


# ---------------------------------------------------------------------------
# Reference (pure JAX) and parameter init
# ---------------------------------------------------------------------------
def _reference(x, weight, bias, *, kernel_size, stride, upsample):
    if upsample:
        x = jnp.repeat(x, upsample, axis=2)
        x = jnp.repeat(x, upsample, axis=3)
        x = jnp.repeat(x, upsample, axis=4)
    p = kernel_size // 2
    x = jnp.pad(x, ((0, 0), (0, 0), (p, p), (p, p), (p, p)), mode="reflect")
    out = lax.conv_general_dilated(
        x, weight, window_strides=(stride,) * 3, padding="VALID",
        dimension_numbers=("NCDHW", "OIDHW", "NCDHW"),
        precision=lax.Precision.HIGHEST)
    return out + bias.reshape(1, -1, 1, 1, 1)


def init_params(key, in_channels, out_channels, kernel_size):
    k = kernel_size
    fan_in = in_channels * k ** 3
    bound = 1.0 / (fan_in ** 0.5)
    kw_, kb_ = jax.random.split(key)
    weight = jax.random.uniform(kw_, (out_channels, in_channels, k, k, k),
                                minval=-bound, maxval=bound, dtype=jnp.float32)
    bias = jax.random.uniform(kb_, (out_channels,),
                              minval=-bound, maxval=bound, dtype=jnp.float32)
    return weight, bias


if __name__ == "__main__":
    key = jax.random.PRNGKey(0)
    k1, k2, k3, k4 = jax.random.split(key, 4)

    # --- test 1: canonical config (upsample=2, stride=1), f32 ----------------
    N, Cin, Cout, Dsp = 2, 4, 8, 8
    ks, s1, u1 = 3, 1, 2
    x1 = jax.random.normal(k1, (N, Cin, Dsp, Dsp, Dsp), dtype=jnp.float32)
    w1, b1 = init_params(k2, Cin, Cout, ks)
    fwd1 = jax.jit(functools.partial(upsample_conv_layer_3d, kernel_size=ks,
                                     stride=s1, upsample=u1))
    out1 = jax.block_until_ready(fwd1(x1, w1, b1))
    ref1 = _reference(x1, w1, b1, kernel_size=ks, stride=s1, upsample=u1)
    assert out1.shape == ref1.shape, (out1.shape, ref1.shape)
    assert bool(jnp.allclose(out1, ref1, atol=2e-3, rtol=2e-3)), "test1 mismatch"

    # --- test 2: native stride 2 + bf16 storage + odd channel counts ---------
    N2, Cin2, Cout2, Dsp2 = 1, 3, 5, 6
    s2, u2 = 2, 2
    x2 = jax.random.normal(k3, (N2, Cin2, Dsp2, Dsp2, Dsp2), dtype=jnp.float32)
    w2_, b2_ = init_params(k4, Cin2, Cout2, ks)
    fwd2 = jax.jit(functools.partial(upsample_conv_layer_3d, kernel_size=ks,
                                     stride=s2, upsample=u2,
                                     storage_dtype=jnp.bfloat16))
    out2 = jax.block_until_ready(fwd2(x2, w2_, b2_))
    ref2 = _reference(x2, w2_, b2_, kernel_size=ks, stride=s2, upsample=u2)
    assert out2.shape == ref2.shape, (out2.shape, ref2.shape)
    assert bool(jnp.allclose(out2, ref2, atol=6e-2, rtol=6e-2)), "test2 mismatch"

    print("KERNEL_OK")
</pallas_src>

<mosaic_0001>
module attributes {stable_mosaic.version = 11 : i64} {
  func.func @_fused_upconv_kernel(%arg0: i32, %arg1: i32, %arg2: memref<18xi32, #tpu.memory_space<smem>>, %arg3: memref<1x8x4x64xf32, #tpu.memory_space<vmem>>, %arg4: memref<64x2304xf32, #tpu.memory_space<vmem>>, %arg5: memref<8x108xf32, #tpu.memory_space<vmem>>, %arg6: memref<8x1xf32, #tpu.memory_space<vmem>>, %arg7: memref<1x8x2048xf32, #tpu.memory_space<vmem>>, %arg8: memref<10x4x2304xf32, #tpu.memory_space<vmem>>) attributes {dimension_semantics = [#tpu.dimension_semantics<parallel>, #tpu.dimension_semantics<parallel>], iteration_bounds = array<i64: 2, 2>, scalar_prefetch = 1 : i64, scratch_operands = 1 : i64, tpu.core_type = #tpu.core_type<tc>, window_params = [{transform_indices = @transform_0, window_bounds = array<i64: 1, 8, 4, 64>}, {pipeline_mode = #tpu.pipeline_mode<synchronous>, transform_indices = @transform_1, window_bounds = array<i64: 64, 2304>}, {pipeline_mode = #tpu.pipeline_mode<synchronous>, transform_indices = @transform_2, window_bounds = array<i64: 8, 108>}, {pipeline_mode = #tpu.pipeline_mode<synchronous>, transform_indices = @transform_3, window_bounds = array<i64: 8, 1>}, {transform_indices = @transform_4, window_bounds = array<i64: 1, 8, 2048>}]} {
    %c8_i32 = arith.constant 8 : i32
    %0 = arith.muli %arg1, %c8_i32 : i32
    %c0 = arith.constant 0 : index
    %c0_0 = arith.constant 0 : index
    %1 = vector.load %arg4[%c0, %c0_0] : memref<64x2304xf32, #tpu.memory_space<vmem>>, vector<64x2304xf32>
    %c0_i32 = arith.constant 0 : i32
    %2 = arith.addi %0, %c0_i32 : i32
    %3 = arith.index_cast %2 : i32 to index
    %4 = memref.load %arg2[%3] : memref<18xi32, #tpu.memory_space<smem>>
    %c0_1 = arith.constant 0 : index
    %5 = arith.index_cast %4 : i32 to index
    %c0_2 = arith.constant 0 : index
    %c0_3 = arith.constant 0 : index
    %6 = vector.load %arg3[%c0_1, %5, %c0_2, %c0_3] : memref<1x8x4x64xf32, #tpu.memory_space<vmem>>, vector<1x1x4x64xf32>
    %7 = vector.shape_cast %6 : vector<1x1x4x64xf32> to vector<4x64xf32>
    %cst = arith.constant dense<0.000000e+00> : vector<4x2304xf32>
    %8 = tpu.matmul %7, %1, %cst {dimension_numbers = #tpu.dot_dimension_numbers<[1], [0], [0], [1], [0, 0, 1, 1], [], []>} : vector<4x64xf32>, vector<64x2304xf32>, vector<4x2304xf32> -> vector<4x2304xf32>
    %c0_4 = arith.constant 0 : index
    %c0_5 = arith.constant 0 : index
    %c0_6 = arith.constant 0 : index
    %9 = vector.load %arg8[%c0_4, %c0_5, %c0_6] : memref<10x4x2304xf32, #tpu.memory_space<vmem>>, vector<1x4x2304xf32>
    %10 = vector.shape_cast %9 : vector<1x4x2304xf32> to vector<4x2304xf32>
    %11 = vector.shape_cast %8 : vector<4x2304xf32> to vector<1x4x2304xf32>
    tpu.vector_store %arg8[%c0_4, %c0_5, %c0_6], %11 {strides = array<i32>} : memref<10x4x2304xf32, #tpu.memory_space<vmem>>, vector<1x4x2304xf32>,
    %c1_i32 = arith.constant 1 : i32
    %12 = arith.addi %0, %c1_i32 : i32
    %13 = arith.index_cast %12 : i32 to index
    %14 = memref.load %arg2[%13] : memref<18xi32, #tpu.memory_space<smem>>
    %c0_7 = arith.constant 0 : index
    %15 = arith.index_cast %14 : i32 to index
    %c0_8 = arith.constant 0 : index
    %c0_9 = arith.constant 0 : index
    %16 = vector.load %arg3[%c0_7, %15, %c0_8, %c0_9] : memref<1x8x4x64xf32, #tpu.memory_space<vmem>>, vector<1x1x4x64xf32>
    %17 = vector.shape_cast %16 : vector<1x1x4x64xf32> to vector<4x64xf32>
    %cst_10 = arith.constant dense<0.000000e+00> : vector<4x2304xf32>
    %18 = tpu.matmul %17, %1, %cst_10 {dimension_numbers = #tpu.dot_dimension_numbers<[1], [0], [0], [1], [0, 0, 1, 1], [], []>} : vector<4x64xf32>, vector<64x2304xf32>, vector<4x2304xf32> -> vector<4x2304xf32>
    %c1 = arith.constant 1 : index
    %c0_11 = arith.constant 0 : index
    %c0_12 = arith.constant 0 : index
    %19 = vector.load %arg8[%c1, %c0_11, %c0_12] : memref<10x4x2304xf32, #tpu.memory_space<vmem>>, vector<1x4x2304xf32>
    %20 = vector.shape_cast %19 : vector<1x4x2304xf32> to vector<4x2304xf32>
    %21 = vector.shape_cast %18 : vector<4x2304xf32> to vector<1x4x2304xf32>
    tpu.vector_store %arg8[%c1, %c0_11, %c0_12], %21 {strides = array<i32>} : memref<10x4x2304xf32, #tpu.memory_space<vmem>>, vector<1x4x2304xf32>,
    %c2_i32 = arith.constant 2 : i32
    %22 = arith.addi %0, %c2_i32 : i32
    %23 = arith.index_cast %22 : i32 to index
    %24 = memref.load %arg2[%23] : memref<18xi32, #tpu.memory_space<smem>>
    %c0_13 = arith.constant 0 : index
    %25 = arith.index_cast %24 : i32 to index
    %c0_14 = arith.constant 0 : index
    %c0_15 = arith.constant 0 : index
    %26 = vector.load %arg3[%c0_13, %25, %c0_14, %c0_15] : memref<1x8x4x64xf32, #tpu.memory_space<vmem>>, vector<1x1x4x64xf32>
    %27 = vector.shape_cast %26 : vector<1x1x4x64xf32> to vector<4x64xf32>
    %cst_16 = arith.constant dense<0.000000e+00> : vector<4x2304xf32>
    %28 = tpu.matmul %27, %1, %cst_16 {dimension_numbers = #tpu.dot_dimension_numbers<[1], [0], [0], [1], [0, 0, 1, 1], [], []>} : vector<4x64xf32>, vector<64x2304xf32>, vector<4x2304xf32> -> vector<4x2304xf32>
    %c2 = arith.constant 2 : index
    %c0_17 = arith.constant 0 : index
    %c0_18 = arith.constant 0 : index
    %29 = vector.load %arg8[%c2, %c0_17, %c0_18] : memref<10x4x2304xf32, #tpu.memory_space<vmem>>, vector<1x4x2304xf32>
    %30 = vector.shape_cast %29 : vector<1x4x2304xf32> to vector<4x2304xf32>
    %31 = vector.shape_cast %28 : vector<4x2304xf32> to vector<1x4x2304xf32>
    tpu.vector_store %arg8[%c2, %c0_17, %c0_18], %31 {strides = array<i32>} : memref<10x4x2304xf32, #tpu.memory_space<vmem>>, vector<1x4x2304xf32>,
    %c3_i32 = arith.constant 3 : i32
    %32 = arith.addi %0, %c3_i32 : i32
    %33 = arith.index_cast %32 : i32 to index
    %34 = memref.load %arg2[%33] : memref<18xi32, #tpu.memory_space<smem>>
    %c0_19 = arith.constant 0 : index
    %35 = arith.index_cast %34 : i32 to index
    %c0_20 = arith.constant 0 : index
    %c0_21 = arith.constant 0 : index
    %36 = vector.load %arg3[%c0_19, %35, %c0_20, %c0_21] : memref<1x8x4x64xf32, #tpu.memory_space<vmem>>, vector<1x1x4x64xf32>
    %37 = vector.shape_cast %36 : vector<1x1x4x64xf32> to vector<4x64xf32>
    %cst_22 = arith.constant dense<0.000000e+00> : vector<4x2304xf32>
    %38 = tpu.matmul %37, %1, %cst_22 {dimension_numbers = #tpu.dot_dimension_numbers<[1], [0], [0], [1], [0, 0, 1, 1], [], []>} : vector<4x64xf32>, vector<64x2304xf32>, vector<4x2304xf32> -> vector<4x2304xf32>
    %c3 = arith.constant 3 : index
    %c0_23 = arith.constant 0 : index
    %c0_24 = arith.constant 0 : index
    %39 = vector.load %arg8[%c3, %c0_23, %c0_24] : memref<10x4x2304xf32, #tpu.memory_space<vmem>>, vector<1x4x2304xf32>
    %40 = vector.shape_cast %39 : vector<1x4x2304xf32> to vector<4x2304xf32>
    %41 = vector.shape_cast %38 : vector<4x2304xf32> to vector<1x4x2304xf32>
    tpu.vector_store %arg8[%c3, %c0_23, %c0_24], %41 {strides = array<i32>} : memref<10x4x2304xf32, #tpu.memory_space<vmem>>, vector<1x4x2304xf32>,
    %c4_i32 = arith.constant 4 : i32
    %42 = arith.addi %0, %c4_i32 : i32
    %43 = arith.index_cast %42 : i32 to index
    %44 = memref.load %arg2[%43] : memref<18xi32, #tpu.memory_space<smem>>
    %c0_25 = arith.constant 0 : index
    %45 = arith.index_cast %44 : i32 to index
    %c0_26 = arith.constant 0 : index
    %c0_27 = arith.constant 0 : index
    %46 = vector.load %arg3[%c0_25, %45, %c0_26, %c0_27] : memref<1x8x4x64xf32, #tpu.memory_space<vmem>>, vector<1x1x4x64xf32>
    %47 = vector.shape_cast %46 : vector<1x1x4x64xf32> to vector<4x64xf32>
    %cst_28 = arith.constant dense<0.000000e+00> : vector<4x2304xf32>
    %48 = tpu.matmul %47, %1, %cst_28 {dimension_numbers = #tpu.dot_dimension_numbers<[1], [0], [0], [1], [0, 0, 1, 1], [], []>} : vector<4x64xf32>, vector<64x2304xf32>, vector<4x2304xf32> -> vector<4x2304xf32>
    %c4 = arith.constant 4 : index
    %c0_29 = arith.constant 0 : index
    %c0_30 = arith.constant 0 : index
    %49 = vector.load %arg8[%c4, %c0_29, %c0_30] : memref<10x4x2304xf32, #tpu.memory_space<vmem>>, vector<1x4x2304xf32>
    %50 = vector.shape_cast %49 : vector<1x4x2304xf32> to vector<4x2304xf32>
    %51 = vector.shape_cast %48 : vector<4x2304xf32> to vector<1x4x2304xf32>
    tpu.vector_store %arg8[%c4, %c0_29, %c0_30], %51 {strides = array<i32>} : memref<10x4x2304xf32, #tpu.memory_space<vmem>>, vector<1x4x2304xf32>,
    %c5_i32 = arith.constant 5 : i32
    %52 = arith.addi %0, %c5_i32 : i32
    %53 = arith.index_cast %52 : i32 to index
    %54 = memref.load %arg2[%53] : memref<18xi32, #tpu.memory_space<smem>>
    %c0_31 = arith.constant 0 : index
    %55 = arith.index_cast %54 : i32 to index
    %c0_32 = arith.constant 0 : index
    %c0_33 = arith.constant 0 : index
    %56 = vector.load %arg3[%c0_31, %55, %c0_32, %c0_33] : memref<1x8x4x64xf32, #tpu.memory_space<vmem>>, vector<1x1x4x64xf32>
    %57 = vector.shape_cast %56 : vector<1x1x4x64xf32> to vector<4x64xf32>
    %cst_34 = arith.constant dense<0.000000e+00> : vector<4x2304xf32>
    %58 = tpu.matmul %57, %1, %cst_34 {dimension_numbers = #tpu.dot_dimension_numbers<[1], [0], [0], [1], [0, 0, 1, 1], [], []>} : vector<4x64xf32>, vector<64x2304xf32>, vector<4x2304xf32> -> vector<4x2304xf32>
    %c5 = arith.constant 5 : index
    %c0_35 = arith.constant 0 : index
    %c0_36 = arith.constant 0 : index
    %59 = vector.load %arg8[%c5, %c0_35, %c0_36] : memref<10x4x2304xf32, #tpu.memory_space<vmem>>, vector<1x4x2304xf32>
    %60 = vector.shape_cast %59 : vector<1x4x2304xf32> to vector<4x2304xf32>
    %61 = vector.shape_cast %58 : vector<4x2304xf32> to vector<1x4x2304xf32>
    tpu.vector_store %arg8[%c5, %c0_35, %c0_36], %61 {strides = array<i32>} : memref<10x4x2304xf32, #tpu.memory_space<vmem>>, vector<1x4x2304xf32>,
    %c6_i32 = arith.constant 6 : i32
    %62 = arith.addi %0, %c6_i32 : i32
    %63 = arith.index_cast %62 : i32 to index
    %64 = memref.load %arg2[%63] : memref<18xi32, #tpu.memory_space<smem>>
    %c0_37 = arith.constant 0 : index
    %65 = arith.index_cast %64 : i32 to index
    %c0_38 = arith.constant 0 : index
    %c0_39 = arith.constant 0 : index
    %66 = vector.load %arg3[%c0_37, %65, %c0_38, %c0_39] : memref<1x8x4x64xf32, #tpu.memory_space<vmem>>, vector<1x1x4x64xf32>
    %67 = vector.shape_cast %66 : vector<1x1x4x64xf32> to vector<4x64xf32>
    %cst_40 = arith.constant dense<0.000000e+00> : vector<4x2304xf32>
    %68 = tpu.matmul %67, %1, %cst_40 {dimension_numbers = #tpu.dot_dimension_numbers<[1], [0], [0], [1], [0, 0, 1, 1], [], []>} : vector<4x64xf32>, vector<64x2304xf32>, vector<4x2304xf32> -> vector<4x2304xf32>
    %c6 = arith.constant 6 : index
    %c0_41 = arith.constant 0 : index
    %c0_42 = arith.constant 0 : index
    %69 = vector.load %arg8[%c6, %c0_41, %c0_42] : memref<10x4x2304xf32, #tpu.memory_space<vmem>>, vector<1x4x2304xf32>
    %70 = vector.shape_cast %69 : vector<1x4x2304xf32> to vector<4x2304xf32>
    %71 = vector.shape_cast %68 : vector<4x2304xf32> to vector<1x4x2304xf32>
    tpu.vector_store %arg8[%c6, %c0_41, %c0_42], %71 {strides = array<i32>} : memref<10x4x2304xf32, #tpu.memory_space<vmem>>, vector<1x4x2304xf32>,
    %c7_i32 = arith.constant 7 : i32
    %72 = arith.addi %0, %c7_i32 : i32
    %73 = arith.index_cast %72 : i32 to index
    %74 = memref.load %arg2[%73] : memref<18xi32, #tpu.memory_space<smem>>
    %c0_43 = arith.constant 0 : index
    %75 = arith.index_cast %74 : i32 to index
    %c0_44 = arith.constant 0 : index
    %c0_45 = arith.constant 0 : index
    %76 = vector.load %arg3[%c0_43, %75, %c0_44, %c0_45] : memref<1x8x4x64xf32, #tpu.memory_space<vmem>>, vector<1x1x4x64xf32>
    %77 = vector.shape_cast %76 : vector<1x1x4x64xf32> to vector<4x64xf32>
    %cst_46 = arith.constant dense<0.000000e+00> : vector<4x2304xf32>
    %78 = tpu.matmul %77, %1, %cst_46 {dimension_numbers = #tpu.dot_dimension_numbers<[1], [0], [0], [1], [0, 0, 1, 1], [], []>} : vector<4x64xf32>, vector<64x2304xf32>, vector<4x2304xf32> -> vector<4x2304xf32>
    %c7 = arith.constant 7 : index
    %c0_47 = arith.constant 0 : index
    %c0_48 = arith.constant 0 : index
    %79 = vector.load %arg8[%c7, %c0_47, %c0_48] : memref<10x4x2304xf32, #tpu.memory_space<vmem>>, vector<1x4x2304xf32>
    %80 = vector.shape_cast %79 : vector<1x4x2304xf32> to vector<4x2304xf32>
    %81 = vector.shape_cast %78 : vector<4x2304xf32> to vector<1x4x2304xf32>
    tpu.vector_store %arg8[%c7, %c0_47, %c0_48], %81 {strides = array<i32>} : memref<10x4x2304xf32, #tpu.memory_space<vmem>>, vector<1x4x2304xf32>,
    %c8_i32_49 = arith.constant 8 : i32
    %82 = arith.addi %0, %c8_i32_49 : i32
    %83 = arith.index_cast %82 : i32 to index
    %84 = memref.load %arg2[%83] : memref<18xi32, #tpu.memory_space<smem>>
    %c0_50 = arith.constant 0 : index
    %85 = arith.index_cast %84 : i32 to index
    %c0_51 = arith.constant 0 : index
    %c0_52 = arith.constant 0 : index
    %86 = vector.load %arg3[%c0_50, %85, %c0_51, %c0_52] : memref<1x8x4x64xf32, #tpu.memory_space<vmem>>, vector<1x1x4x64xf32>
    %87 = vector.shape_cast %86 : vector<1x1x4x64xf32> to vector<4x64xf32>
    %cst_53 = arith.constant dense<0.000000e+00> : vector<4x2304xf32>
    %88 = tpu.matmul %87, %1, %cst_53 {dimension_numbers = #tpu.dot_dimension_numbers<[1], [0], [0], [1], [0, 0, 1, 1], [], []>} : vector<4x64xf32>, vector<64x2304xf32>, vector<4x2304xf32> -> vector<4x2304xf32>
    %c8 = arith.constant 8 : index
    %c0_54 = arith.constant 0 : index
    %c0_55 = arith.constant 0 : index
    %89 = vector.load %arg8[%c8, %c0_54, %c0_55] : memref<10x4x2304xf32, #tpu.memory_space<vmem>>, vector<1x4x2304xf32>
    %90 = vector.shape_cast %89 : vector<1x4x2304xf32> to vector<4x2304xf32>
    %91 = vector.shape_cast %88 : vector<4x2304xf32> to vector<1x4x2304xf32>
    tpu.vector_store %arg8[%c8, %c0_54, %c0_55], %91 {strides = array<i32>} : memref<10x4x2304xf32, #tpu.memory_space<vmem>>, vector<1x4x2304xf32>,
    %c9_i32 = arith.constant 9 : i32
    %92 = arith.addi %0, %c9_i32 : i32
    %93 = arith.index_cast %92 : i32 to index
    %94 = memref.load %arg2[%93] : memref<18xi32, #tpu.memory_space<smem>>
    %c0_56 = arith.constant 0 : index
    %95 = arith.index_cast %94 : i32 to index
    %c0_57 = arith.constant 0 : index
    %c0_58 = arith.constant 0 : index
    %96 = vector.load %arg3[%c0_56, %95, %c0_57, %c0_58] : memref<1x8x4x64xf32, #tpu.memory_space<vmem>>, vector<1x1x4x64xf32>
    %97 = vector.shape_cast %96 : vector<1x1x4x64xf32> to vector<4x64xf32>
    %cst_59 = arith.constant dense<0.000000e+00> : vector<4x2304xf32>
    %98 = tpu.matmul %97, %1, %cst_59 {dimension_numbers = #tpu.dot_dimension_numbers<[1], [0], [0], [1], [0, 0, 1, 1], [], []>} : vector<4x64xf32>, vector<64x2304xf32>, vector<4x2304xf32> -> vector<4x2304xf32>
    %c9 = arith.constant 9 : index
    %c0_60 = arith.constant 0 : index
    %c0_61 = arith.constant 0 : index
    %99 = vector.load %arg8[%c9, %c0_60, %c0_61] : memref<10x4x2304xf32, #tpu.memory_space<vmem>>, vector<1x4x2304xf32>
    %100 = vector.shape_cast %99 : vector<1x4x2304xf32> to vector<4x2304xf32>
    %101 = vector.shape_cast %98 : vector<4x2304xf32> to vector<1x4x2304xf32>
    tpu.vector_store %arg8[%c9, %c0_60, %c0_61], %101 {strides = array<i32>} : memref<10x4x2304xf32, #tpu.memory_space<vmem>>, vector<1x4x2304xf32>,
    %c0_62 = arith.constant 0 : index
    %c0_63 = arith.constant 0 : index
    %102 = vector.load %arg5[%c0_62, %c0_63] : memref<8x108xf32, #tpu.memory_space<vmem>>, vector<8x108xf32>
    %c0_64 = arith.constant 0 : index
    %c0_65 = arith.constant 0 : index
    %103 = vector.load %arg6[%c0_64, %c0_65] : memref<8x1xf32, #tpu.memory_space<vmem>>, vector<8x1xf32>
    %c0_66 = arith.constant 0 : index
    %c0_67 = arith.constant 0 : index
    %c0_68 = arith.constant 0 : index
    %104 = vector.load %arg8[%c0_66, %c0_67, %c0_68] : memref<10x4x2304xf32, #tpu.memory_space<vmem>>, vector<1x4x2304xf32>
    %105 = vector.shape_cast %104 : vector<1x4x2304xf32> to vector<4x2304xf32>
    %c1_69 = arith.constant 1 : index
    %c0_70 = arith.constant 0 : index
    %c0_71 = arith.constant 0 : index
    %106 = vector.load %arg8[%c1_69, %c0_70, %c0_71] : memref<10x4x2304xf32, #tpu.memory_space<vmem>>, vector<1x4x2304xf32>
    %107 = vector.shape_cast %106 : vector<1x4x2304xf32> to vector<4x2304xf32>
    %c2_72 = arith.constant 2 : index
    %c0_73 = arith.constant 0 : index
    %c0_74 = arith.constant 0 : index
    %108 = vector.load %arg8[%c2_72, %c0_73, %c0_74] : memref<10x4x2304xf32, #tpu.memory_space<vmem>>, vector<1x4x2304xf32>
    %109 = vector.shape_cast %108 : vector<1x4x2304xf32> to vector<4x2304xf32>
    %110 = tpu.concatenate %105, %107, %109 in 1 : vector<4x2304xf32>, vector<4x2304xf32>, vector<4x2304xf32> -> vector<4x6912xf32>
    %111 = vector.shape_cast %110 : vector<4x6912xf32> to vector<108x256xf32>
    %cst_75 = arith.constant dense<0.000000e+00> : vector<8x256xf32>
    %112 = tpu.matmul %102, %111, %cst_75 {dimension_numbers = #tpu.dot_dimension_numbers<[1], [0], [0], [1], [0, 0, 1, 1], [], []>} : vector<8x108xf32>, vector<108x256xf32>, vector<8x256xf32> -> vector<8x256xf32>
    %113 = vector.broadcast %103 : vector<8x1xf32> to vector<8x256xf32>
    %114 = arith.addf %112, %113 : vector<8x256xf32>
    %c0_76 = arith.constant 0 : index
    %c0_77 = arith.constant 0 : index
    %c0_78 = arith.constant 0 : index
    %115 = vector.load %arg7[%c0_76, %c0_77, %c0_78] : memref<1x8x2048xf32, #tpu.memory_space<vmem>>, vector<1x8x256xf32>
    %116 = vector.shape_cast %115 : vector<1x8x256xf32> to vector<8x256xf32>
    %117 = vector.shape_cast %114 : vector<8x256xf32> to vector<1x8x256xf32>
    tpu.vector_store %arg7[%c0_76, %c0_77, %c0_78], %117 {strides = array<i32>} : memref<1x8x2048xf32, #tpu.memory_space<vmem>>, vector<1x8x256xf32>,
    %c1_79 = arith.constant 1 : index
    %c0_80 = arith.constant 0 : index
    %c0_81 = arith.constant 0 : index
    %118 = vector.load %arg8[%c1_79, %c0_80, %c0_81] : memref<10x4x2304xf32, #tpu.memory_space<vmem>>, vector<1x4x2304xf32>
    %119 = vector.shape_cast %118 : vector<1x4x2304xf32> to vector<4x2304xf32>
    %c2_82 = arith.constant 2 : index
    %c0_83 = arith.constant 0 : index
    %c0_84 = arith.constant 0 : index
    %120 = vector.load %arg8[%c2_82, %c0_83, %c0_84] : memref<10x4x2304xf32, #tpu.memory_space<vmem>>, vector<1x4x2304xf32>
    %121 = vector.shape_cast %120 : vector<1x4x2304xf32> to vector<4x2304xf32>
    %c3_85 = arith.constant 3 : index
    %c0_86 = arith.constant 0 : index
    %c0_87 = arith.constant 0 : index
    %122 = vector.load %arg8[%c3_85, %c0_86, %c0_87] : memref<10x4x2304xf32, #tpu.memory_space<vmem>>, vector<1x4x2304xf32>
    %123 = vector.shape_cast %122 : vector<1x4x2304xf32> to vector<4x2304xf32>
    %124 = tpu.concatenate %119, %121, %123 in 1 : vector<4x2304xf32>, vector<4x2304xf32>, vector<4x2304xf32> -> vector<4x6912xf32>
    %125 = vector.shape_cast %124 : vector<4x6912xf32> to vector<108x256xf32>
    %cst_88 = arith.constant dense<0.000000e+00> : vector<8x256xf32>
    %126 = tpu.matmul %102, %125, %cst_88 {dimension_numbers = #tpu.dot_dimension_numbers<[1], [0], [0], [1], [0, 0, 1, 1], [], []>} : vector<8x108xf32>, vector<108x256xf32>, vector<8x256xf32> -> vector<8x256xf32>
    %127 = vector.broadcast %103 : vector<8x1xf32> to vector<8x256xf32>
    %128 = arith.addf %126, %127 : vector<8x256xf32>
    %c0_89 = arith.constant 0 : index
    %c0_90 = arith.constant 0 : index
    %c256 = arith.constant 256 : index
    %129 = vector.load %arg7[%c0_89, %c0_90, %c256] : memref<1x8x2048xf32, #tpu.memory_space<vmem>>, vector<1x8x256xf32>
    %130 = vector.shape_cast %129 : vector<1x8x256xf32> to vector<8x256xf32>
    %131 = vector.shape_cast %128 : vector<8x256xf32> to vector<1x8x256xf32>
    tpu.vector_store %arg7[%c0_89, %c0_90, %c256], %131 {strides = array<i32>} : memref<1x8x2048xf32, #tpu.memory_space<vmem>>, vector<1x8x256xf32>,
    %c2_91 = arith.constant 2 : index
    %c0_92 = arith.constant 0 : index
    %c0_93 = arith.constant 0 : index
    %132 = vector.load %arg8[%c2_91, %c0_92, %c0_93] : memref<10x4x2304xf32, #tpu.memory_space<vmem>>, vector<1x4x2304xf32>
    %133 = vector.shape_cast %132 : vector<1x4x2304xf32> to vector<4x2304xf32>
    %c3_94 = arith.constant 3 : index
    %c0_95 = arith.constant 0 : index
    %c0_96 = arith.constant 0 : index
    %134 = vector.load %arg8[%c3_94, %c0_95, %c0_96] : memref<10x4x2304xf32, #tpu.memory_space<vmem>>, vector<1x4x2304xf32>
    %135 = vector.shape_cast %134 : vector<1x4x2304xf32> to vector<4x2304xf32>
    %c4_97 = arith.constant 4 : index
    %c0_98 = arith.constant 0 : index
    %c0_99 = arith.constant 0 : index
    %136 = vector.load %arg8[%c4_97, %c0_98, %c0_99] : memref<10x4x2304xf32, #tpu.memory_space<vmem>>, vector<1x4x2304xf32>
    %137 = vector.shape_cast %136 : vector<1x4x2304xf32> to vector<4x2304xf32>
    %138 = tpu.concatenate %133, %135, %137 in 1 : vector<4x2304xf32>, vector<4x2304xf32>, vector<4x2304xf32> -> vector<4x6912xf32>
    %139 = vector.shape_cast %138 : vector<4x6912xf32> to vector<108x256xf32>
    %cst_100 = arith.constant dense<0.000000e+00> : vector<8x256xf32>
    %140 = tpu.matmul %102, %139, %cst_100 {dimension_numbers = #tpu.dot_dimension_numbers<[1], [0], [0], [1], [0, 0, 1, 1], [], []>} : vector<8x108xf32>, vector<108x256xf32>, vector<8x256xf32> -> vector<8x256xf32>
    %141 = vector.broadcast %103 : vector<8x1xf32> to vector<8x256xf32>
    %142 = arith.addf %140, %141 : vector<8x256xf32>
    %c0_101 = arith.constant 0 : index
    %c0_102 = arith.constant 0 : index
    %c512 = arith.constant 512 : index
    %143 = vector.load %arg7[%c0_101, %c0_102, %c512] : memref<1x8x2048xf32, #tpu.memory_space<vmem>>, vector<1x8x256xf32>
    %144 = vector.shape_cast %143 : vector<1x8x256xf32> to vector<8x256xf32>
    %145 = vector.shape_cast %142 : vector<8x256xf32> to vector<1x8x256xf32>
    tpu.vector_store %arg7[%c0_101, %c0_102, %c512], %145 {strides = array<i32>} : memref<1x8x2048xf32, #tpu.memory_space<vmem>>, vector<1x8x256xf32>,
    %c3_103 = arith.constant 3 : index
    %c0_104 = arith.constant 0 : index
    %c0_105 = arith.constant 0 : index
    %146 = vector.load %arg8[%c3_103, %c0_104, %c0_105] : memref<10x4x2304xf32, #tpu.memory_space<vmem>>, vector<1x4x2304xf32>
    %147 = vector.shape_cast %146 : vector<1x4x2304xf32> to vector<4x2304xf32>
    %c4_106 = arith.constant 4 : index
    %c0_107 = arith.constant 0 : index
    %c0_108 = arith.constant 0 : index
    %148 = vector.load %arg8[%c4_106, %c0_107, %c0_108] : memref<10x4x2304xf32, #tpu.memory_space<vmem>>, vector<1x4x2304xf32>
    %149 = vector.shape_cast %148 : vector<1x4x2304xf32> to vector<4x2304xf32>
    %c5_109 = arith.constant 5 : index
    %c0_110 = arith.constant 0 : index
    %c0_111 = arith.constant 0 : index
    %150 = vector.load %arg8[%c5_109, %c0_110, %c0_111] : memref<10x4x2304xf32, #tpu.memory_space<vmem>>, vector<1x4x2304xf32>
    %151 = vector.shape_cast %150 : vector<1x4x2304xf32> to vector<4x2304xf32>
    %152 = tpu.concatenate %147, %149, %151 in 1 : vector<4x2304xf32>, vector<4x2304xf32>, vector<4x2304xf32> -> vector<4x6912xf32>
    %153 = vector.shape_cast %152 : vector<4x6912xf32> to vector<108x256xf32>
    %cst_112 = arith.constant dense<0.000000e+00> : vector<8x256xf32>
    %154 = tpu.matmul %102, %153, %cst_112 {dimension_numbers = #tpu.dot_dimension_numbers<[1], [0], [0], [1], [0, 0, 1, 1], [], []>} : vector<8x108xf32>, vector<108x256xf32>, vector<8x256xf32> -> vector<8x256xf32>
    %155 = vector.broadcast %103 : vector<8x1xf32> to vector<8x256xf32>
    %156 = arith.addf %154, %155 : vector<8x256xf32>
    %c0_113 = arith.constant 0 : index
    %c0_114 = arith.constant 0 : index
    %c768 = arith.constant 768 : index
    %157 = vector.load %arg7[%c0_113, %c0_114, %c768] : memref<1x8x2048xf32, #tpu.memory_space<vmem>>, vector<1x8x256xf32>
    %158 = vector.shape_cast %157 : vector<1x8x256xf32> to vector<8x256xf32>
    %159 = vector.shape_cast %156 : vector<8x256xf32> to vector<1x8x256xf32>
    tpu.vector_store %arg7[%c0_113, %c0_114, %c768], %159 {strides = array<i32>} : memref<1x8x2048xf32, #tpu.memory_space<vmem>>, vector<1x8x256xf32>,
    %c4_115 = arith.constant 4 : index
    %c0_116 = arith.constant 0 : index
    %c0_117 = arith.constant 0 : index
    %160 = vector.load %arg8[%c4_115, %c0_116, %c0_117] : memref<10x4x2304xf32, #tpu.memory_space<vmem>>, vector<1x4x2304xf32>
    %161 = vector.shape_cast %160 : vector<1x4x2304xf32> to vector<4x2304xf32>
    %c5_118 = arith.constant 5 : index
    %c0_119 = arith.constant 0 : index
    %c0_120 = arith.constant 0 : index
    %162 = vector.load %arg8[%c5_118, %c0_119, %c0_120] : memref<10x4x2304xf32, #tpu.memory_space<vmem>>, vector<1x4x2304xf32>
    %163 = vector.shape_cast %162 : vector<1x4x2304xf32> to vector<4x2304xf32>
    %c6_121 = arith.constant 6 : index
    %c0_122 = arith.constant 0 : index
    %c0_123 = arith.constant 0 : index
    %164 = vector.load %arg8[%c6_121, %c0_122, %c0_123] : memref<10x4x2304xf32, #tpu.memory_space<vmem>>, vector<1x4x2304xf32>
    %165 = vector.shape_cast %164 : vector<1x4x2304xf32> to vector<4x2304xf32>
    %166 = tpu.concatenate %161, %163, %165 in 1 : vector<4x2304xf32>, vector<4x2304xf32>, vector<4x2304xf32> -> vector<4x6912xf32>
    %167 = vector.shape_cast %166 : vector<4x6912xf32> to vector<108x256xf32>
    %cst_124 = arith.constant dense<0.000000e+00> : vector<8x256xf32>
    %168 = tpu.matmul %102, %167, %cst_124 {dimension_numbers = #tpu.dot_dimension_numbers<[1], [0], [0], [1], [0, 0, 1, 1], [], []>} : vector<8x108xf32>, vector<108x256xf32>, vector<8x256xf32> -> vector<8x256xf32>
    %169 = vector.broadcast %103 : vector<8x1xf32> to vector<8x256xf32>
    %170 = arith.addf %168, %169 : vector<8x256xf32>
    %c0_125 = arith.constant 0 : index
    %c0_126 = arith.constant 0 : index
    %c1024 = arith.constant 1024 : index
    %171 = vector.load %arg7[%c0_125, %c0_126, %c1024] : memref<1x8x2048xf32, #tpu.memory_space<vmem>>, vector<1x8x256xf32>
    %172 = vector.shape_cast %171 : vector<1x8x256xf32> to vector<8x256xf32>
    %173 = vector.shape_cast %170 : vector<8x256xf32> to vector<1x8x256xf32>
    tpu.vector_store %arg7[%c0_125, %c0_126, %c1024], %173 {strides = array<i32>} : memref<1x8x2048xf32, #tpu.memory_space<vmem>>, vector<1x8x256xf32>,
    %c5_127 = arith.constant 5 : index
    %c0_128 = arith.constant 0 : index
    %c0_129 = arith.constant 0 : index
    %174 = vector.load %arg8[%c5_127, %c0_128, %c0_129] : memref<10x4x2304xf32, #tpu.memory_space<vmem>>, vector<1x4x2304xf32>
    %175 = vector.shape_cast %174 : vector<1x4x2304xf32> to vector<4x2304xf32>
    %c6_130 = arith.constant 6 : index
    %c0_131 = arith.constant 0 : index
    %c0_132 = arith.constant 0 : index
    %176 = vector.load %arg8[%c6_130, %c0_131, %c0_132] : memref<10x4x2304xf32, #tpu.memory_space<vmem>>, vector<1x4x2304xf32>
    %177 = vector.shape_cast %176 : vector<1x4x2304xf32> to vector<4x2304xf32>
    %c7_133 = arith.constant 7 : index
    %c0_134 = arith.constant 0 : index
    %c0_135 = arith.constant 0 : index
    %178 = vector.load %arg8[%c7_133, %c0_134, %c0_135] : memref<10x4x2304xf32, #tpu.memory_space<vmem>>, vector<1x4x2304xf32>
    %179 = vector.shape_cast %178 : vector<1x4x2304xf32> to vector<4x2304xf32>
    %180 = tpu.concatenate %175, %177, %179 in 1 : vector<4x2304xf32>, vector<4x2304xf32>, vector<4x2304xf32> -> vector<4x6912xf32>
    %181 = vector.shape_cast %180 : vector<4x6912xf32> to vector<108x256xf32>
    %cst_136 = arith.constant dense<0.000000e+00> : vector<8x256xf32>
    %182 = tpu.matmul %102, %181, %cst_136 {dimension_numbers = #tpu.dot_dimension_numbers<[1], [0], [0], [1], [0, 0, 1, 1], [], []>} : vector<8x108xf32>, vector<108x256xf32>, vector<8x256xf32> -> vector<8x256xf32>
    %183 = vector.broadcast %103 : vector<8x1xf32> to vector<8x256xf32>
    %184 = arith.addf %182, %183 : vector<8x256xf32>
    %c0_137 = arith.constant 0 : index
    %c0_138 = arith.constant 0 : index
    %c1280 = arith.constant 1280 : index
    %185 = vector.load %arg7[%c0_137, %c0_138, %c1280] : memref<1x8x2048xf32, #tpu.memory_space<vmem>>, vector<1x8x256xf32>
    %186 = vector.shape_cast %185 : vector<1x8x256xf32> to vector<8x256xf32>
    %187 = vector.shape_cast %184 : vector<8x256xf32> to vector<1x8x256xf32>
    tpu.vector_store %arg7[%c0_137, %c0_138, %c1280], %187 {strides = array<i32>} : memref<1x8x2048xf32, #tpu.memory_space<vmem>>, vector<1x8x256xf32>,
    %c6_139 = arith.constant 6 : index
    %c0_140 = arith.constant 0 : index
    %c0_141 = arith.constant 0 : index
    %188 = vector.load %arg8[%c6_139, %c0_140, %c0_141] : memref<10x4x2304xf32, #tpu.memory_space<vmem>>, vector<1x4x2304xf32>
    %189 = vector.shape_cast %188 : vector<1x4x2304xf32> to vector<4x2304xf32>
    %c7_142 = arith.constant 7 : index
    %c0_143 = arith.constant 0 : index
    %c0_144 = arith.constant 0 : index
    %190 = vector.load %arg8[%c7_142, %c0_143, %c0_144] : memref<10x4x2304xf32, #tpu.memory_space<vmem>>, vector<1x4x2304xf32>
    %191 = vector.shape_cast %190 : vector<1x4x2304xf32> to vector<4x2304xf32>
    %c8_145 = arith.constant 8 : index
    %c0_146 = arith.constant 0 : index
    %c0_147 = arith.constant 0 : index
    %192 = vector.load %arg8[%c8_145, %c0_146, %c0_147] : memref<10x4x2304xf32, #tpu.memory_space<vmem>>, vector<1x4x2304xf32>
    %193 = vector.shape_cast %192 : vector<1x4x2304xf32> to vector<4x2304xf32>
    %194 = tpu.concatenate %189, %191, %193 in 1 : vector<4x2304xf32>, vector<4x2304xf32>, vector<4x2304xf32> -> vector<4x6912xf32>
    %195 = vector.shape_cast %194 : vector<4x6912xf32> to vector<108x256xf32>
    %cst_148 = arith.constant dense<0.000000e+00> : vector<8x256xf32>
    %196 = tpu.matmul %102, %195, %cst_148 {dimension_numbers = #tpu.dot_dimension_numbers<[1], [0], [0], [1], [0, 0, 1, 1], [], []>} : vector<8x108xf32>, vector<108x256xf32>, vector<8x256xf32> -> vector<8x256xf32>
    %197 = vector.broadcast %103 : vector<8x1xf32> to vector<8x256xf32>
    %198 = arith.addf %196, %197 : vector<8x256xf32>
    %c0_149 = arith.constant 0 : index
    %c0_150 = arith.constant 0 : index
    %c1536 = arith.constant 1536 : index
    %199 = vector.load %arg7[%c0_149, %c0_150, %c1536] : memref<1x8x2048xf32, #tpu.memory_space<vmem>>, vector<1x8x256xf32>
    %200 = vector.shape_cast %199 : vector<1x8x256xf32> to vector<8x256xf32>
    %201 = vector.shape_cast %198 : vector<8x256xf32> to vector<1x8x256xf32>
    tpu.vector_store %arg7[%c0_149, %c0_150, %c1536], %201 {strides = array<i32>} : memref<1x8x2048xf32, #tpu.memory_space<vmem>>, vector<1x8x256xf32>,
    %c7_151 = arith.constant 7 : index
    %c0_152 = arith.constant 0 : index
    %c0_153 = arith.constant 0 : index
    %202 = vector.load %arg8[%c7_151, %c0_152, %c0_153] : memref<10x4x2304xf32, #tpu.memory_space<vmem>>, vector<1x4x2304xf32>
    %203 = vector.shape_cast %202 : vector<1x4x2304xf32> to vector<4x2304xf32>
    %c8_154 = arith.constant 8 : index
    %c0_155 = arith.constant 0 : index
    %c0_156 = arith.constant 0 : index
    %204 = vector.load %arg8[%c8_154, %c0_155, %c0_156] : memref<10x4x2304xf32, #tpu.memory_space<vmem>>, vector<1x4x2304xf32>
    %205 = vector.shape_cast %204 : vector<1x4x2304xf32> to vector<4x2304xf32>
    %c9_157 = arith.constant 9 : index
    %c0_158 = arith.constant 0 : index
    %c0_159 = arith.constant 0 : index
    %206 = vector.load %arg8[%c9_157, %c0_158, %c0_159] : memref<10x4x2304xf32, #tpu.memory_space<vmem>>, vector<1x4x2304xf32>
    %207 = vector.shape_cast %206 : vector<1x4x2304xf32> to vector<4x2304xf32>
    %208 = tpu.concatenate %203, %205, %207 in 1 : vector<4x2304xf32>, vector<4x2304xf32>, vector<4x2304xf32> -> vector<4x6912xf32>
    %209 = vector.shape_cast %208 : vector<4x6912xf32> to vector<108x256xf32>
    %cst_160 = arith.constant dense<0.000000e+00> : vector<8x256xf32>
    %210 = tpu.matmul %102, %209, %cst_160 {dimension_numbers = #tpu.dot_dimension_numbers<[1], [0], [0], [1], [0, 0, 1, 1], [], []>} : vector<8x108xf32>, vector<108x256xf32>, vector<8x256xf32> -> vector<8x256xf32>
    %211 = vector.broadcast %103 : vector<8x1xf32> to vector<8x256xf32>
    %212 = arith.addf %210, %211 : vector<8x256xf32>
    %c0_161 = arith.constant 0 : index
    %c0_162 = arith.constant 0 : index
    %c1792 = arith.constant 1792 : index
    %213 = vector.load %arg7[%c0_161, %c0_162, %c1792] : memref<1x8x2048xf32, #tpu.memory_space<vmem>>, vector<1x8x256xf32>
    %214 = vector.shape_cast %213 : vector<1x8x256xf32> to vector<8x256xf32>
    %215 = vector.shape_cast %212 : vector<8x256xf32> to vector<1x8x256xf32>
    tpu.vector_store %arg7[%c0_161, %c0_162, %c1792], %215 {strides = array<i32>} : memref<1x8x2048xf32, #tpu.memory_space<vmem>>, vector<1x8x256xf32>,
    return
  }
  func.func @transform_0(%arg0: i32, %arg1: i32, %arg2: memref<18xi32, #tpu.memory_space<smem>>) -> (i32, i32, i32, i32) {
    %c0_i32 = arith.constant 0 : i32
    %c0_i32_0 = arith.constant 0 : i32
    %c0_i32_1 = arith.constant 0 : i32
    %c0_i32_2 = arith.constant 0 : i32
    return %arg0, %c0_i32, %c0_i32_0, %c0_i32_1 : i32, i32, i32, i32
  }
  func.func @transform_1(%arg0: i32, %arg1: i32, %arg2: memref<18xi32, #tpu.memory_space<smem>>) -> (i32, i32) {
    %c0_i32 = arith.constant 0 : i32
    %c0_i32_0 = arith.constant 0 : i32
    %c0_i32_1 = arith.constant 0 : i32
    return %c0_i32, %c0_i32_0 : i32, i32
  }
  func.func @transform_2(%arg0: i32, %arg1: i32, %arg2: memref<18xi32, #tpu.memory_space<smem>>) -> (i32, i32) {
    %c0_i32 = arith.constant 0 : i32
    %c0_i32_0 = arith.constant 0 : i32
    %c0_i32_1 = arith.constant 0 : i32
    return %c0_i32, %c0_i32_0 : i32, i32
  }
  func.func @transform_3(%arg0: i32, %arg1: i32, %arg2: memref<18xi32, #tpu.memory_space<smem>>) -> (i32, i32) {
    %c0_i32 = arith.constant 0 : i32
    %c0_i32_0 = arith.constant 0 : i32
    %c0_i32_1 = arith.constant 0 : i32
    return %c0_i32, %c0_i32_0 : i32, i32
  }
  func.func @transform_4(%arg0: i32, %arg1: i32, %arg2: memref<18xi32, #tpu.memory_space<smem>>) -> (i32, i32, i32) {
    %c0_i32 = arith.constant 0 : i32
    %c0_i32_0 = arith.constant 0 : i32
    return %arg0, %c0_i32, %arg1 : i32, i32, i32
  }
}

</mosaic_0001>

<llo_original>
// kernel: upsample_conv_layer_3d.1
$region0: #{upsample_conv_layer_3d.1}
  #allocation0 [shape = 'u32[]', space=smem, size = 0x4, offset = 0x4, fixed_abs, tag = 'smem constant byte address 0x4 - core index']
  #allocation1 [shape = 'u32[72,128]{1,0:T(1,128)}', space=vmem, size = 0x9000, scoped, tag = 'internal scratch']
  #allocation2 [shape = 'f32[10,4,2304]{2,1,0:T(4,128)}', space=vmem, size = 0x5a000, scoped, tag = 'scratch operand']
  #allocation3 [shape = 's32[1]{0}', space=sflag, size = 0x4, scoped, tag = 'scoped memory for upsample_conv_layer_3d.1']
  #allocation4 [shape = 'u8[512]{0}', space=smem, size = 0x200, scoped, tag = 'prefetched SMEM operand 0']
  %s0 = inlined_call_operand.hbm [shape: s32[18], index: 0, kind: input, shape index: {}]
  %s1 = inlined_call_operand.vmem [shape: f32[2,8,4,64], index: 1, kind: input, shape index: {}]
  %s2 = inlined_call_operand.hbm [shape: f32[64,2304], index: 2, kind: input, shape index: {}]
  %s3 = inlined_call_operand.vmem [shape: f32[8,108], index: 3, kind: input, shape index: {}]
  %s4 = inlined_call_operand.vmem [shape: f32[8,1], index: 4, kind: input, shape index: {}]
  %s5 = inlined_call_operand.vmem [shape: f32[2,8,4096], index: 5, kind: output, shape index: {}]
  %s6 = sld [smem:[#allocation0]]
  $region53: #{upsample_conv_layer_3d.1} parent=0
    _
  %s8 = ssub.s32 1, %s6
  %s9 = scalar_select 0, %s8, %s6
  %s11 = sshll.u32 %s0, 4
  %s12 = int_to_ptr.hbm [resolvable:$true] %s11
  %14 = dma.hbm_to_smem %s12, 16, [#allocation4], [#allocation3]
  %16 = dma.done [#allocation3], 16
  %17 = sfence
  $region1: #{upsample_conv_layer_3d.1} parent=0
    #allocation5 [shape = 'u8[589824]{0}', space=vmem, size = 0x90000, scoped, tag = 'input window, operand 2, single buffered']
    #allocation6 [shape = 's32[2]{0}', space=sflag, size = 0x8, scoped, tag = 'scoped memory for upsample_conv_layer_3d.1']
    %18 = vsyncpa [#allocation6], 0
    loop: start=0, step=1, limit=6
    $region2: #{upsample_conv_layer_3d.1} parent=1 // loop_pre_header
      _
    $region3: #{upsample_conv_layer_3d.1} parent=1 // loop_header
      %s20 = sphi 0, %s24
      %p21 = scmp.ge.s32.totalorder %s20, 6
      %s27 = sphi 0, %s39
      %s28 = sphi 0, %s35
      %s29 = sphi 0, %s27
      %s30 = sphi 0, %s28
      %s31 = sphi 0, %s29
      %s32 = sphi 0, %s30
      %s42 = sphi 0, %s44
      %s45 = sphi 0, %s42
      %s46 = sphi 0, %s45
      %s62 = sphi 0, %s46
      %s66 = sphi 0, %s66
      %s68 = sphi 0, %s66
      %s69 = sphi 0, %s68
      %s83 = sphi 0, %s69
      %s87 = sphi 0, %s87
      %s89 = sphi 0, %s87
      %s90 = sphi 0, %s89
      %s104 = sphi 0, %s90
      %s108 = sphi 0, %s108
      %s110 = sphi 0, %s108
      %s111 = sphi 0, %s110
      %s125 = sphi 0, %s111
      %s133 = sphi 0, %s135
      %s136 = sphi 0, %s133
      %s137 = sphi 0, %s136
      %s153 = sphi 0, %s137
    $region4: #{upsample_conv_layer_3d.1} parent=1 // loop_header_branch
      %23 = sbr.rel (%p21) target = $region8
    $region5: #{upsample_conv_layer_3d.1} parent=1 // loop_body
      %s25 = ssub.s32 %s20, 1
      %s26 = ssub.s32 %s20, 2
      %s33 = sadd.s32 1, %s28
      %p34 = scmp.ge.s32.totalorder %s33, 2
      %s35 = scalar_select %p34, 0, %s33
      %s36 = sadd.s32 1, %s27
      %s37 = scalar_select %p34, %s36, %s27
      %p38 = scmp.ge.s32.totalorder %s37, 2
      %s39 = scalar_select %p38, 0, %s37
      %s40 = ssub.s32 %s27, %s39
      %p41 = scmp.eq.s32.totalorder %s40, 0
      %s43 = sadd.s32 %s42, 1
      %s44 = scalar_select %p41, %s42, %s43
      %p47 = pneg %p41
      %p48 = scmp.eq.s32.totalorder %s20, 3
      %p49 = por %p47, %p48
      %p50 = scmp.ne.s32.totalorder %s42, %s45
      %p51 = scmp.eq.s32.totalorder %s20, 0
      %p52 = por %p50, %p51
      %p53 = scmp.ne.s32.totalorder %s42, %s45
      %p54 = scmp.eq.s32.totalorder %s25, 3
      %p55 = por %p53, %p54
      %p56 = scmp.ne.s32.totalorder %s45, %s46
      %p57 = scmp.eq.s32.totalorder %s25, 0
      %p58 = por %p56, %p57
      %p59 = scmp.ne.s32.totalorder %s45, %s46
      %p60 = scmp.eq.s32.totalorder %s26, 3
      %p61 = por %p59, %p60
      %p63 = scmp.ne.s32.totalorder %s46, %s62
      %p64 = scmp.eq.s32.totalorder %s26, 0
      %p65 = por %p63, %p64
      %s67 = sadd.s32 %s66, 1
      %p70 = scmp.eq.s32.totalorder %s20, 3
      %p71 = scmp.ne.s32.totalorder %s66, %s68
      %p72 = scmp.eq.s32.totalorder %s20, 0
      %p73 = por %p71, %p72
      %p74 = scmp.ne.s32.totalorder %s66, %s68
      %p75 = scmp.eq.s32.totalorder %s25, 3
      %p76 = por %p74, %p75
      %p77 = scmp.ne.s32.totalorder %s68, %s69
      %p78 = scmp.eq.s32.totalorder %s25, 0
      %p79 = por %p77, %p78
      %p80 = scmp.ne.s32.totalorder %s68, %s69
      %p81 = scmp.eq.s32.totalorder %s26, 3
      %p82 = por %p80, %p81
      %p84 = scmp.ne.s32.totalorder %s69, %s83
      %p85 = scmp.eq.s32.totalorder %s26, 0
      %p86 = por %p84, %p85
      %s88 = sadd.s32 %s87, 1
      %p91 = scmp.eq.s32.totalorder %s20, 3
      %p92 = scmp.ne.s32.totalorder %s87, %s89
      %p93 = scmp.eq.s32.totalorder %s20, 0
      %p94 = por %p92, %p93
      %p95 = scmp.ne.s32.totalorder %s87, %s89
      %p96 = scmp.eq.s32.totalorder %s25, 3
      %p97 = por %p95, %p96
      %p98 = scmp.ne.s32.totalorder %s89, %s90
      %p99 = scmp.eq.s32.totalorder %s25, 0
      %p100 = por %p98, %p99
      %p101 = scmp.ne.s32.totalorder %s89, %s90
      %p102 = scmp.eq.s32.totalorder %s26, 3
      %p103 = por %p101, %p102
      %p105 = scmp.ne.s32.totalorder %s90, %s104
      %p106 = scmp.eq.s32.totalorder %s26, 0
      %p107 = por %p105, %p106
      %s109 = sadd.s32 %s108, 1
      %p112 = scmp.eq.s32.totalorder %s20, 3
      %p113 = scmp.ne.s32.totalorder %s108, %s110
      %p114 = scmp.eq.s32.totalorder %s20, 0
      %p115 = por %p113, %p114
      %p116 = scmp.ne.s32.totalorder %s108, %s110
      %p117 = scmp.eq.s32.totalorder %s25, 3
      %p118 = por %p116, %p117
      %p119 = scmp.ne.s32.totalorder %s110, %s111
      %p120 = scmp.eq.s32.totalorder %s25, 0
      %p121 = por %p119, %p120
      %p122 = scmp.ne.s32.totalorder %s110, %s111
      %p123 = scmp.eq.s32.totalorder %s26, 3
      %p124 = por %p122, %p123
      %p126 = scmp.ne.s32.totalorder %s111, %s125
      %p127 = scmp.eq.s32.totalorder %s26, 0
      %p128 = por %p126, %p127
      %s129 = ssub.s32 %s27, %s39
      %s130 = ssub.s32 %s28, %s35
      %s131 = sor.u32 %s129, %s130
      %p132 = scmp.eq.s32.totalorder %s131, 0
      %s134 = sadd.s32 %s133, 1
      %s135 = scalar_select %p132, %s133, %s134
      %p138 = pneg %p132
      %p139 = scmp.eq.s32.totalorder %s20, 3
      %p140 = por %p138, %p139
      %p141 = scmp.ne.s32.totalorder %s133, %s136
      %p142 = scmp.eq.s32.totalorder %s20, 0
      %p143 = por %p141, %p142
      %p144 = scmp.ne.s32.totalorder %s133, %s136
      %p145 = scmp.eq.s32.totalorder %s25, 3
      %p146 = por %p144, %p145
      %p147 = scmp.ne.s32.totalorder %s136, %s137
      %p148 = scmp.eq.s32.totalorder %s25, 0
      %p149 = por %p147, %p148
      %p150 = scmp.ne.s32.totalorder %s136, %s137
      %p151 = scmp.eq.s32.totalorder %s26, 3
      %p152 = por %p150, %p151
      %p154 = scmp.ne.s32.totalorder %s137, %s153
      %p155 = scmp.eq.s32.totalorder %s26, 0
      %p156 = por %p154, %p155
      %p157 = scmp.le.s32.totalorder 1, %s20
      %p158 = scmp.lt.s32.totalorder %s20, 5
      %p159 = pnand %p157, %p158
      %p160 = pneg %p159
      // Predicated region
      $region9: #{upsample_conv_layer_3d.1} parent=5 // pred_check
        _
      $region10: #{upsample_conv_layer_3d.1} parent=5 // pred_check_branch
        %162 = sbr.rel (%p159) target = $region12
      $region11: #{upsample_conv_layer_3d.1} parent=5 // pred_region
        %s163 = ssub.s32 %s20, 1
        // Predicated region
        $region13: #{upsample_conv_layer_3d.1} parent=11 // pred_check
          %p164 = pneg %p79
        $region14: #{upsample_conv_layer_3d.1} parent=11 // pred_check_branch
          %166 = sbr.rel (%p164) target = $region16
        $region15: #{upsample_conv_layer_3d.1} parent=11 // pred_region
          %168 = vsyncadd [#allocation6], 0
          %s169 = sshll.u32 %s2, 4
          %s170 = int_to_ptr.hbm [resolvable:$true] %s169
          %s171 = sshll.u32 [#allocation5], 4
          %s172 = int_to_ptr.vmem [resolvable:$true] %s171
          %177 = dma.hbm_to_vmem [thread:$0]  %s170, 18432, %s172, [#allocation6], 2304, 2304, 144
        $region16: #{upsample_conv_layer_3d.1} parent=11 // pred_fallthru
          _
        // Predicated region
        $region17: #{upsample_conv_layer_3d.1} parent=11 // pred_check
          %p178 = pneg %p100
        $region18: #{upsample_conv_layer_3d.1} parent=11 // pred_check_branch
          %180 = sbr.rel (%p178) target = $region20
        $region19: #{upsample_conv_layer_3d.1} parent=11 // pred_region
          _
        $region20: #{upsample_conv_layer_3d.1} parent=11 // pred_fallthru
          _
        // Predicated region
        $region21: #{upsample_conv_layer_3d.1} parent=11 // pred_check
          %p181 = pneg %p121
        $region22: #{upsample_conv_layer_3d.1} parent=11 // pred_check_branch
          %183 = sbr.rel (%p181) target = $region24
        $region23: #{upsample_conv_layer_3d.1} parent=11 // pred_region
          _
        $region24: #{upsample_conv_layer_3d.1} parent=11 // pred_fallthru
          _
      $region12: #{upsample_conv_layer_3d.1} parent=5 // pred_fallthru
        _
      %p184 = scmp.lt.s32.totalorder %s20, 4
      // Predicated region
      $region25: #{upsample_conv_layer_3d.1} parent=5 // pred_check
        %p185 = pneg %p184
      $region26: #{upsample_conv_layer_3d.1} parent=5 // pred_check_branch
        %187 = sbr.rel (%p185) target = $region28
      $region27: #{upsample_conv_layer_3d.1} parent=5 // pred_region
        // Predicated region
        $region29: #{upsample_conv_layer_3d.1} parent=27 // pred_check
          %p188 = pneg %p52
        $region30: #{upsample_conv_layer_3d.1} parent=27 // pred_check_branch
          %190 = sbr.rel (%p188) target = $region32
        $region31: #{upsample_conv_layer_3d.1} parent=27 // pred_region
          %p191 = scmp.lt.s32.totalorder %s27, 1
          %s192 = scalar_select %p191, %s27, 1
          %s193 = smul.addr %s192, 8
          %s194 = smul.addr %s193, 4
          %s195 = scalar_lea.vmem %s1, %s194
        $region32: #{upsample_conv_layer_3d.1} parent=27 // pred_fallthru
          _
      $region28: #{upsample_conv_layer_3d.1} parent=5 // pred_fallthru
        _
      %p196 = scmp.le.s32.totalorder 1, %s20
      %p197 = scmp.lt.s32.totalorder %s20, 5
      %p198 = pnand %p196, %p197
      %p199 = pneg %p198
      // Predicated region
      $region33: #{upsample_conv_layer_3d.1} parent=5 // pred_check
        _
      $region34: #{upsample_conv_layer_3d.1} parent=5 // pred_check_branch
        %201 = sbr.rel (%p198) target = $region36
      $region35: #{upsample_conv_layer_3d.1} parent=5 // pred_region
        %s202 = ssub.s32 %s20, 1
        // Predicated region
        $region37: #{upsample_conv_layer_3d.1} parent=35 // pred_check
          %p203 = pneg %p79
        $region38: #{upsample_conv_layer_3d.1} parent=35 // pred_check_branch
          %205 = sbr.rel (%p203) target = $region40
        $region39: #{upsample_conv_layer_3d.1} parent=35 // pred_region
          %207 = dma.done [#allocation6], 18432
        $region40: #{upsample_conv_layer_3d.1} parent=35 // pred_fallthru
          _
        %p208 = scmp.lt.s32.totalorder %s29, 1
        %s209 = scalar_select %p208, %s29, 1
        %s210 = smul.addr %s209, 8
        %s211 = smul.addr %s210, 4
        %s212 = scalar_lea.vmem %s1, %s211
        %p213 = pneg %p58
        %p214 = pneg %p55
        %p215 = pneg %p79
        %p216 = pneg %p76
        %p217 = pneg %p100
        %p218 = pneg %p97
        %p219 = pneg %p121
        %p220 = pneg %p118
        %p221 = pneg %p149
        %p222 = pneg %p146
        %s223 = smul.u32 16, %s30
        %p224 = scmp.lt.s32.totalorder %s29, 1
        %s225 = scalar_select %p224, %s29, 1
        %p226 = scmp.lt.s32.totalorder %s223, 31
        %s227 = scalar_select %p226, %s223, 31
        %s228 = smul.addr %s225, 32
        %s229 = sadd.s32 %s227, %s228
        %s230 = smul.addr %s229, 8
        %s231 = scalar_lea.vmem %s5, %s230
        %p232 = scmp.lt.s32.totalorder %s29, 1
        %s233 = scalar_select %p232, %s29, 1
        %s234 = smul.addr %s233, 8
        %s235 = smul.addr %s234, 4
        %s236 = scalar_lea.vmem %s1, %s235
        %s237 = smul.u32 16, %s30
        %p238 = scmp.lt.s32.totalorder %s29, 1
        %s239 = scalar_select %p238, %s29, 1
        %p240 = scmp.lt.s32.totalorder %s237, 31
        %s241 = scalar_select %p240, %s237, 31
        %s242 = smul.addr %s239, 32
        %s243 = sadd.s32 %s241, %s242
        %s244 = smul.addr %s243, 8
        %s245 = scalar_lea.vmem %s5, %s244
        %s246 = smul.u32 16, %s30
        %s247 = smul.u32 %s30, 8
        %v248 = vld [vmem:[#allocation5] sm:$0xff]
        %v249 = vld [vmem:[#allocation5 + $0x8] sm:$0xff]
        %v250 = vld [vmem:[#allocation5 + $0x10] sm:$0xff]
        %v251 = vld [vmem:[#allocation5 + $0x18] sm:$0xff]
        %v252 = vld [vmem:[#allocation5 + $0x20] sm:$0xff]
        %v253 = vld [vmem:[#allocation5 + $0x28] sm:$0xff]
        %v254 = vld [vmem:[#allocation5 + $0x30] sm:$0xff]
        %v255 = vld [vmem:[#allocation5 + $0x38] sm:$0xff]
        %v256 = vld [vmem:[#allocation5 + $0x40] sm:$0xff]
        %v257 = vld [vmem:[#allocation5 + $0x48] sm:$0xff]
        %v258 = vld [vmem:[#allocation5 + $0x50] sm:$0xff]
        %v259 = vld [vmem:[#allocation5 + $0x58] sm:$0xff]
        %v260 = vld [vmem:[#allocation5 + $0x60] sm:$0xff]
        %v261 = vld [vmem:[#allocation5 + $0x68] sm:$0xff]
        %v262 = vld [vmem:[#allocation5 + $0x70] sm:$0xff]
        %v263 = vld [vmem:[#allocation5 + $0x78] sm:$0xff]
        %v264 = vld [vmem:[#allocation5 + $0x80] sm:$0xff]
        %v265 = vld [vmem:[#allocation5 + $0x88] sm:$0xff]
        %v266 = vld [vmem:[#allocation5 + $0x90] sm:$0xff]
        %v267 = vld [vmem:[#allocation5 + $0x98] sm:$0xff]
        %v268 = vld [vmem:[#allocation5 + $0xa0] sm:$0xff]
        %v269 = vld [vmem:[#allocation5 + $0xa8] sm:$0xff]
        %v270 = vld [vmem:[#allocation5 + $0xb0] sm:$0xff]
        %v271 = vld [vmem:[#allocation5 + $0xb8] sm:$0xff]
        %v272 = vld [vmem:[#allocation5 + $0xc0] sm:$0xff]
        %v273 = vld [vmem:[#allocation5 + $0xc8] sm:$0xff]
        %v274 = vld [vmem:[#allocation5 + $0xd0] sm:$0xff]
        %v275 = vld [vmem:[#allocation5 + $0xd8] sm:$0xff]
        %v276 = vld [vmem:[#allocation5 + $0xe0] sm:$0xff]
        %v277 = vld [vmem:[#allocation5 + $0xe8] sm:$0xff]
        %v278 = vld [vmem:[#allocation5 + $0xf0] sm:$0xff]
        %v279 = vld [vmem:[#allocation5 + $0xf8] sm:$0xff]
        %v280 = vld [vmem:[#allocation5 + $0x100] sm:$0xff]
        %v281 = vld [vmem:[#allocation5 + $0x108] sm:$0xff]
        %v282 = vld [vmem:[#allocation5 + $0x110] sm:$0xff]
        %v283 = vld [vmem:[#allocation5 + $0x118] sm:$0xff]
        %v284 = vld [vmem:[#allocation5 + $0x120] sm:$0xff]
        %v285 = vld [vmem:[#allocation5 + $0x128] sm:$0xff]
        %v286 = vld [vmem:[#allocation5 + $0x130] sm:$0xff]
        %v287 = vld [vmem:[#allocation5 + $0x138] sm:$0xff]
        %v288 = vld [vmem:[#allocation5 + $0x140] sm:$0xff]
        %v289 = vld [vmem:[#allocation5 + $0x148] sm:$0xff]
        %v290 = vld [vmem:[#allocation5 + $0x150] sm:$0xff]
        %v291 = vld [vmem:[#allocation5 + $0x158] sm:$0xff]
        %v292 = vld [vmem:[#allocation5 + $0x160] sm:$0xff]
        %v293 = vld [vmem:[#allocation5 + $0x168] sm:$0xff]
        %v294 = vld [vmem:[#allocation5 + $0x170] sm:$0xff]
        %v295 = vld [vmem:[#allocation5 + $0x178] sm:$0xff]
        %v296 = vld [vmem:[#allocation5 + $0x180] sm:$0xff]
        %v297 = vld [vmem:[#allocation5 + $0x188] sm:$0xff]
        %v298 = vld [vmem:[#allocation5 + $0x190] sm:$0xff]
        %v299 = vld [vmem:[#allocation5 + $0x198] sm:$0xff]
        %v300 = vld [vmem:[#allocation5 + $0x1a0] sm:$0xff]
        %v301 = vld [vmem:[#allocation5 + $0x1a8] sm:$0xff]
        %v302 = vld [vmem:[#allocation5 + $0x1b0] sm:$0xff]
        %v303 = vld [vmem:[#allocation5 + $0x1b8] sm:$0xff]
        %v304 = vld [vmem:[#allocation5 + $0x1c0] sm:$0xff]
        %v305 = vld [vmem:[#allocation5 + $0x1c8] sm:$0xff]
        %v306 = vld [vmem:[#allocation5 + $0x1d0] sm:$0xff]
        %v307 = vld [vmem:[#allocation5 + $0x1d8] sm:$0xff]
        %v308 = vld [vmem:[#allocation5 + $0x1e0] sm:$0xff]
        %v309 = vld [vmem:[#allocation5 + $0x1e8] sm:$0xff]
        %v310 = vld [vmem:[#allocation5 + $0x1f0] sm:$0xff]
        %v311 = vld [vmem:[#allocation5 + $0x1f8] sm:$0xff]
        %v312 = vld [vmem:[#allocation5 + $0x200] sm:$0xff]
        %v313 = vld [vmem:[#allocation5 + $0x208] sm:$0xff]
        %v314 = vld [vmem:[#allocation5 + $0x210] sm:$0xff]
        %v315 = vld [vmem:[#allocation5 + $0x218] sm:$0xff]
        %v316 = vld [vmem:[#allocation5 + $0x220] sm:$0xff]
        %v317 = vld [vmem:[#allocation5 + $0x228] sm:$0xff]
        %v318 = vld [vmem:[#allocation5 + $0x230] sm:$0xff]
        %v319 = vld [vmem:[#allocation5 + $0x238] sm:$0xff]
        %v320 = vld [vmem:[#allocation5 + $0x240] sm:$0xff]
        %v321 = vld [vmem:[#allocation5 + $0x248] sm:$0xff]
        %v322 = vld [vmem:[#allocation5 + $0x250] sm:$0xff]
        %v323 = vld [vmem:[#allocation5 + $0x258] sm:$0xff]
        %v324 = vld [vmem:[#allocation5 + $0x260] sm:$0xff]
        %v325 = vld [vmem:[#allocation5 + $0x268] sm:$0xff]
        %v326 = vld [vmem:[#allocation5 + $0x270] sm:$0xff]
        %v327 = vld [vmem:[#allocation5 + $0x278] sm:$0xff]
        %v328 = vld [vmem:[#allocation5 + $0x280] sm:$0xff]
        %v329 = vld [vmem:[#allocation5 + $0x288] sm:$0xff]
        %v330 = vld [vmem:[#allocation5 + $0x290] sm:$0xff]
        %v331 = vld [vmem:[#allocation5 + $0x298] sm:$0xff]
        %v332 = vld [vmem:[#allocation5 + $0x2a0] sm:$0xff]
        %v333 = vld [vmem:[#allocation5 + $0x2a8] sm:$0xff]
        %v334 = vld [vmem:[#allocation5 + $0x2b0] sm:$0xff]
        %v335 = vld [vmem:[#allocation5 + $0x2b8] sm:$0xff]
        %v336 = vld [vmem:[#allocation5 + $0x2c0] sm:$0xff]
        %v337 = vld [vmem:[#allocation5 + $0x2c8] sm:$0xff]
        %v338 = vld [vmem:[#allocation5 + $0x2d0] sm:$0xff]
        %v339 = vld [vmem:[#allocation5 + $0x2d8] sm:$0xff]
        %v340 = vld [vmem:[#allocation5 + $0x2e0] sm:$0xff]
        %v341 = vld [vmem:[#allocation5 + $0x2e8] sm:$0xff]
        %v342 = vld [vmem:[#allocation5 + $0x2f0] sm:$0xff]
        %v343 = vld [vmem:[#allocation5 + $0x2f8] sm:$0xff]
        %v344 = vld [vmem:[#allocation5 + $0x300] sm:$0xff]
        %v345 = vld [vmem:[#allocation5 + $0x308] sm:$0xff]
        %v346 = vld [vmem:[#allocation5 + $0x310] sm:$0xff]
        %v347 = vld [vmem:[#allocation5 + $0x318] sm:$0xff]
        %v348 = vld [vmem:[#allocation5 + $0x320] sm:$0xff]
        %v349 = vld [vmem:[#allocation5 + $0x328] sm:$0xff]
        %v350 = vld [vmem:[#allocation5 + $0x330] sm:$0xff]
        %v351 = vld [vmem:[#allocation5 + $0x338] sm:$0xff]
        %v352 = vld [vmem:[#allocation5 + $0x340] sm:$0xff]
        %v353 = vld [vmem:[#allocation5 + $0x348] sm:$0xff]
        %v354 = vld [vmem:[#allocation5 + $0x350] sm:$0xff]
        %v355 = vld [vmem:[#allocation5 + $0x358] sm:$0xff]
        %v356 = vld [vmem:[#allocation5 + $0x360] sm:$0xff]
        %v357 = vld [vmem:[#allocation5 + $0x368] sm:$0xff]
        %v358 = vld [vmem:[#allocation5 + $0x370] sm:$0xff]
        %v359 = vld [vmem:[#allocation5 + $0x378] sm:$0xff]
        %v360 = vld [vmem:[#allocation5 + $0x380] sm:$0xff]
        %v361 = vld [vmem:[#allocation5 + $0x388] sm:$0xff]
        %v362 = vld [vmem:[#allocation5 + $0x390] sm:$0xff]
        %v363 = vld [vmem:[#allocation5 + $0x398] sm:$0xff]
        %v364 = vld [vmem:[#allocation5 + $0x3a0] sm:$0xff]
        %v365 = vld [vmem:[#allocation5 + $0x3a8] sm:$0xff]
        %v366 = vld [vmem:[#allocation5 + $0x3b0] sm:$0xff]
        %v367 = vld [vmem:[#allocation5 + $0x3b8] sm:$0xff]
        %v368 = vld [vmem:[#allocation5 + $0x3c0] sm:$0xff]
        %v369 = vld [vmem:[#allocation5 + $0x3c8] sm:$0xff]
        %v370 = vld [vmem:[#allocation5 + $0x3d0] sm:$0xff]
        %v371 = vld [vmem:[#allocation5 + $0x3d8] sm:$0xff]
        %v372 = vld [vmem:[#allocation5 + $0x3e0] sm:$0xff]
        %v373 = vld [vmem:[#allocation5 + $0x3e8] sm:$0xff]
        %v374 = vld [vmem:[#allocation5 + $0x3f0] sm:$0xff]
        %v375 = vld [vmem:[#allocation5 + $0x3f8] sm:$0xff]
        %v376 = vld [vmem:[#allocation5 + $0x400] sm:$0xff]
        %v377 = vld [vmem:[#allocation5 + $0x408] sm:$0xff]
        %v378 = vld [vmem:[#allocation5 + $0x410] sm:$0xff]
        %v379 = vld [vmem:[#allocation5 + $0x418] sm:$0xff]
        %v380 = vld [vmem:[#allocation5 + $0x420] sm:$0xff]
        %v381 = vld [vmem:[#allocation5 + $0x428] sm:$0xff]
        %v382 = vld [vmem:[#allocation5 + $0x430] sm:$0xff]
        %v383 = vld [vmem:[#allocation5 + $0x438] sm:$0xff]
        %v384 = vld [vmem:[#allocation5 + $0x440] sm:$0xff]
        %v385 = vld [vmem:[#allocation5 + $0x448] sm:$0xff]
        %v386 = vld [vmem:[#allocation5 + $0x450] sm:$0xff]
        %v387 = vld [vmem:[#allocation5 + $0x458] sm:$0xff]
        %v388 = vld [vmem:[#allocation5 + $0x460] sm:$0xff]
        %v389 = vld [vmem:[#allocation5 + $0x468] sm:$0xff]
        %v390 = vld [vmem:[#allocation5 + $0x470] sm:$0xff]
        %v391 = vld [vmem:[#allocation5 + $0x478] sm:$0xff]
        %s392 = sld [smem:[#allocation4 + %s247]]
        %s393 = smul.u32 %s392, 4
        %s394 = scalar_lea.vmem %s236, %s393
        %v395 = vld [vmem:[%s394] sm:$0xf]
        %vm396 = vcmask 523264
        %v398 = vsel %vm396, %v395, 0
        %400 = vmatpush.msra.mxu0 0.0
        %401 = vmatpush.msra.mxu0 0.0
        %402 = vmatpush.msra.mxu0 0.0
        %403 = vmatpush.msra.mxu0 0.0
        %404 = vmatpush.msra.mxu0 0.0
        %405 = vmatpush.msra.mxu0 0.0
        %406 = vmatpush.msra.mxu0 0.0
        %407 = vmatpush.msra.mxu0 0.0
        %408 = vmatpush.msra.mxu0 %v374
        %409 = vmatpush.msra.mxu0 %v356
        %410 = vmatpush.msra.mxu0 %v338
        %411 = vmatpush.msra.mxu0 %v320
        %412 = vmatpush.msra.mxu0 %v302
        %413 = vmatpush.msra.mxu0 %v284
        %414 = vmatpush.msra.mxu0 %v266
        %415 = vmatpush.msra.mxu0 %v248
        %416 = vmatmul.f32.gmra.mxu0 %v398
        %v417 = vpop.f32.mrf.mxu0
        %v418 = vadd.f32 0.0, %v417
        %419 = vdwg.mxu0
        %420 = vmatpush.msra.mxu0 0.0
        %421 = vmatpush.msra.mxu0 0.0
        %422 = vmatpush.msra.mxu0 0.0
        %423 = vmatpush.msra.mxu0 0.0
        %424 = vmatpush.msra.mxu0 0.0
        %425 = vmatpush.msra.mxu0 0.0
        %426 = vmatpush.msra.mxu0 0.0
        %427 = vmatpush.msra.mxu0 0.0
        %428 = vmatpush.msra.mxu0 %v375
        %429 = vmatpush.msra.mxu0 %v357
        %430 = vmatpush.msra.mxu0 %v339
        %431 = vmatpush.msra.mxu0 %v321
        %432 = vmatpush.msra.mxu0 %v303
        %433 = vmatpush.msra.mxu0 %v285
        %434 = vmatpush.msra.mxu0 %v267
        %435 = vmatpush.msra.mxu0 %v249
        %436 = vmatmul.f32.gmra.mxu0 %v398
        %v437 = vpop.f32.mrf.mxu0
        %v438 = vadd.f32 0.0, %v437
        %439 = vdwg.mxu0
        %440 = vmatpush.msra.mxu0 0.0
        %441 = vmatpush.msra.mxu0 0.0
        %442 = vmatpush.msra.mxu0 0.0
        %443 = vmatpush.msra.mxu0 0.0
        %444 = vmatpush.msra.mxu0 0.0
        %445 = vmatpush.msra.mxu0 0.0
        %446 = vmatpush.msra.mxu0 0.0
        %447 = vmatpush.msra.mxu0 0.0
        %448 = vmatpush.msra.mxu0 %v376
        %449 = vmatpush.msra.mxu0 %v358
        %450 = vmatpush.msra.mxu0 %v340
        %451 = vmatpush.msra.mxu0 %v322
        %452 = vmatpush.msra.mxu0 %v304
        %453 = vmatpush.msra.mxu0 %v286
        %454 = vmatpush.msra.mxu0 %v268
        %455 = vmatpush.msra.mxu0 %v250
        %456 = vmatmul.f32.gmra.mxu0 %v398
        %v457 = vpop.f32.mrf.mxu0
        %v458 = vadd.f32 0.0, %v457
        %459 = vdwg.mxu0
        %460 = vmatpush.msra.mxu0 0.0
        %461 = vmatpush.msra.mxu0 0.0
        %462 = vmatpush.msra.mxu0 0.0
        %463 = vmatpush.msra.mxu0 0.0
        %464 = vmatpush.msra.mxu0 0.0
        %465 = vmatpush.msra.mxu0 0.0
        %466 = vmatpush.msra.mxu0 0.0
        %467 = vmatpush.msra.mxu0 0.0
        %468 = vmatpush.msra.mxu0 %v377
        %469 = vmatpush.msra.mxu0 %v359
        %470 = vmatpush.msra.mxu0 %v341
        %471 = vmatpush.msra.mxu0 %v323
        %472 = vmatpush.msra.mxu0 %v305
        %473 = vmatpush.msra.mxu0 %v287
        %474 = vmatpush.msra.mxu0 %v269
        %475 = vmatpush.msra.mxu0 %v251
        %476 = vmatmul.f32.gmra.mxu0 %v398
        %v477 = vpop.f32.mrf.mxu0
        %v478 = vadd.f32 0.0, %v477
        %479 = vdwg.mxu0
        %480 = vmatpush.msra.mxu0 0.0
        %481 = vmatpush.msra.mxu0 0.0
        %482 = vmatpush.msra.mxu0 0.0
        %483 = vmatpush.msra.mxu0 0.0
        %484 = vmatpush.msra.mxu0 0.0
        %485 = vmatpush.msra.mxu0 0.0
        %486 = vmatpush.msra.mxu0 0.0
        %487 = vmatpush.msra.mxu0 0.0
        %488 = vmatpush.msra.mxu0 %v378
        %489 = vmatpush.msra.mxu0 %v360
        %490 = vmatpush.msra.mxu0 %v342
        %491 = vmatpush.msra.mxu0 %v324
        %492 = vmatpush.msra.mxu0 %v306
        %493 = vmatpush.msra.mxu0 %v288
        %494 = vmatpush.msra.mxu0 %v270
        %495 = vmatpush.msra.mxu0 %v252
        %496 = vmatmul.f32.gmra.mxu0 %v398
        %v497 = vpop.f32.mrf.mxu0
        %v498 = vadd.f32 0.0, %v497
        %499 = vdwg.mxu0
        %500 = vmatpush.msra.mxu0 0.0
        %501 = vmatpush.msra.mxu0 0.0
        %502 = vmatpush.msra.mxu0 0.0
        %503 = vmatpush.msra.mxu0 0.0
        %504 = vmatpush.msra.mxu0 0.0
        %505 = vmatpush.msra.mxu0 0.0
        %506 = vmatpush.msra.mxu0 0.0
        %507 = vmatpush.msra.mxu0 0.0
        %508 = vmatpush.msra.mxu0 %v379
        %509 = vmatpush.msra.mxu0 %v361
        %510 = vmatpush.msra.mxu0 %v343
        %511 = vmatpush.msra.mxu0 %v325
        %512 = vmatpush.msra.mxu0 %v307
        %513 = vmatpush.msra.mxu0 %v289
        %514 = vmatpush.msra.mxu0 %v271
        %515 = vmatpush.msra.mxu0 %v253
        %516 = vmatmul.f32.gmra.mxu0 %v398
        %v517 = vpop.f32.mrf.mxu0
        %v518 = vadd.f32 0.0, %v517
        %519 = vdwg.mxu0
        %520 = vmatpush.msra.mxu0 0.0
        %521 = vmatpush.msra.mxu0 0.0
        %522 = vmatpush.msra.mxu0 0.0
        %523 = vmatpush.msra.mxu0 0.0
        %524 = vmatpush.msra.mxu0 0.0
        %525 = vmatpush.msra.mxu0 0.0
        %526 = vmatpush.msra.mxu0 0.0
        %527 = vmatpush.msra.mxu0 0.0
        %528 = vmatpush.msra.mxu0 %v380
        %529 = vmatpush.msra.mxu0 %v362
        %530 = vmatpush.msra.mxu0 %v344
        %531 = vmatpush.msra.mxu0 %v326
        %532 = vmatpush.msra.mxu0 %v308
        %533 = vmatpush.msra.mxu0 %v290
        %534 = vmatpush.msra.mxu0 %v272
        %535 = vmatpush.msra.mxu0 %v254
        %536 = vmatmul.f32.gmra.mxu0 %v398
        %v537 = vpop.f32.mrf.mxu0
        %v538 = vadd.f32 0.0, %v537
        %539 = vdwg.mxu0
        %540 = vmatpush.msra.mxu0 0.0
        %541 = vmatpush.msra.mxu0 0.0
        %542 = vmatpush.msra.mxu0 0.0
        %543 = vmatpush.msra.mxu0 0.0
        %544 = vmatpush.msra.mxu0 0.0
        %545 = vmatpush.msra.mxu0 0.0
        %546 = vmatpush.msra.mxu0 0.0
        %547 = vmatpush.msra.mxu0 0.0
        %548 = vmatpush.msra.mxu0 %v381
        %549 = vmatpush.msra.mxu0 %v363
        %550 = vmatpush.msra.mxu0 %v345
        %551 = vmatpush.msra.mxu0 %v327
        %552 = vmatpush.msra.mxu0 %v309
        %553 = vmatpush.msra.mxu0 %v291
        %554 = vmatpush.msra.mxu0 %v273
        %555 = vmatpush.msra.mxu0 %v255
        %556 = vmatmul.f32.gmra.mxu0 %v398
        %v557 = vpop.f32.mrf.mxu0
        %v558 = vadd.f32 0.0, %v557
        %559 = vdwg.mxu0
        %560 = vmatpush.msra.mxu0 0.0
        %561 = vmatpush.msra.mxu0 0.0
        %562 = vmatpush.msra.mxu0 0.0
        %563 = vmatpush.msra.mxu0 0.0
        %564 = vmatpush.msra.mxu0 0.0
        %565 = vmatpush.msra.mxu0 0.0
        %566 = vmatpush.msra.mxu0 0.0
        %567 = vmatpush.msra.mxu0 0.0
        %568 = vmatpush.msra.mxu0 %v382
        %569 = vmatpush.msra.mxu0 %v364
        %570 = vmatpush.msra.mxu0 %v346
        %571 = vmatpush.msra.mxu0 %v328
        %572 = vmatpush.msra.mxu0 %v310
        %573 = vmatpush.msra.mxu0 %v292
        %574 = vmatpush.msra.mxu0 %v274
        %575 = vmatpush.msra.mxu0 %v256
        %576 = vmatmul.f32.gmra.mxu0 %v398
        %v577 = vpop.f32.mrf.mxu0
        %v578 = vadd.f32 0.0, %v577
        %579 = vdwg.mxu0
        %580 = vmatpush.msra.mxu0 0.0
        %581 = vmatpush.msra.mxu0 0.0
        %582 = vmatpush.msra.mxu0 0.0
        %583 = vmatpush.msra.mxu0 0.0
        %584 = vmatpush.msra.mxu0 0.0
        %585 = vmatpush.msra.mxu0 0.0
        %586 = vmatpush.msra.mxu0 0.0
        %587 = vmatpush.msra.mxu0 0.0
        %588 = vmatpush.msra.mxu0 %v383
        %589 = vmatpush.msra.mxu0 %v365
        %590 = vmatpush.msra.mxu0 %v347
        %591 = vmatpush.msra.mxu0 %v329
        %592 = vmatpush.msra.mxu0 %v311
        %593 = vmatpush.msra.mxu0 %v293
        %594 = vmatpush.msra.mxu0 %v275
        %595 = vmatpush.msra.mxu0 %v257
        %596 = vmatmul.f32.gmra.mxu0 %v398
        %v597 = vpop.f32.mrf.mxu0
        %v598 = vadd.f32 0.0, %v597
        %599 = vdwg.mxu0
        %600 = vmatpush.msra.mxu0 0.0
        %601 = vmatpush.msra.mxu0 0.0
        %602 = vmatpush.msra.mxu0 0.0
        %603 = vmatpush.msra.mxu0 0.0
        %604 = vmatpush.msra.mxu0 0.0
        %605 = vmatpush.msra.mxu0 0.0
        %606 = vmatpush.msra.mxu0 0.0
        %607 = vmatpush.msra.mxu0 0.0
        %608 = vmatpush.msra.mxu0 %v384
        %609 = vmatpush.msra.mxu0 %v366
        %610 = vmatpush.msra.mxu0 %v348
        %611 = vmatpush.msra.mxu0 %v330
        %612 = vmatpush.msra.mxu0 %v312
        %613 = vmatpush.msra.mxu0 %v294
        %614 = vmatpush.msra.mxu0 %v276
        %615 = vmatpush.msra.mxu0 %v258
        %616 = vmatmul.f32.gmra.mxu0 %v398
        %v617 = vpop.f32.mrf.mxu0
        %v618 = vadd.f32 0.0, %v617
        %619 = vdwg.mxu0
        %620 = vmatpush.msra.mxu0 0.0
        %621 = vmatpush.msra.mxu0 0.0
        %622 = vmatpush.msra.mxu0 0.0
        %623 = vmatpush.msra.mxu0 0.0
        %624 = vmatpush.msra.mxu0 0.0
        %625 = vmatpush.msra.mxu0 0.0
        %626 = vmatpush.msra.mxu0 0.0
        %627 = vmatpush.msra.mxu0 0.0
        %628 = vmatpush.msra.mxu0 %v385
        %629 = vmatpush.msra.mxu0 %v367
        %630 = vmatpush.msra.mxu0 %v349
        %631 = vmatpush.msra.mxu0 %v331
        %632 = vmatpush.msra.mxu0 %v313
        %633 = vmatpush.msra.mxu0 %v295
        %634 = vmatpush.msra.mxu0 %v277
        %635 = vmatpush.msra.mxu0 %v259
        %636 = vmatmul.f32.gmra.mxu0 %v398
        %v637 = vpop.f32.mrf.mxu0
        %v638 = vadd.f32 0.0, %v637
        %639 = vdwg.mxu0
        %640 = vmatpush.msra.mxu0 0.0
        %641 = vmatpush.msra.mxu0 0.0
        %642 = vmatpush.msra.mxu0 0.0
        %643 = vmatpush.msra.mxu0 0.0
        %644 = vmatpush.msra.mxu0 0.0
        %645 = vmatpush.msra.mxu0 0.0
        %646 = vmatpush.msra.mxu0 0.0
        %647 = vmatpush.msra.mxu0 0.0
        %648 = vmatpush.msra.mxu0 %v386
        %649 = vmatpush.msra.mxu0 %v368
        %650 = vmatpush.msra.mxu0 %v350
        %651 = vmatpush.msra.mxu0 %v332
        %652 = vmatpush.msra.mxu0 %v314
        %653 = vmatpush.msra.mxu0 %v296
        %654 = vmatpush.msra.mxu0 %v278
        %655 = vmatpush.msra.mxu0 %v260
        %656 = vmatmul.f32.gmra.mxu0 %v398
        %v657 = vpop.f32.mrf.mxu0
        %v658 = vadd.f32 0.0, %v657
        %659 = vdwg.mxu0
        %660 = vmatpush.msra.mxu0 0.0
        %661 = vmatpush.msra.mxu0 0.0
        %662 = vmatpush.msra.mxu0 0.0
        %663 = vmatpush.msra.mxu0 0.0
        %664 = vmatpush.msra.mxu0 0.0
        %665 = vmatpush.msra.mxu0 0.0
        %666 = vmatpush.msra.mxu0 0.0
        %667 = vmatpush.msra.mxu0 0.0
        %668 = vmatpush.msra.mxu0 %v387
        %669 = vmatpush.msra.mxu0 %v369
        %670 = vmatpush.msra.mxu0 %v351
        %671 = vmatpush.msra.mxu0 %v333
        %672 = vmatpush.msra.mxu0 %v315
        %673 = vmatpush.msra.mxu0 %v297
        %674 = vmatpush.msra.mxu0 %v279
        %675 = vmatpush.msra.mxu0 %v261
        %676 = vmatmul.f32.gmra.mxu0 %v398
        %v677 = vpop.f32.mrf.mxu0
        %v678 = vadd.f32 0.0, %v677
        %679 = vdwg.mxu0
        %680 = vmatpush.msra.mxu0 0.0
        %681 = vmatpush.msra.mxu0 0.0
        %682 = vmatpush.msra.mxu0 0.0
        %683 = vmatpush.msra.mxu0 0.0
        %684 = vmatpush.msra.mxu0 0.0
        %685 = vmatpush.msra.mxu0 0.0
        %686 = vmatpush.msra.mxu0 0.0
        %687 = vmatpush.msra.mxu0 0.0
        %688 = vmatpush.msra.mxu0 %v388
        %689 = vmatpush.msra.mxu0 %v370
        %690 = vmatpush.msra.mxu0 %v352
        %691 = vmatpush.msra.mxu0 %v334
        %692 = vmatpush.msra.mxu0 %v316
        %693 = vmatpush.msra.mxu0 %v298
        %694 = vmatpush.msra.mxu0 %v280
        %695 = vmatpush.msra.mxu0 %v262
        %696 = vmatmul.f32.gmra.mxu0 %v398
        %v697 = vpop.f32.mrf.mxu0
        %v698 = vadd.f32 0.0, %v697
        %699 = vdwg.mxu0
        %700 = vmatpush.msra.mxu0 0.0
        %701 = vmatpush.msra.mxu0 0.0
        %702 = vmatpush.msra.mxu0 0.0
        %703 = vmatpush.msra.mxu0 0.0
        %704 = vmatpush.msra.mxu0 0.0
        %705 = vmatpush.msra.mxu0 0.0
        %706 = vmatpush.msra.mxu0 0.0
        %707 = vmatpush.msra.mxu0 0.0
        %708 = vmatpush.msra.mxu0 %v389
        %709 = vmatpush.msra.mxu0 %v371
        %710 = vmatpush.msra.mxu0 %v353
        %711 = vmatpush.msra.mxu0 %v335
        %712 = vmatpush.msra.mxu0 %v317
        %713 = vmatpush.msra.mxu0 %v299
        %714 = vmatpush.msra.mxu0 %v281
        %715 = vmatpush.msra.mxu0 %v263
        %716 = vmatmul.f32.gmra.mxu0 %v398
        %v717 = vpop.f32.mrf.mxu0
        %v718 = vadd.f32 0.0, %v717
        %719 = vdwg.mxu0
        %720 = vmatpush.msra.mxu0 0.0
        %721 = vmatpush.msra.mxu0 0.0
        %722 = vmatpush.msra.mxu0 0.0
        %723 = vmatpush.msra.mxu0 0.0
        %724 = vmatpush.msra.mxu0 0.0
        %725 = vmatpush.msra.mxu0 0.0
        %726 = vmatpush.msra.mxu0 0.0
        %727 = vmatpush.msra.mxu0 0.0
        %728 = vmatpush.msra.mxu0 %v390
        %729 = vmatpush.msra.mxu0 %v372
        %730 = vmatpush.msra.mxu0 %v354
        %731 = vmatpush.msra.mxu0 %v336
        %732 = vmatpush.msra.mxu0 %v318
        %733 = vmatpush.msra.mxu0 %v300
        %734 = vmatpush.msra.mxu0 %v282
        %735 = vmatpush.msra.mxu0 %v264
        %736 = vmatmul.f32.gmra.mxu0 %v398
        %v737 = vpop.f32.mrf.mxu0
        %v738 = vadd.f32 0.0, %v737
        %739 = vdwg.mxu0
        %740 = vmatpush.msra.mxu0 0.0
        %741 = vmatpush.msra.mxu0 0.0
        %742 = vmatpush.msra.mxu0 0.0
        %743 = vmatpush.msra.mxu0 0.0
        %744 = vmatpush.msra.mxu0 0.0
        %745 = vmatpush.msra.mxu0 0.0
        %746 = vmatpush.msra.mxu0 0.0
        %747 = vmatpush.msra.mxu0 0.0
        %748 = vmatpush.msra.mxu0 %v391
        %749 = vmatpush.msra.mxu0 %v373
        %750 = vmatpush.msra.mxu0 %v355
        %751 = vmatpush.msra.mxu0 %v337
        %752 = vmatpush.msra.mxu0 %v319
        %753 = vmatpush.msra.mxu0 %v301
        %754 = vmatpush.msra.mxu0 %v283
        %755 = vmatpush.msra.mxu0 %v265
        %756 = vmatmul.f32.gmra.mxu0 %v398
        %v757 = vpop.f32.mrf.mxu0
        %v758 = vadd.f32 0.0, %v757
        %759 = vdwg.mxu0
        %v778 = vrot.slane %v438, 4
        %v779 = vrot.slane %v478, 4
        %v780 = vrot.slane %v518, 4
        %v781 = vrot.slane %v558, 4
        %v782 = vrot.slane %v598, 4
        %v783 = vrot.slane %v638, 4
        %v784 = vrot.slane %v678, 4
        %v785 = vrot.slane %v718, 4
        %v786 = vrot.slane %v758, 4
        %vm787 = vcmask 1043456
        %v788 = vsel %vm787, %v418, %v778
        %v789 = vsel %vm787, %v458, %v779
        %v790 = vsel %vm787, %v498, %v780
        %v791 = vsel %vm787, %v538, %v781
        %v792 = vsel %vm787, %v578, %v782
        %v793 = vsel %vm787, %v618, %v783
        %v794 = vsel %vm787, %v658, %v784
        %v795 = vsel %vm787, %v698, %v785
        %v796 = vsel %vm787, %v738, %v786
        %806 = vst [vmem:[#allocation2] sm:$0xff] %v788
        %807 = vst [vmem:[#allocation2 + $0x8] sm:$0xff] %v789
        %808 = vst [vmem:[#allocation2 + $0x10] sm:$0xff] %v790
        %809 = vst [vmem:[#allocation2 + $0x18] sm:$0xff] %v791
        %810 = vst [vmem:[#allocation2 + $0x20] sm:$0xff] %v792
        %811 = vst [vmem:[#allocation2 + $0x28] sm:$0xff] %v793
        %812 = vst [vmem:[#allocation2 + $0x30] sm:$0xff] %v794
        %813 = vst [vmem:[#allocation2 + $0x38] sm:$0xff] %v795
        %814 = vst [vmem:[#allocation2 + $0x40] sm:$0xff] %v796
        %s815 = sadd.s32 %s247, 1
        %s816 = sld [smem:[#allocation4 + %s815]]
        %s817 = smul.u32 %s816, 4
        %s818 = scalar_lea.vmem %s236, %s817
        %v819 = vld [vmem:[%s818] sm:$0xf]
        %v821 = vsel %vm396, %v819, 0
        %823 = vmatpush.msra.mxu0 0.0
        %824 = vmatpush.msra.mxu0 0.0
        %825 = vmatpush.msra.mxu0 0.0
        %826 = vmatpush.msra.mxu0 0.0
        %827 = vmatpush.msra.mxu0 0.0
        %828 = vmatpush.msra.mxu0 0.0
        %829 = vmatpush.msra.mxu0 0.0
        %830 = vmatpush.msra.mxu0 0.0
        %831 = vmatpush.msra.mxu0 %v374
        %832 = vmatpush.msra.mxu0 %v356
        %833 = vmatpush.msra.mxu0 %v338
        %834 = vmatpush.msra.mxu0 %v320
        %835 = vmatpush.msra.mxu0 %v302
        %836 = vmatpush.msra.mxu0 %v284
        %837 = vmatpush.msra.mxu0 %v266
        %838 = vmatpush.msra.mxu0 %v248
        %839 = vmatmul.f32.gmra.mxu0 %v821
        %v840 = vpop.f32.mrf.mxu0
        %v841 = vadd.f32 0.0, %v840
        %842 = vdwg.mxu0
        %843 = vmatpush.msra.mxu0 0.0
        %844 = vmatpush.msra.mxu0 0.0
        %845 = vmatpush.msra.mxu0 0.0
        %846 = vmatpush.msra.mxu0 0.0
        %847 = vmatpush.msra.mxu0 0.0
        %848 = vmatpush.msra.mxu0 0.0
        %849 = vmatpush.msra.mxu0 0.0
        %850 = vmatpush.msra.mxu0 0.0
        %851 = vmatpush.msra.mxu0 %v375
        %852 = vmatpush.msra.mxu0 %v357
        %853 = vmatpush.msra.mxu0 %v339
        %854 = vmatpush.msra.mxu0 %v321
        %855 = vmatpush.msra.mxu0 %v303
        %856 = vmatpush.msra.mxu0 %v285
        %857 = vmatpush.msra.mxu0 %v267
        %858 = vmatpush.msra.mxu0 %v249
        %859 = vmatmul.f32.gmra.mxu0 %v821
        %v860 = vpop.f32.mrf.mxu0
        %v861 = vadd.f32 0.0, %v860
        %862 = vdwg.mxu0
        %863 = vmatpush.msra.mxu0 0.0
        %864 = vmatpush.msra.mxu0 0.0
        %865 = vmatpush.msra.mxu0 0.0
        %866 = vmatpush.msra.mxu0 0.0
        %867 = vmatpush.msra.mxu0 0.0
        %868 = vmatpush.msra.mxu0 0.0
        %869 = vmatpush.msra.mxu0 0.0
        %870 = vmatpush.msra.mxu0 0.0
        %871 = vmatpush.msra.mxu0 %v376
        %872 = vmatpush.msra.mxu0 %v358
        %873 = vmatpush.msra.mxu0 %v340
        %874 = vmatpush.msra.mxu0 %v322
        %875 = vmatpush.msra.mxu0 %v304
        %876 = vmatpush.msra.mxu0 %v286
        %877 = vmatpush.msra.mxu0 %v268
        %878 = vmatpush.msra.mxu0 %v250
        %879 = vmatmul.f32.gmra.mxu0 %v821
        %v880 = vpop.f32.mrf.mxu0
        %v881 = vadd.f32 0.0, %v880
        %882 = vdwg.mxu0
        %883 = vmatpush.msra.mxu0 0.0
        %884 = vmatpush.msra.mxu0 0.0
        %885 = vmatpush.msra.mxu0 0.0
        %886 = vmatpush.msra.mxu0 0.0
        %887 = vmatpush.msra.mxu0 0.0
        %888 = vmatpush.msra.mxu0 0.0
        %889 = vmatpush.msra.mxu0 0.0
        %890 = vmatpush.msra.mxu0 0.0
        %891 = vmatpush.msra.mxu0 %v377
        %892 = vmatpush.msra.mxu0 %v359
        %893 = vmatpush.msra.mxu0 %v341
        %894 = vmatpush.msra.mxu0 %v323
        %895 = vmatpush.msra.mxu0 %v305
        %896 = vmatpush.msra.mxu0 %v287
        %897 = vmatpush.msra.mxu0 %v269
        %898 = vmatpush.msra.mxu0 %v251
        %899 = vmatmul.f32.gmra.mxu0 %v821
        %v900 = vpop.f32.mrf.mxu0
        %v901 = vadd.f32 0.0, %v900
        %902 = vdwg.mxu0
        %903 = vmatpush.msra.mxu0 0.0
        %904 = vmatpush.msra.mxu0 0.0
        %905 = vmatpush.msra.mxu0 0.0
        %906 = vmatpush.msra.mxu0 0.0
        %907 = vmatpush.msra.mxu0 0.0
        %908 = vmatpush.msra.mxu0 0.0
        %909 = vmatpush.msra.mxu0 0.0
        %910 = vmatpush.msra.mxu0 0.0
        %911 = vmatpush.msra.mxu0 %v378
        %912 = vmatpush.msra.mxu0 %v360
        %913 = vmatpush.msra.mxu0 %v342
        %914 = vmatpush.msra.mxu0 %v324
        %915 = vmatpush.msra.mxu0 %v306
        %916 = vmatpush.msra.mxu0 %v288
        %917 = vmatpush.msra.mxu0 %v270
        %918 = vmatpush.msra.mxu0 %v252
        %919 = vmatmul.f32.gmra.mxu0 %v821
        %v920 = vpop.f32.mrf.mxu0
        %v921 = vadd.f32 0.0, %v920
        %922 = vdwg.mxu0
        %923 = vmatpush.msra.mxu0 0.0
        %924 = vmatpush.msra.mxu0 0.0
        %925 = vmatpush.msra.mxu0 0.0
        %926 = vmatpush.msra.mxu0 0.0
        %927 = vmatpush.msra.mxu0 0.0
        %928 = vmatpush.msra.mxu0 0.0
        %929 = vmatpush.msra.mxu0 0.0
        %930 = vmatpush.msra.mxu0 0.0
        %931 = vmatpush.msra.mxu0 %v379
        %932 = vmatpush.msra.mxu0 %v361
        %933 = vmatpush.msra.mxu0 %v343
        %934 = vmatpush.msra.mxu0 %v325
        %935 = vmatpush.msra.mxu0 %v307
        %936 = vmatpush.msra.mxu0 %v289
        %937 = vmatpush.msra.mxu0 %v271
        %938 = vmatpush.msra.mxu0 %v253
        %939 = vmatmul.f32.gmra.mxu0 %v821
        %v940 = vpop.f32.mrf.mxu0
        %v941 = vadd.f32 0.0, %v940
        %942 = vdwg.mxu0
        %943 = vmatpush.msra.mxu0 0.0
        %944 = vmatpush.msra.mxu0 0.0
        %945 = vmatpush.msra.mxu0 0.0
        %946 = vmatpush.msra.mxu0 0.0
        %947 = vmatpush.msra.mxu0 0.0
        %948 = vmatpush.msra.mxu0 0.0
        %949 = vmatpush.msra.mxu0 0.0
        %950 = vmatpush.msra.mxu0 0.0
        %951 = vmatpush.msra.mxu0 %v380
        %952 = vmatpush.msra.mxu0 %v362
        %953 = vmatpush.msra.mxu0 %v344
        %954 = vmatpush.msra.mxu0 %v326
        %955 = vmatpush.msra.mxu0 %v308
        %956 = vmatpush.msra.mxu0 %v290
        %957 = vmatpush.msra.mxu0 %v272
        %958 = vmatpush.msra.mxu0 %v254
        %959 = vmatmul.f32.gmra.mxu0 %v821
        %v960 = vpop.f32.mrf.mxu0
        %v961 = vadd.f32 0.0, %v960
        %962 = vdwg.mxu0
        %963 = vmatpush.msra.mxu0 0.0
        %964 = vmatpush.msra.mxu0 0.0
        %965 = vmatpush.msra.mxu0 0.0
        %966 = vmatpush.msra.mxu0 0.0
        %967 = vmatpush.msra.mxu0 0.0
        %968 = vmatpush.msra.mxu0 0.0
        %969 = vmatpush.msra.mxu0 0.0
        %970 = vmatpush.msra.mxu0 0.0
        %971 = vmatpush.msra.mxu0 %v381
        %972 = vmatpush.msra.mxu0 %v363
        %973 = vmatpush.msra.mxu0 %v345
        %974 = vmatpush.msra.mxu0 %v327
        %975 = vmatpush.msra.mxu0 %v309
        %976 = vmatpush.msra.mxu0 %v291
        %977 = vmatpush.msra.mxu0 %v273
        %978 = vmatpush.msra.mxu0 %v255
        %979 = vmatmul.f32.gmra.mxu0 %v821
        %v980 = vpop.f32.mrf.mxu0
        %v981 = vadd.f32 0.0, %v980
        %982 = vdwg.mxu0
        %983 = vmatpush.msra.mxu0 0.0
        %984 = vmatpush.msra.mxu0 0.0
        %985 = vmatpush.msra.mxu0 0.0
        %986 = vmatpush.msra.mxu0 0.0
        %987 = vmatpush.msra.mxu0 0.0
        %988 = vmatpush.msra.mxu0 0.0
        %989 = vmatpush.msra.mxu0 0.0
        %990 = vmatpush.msra.mxu0 0.0
        %991 = vmatpush.msra.mxu0 %v382
        %992 = vmatpush.msra.mxu0 %v364
        %993 = vmatpush.msra.mxu0 %v346
        %994 = vmatpush.msra.mxu0 %v328
        %995 = vmatpush.msra.mxu0 %v310
        %996 = vmatpush.msra.mxu0 %v292
        %997 = vmatpush.msra.mxu0 %v274
        %998 = vmatpush.msra.mxu0 %v256
        %999 = vmatmul.f32.gmra.mxu0 %v821
        %v1000 = vpop.f32.mrf.mxu0
        %v1001 = vadd.f32 0.0, %v1000
        %1002 = vdwg.mxu0
        %1003 = vmatpush.msra.mxu0 0.0
        %1004 = vmatpush.msra.mxu0 0.0
        %1005 = vmatpush.msra.mxu0 0.0
        %1006 = vmatpush.msra.mxu0 0.0
        %1007 = vmatpush.msra.mxu0 0.0
        %1008 = vmatpush.msra.mxu0 0.0
        %1009 = vmatpush.msra.mxu0 0.0
        %1010 = vmatpush.msra.mxu0 0.0
        %1011 = vmatpush.msra.mxu0 %v383
        %1012 = vmatpush.msra.mxu0 %v365
        %1013 = vmatpush.msra.mxu0 %v347
        %1014 = vmatpush.msra.mxu0 %v329
        %1015 = vmatpush.msra.mxu0 %v311
        %1016 = vmatpush.msra.mxu0 %v293
        %1017 = vmatpush.msra.mxu0 %v275
        %1018 = vmatpush.msra.mxu0 %v257
        %1019 = vmatmul.f32.gmra.mxu0 %v821
        %v1020 = vpop.f32.mrf.mxu0
        %v1021 = vadd.f32 0.0, %v1020
        %1022 = vdwg.mxu0
        %1023 = vmatpush.msra.mxu0 0.0
        %1024 = vmatpush.msra.mxu0 0.0
        %1025 = vmatpush.msra.mxu0 0.0
        %1026 = vmatpush.msra.mxu0 0.0
        %1027 = vmatpush.msra.mxu0 0.0
        %1028 = vmatpush.msra.mxu0 0.0
        %1029 = vmatpush.msra.mxu0 0.0
        %1030 = vmatpush.msra.mxu0 0.0
        %1031 = vmatpush.msra.mxu0 %v384
        %1032 = vmatpush.msra.mxu0 %v366
        %1033 = vmatpush.msra.mxu0 %v348
        %1034 = vmatpush.msra.mxu0 %v330
        %1035 = vmatpush.msra.mxu0 %v312
        %1036 = vmatpush.msra.mxu0 %v294
        %1037 = vmatpush.msra.mxu0 %v276
        %1038 = vmatpush.msra.mxu0 %v258
        %1039 = vmatmul.f32.gmra.mxu0 %v821
        %v1040 = vpop.f32.mrf.mxu0
        %v1041 = vadd.f32 0.0, %v1040
        %1042 = vdwg.mxu0
        %1043 = vmatpush.msra.mxu0 0.0
        %1044 = vmatpush.msra.mxu0 0.0
        %1045 = vmatpush.msra.mxu0 0.0
        %1046 = vmatpush.msra.mxu0 0.0
        %1047 = vmatpush.msra.mxu0 0.0
        %1048 = vmatpush.msra.mxu0 0.0
        %1049 = vmatpush.msra.mxu0 0.0
        %1050 = vmatpush.msra.mxu0 0.0
        %1051 = vmatpush.msra.mxu0 %v385
        %1052 = vmatpush.msra.mxu0 %v367
        %1053 = vmatpush.msra.mxu0 %v349
        %1054 = vmatpush.msra.mxu0 %v331
        %1055 = vmatpush.msra.mxu0 %v313
        %1056 = vmatpush.msra.mxu0 %v295
        %1057 = vmatpush.msra.mxu0 %v277
        %1058 = vmatpush.msra.mxu0 %v259
        %1059 = vmatmul.f32.gmra.mxu0 %v821
        %v1060 = vpop.f32.mrf.mxu0
        %v1061 = vadd.f32 0.0, %v1060
        %1062 = vdwg.mxu0
        %1063 = vmatpush.msra.mxu0 0.0
        %1064 = vmatpush.msra.mxu0 0.0
        %1065 = vmatpush.msra.mxu0 0.0
        %1066 = vmatpush.msra.mxu0 0.0
        %1067 = vmatpush.msra.mxu0 0.0
        %1068 = vmatpush.msra.mxu0 0.0
        %1069 = vmatpush.msra.mxu0 0.0
        %1070 = vmatpush.msra.mxu0 0.0
        %1071 = vmatpush.msra.mxu0 %v386
        %1072 = vmatpush.msra.mxu0 %v368
        %1073 = vmatpush.msra.mxu0 %v350
        %1074 = vmatpush.msra.mxu0 %v332
        %1075 = vmatpush.msra.mxu0 %v314
        %1076 = vmatpush.msra.mxu0 %v296
        %1077 = vmatpush.msra.mxu0 %v278
        %1078 = vmatpush.msra.mxu0 %v260
        %1079 = vmatmul.f32.gmra.mxu0 %v821
        %v1080 = vpop.f32.mrf.mxu0
        %v1081 = vadd.f32 0.0, %v1080
        %1082 = vdwg.mxu0
        %1083 = vmatpush.msra.mxu0 0.0
        %1084 = vmatpush.msra.mxu0 0.0
        %1085 = vmatpush.msra.mxu0 0.0
        %1086 = vmatpush.msra.mxu0 0.0
        %1087 = vmatpush.msra.mxu0 0.0
        %1088 = vmatpush.msra.mxu0 0.0
        %1089 = vmatpush.msra.mxu0 0.0
        %1090 = vmatpush.msra.mxu0 0.0
        %1091 = vmatpush.msra.mxu0 %v387
        %1092 = vmatpush.msra.mxu0 %v369
        %1093 = vmatpush.msra.mxu0 %v351
        %1094 = vmatpush.msra.mxu0 %v333
        %1095 = vmatpush.msra.mxu0 %v315
        %1096 = vmatpush.msra.mxu0 %v297
        %1097 = vmatpush.msra.mxu0 %v279
        %1098 = vmatpush.msra.mxu0 %v261
        %1099 = vmatmul.f32.gmra.mxu0 %v821
        %v1100 = vpop.f32.mrf.mxu0
        %v1101 = vadd.f32 0.0, %v1100
        %1102 = vdwg.mxu0
        %1103 = vmatpush.msra.mxu0 0.0
        %1104 = vmatpush.msra.mxu0 0.0
        %1105 = vmatpush.msra.mxu0 0.0
        %1106 = vmatpush.msra.mxu0 0.0
        %1107 = vmatpush.msra.mxu0 0.0
        %1108 = vmatpush.msra.mxu0 0.0
        %1109 = vmatpush.msra.mxu0 0.0
        %1110 = vmatpush.msra.mxu0 0.0
        %1111 = vmatpush.msra.mxu0 %v388
        %1112 = vmatpush.msra.mxu0 %v370
        %1113 = vmatpush.msra.mxu0 %v352
        %1114 = vmatpush.msra.mxu0 %v334
        %1115 = vmatpush.msra.mxu0 %v316
        %1116 = vmatpush.msra.mxu0 %v298
        %1117 = vmatpush.msra.mxu0 %v280
        %1118 = vmatpush.msra.mxu0 %v262
        %1119 = vmatmul.f32.gmra.mxu0 %v821
        %v1120 = vpop.f32.mrf.mxu0
        %v1121 = vadd.f32 0.0, %v1120
        %1122 = vdwg.mxu0
        %1123 = vmatpush.msra.mxu0 0.0
        %1124 = vmatpush.msra.mxu0 0.0
        %1125 = vmatpush.msra.mxu0 0.0
        %1126 = vmatpush.msra.mxu0 0.0
        %1127 = vmatpush.msra.mxu0 0.0
        %1128 = vmatpush.msra.mxu0 0.0
        %1129 = vmatpush.msra.mxu0 0.0
        %1130 = vmatpush.msra.mxu0 0.0
        %1131 = vmatpush.msra.mxu0 %v389
        %1132 = vmatpush.msra.mxu0 %v371
        %1133 = vmatpush.msra.mxu0 %v353
        %1134 = vmatpush.msra.mxu0 %v335
        %1135 = vmatpush.msra.mxu0 %v317
        %1136 = vmatpush.msra.mxu0 %v299
        %1137 = vmatpush.msra.mxu0 %v281
        %1138 = vmatpush.msra.mxu0 %v263
        %1139 = vmatmul.f32.gmra.mxu0 %v821
        %v1140 = vpop.f32.mrf.mxu0
        %v1141 = vadd.f32 0.0, %v1140
        %1142 = vdwg.mxu0
        %1143 = vmatpush.msra.mxu0 0.0
        %1144 = vmatpush.msra.mxu0 0.0
        %1145 = vmatpush.msra.mxu0 0.0
        %1146 = vmatpush.msra.mxu0 0.0
        %1147 = vmatpush.msra.mxu0 0.0
        %1148 = vmatpush.msra.mxu0 0.0
        %1149 = vmatpush.msra.mxu0 0.0
        %1150 = vmatpush.msra.mxu0 0.0
        %1151 = vmatpush.msra.mxu0 %v390
        %1152 = vmatpush.msra.mxu0 %v372
        %1153 = vmatpush.msra.mxu0 %v354
        %1154 = vmatpush.msra.mxu0 %v336
        %1155 = vmatpush.msra.mxu0 %v318
        %1156 = vmatpush.msra.mxu0 %v300
        %1157 = vmatpush.msra.mxu0 %v282
        %1158 = vmatpush.msra.mxu0 %v264
        %1159 = vmatmul.f32.gmra.mxu0 %v821
        %v1160 = vpop.f32.mrf.mxu0
        %v1161 = vadd.f32 0.0, %v1160
        %1162 = vdwg.mxu0
        %1163 = vmatpush.msra.mxu0 0.0
        %1164 = vmatpush.msra.mxu0 0.0
        %1165 = vmatpush.msra.mxu0 0.0
        %1166 = vmatpush.msra.mxu0 0.0
        %1167 = vmatpush.msra.mxu0 0.0
        %1168 = vmatpush.msra.mxu0 0.0
        %1169 = vmatpush.msra.mxu0 0.0
        %1170 = vmatpush.msra.mxu0 0.0
        %1171 = vmatpush.msra.mxu0 %v391
        %1172 = vmatpush.msra.mxu0 %v373
        %1173 = vmatpush.msra.mxu0 %v355
        %1174 = vmatpush.msra.mxu0 %v337
        %1175 = vmatpush.msra.mxu0 %v319
        %1176 = vmatpush.msra.mxu0 %v301
        %1177 = vmatpush.msra.mxu0 %v283
        %1178 = vmatpush.msra.mxu0 %v265
        %1179 = vmatmul.f32.gmra.mxu0 %v821
        %v1180 = vpop.f32.mrf.mxu0
        %v1181 = vadd.f32 0.0, %v1180
        %1182 = vdwg.mxu0
        %v1201 = vrot.slane %v861, 4
        %v1202 = vrot.slane %v901, 4
        %v1203 = vrot.slane %v941, 4
        %v1204 = vrot.slane %v981, 4
        %v1205 = vrot.slane %v1021, 4
        %v1206 = vrot.slane %v1061, 4
        %v1207 = vrot.slane %v1101, 4
        %v1208 = vrot.slane %v1141, 4
        %v1209 = vrot.slane %v1181, 4
        %v1210 = vsel %vm787, %v841, %v1201
        %v1211 = vsel %vm787, %v881, %v1202
        %v1212 = vsel %vm787, %v921, %v1203
        %v1213 = vsel %vm787, %v961, %v1204
        %v1214 = vsel %vm787, %v1001, %v1205
        %v1215 = vsel %vm787, %v1041, %v1206
        %v1216 = vsel %vm787, %v1081, %v1207
        %v1217 = vsel %vm787, %v1121, %v1208
        %v1218 = vsel %vm787, %v1161, %v1209
        %s1228 = scalar_lea.vmem [#allocation2], 72
        %1229 = vst [vmem:[%s1228] sm:$0xff] %v1210
        %1230 = vst [vmem:[%s1228 + $0x8] sm:$0xff] %v1211
        %1231 = vst [vmem:[%s1228 + $0x10] sm:$0xff] %v1212
        %1232 = vst [vmem:[%s1228 + $0x18] sm:$0xff] %v1213
        %1233 = vst [vmem:[%s1228 + $0x20] sm:$0xff] %v1214
        %1234 = vst [vmem:[%s1228 + $0x28] sm:$0xff] %v1215
        %1235 = vst [vmem:[%s1228 + $0x30] sm:$0xff] %v1216
        %1236 = vst [vmem:[%s1228 + $0x38] sm:$0xff] %v1217
        %1237 = vst [vmem:[%s1228 + $0x40] sm:$0xff] %v1218
        %s1238 = sadd.s32 %s247, 2
        %s1239 = sld [smem:[#allocation4 + %s1238]]
        %s1240 = smul.u32 %s1239, 4
        %s1241 = scalar_lea.vmem %s236, %s1240
        %v1242 = vld [vmem:[%s1241] sm:$0xf]
        %v1244 = vsel %vm396, %v1242, 0
        %1246 = vmatpush.msra.mxu0 0.0
        %1247 = vmatpush.msra.mxu0 0.0
        %1248 = vmatpush.msra.mxu0 0.0
        %1249 = vmatpush.msra.mxu0 0.0
        %1250 = vmatpush.msra.mxu0 0.0
        %1251 = vmatpush.msra.mxu0 0.0
        %1252 = vmatpush.msra.mxu0 0.0
        %1253 = vmatpush.msra.mxu0 0.0
        %1254 = vmatpush.msra.mxu0 %v374
        %1255 = vmatpush.msra.mxu0 %v356
        %1256 = vmatpush.msra.mxu0 %v338
        %1257 = vmatpush.msra.mxu0 %v320
        %1258 = vmatpush.msra.mxu0 %v302
        %1259 = vmatpush.msra.mxu0 %v284
        %1260 = vmatpush.msra.mxu0 %v266
        %1261 = vmatpush.msra.mxu0 %v248
        %1262 = vmatmul.f32.gmra.mxu0 %v1244
        %v1263 = vpop.f32.mrf.mxu0
        %v1264 = vadd.f32 0.0, %v1263
        %1265 = vdwg.mxu0
        %1266 = vmatpush.msra.mxu0 0.0
        %1267 = vmatpush.msra.mxu0 0.0
        %1268 = vmatpush.msra.mxu0 0.0
        %1269 = vmatpush.msra.mxu0 0.0
        %1270 = vmatpush.msra.mxu0 0.0
        %1271 = vmatpush.msra.mxu0 0.0
        %1272 = vmatpush.msra.mxu0 0.0
        %1273 = vmatpush.msra.mxu0 0.0
        %1274 = vmatpush.msra.mxu0 %v375
        %1275 = vmatpush.msra.mxu0 %v357
        %1276 = vmatpush.msra.mxu0 %v339
        %1277 = vmatpush.msra.mxu0 %v321
        %1278 = vmatpush.msra.mxu0 %v303
        %1279 = vmatpush.msra.mxu0 %v285
        %1280 = vmatpush.msra.mxu0 %v267
        %1281 = vmatpush.msra.mxu0 %v249
        %1282 = vmatmul.f32.gmra.mxu0 %v1244
        %v1283 = vpop.f32.mrf.mxu0
        %v1284 = vadd.f32 0.0, %v1283
        %1285 = vdwg.mxu0
        %1286 = vmatpush.msra.mxu0 0.0
        %1287 = vmatpush.msra.mxu0 0.0
        %1288 = vmatpush.msra.mxu0 0.0
        %1289 = vmatpush.msra.mxu0 0.0
        %1290 = vmatpush.msra.mxu0 0.0
        %1291 = vmatpush.msra.mxu0 0.0
        %1292 = vmatpush.msra.mxu0 0.0
        %1293 = vmatpush.msra.mxu0 0.0
        %1294 = vmatpush.msra.mxu0 %v376
        %1295 = vmatpush.msra.mxu0 %v358
        %1296 = vmatpush.msra.mxu0 %v340
        %1297 = vmatpush.msra.mxu0 %v322
        %1298 = vmatpush.msra.mxu0 %v304
        %1299 = vmatpush.msra.mxu0 %v286
        %1300 = vmatpush.msra.mxu0 %v268
        %1301 = vmatpush.msra.mxu0 %v250
        %1302 = vmatmul.f32.gmra.mxu0 %v1244
        %v1303 = vpop.f32.mrf.mxu0
        %v1304 = vadd.f32 0.0, %v1303
        %1305 = vdwg.mxu0
        %1306 = vmatpush.msra.mxu0 0.0
        %1307 = vmatpush.msra.mxu0 0.0
        %1308 = vmatpush.msra.mxu0 0.0
        %1309 = vmatpush.msra.mxu0 0.0
        %1310 = vmatpush.msra.mxu0 0.0
        %1311 = vmatpush.msra.mxu0 0.0
        %1312 = vmatpush.msra.mxu0 0.0
        %1313 = vmatpush.msra.mxu0 0.0
        %1314 = vmatpush.msra.mxu0 %v377
        %1315 = vmatpush.msra.mxu0 %v359
        %1316 = vmatpush.msra.mxu0 %v341
        %1317 = vmatpush.msra.mxu0 %v323
        %1318 = vmatpush.msra.mxu0 %v305
        %1319 = vmatpush.msra.mxu0 %v287
        %1320 = vmatpush.msra.mxu0 %v269
        %1321 = vmatpush.msra.mxu0 %v251
        %1322 = vmatmul.f32.gmra.mxu0 %v1244
        %v1323 = vpop.f32.mrf.mxu0
        %v1324 = vadd.f32 0.0, %v1323
        %1325 = vdwg.mxu0
        %1326 = vmatpush.msra.mxu0 0.0
        %1327 = vmatpush.msra.mxu0 0.0
        %1328 = vmatpush.msra.mxu0 0.0
        %1329 = vmatpush.msra.mxu0 0.0
        %1330 = vmatpush.msra.mxu0 0.0
        %1331 = vmatpush.msra.mxu0 0.0
        %1332 = vmatpush.msra.mxu0 0.0
        %1333 = vmatpush.msra.mxu0 0.0
        %1334 = vmatpush.msra.mxu0 %v378
        %1335 = vmatpush.msra.mxu0 %v360
        %1336 = vmatpush.msra.mxu0 %v342
        %1337 = vmatpush.msra.mxu0 %v324
        %1338 = vmatpush.msra.mxu0 %v306
        %1339 = vmatpush.msra.mxu0 %v288
        %1340 = vmatpush.msra.mxu0 %v270
        %1341 = vmatpush.msra.mxu0 %v252
        %1342 = vmatmul.f32.gmra.mxu0 %v1244
        %v1343 = vpop.f32.mrf.mxu0
        %v1344 = vadd.f32 0.0, %v1343
        %1345 = vdwg.mxu0
        %1346 = vmatpush.msra.mxu0 0.0
        %1347 = vmatpush.msra.mxu0 0.0
        %1348 = vmatpush.msra.mxu0 0.0
        %1349 = vmatpush.msra.mxu0 0.0
        %1350 = vmatpush.msra.mxu0 0.0
        %1351 = vmatpush.msra.mxu0 0.0
        %1352 = vmatpush.msra.mxu0 0.0
        %1353 = vmatpush.msra.mxu0 0.0
        %1354 = vmatpush.msra.mxu0 %v379
        %1355 = vmatpush.msra.mxu0 %v361
        %1356 = vmatpush.msra.mxu0 %v343
        %1357 = vmatpush.msra.mxu0 %v325
        %1358 = vmatpush.msra.mxu0 %v307
        %1359 = vmatpush.msra.mxu0 %v289
        %1360 = vmatpush.msra.mxu0 %v271
        %1361 = vmatpush.msra.mxu0 %v253
        %1362 = vmatmul.f32.gmra.mxu0 %v1244
        %v1363 = vpop.f32.mrf.mxu0
        %v1364 = vadd.f32 0.0, %v1363
        %1365 = vdwg.mxu0
        %1366 = vmatpush.msra.mxu0 0.0
        %1367 = vmatpush.msra.mxu0 0.0
        %1368 = vmatpush.msra.mxu0 0.0
        %1369 = vmatpush.msra.mxu0 0.0
        %1370 = vmatpush.msra.mxu0 0.0
        %1371 = vmatpush.msra.mxu0 0.0
        %1372 = vmatpush.msra.mxu0 0.0
        %1373 = vmatpush.msra.mxu0 0.0
        %1374 = vmatpush.msra.mxu0 %v380
        %1375 = vmatpush.msra.mxu0 %v362
        %1376 = vmatpush.msra.mxu0 %v344
        %1377 = vmatpush.msra.mxu0 %v326
        %1378 = vmatpush.msra.mxu0 %v308
        %1379 = vmatpush.msra.mxu0 %v290
        %1380 = vmatpush.msra.mxu0 %v272
        %1381 = vmatpush.msra.mxu0 %v254
        %1382 = vmatmul.f32.gmra.mxu0 %v1244
        %v1383 = vpop.f32.mrf.mxu0
        %v1384 = vadd.f32 0.0, %v1383
        %1385 = vdwg.mxu0
        %1386 = vmatpush.msra.mxu0 0.0
        %1387 = vmatpush.msra.mxu0 0.0
        %1388 = vmatpush.msra.mxu0 0.0
        %1389 = vmatpush.msra.mxu0 0.0
        %1390 = vmatpush.msra.mxu0 0.0
        %1391 = vmatpush.msra.mxu0 0.0
        %1392 = vmatpush.msra.mxu0 0.0
        %1393 = vmatpush.msra.mxu0 0.0
        %1394 = vmatpush.msra.mxu0 %v381
        %1395 = vmatpush.msra.mxu0 %v363
        %1396 = vmatpush.msra.mxu0 %v345
        %1397 = vmatpush.msra.mxu0 %v327
        %1398 = vmatpush.msra.mxu0 %v309
        %1399 = vmatpush.msra.mxu0 %v291
        %1400 = vmatpush.msra.mxu0 %v273
        %1401 = vmatpush.msra.mxu0 %v255
        %1402 = vmatmul.f32.gmra.mxu0 %v1244
        %v1403 = vpop.f32.mrf.mxu0
        %v1404 = vadd.f32 0.0, %v1403
        %1405 = vdwg.mxu0
        %1406 = vmatpush.msra.mxu0 0.0
        %1407 = vmatpush.msra.mxu0 0.0
        %1408 = vmatpush.msra.mxu0 0.0
        %1409 = vmatpush.msra.mxu0 0.0
        %1410 = vmatpush.msra.mxu0 0.0
        %1411 = vmatpush.msra.mxu0 0.0
        %1412 = vmatpush.msra.mxu0 0.0
        %1413 = vmatpush.msra.mxu0 0.0
        %1414 = vmatpush.msra.mxu0 %v382
        %1415 = vmatpush.msra.mxu0 %v364
        %1416 = vmatpush.msra.mxu0 %v346
        %1417 = vmatpush.msra.mxu0 %v328
        %1418 = vmatpush.msra.mxu0 %v310
        %1419 = vmatpush.msra.mxu0 %v292
        %1420 = vmatpush.msra.mxu0 %v274
        %1421 = vmatpush.msra.mxu0 %v256
        %1422 = vmatmul.f32.gmra.mxu0 %v1244
        %v1423 = vpop.f32.mrf.mxu0
        %v1424 = vadd.f32 0.0, %v1423
        %1425 = vdwg.mxu0
        %1426 = vmatpush.msra.mxu0 0.0
        %1427 = vmatpush.msra.mxu0 0.0
        %1428 = vmatpush.msra.mxu0 0.0
        %1429 = vmatpush.msra.mxu0 0.0
        %1430 = vmatpush.msra.mxu0 0.0
        %1431 = vmatpush.msra.mxu0 0.0
        %1432 = vmatpush.msra.mxu0 0.0
        %1433 = vmatpush.msra.mxu0 0.0
        %1434 = vmatpush.msra.mxu0 %v383
        %1435 = vmatpush.msra.mxu0 %v365
        %1436 = vmatpush.msra.mxu0 %v347
        %1437 = vmatpush.msra.mxu0 %v329
        %1438 = vmatpush.msra.mxu0 %v311
        %1439 = vmatpush.msra.mxu0 %v293
        %1440 = vmatpush.msra.mxu0 %v275
        %1441 = vmatpush.msra.mxu0 %v257
        %1442 = vmatmul.f32.gmra.mxu0 %v1244
        %v1443 = vpop.f32.mrf.mxu0
        %v1444 = vadd.f32 0.0, %v1443
        %1445 = vdwg.mxu0
        %1446 = vmatpush.msra.mxu0 0.0
        %1447 = vmatpush.msra.mxu0 0.0
        %1448 = vmatpush.msra.mxu0 0.0
        %1449 = vmatpush.msra.mxu0 0.0
        %1450 = vmatpush.msra.mxu0 0.0
        %1451 = vmatpush.msra.mxu0 0.0
        %1452 = vmatpush.msra.mxu0 0.0
        %1453 = vmatpush.msra.mxu0 0.0
        %1454 = vmatpush.msra.mxu0 %v384
        %1455 = vmatpush.msra.mxu0 %v366
        %1456 = vmatpush.msra.mxu0 %v348
        %1457 = vmatpush.msra.mxu0 %v330
        %1458 = vmatpush.msra.mxu0 %v312
        %1459 = vmatpush.msra.mxu0 %v294
        %1460 = vmatpush.msra.mxu0 %v276
        %1461 = vmatpush.msra.mxu0 %v258
        %1462 = vmatmul.f32.gmra.mxu0 %v1244
        %v1463 = vpop.f32.mrf.mxu0
        %v1464 = vadd.f32 0.0, %v1463
        %1465 = vdwg.mxu0
        %1466 = vmatpush.msra.mxu0 0.0
        %1467 = vmatpush.msra.mxu0 0.0
        %1468 = vmatpush.msra.mxu0 0.0
        %1469 = vmatpush.msra.mxu0 0.0
        %1470 = vmatpush.msra.mxu0 0.0
        %1471 = vmatpush.msra.mxu0 0.0
        %1472 = vmatpush.msra.mxu0 0.0
        %1473 = vmatpush.msra.mxu0 0.0
        %1474 = vmatpush.msra.mxu0 %v385
        %1475 = vmatpush.msra.mxu0 %v367
        %1476 = vmatpush.msra.mxu0 %v349
        %1477 = vmatpush.msra.mxu0 %v331
        %1478 = vmatpush.msra.mxu0 %v313
        %1479 = vmatpush.msra.mxu0 %v295
        %1480 = vmatpush.msra.mxu0 %v277
        %1481 = vmatpush.msra.mxu0 %v259
        %1482 = vmatmul.f32.gmra.mxu0 %v1244
        %v1483 = vpop.f32.mrf.mxu0
        %v1484 = vadd.f32 0.0, %v1483
        %1485 = vdwg.mxu0
        %1486 = vmatpush.msra.mxu0 0.0
        %1487 = vmatpush.msra.mxu0 0.0
        %1488 = vmatpush.msra.mxu0 0.0
        %1489 = vmatpush.msra.mxu0 0.0
        %1490 = vmatpush.msra.mxu0 0.0
        %1491 = vmatpush.msra.mxu0 0.0
        %1492 = vmatpush.msra.mxu0 0.0
        %1493 = vmatpush.msra.mxu0 0.0
        %1494 = vmatpush.msra.mxu0 %v386
        %1495 = vmatpush.msra.mxu0 %v368
        %1496 = vmatpush.msra.mxu0 %v350
        %1497 = vmatpush.msra.mxu0 %v332
        %1498 = vmatpush.msra.mxu0 %v314
        %1499 = vmatpush.msra.mxu0 %v296
        %1500 = vmatpush.msra.mxu0 %v278
        %1501 = vmatpush.msra.mxu0 %v260
        %1502 = vmatmul.f32.gmra.mxu0 %v1244
        %v1503 = vpop.f32.mrf.mxu0
        %v1504 = vadd.f32 0.0, %v1503
        %1505 = vdwg.mxu0
        %1506 = vmatpush.msra.mxu0 0.0
        %1507 = vmatpush.msra.mxu0 0.0
        %1508 = vmatpush.msra.mxu0 0.0
        %1509 = vmatpush.msra.mxu0 0.0
        %1510 = vmatpush.msra.mxu0 0.0
        %1511 = vmatpush.msra.mxu0 0.0
        %1512 = vmatpush.msra.mxu0 0.0
        %1513 = vmatpush.msra.mxu0 0.0
        %1514 = vmatpush.msra.mxu0 %v387
        %1515 = vmatpush.msra.mxu0 %v369
        %1516 = vmatpush.msra.mxu0 %v351
        %1517 = vmatpush.msra.mxu0 %v333
        %1518 = vmatpush.msra.mxu0 %v315
        %1519 = vmatpush.msra.mxu0 %v297
        %1520 = vmatpush.msra.mxu0 %v279
        %1521 = vmatpush.msra.mxu0 %v261
        %1522 = vmatmul.f32.gmra.mxu0 %v1244
        %v1523 = vpop.f32.mrf.mxu0
        %v1524 = vadd.f32 0.0, %v1523
        %1525 = vdwg.mxu0
        %1526 = vmatpush.msra.mxu0 0.0
        %1527 = vmatpush.msra.mxu0 0.0
        %1528 = vmatpush.msra.mxu0 0.0
        %1529 = vmatpush.msra.mxu0 0.0
        %1530 = vmatpush.msra.mxu0 0.0
        %1531 = vmatpush.msra.mxu0 0.0
        %1532 = vmatpush.msra.mxu0 0.0
        %1533 = vmatpush.msra.mxu0 0.0
        %1534 = vmatpush.msra.mxu0 %v388
        %1535 = vmatpush.msra.mxu0 %v370
        %1536 = vmatpush.msra.mxu0 %v352
        %1537 = vmatpush.msra.mxu0 %v334
        %1538 = vmatpush.msra.mxu0 %v316
        %1539 = vmatpush.msra.mxu0 %v298
        %1540 = vmatpush.msra.mxu0 %v280
        %1541 = vmatpush.msra.mxu0 %v262
        %1542 = vmatmul.f32.gmra.mxu0 %v1244
        %v1543 = vpop.f32.mrf.mxu0
        %v1544 = vadd.f32 0.0, %v1543
        %1545 = vdwg.mxu0
        %1546 = vmatpush.msra.mxu0 0.0
        %1547 = vmatpush.msra.mxu0 0.0
        %1548 = vmatpush.msra.mxu0 0.0
        %1549 = vmatpush.msra.mxu0 0.0
        %1550 = vmatpush.msra.mxu0 0.0
        %1551 = vmatpush.msra.mxu0 0.0
        %1552 = vmatpush.msra.mxu0 0.0
        %1553 = vmatpush.msra.mxu0 0.0
        %1554 = vmatpush.msra.mxu0 %v389
        %1555 = vmatpush.msra.mxu0 %v371
        %1556 = vmatpush.msra.mxu0 %v353
        %1557 = vmatpush.msra.mxu0 %v335
        %1558 = vmatpush.msra.mxu0 %v317
        %1559 = vmatpush.msra.mxu0 %v299
        %1560 = vmatpush.msra.mxu0 %v281
        %1561 = vmatpush.msra.mxu0 %v263
        %1562 = vmatmul.f32.gmra.mxu0 %v1244
        %v1563 = vpop.f32.mrf.mxu0
        %v1564 = vadd.f32 0.0, %v1563
        %1565 = vdwg.mxu0
        %1566 = vmatpush.msra.mxu0 0.0
        %1567 = vmatpush.msra.mxu0 0.0
        %1568 = vmatpush.msra.mxu0 0.0
        %1569 = vmatpush.msra.mxu0 0.0
        %1570 = vmatpush.msra.mxu0 0.0
        %1571 = vmatpush.msra.mxu0 0.0
        %1572 = vmatpush.msra.mxu0 0.0
        %1573 = vmatpush.msra.mxu0 0.0
        %1574 = vmatpush.msra.mxu0 %v390
        %1575 = vmatpush.msra.mxu0 %v372
        %1576 = vmatpush.msra.mxu0 %v354
        %1577 = vmatpush.msra.mxu0 %v336
        %1578 = vmatpush.msra.mxu0 %v318
        %1579 = vmatpush.msra.mxu0 %v300
        %1580 = vmatpush.msra.mxu0 %v282
        %1581 = vmatpush.msra.mxu0 %v264
        %1582 = vmatmul.f32.gmra.mxu0 %v1244
        %v1583 = vpop.f32.mrf.mxu0
        %v1584 = vadd.f32 0.0, %v1583
        %1585 = vdwg.mxu0
        %1586 = vmatpush.msra.mxu0 0.0
        %1587 = vmatpush.msra.mxu0 0.0
        %1588 = vmatpush.msra.mxu0 0.0
        %1589 = vmatpush.msra.mxu0 0.0
        %1590 = vmatpush.msra.mxu0 0.0
        %1591 = vmatpush.msra.mxu0 0.0
        %1592 = vmatpush.msra.mxu0 0.0
        %1593 = vmatpush.msra.mxu0 0.0
        %1594 = vmatpush.msra.mxu0 %v391
        %1595 = vmatpush.msra.mxu0 %v373
        %1596 = vmatpush.msra.mxu0 %v355
        %1597 = vmatpush.msra.mxu0 %v337
        %1598 = vmatpush.msra.mxu0 %v319
        %1599 = vmatpush.msra.mxu0 %v301
        %1600 = vmatpush.msra.mxu0 %v283
        %1601 = vmatpush.msra.mxu0 %v265
        %1602 = vmatmul.f32.gmra.mxu0 %v1244
        %v1603 = vpop.f32.mrf.mxu0
        %v1604 = vadd.f32 0.0, %v1603
        %1605 = vdwg.mxu0
        %v1624 = vrot.slane %v1284, 4
        %v1625 = vrot.slane %v1324, 4
        %v1626 = vrot.slane %v1364, 4
        %v1627 = vrot.slane %v1404, 4
        %v1628 = vrot.slane %v1444, 4
        %v1629 = vrot.slane %v1484, 4
        %v1630 = vrot.slane %v1524, 4
        %v1631 = vrot.slane %v1564, 4
        %v1632 = vrot.slane %v1604, 4
        %v1633 = vsel %vm787, %v1264, %v1624
        %v1634 = vsel %vm787, %v1304, %v1625
        %v1635 = vsel %vm787, %v1344, %v1626
        %v1636 = vsel %vm787, %v1384, %v1627
        %v1637 = vsel %vm787, %v1424, %v1628
        %v1638 = vsel %vm787, %v1464, %v1629
        %v1639 = vsel %vm787, %v1504, %v1630
        %v1640 = vsel %vm787, %v1544, %v1631
        %v1641 = vsel %vm787, %v1584, %v1632
        %s1651 = scalar_lea.vmem [#allocation2], 144
        %1652 = vst [vmem:[%s1651] sm:$0xff] %v1633
        %1653 = vst [vmem:[%s1651 + $0x8] sm:$0xff] %v1634
        %1654 = vst [vmem:[%s1651 + $0x10] sm:$0xff] %v1635
        %1655 = vst [vmem:[%s1651 + $0x18] sm:$0xff] %v1636
        %1656 = vst [vmem:[%s1651 + $0x20] sm:$0xff] %v1637
        %1657 = vst [vmem:[%s1651 + $0x28] sm:$0xff] %v1638
        %1658 = vst [vmem:[%s1651 + $0x30] sm:$0xff] %v1639
        %1659 = vst [vmem:[%s1651 + $0x38] sm:$0xff] %v1640
        %1660 = vst [vmem:[%s1651 + $0x40] sm:$0xff] %v1641
        %s1661 = sadd.s32 %s247, 3
        %s1662 = sld [smem:[#allocation4 + %s1661]]
        %s1663 = smul.u32 %s1662, 4
        %s1664 = scalar_lea.vmem %s236, %s1663
        %v1665 = vld [vmem:[%s1664] sm:$0xf]
        %v1667 = vsel %vm396, %v1665, 0
        %1669 = vmatpush.msra.mxu0 0.0
        %1670 = vmatpush.msra.mxu0 0.0
        %1671 = vmatpush.msra.mxu0 0.0
        %1672 = vmatpush.msra.mxu0 0.0
        %1673 = vmatpush.msra.mxu0 0.0
        %1674 = vmatpush.msra.mxu0 0.0
        %1675 = vmatpush.msra.mxu0 0.0
        %1676 = vmatpush.msra.mxu0 0.0
        %1677 = vmatpush.msra.mxu0 %v374
        %1678 = vmatpush.msra.mxu0 %v356
        %1679 = vmatpush.msra.mxu0 %v338
        %1680 = vmatpush.msra.mxu0 %v320
        %1681 = vmatpush.msra.mxu0 %v302
        %1682 = vmatpush.msra.mxu0 %v284
        %1683 = vmatpush.msra.mxu0 %v266
        %1684 = vmatpush.msra.mxu0 %v248
        %1685 = vmatmul.f32.gmra.mxu0 %v1667
        %v1686 = vpop.f32.mrf.mxu0
        %v1687 = vadd.f32 0.0, %v1686
        %1688 = vdwg.mxu0
        %1689 = vmatpush.msra.mxu0 0.0
        %1690 = vmatpush.msra.mxu0 0.0
        %1691 = vmatpush.msra.mxu0 0.0
        %1692 = vmatpush.msra.mxu0 0.0
        %1693 = vmatpush.msra.mxu0 0.0
        %1694 = vmatpush.msra.mxu0 0.0
        %1695 = vmatpush.msra.mxu0 0.0
        %1696 = vmatpush.msra.mxu0 0.0
        %1697 = vmatpush.msra.mxu0 %v375
        %1698 = vmatpush.msra.mxu0 %v357
        %1699 = vmatpush.msra.mxu0 %v339
        %1700 = vmatpush.msra.mxu0 %v321
        %1701 = vmatpush.msra.mxu0 %v303
        %1702 = vmatpush.msra.mxu0 %v285
        %1703 = vmatpush.msra.mxu0 %v267
        %1704 = vmatpush.msra.mxu0 %v249
        %1705 = vmatmul.f32.gmra.mxu0 %v1667
        %v1706 = vpop.f32.mrf.mxu0
        %v1707 = vadd.f32 0.0, %v1706
        %1708 = vdwg.mxu0
        %1709 = vmatpush.msra.mxu0 0.0
        %1710 = vmatpush.msra.mxu0 0.0
        %1711 = vmatpush.msra.mxu0 0.0
        %1712 = vmatpush.msra.mxu0 0.0
        %1713 = vmatpush.msra.mxu0 0.0
        %1714 = vmatpush.msra.mxu0 0.0
        %1715 = vmatpush.msra.mxu0 0.0
        %1716 = vmatpush.msra.mxu0 0.0
        %1717 = vmatpush.msra.mxu0 %v376
        %1718 = vmatpush.msra.mxu0 %v358
        %1719 = vmatpush.msra.mxu0 %v340
        %1720 = vmatpush.msra.mxu0 %v322
        %1721 = vmatpush.msra.mxu0 %v304
        %1722 = vmatpush.msra.mxu0 %v286
        %1723 = vmatpush.msra.mxu0 %v268
        %1724 = vmatpush.msra.mxu0 %v250
        %1725 = vmatmul.f32.gmra.mxu0 %v1667
        %v1726 = vpop.f32.mrf.mxu0
        %v1727 = vadd.f32 0.0, %v1726
        %1728 = vdwg.mxu0
        %1729 = vmatpush.msra.mxu0 0.0
        %1730 = vmatpush.msra.mxu0 0.0
        %1731 = vmatpush.msra.mxu0 0.0
        %1732 = vmatpush.msra.mxu0 0.0
        %1733 = vmatpush.msra.mxu0 0.0
        %1734 = vmatpush.msra.mxu0 0.0
        %1735 = vmatpush.msra.mxu0 0.0
        %1736 = vmatpush.msra.mxu0 0.0
        %1737 = vmatpush.msra.mxu0 %v377
        %1738 = vmatpush.msra.mxu0 %v359
        %1739 = vmatpush.msra.mxu0 %v341
        %1740 = vmatpush.msra.mxu0 %v323
        %1741 = vmatpush.msra.mxu0 %v305
        %1742 = vmatpush.msra.mxu0 %v287
        %1743 = vmatpush.msra.mxu0 %v269
        %1744 = vmatpush.msra.mxu0 %v251
        %1745 = vmatmul.f32.gmra.mxu0 %v1667
        %v1746 = vpop.f32.mrf.mxu0
        %v1747 = vadd.f32 0.0, %v1746
        %1748 = vdwg.mxu0
        %1749 = vmatpush.msra.mxu0 0.0
        %1750 = vmatpush.msra.mxu0 0.0
        %1751 = vmatpush.msra.mxu0 0.0
        %1752 = vmatpush.msra.mxu0 0.0
        %1753 = vmatpush.msra.mxu0 0.0
        %1754 = vmatpush.msra.mxu0 0.0
        %1755 = vmatpush.msra.mxu0 0.0
        %1756 = vmatpush.msra.mxu0 0.0
        %1757 = vmatpush.msra.mxu0 %v378
        %1758 = vmatpush.msra.mxu0 %v360
        %1759 = vmatpush.msra.mxu0 %v342
        %1760 = vmatpush.msra.mxu0 %v324
        %1761 = vmatpush.msra.mxu0 %v306
        %1762 = vmatpush.msra.mxu0 %v288
        %1763 = vmatpush.msra.mxu0 %v270
        %1764 = vmatpush.msra.mxu0 %v252
        %1765 = vmatmul.f32.gmra.mxu0 %v1667
        %v1766 = vpop.f32.mrf.mxu0
        %v1767 = vadd.f32 0.0, %v1766
        %1768 = vdwg.mxu0
        %1769 = vmatpush.msra.mxu0 0.0
        %1770 = vmatpush.msra.mxu0 0.0
        %1771 = vmatpush.msra.mxu0 0.0
        %1772 = vmatpush.msra.mxu0 0.0
        %1773 = vmatpush.msra.mxu0 0.0
        %1774 = vmatpush.msra.mxu0 0.0
        %1775 = vmatpush.msra.mxu0 0.0
        %1776 = vmatpush.msra.mxu0 0.0
        %1777 = vmatpush.msra.mxu0 %v379
        %1778 = vmatpush.msra.mxu0 %v361
        %1779 = vmatpush.msra.mxu0 %v343
        %1780 = vmatpush.msra.mxu0 %v325
        %1781 = vmatpush.msra.mxu0 %v307
        %1782 = vmatpush.msra.mxu0 %v289
        %1783 = vmatpush.msra.mxu0 %v271
        %1784 = vmatpush.msra.mxu0 %v253
        %1785 = vmatmul.f32.gmra.mxu0 %v1667
        %v1786 = vpop.f32.mrf.mxu0
        %v1787 = vadd.f32 0.0, %v1786
        %1788 = vdwg.mxu0
        %1789 = vmatpush.msra.mxu0 0.0
        %1790 = vmatpush.msra.mxu0 0.0
        %1791 = vmatpush.msra.mxu0 0.0
        %1792 = vmatpush.msra.mxu0 0.0
        %1793 = vmatpush.msra.mxu0 0.0
        %1794 = vmatpush.msra.mxu0 0.0
        %1795 = vmatpush.msra.mxu0 0.0
        %1796 = vmatpush.msra.mxu0 0.0
        %1797 = vmatpush.msra.mxu0 %v380
        %1798 = vmatpush.msra.mxu0 %v362
        %1799 = vmatpush.msra.mxu0 %v344
        %1800 = vmatpush.msra.mxu0 %v326
        %1801 = vmatpush.msra.mxu0 %v308
        %1802 = vmatpush.msra.mxu0 %v290
        %1803 = vmatpush.msra.mxu0 %v272
        %1804 = vmatpush.msra.mxu0 %v254
        %1805 = vmatmul.f32.gmra.mxu0 %v1667
        %v1806 = vpop.f32.mrf.mxu0
        %v1807 = vadd.f32 0.0, %v1806
        %1808 = vdwg.mxu0
        %1809 = vmatpush.msra.mxu0 0.0
        %1810 = vmatpush.msra.mxu0 0.0
        %1811 = vmatpush.msra.mxu0 0.0
        %1812 = vmatpush.msra.mxu0 0.0
        %1813 = vmatpush.msra.mxu0 0.0
        %1814 = vmatpush.msra.mxu0 0.0
        %1815 = vmatpush.msra.mxu0 0.0
        %1816 = vmatpush.msra.mxu0 0.0
        %1817 = vmatpush.msra.mxu0 %v381
        %1818 = vmatpush.msra.mxu0 %v363
        %1819 = vmatpush.msra.mxu0 %v345
        %1820 = vmatpush.msra.mxu0 %v327
        %1821 = vmatpush.msra.mxu0 %v309
        %1822 = vmatpush.msra.mxu0 %v291
        %1823 = vmatpush.msra.mxu0 %v273
        %1824 = vmatpush.msra.mxu0 %v255
        %1825 = vmatmul.f32.gmra.mxu0 %v1667
        %v1826 = vpop.f32.mrf.mxu0
        %v1827 = vadd.f32 0.0, %v1826
        %1828 = vdwg.mxu0
        %1829 = vmatpush.msra.mxu0 0.0
        %1830 = vmatpush.msra.mxu0 0.0
        %1831 = vmatpush.msra.mxu0 0.0
        %1832 = vmatpush.msra.mxu0 0.0
        %1833 = vmatpush.msra.mxu0 0.0
        %1834 = vmatpush.msra.mxu0 0.0
        %1835 = vmatpush.msra.mxu0 0.0
        %1836 = vmatpush.msra.mxu0 0.0
        %1837 = vmatpush.msra.mxu0 %v382
        %1838 = vmatpush.msra.mxu0 %v364
        %1839 = vmatpush.msra.mxu0 %v346
        %1840 = vmatpush.msra.mxu0 %v328
        %1841 = vmatpush.msra.mxu0 %v310
        %1842 = vmatpush.msra.mxu0 %v292
        %1843 = vmatpush.msra.mxu0 %v274
        %1844 = vmatpush.msra.mxu0 %v256
        %1845 = vmatmul.f32.gmra.mxu0 %v1667
        %v1846 = vpop.f32.mrf.mxu0
        %v1847 = vadd.f32 0.0, %v1846
        %1848 = vdwg.mxu0
        %1849 = vmatpush.msra.mxu0 0.0
        %1850 = vmatpush.msra.mxu0 0.0
        %1851 = vmatpush.msra.mxu0 0.0
        %1852 = vmatpush.msra.mxu0 0.0
        %1853 = vmatpush.msra.mxu0 0.0
        %1854 = vmatpush.msra.mxu0 0.0
        %1855 = vmatpush.msra.mxu0 0.0
        %1856 = vmatpush.msra.mxu0 0.0
        %1857 = vmatpush.msra.mxu0 %v383
        %1858 = vmatpush.msra.mxu0 %v365
        %1859 = vmatpush.msra.mxu0 %v347
        %1860 = vmatpush.msra.mxu0 %v329
        %1861 = vmatpush.msra.mxu0 %v311
        %1862 = vmatpush.msra.mxu0 %v293
        %1863 = vmatpush.msra.mxu0 %v275
        %1864 = vmatpush.msra.mxu0 %v257
        %1865 = vmatmul.f32.gmra.mxu0 %v1667
        %v1866 = vpop.f32.mrf.mxu0
        %v1867 = vadd.f32 0.0, %v1866
        %1868 = vdwg.mxu0
        %1869 = vmatpush.msra.mxu0 0.0
        %1870 = vmatpush.msra.mxu0 0.0
        %1871 = vmatpush.msra.mxu0 0.0
        %1872 = vmatpush.msra.mxu0 0.0
        %1873 = vmatpush.msra.mxu0 0.0
        %1874 = vmatpush.msra.mxu0 0.0
        %1875 = vmatpush.msra.mxu0 0.0
        %1876 = vmatpush.msra.mxu0 0.0
        %1877 = vmatpush.msra.mxu0 %v384
        %1878 = vmatpush.msra.mxu0 %v366
        %1879 = vmatpush.msra.mxu0 %v348
        %1880 = vmatpush.msra.mxu0 %v330
        %1881 = vmatpush.msra.mxu0 %v312
        %1882 = vmatpush.msra.mxu0 %v294
        %1883 = vmatpush.msra.mxu0 %v276
        %1884 = vmatpush.msra.mxu0 %v258
        %1885 = vmatmul.f32.gmra.mxu0 %v1667
        %v1886 = vpop.f32.mrf.mxu0
        %v1887 = vadd.f32 0.0, %v1886
        %1888 = vdwg.mxu0
        %1889 = vmatpush.msra.mxu0 0.0
        %1890 = vmatpush.msra.mxu0 0.0
        %1891 = vmatpush.msra.mxu0 0.0
        %1892 = vmatpush.msra.mxu0 0.0
        %1893 = vmatpush.msra.mxu0 0.0
        %1894 = vmatpush.msra.mxu0 0.0
        %1895 = vmatpush.msra.mxu0 0.0
        %1896 = vmatpush.msra.mxu0 0.0
        %1897 = vmatpush.msra.mxu0 %v385
        %1898 = vmatpush.msra.mxu0 %v367
        %1899 = vmatpush.msra.mxu0 %v349
        %1900 = vmatpush.msra.mxu0 %v331
        %1901 = vmatpush.msra.mxu0 %v313
        %1902 = vmatpush.msra.mxu0 %v295
        %1903 = vmatpush.msra.mxu0 %v277
        %1904 = vmatpush.msra.mxu0 %v259
        %1905 = vmatmul.f32.gmra.mxu0 %v1667
        %v1906 = vpop.f32.mrf.mxu0
        %v1907 = vadd.f32 0.0, %v1906
        %1908 = vdwg.mxu0
        %1909 = vmatpush.msra.mxu0 0.0
        %1910 = vmatpush.msra.mxu0 0.0
        %1911 = vmatpush.msra.mxu0 0.0
        %1912 = vmatpush.msra.mxu0 0.0
        %1913 = vmatpush.msra.mxu0 0.0
        %1914 = vmatpush.msra.mxu0 0.0
        %1915 = vmatpush.msra.mxu0 0.0
        %1916 = vmatpush.msra.mxu0 0.0
        %1917 = vmatpush.msra.mxu0 %v386
        %1918 = vmatpush.msra.mxu0 %v368
        %1919 = vmatpush.msra.mxu0 %v350
        %1920 = vmatpush.msra.mxu0 %v332
        %1921 = vmatpush.msra.mxu0 %v314
        %1922 = vmatpush.msra.mxu0 %v296
        %1923 = vmatpush.msra.mxu0 %v278
        %1924 = vmatpush.msra.mxu0 %v260
        %1925 = vmatmul.f32.gmra.mxu0 %v1667
        %v1926 = vpop.f32.mrf.mxu0
        %v1927 = vadd.f32 0.0, %v1926
        %1928 = vdwg.mxu0
        %1929 = vmatpush.msra.mxu0 0.0
        %1930 = vmatpush.msra.mxu0 0.0
        %1931 = vmatpush.msra.mxu0 0.0
        %1932 = vmatpush.msra.mxu0 0.0
        %1933 = vmatpush.msra.mxu0 0.0
        %1934 = vmatpush.msra.mxu0 0.0
        %1935 = vmatpush.msra.mxu0 0.0
        %1936 = vmatpush.msra.mxu0 0.0
        %1937 = vmatpush.msra.mxu0 %v387
        %1938 = vmatpush.msra.mxu0 %v369
        %1939 = vmatpush.msra.mxu0 %v351
        %1940 = vmatpush.msra.mxu0 %v333
        %1941 = vmatpush.msra.mxu0 %v315
        %1942 = vmatpush.msra.mxu0 %v297
        %1943 = vmatpush.msra.mxu0 %v279
        %1944 = vmatpush.msra.mxu0 %v261
        %1945 = vmatmul.f32.gmra.mxu0 %v1667
        %v1946 = vpop.f32.mrf.mxu0
        %v1947 = vadd.f32 0.0, %v1946
        %1948 = vdwg.mxu0
        %1949 = vmatpush.msra.mxu0 0.0
        %1950 = vmatpush.msra.mxu0 0.0
        %1951 = vmatpush.msra.mxu0 0.0
        %1952 = vmatpush.msra.mxu0 0.0
        %1953 = vmatpush.msra.mxu0 0.0
        %1954 = vmatpush.msra.mxu0 0.0
        %1955 = vmatpush.msra.mxu0 0.0
        %1956 = vmatpush.msra.mxu0 0.0
        %1957 = vmatpush.msra.mxu0 %v388
        %1958 = vmatpush.msra.mxu0 %v370
        %1959 = vmatpush.msra.mxu0 %v352
        %1960 = vmatpush.msra.mxu0 %v334
        %1961 = vmatpush.msra.mxu0 %v316
        %1962 = vmatpush.msra.mxu0 %v298
        %1963 = vmatpush.msra.mxu0 %v280
        %1964 = vmatpush.msra.mxu0 %v262
        %1965 = vmatmul.f32.gmra.mxu0 %v1667
        %v1966 = vpop.f32.mrf.mxu0
        %v1967 = vadd.f32 0.0, %v1966
        %1968 = vdwg.mxu0
        %1969 = vmatpush.msra.mxu0 0.0
        %1970 = vmatpush.msra.mxu0 0.0
        %1971 = vmatpush.msra.mxu0 0.0
        %1972 = vmatpush.msra.mxu0 0.0
        %1973 = vmatpush.msra.mxu0 0.0
        %1974 = vmatpush.msra.mxu0 0.0
        %1975 = vmatpush.msra.mxu0 0.0
        %1976 = vmatpush.msra.mxu0 0.0
        %1977 = vmatpush.msra.mxu0 %v389
        %1978 = vmatpush.msra.mxu0 %v371
        %1979 = vmatpush.msra.mxu0 %v353
        %1980 = vmatpush.msra.mxu0 %v335
        %1981 = vmatpush.msra.mxu0 %v317
        %1982 = vmatpush.msra.mxu0 %v299
        %1983 = vmatpush.msra.mxu0 %v281
        %1984 = vmatpush.msra.mxu0 %v263
        %1985 = vmatmul.f32.gmra.mxu0 %v1667
        %v1986 = vpop.f32.mrf.mxu0
        %v1987 = vadd.f32 0.0, %v1986
        %1988 = vdwg.mxu0
        %1989 = vmatpush.msra.mxu0 0.0
        %1990 = vmatpush.msra.mxu0 0.0
        %1991 = vmatpush.msra.mxu0 0.0
        %1992 = vmatpush.msra.mxu0 0.0
        %1993 = vmatpush.msra.mxu0 0.0
        %1994 = vmatpush.msra.mxu0 0.0
        %1995 = vmatpush.msra.mxu0 0.0
        %1996 = vmatpush.msra.mxu0 0.0
        %1997 = vmatpush.msra.mxu0 %v390
        %1998 = vmatpush.msra.mxu0 %v372
        %1999 = vmatpush.msra.mxu0 %v354
        %2000 = vmatpush.msra.mxu0 %v336
        %2001 = vmatpush.msra.mxu0 %v318
        %2002 = vmatpush.msra.mxu0 %v300
        %2003 = vmatpush.msra.mxu0 %v282
        %2004 = vmatpush.msra.mxu0 %v264
        %2005 = vmatmul.f32.gmra.mxu0 %v1667
        %v2006 = vpop.f32.mrf.mxu0
        %v2007 = vadd.f32 0.0, %v2006
        %2008 = vdwg.mxu0
        %2009 = vmatpush.msra.mxu0 0.0
        %2010 = vmatpush.msra.mxu0 0.0
        %2011 = vmatpush.msra.mxu0 0.0
        %2012 = vmatpush.msra.mxu0 0.0
        %2013 = vmatpush.msra.mxu0 0.0
        %2014 = vmatpush.msra.mxu0 0.0
        %2015 = vmatpush.msra.mxu0 0.0
        %2016 = vmatpush.msra.mxu0 0.0
        %2017 = vmatpush.msra.mxu0 %v391
        %2018 = vmatpush.msra.mxu0 %v373
        %2019 = vmatpush.msra.mxu0 %v355
        %2020 = vmatpush.msra.mxu0 %v337
        %2021 = vmatpush.msra.mxu0 %v319
        %2022 = vmatpush.msra.mxu0 %v301
        %2023 = vmatpush.msra.mxu0 %v283
        %2024 = vmatpush.msra.mxu0 %v265
        %2025 = vmatmul.f32.gmra.mxu0 %v1667
        %v2026 = vpop.f32.mrf.mxu0
        %v2027 = vadd.f32 0.0, %v2026
        %2028 = vdwg.mxu0
        %v2047 = vrot.slane %v1707, 4
        %v2048 = vrot.slane %v1747, 4
        %v2049 = vrot.slane %v1787, 4
        %v2050 = vrot.slane %v1827, 4
        %v2051 = vrot.slane %v1867, 4
        %v2052 = vrot.slane %v1907, 4
        %v2053 = vrot.slane %v1947, 4
        %v2054 = vrot.slane %v1987, 4
        %v2055 = vrot.slane %v2027, 4
        %v2056 = vsel %vm787, %v1687, %v2047
        %v2057 = vsel %vm787, %v1727, %v2048
        %v2058 = vsel %vm787, %v1767, %v2049
        %v2059 = vsel %vm787, %v1807, %v2050
        %v2060 = vsel %vm787, %v1847, %v2051
        %v2061 = vsel %vm787, %v1887, %v2052
        %v2062 = vsel %vm787, %v1927, %v2053
        %v2063 = vsel %vm787, %v1967, %v2054
        %v2064 = vsel %vm787, %v2007, %v2055
        %s2074 = scalar_lea.vmem [#allocation2], 216
        %2075 = vst [vmem:[%s2074] sm:$0xff] %v2056
        %2076 = vst [vmem:[%s2074 + $0x8] sm:$0xff] %v2057
        %2077 = vst [vmem:[%s2074 + $0x10] sm:$0xff] %v2058
        %2078 = vst [vmem:[%s2074 + $0x18] sm:$0xff] %v2059
        %2079 = vst [vmem:[%s2074 + $0x20] sm:$0xff] %v2060
        %2080 = vst [vmem:[%s2074 + $0x28] sm:$0xff] %v2061
        %2081 = vst [vmem:[%s2074 + $0x30] sm:$0xff] %v2062
        %2082 = vst [vmem:[%s2074 + $0x38] sm:$0xff] %v2063
        %2083 = vst [vmem:[%s2074 + $0x40] sm:$0xff] %v2064
        %s2084 = sadd.s32 %s247, 4
        %s2085 = sld [smem:[#allocation4 + %s2084]]
        %s2086 = smul.u32 %s2085, 4
        %s2087 = scalar_lea.vmem %s236, %s2086
        %v2088 = vld [vmem:[%s2087] sm:$0xf]
        %v2090 = vsel %vm396, %v2088, 0
        %2092 = vmatpush.msra.mxu0 0.0
        %2093 = vmatpush.msra.mxu0 0.0
        %2094 = vmatpush.msra.mxu0 0.0
        %2095 = vmatpush.msra.mxu0 0.0
        %2096 = vmatpush.msra.mxu0 0.0
        %2097 = vmatpush.msra.mxu0 0.0
        %2098 = vmatpush.msra.mxu0 0.0
        %2099 = vmatpush.msra.mxu0 0.0
        %2100 = vmatpush.msra.mxu0 %v374
        %2101 = vmatpush.msra.mxu0 %v356
        %2102 = vmatpush.msra.mxu0 %v338
        %2103 = vmatpush.msra.mxu0 %v320
        %2104 = vmatpush.msra.mxu0 %v302
        %2105 = vmatpush.msra.mxu0 %v284
        %2106 = vmatpush.msra.mxu0 %v266
        %2107 = vmatpush.msra.mxu0 %v248
        %2108 = vmatmul.f32.gmra.mxu0 %v2090
        %v2109 = vpop.f32.mrf.mxu0
        %v2110 = vadd.f32 0.0, %v2109
        %2111 = vdwg.mxu0
        %2112 = vmatpush.msra.mxu0 0.0
        %2113 = vmatpush.msra.mxu0 0.0
        %2114 = vmatpush.msra.mxu0 0.0
        %2115 = vmatpush.msra.mxu0 0.0
        %2116 = vmatpush.msra.mxu0 0.0
        %2117 = vmatpush.msra.mxu0 0.0
        %2118 = vmatpush.msra.mxu0 0.0
        %2119 = vmatpush.msra.mxu0 0.0
        %2120 = vmatpush.msra.mxu0 %v375
        %2121 = vmatpush.msra.mxu0 %v357
        %2122 = vmatpush.msra.mxu0 %v339
        %2123 = vmatpush.msra.mxu0 %v321
        %2124 = vmatpush.msra.mxu0 %v303
        %2125 = vmatpush.msra.mxu0 %v285
        %2126 = vmatpush.msra.mxu0 %v267
        %2127 = vmatpush.msra.mxu0 %v249
        %2128 = vmatmul.f32.gmra.mxu0 %v2090
        %v2129 = vpop.f32.mrf.mxu0
        %v2130 = vadd.f32 0.0, %v2129
        %2131 = vdwg.mxu0
        %2132 = vmatpush.msra.mxu0 0.0
        %2133 = vmatpush.msra.mxu0 0.0
        %2134 = vmatpush.msra.mxu0 0.0
        %2135 = vmatpush.msra.mxu0 0.0
        %2136 = vmatpush.msra.mxu0 0.0
        %2137 = vmatpush.msra.mxu0 0.0
        %2138 = vmatpush.msra.mxu0 0.0
        %2139 = vmatpush.msra.mxu0 0.0
        %2140 = vmatpush.msra.mxu0 %v376
        %2141 = vmatpush.msra.mxu0 %v358
        %2142 = vmatpush.msra.mxu0 %v340
        %2143 = vmatpush.msra.mxu0 %v322
        %2144 = vmatpush.msra.mxu0 %v304
        %2145 = vmatpush.msra.mxu0 %v286
        %2146 = vmatpush.msra.mxu0 %v268
        %2147 = vmatpush.msra.mxu0 %v250
        %2148 = vmatmul.f32.gmra.mxu0 %v2090
        %v2149 = vpop.f32.mrf.mxu0
        %v2150 = vadd.f32 0.0, %v2149
        %2151 = vdwg.mxu0
        %2152 = vmatpush.msra.mxu0 0.0
        %2153 = vmatpush.msra.mxu0 0.0
        %2154 = vmatpush.msra.mxu0 0.0
        %2155 = vmatpush.msra.mxu0 0.0
        %2156 = vmatpush.msra.mxu0 0.0
        %2157 = vmatpush.msra.mxu0 0.0
        %2158 = vmatpush.msra.mxu0 0.0
        %2159 = vmatpush.msra.mxu0 0.0
        %2160 = vmatpush.msra.mxu0 %v377
        %2161 = vmatpush.msra.mxu0 %v359
        %2162 = vmatpush.msra.mxu0 %v341
        %2163 = vmatpush.msra.mxu0 %v323
        %2164 = vmatpush.msra.mxu0 %v305
        %2165 = vmatpush.msra.mxu0 %v287
        %2166 = vmatpush.msra.mxu0 %v269
        %2167 = vmatpush.msra.mxu0 %v251
        %2168 = vmatmul.f32.gmra.mxu0 %v2090
        %v2169 = vpop.f32.mrf.mxu0
        %v2170 = vadd.f32 0.0, %v2169
        %2171 = vdwg.mxu0
        %2172 = vmatpush.msra.mxu0 0.0
        %2173 = vmatpush.msra.mxu0 0.0
        %2174 = vmatpush.msra.mxu0 0.0
        %2175 = vmatpush.msra.mxu0 0.0
        %2176 = vmatpush.msra.mxu0 0.0
        %2177 = vmatpush.msra.mxu0 0.0
        %2178 = vmatpush.msra.mxu0 0.0
        %2179 = vmatpush.msra.mxu0 0.0
        %2180 = vmatpush.msra.mxu0 %v378
        %2181 = vmatpush.msra.mxu0 %v360
        %2182 = vmatpush.msra.mxu0 %v342
        %2183 = vmatpush.msra.mxu0 %v324
        %2184 = vmatpush.msra.mxu0 %v306
        %2185 = vmatpush.msra.mxu0 %v288
        %2186 = vmatpush.msra.mxu0 %v270
        %2187 = vmatpush.msra.mxu0 %v252
        %2188 = vmatmul.f32.gmra.mxu0 %v2090
        %v2189 = vpop.f32.mrf.mxu0
        %v2190 = vadd.f32 0.0, %v2189
        %2191 = vdwg.mxu0
        %2192 = vmatpush.msra.mxu0 0.0
        %2193 = vmatpush.msra.mxu0 0.0
        %2194 = vmatpush.msra.mxu0 0.0
        %2195 = vmatpush.msra.mxu0 0.0
        %2196 = vmatpush.msra.mxu0 0.0
        %2197 = vmatpush.msra.mxu0 0.0
        %2198 = vmatpush.msra.mxu0 0.0
        %2199 = vmatpush.msra.mxu0 0.0
        %2200 = vmatpush.msra.mxu0 %v379
        %2201 = vmatpush.msra.mxu0 %v361
        %2202 = vmatpush.msra.mxu0 %v343
        %2203 = vmatpush.msra.mxu0 %v325
        %2204 = vmatpush.msra.mxu0 %v307
        %2205 = vmatpush.msra.mxu0 %v289
        %2206 = vmatpush.msra.mxu0 %v271
        %2207 = vmatpush.msra.mxu0 %v253
        %2208 = vmatmul.f32.gmra.mxu0 %v2090
        %v2209 = vpop.f32.mrf.mxu0
        %v2210 = vadd.f32 0.0, %v2209
        %2211 = vdwg.mxu0
        %2212 = vmatpush.msra.mxu0 0.0
        %2213 = vmatpush.msra.mxu0 0.0
        %2214 = vmatpush.msra.mxu0 0.0
        %2215 = vmatpush.msra.mxu0 0.0
        %2216 = vmatpush.msra.mxu0 0.0
        %2217 = vmatpush.msra.mxu0 0.0
        %2218 = vmatpush.msra.mxu0 0.0
        %2219 = vmatpush.msra.mxu0 0.0
        %2220 = vmatpush.msra.mxu0 %v380
        %2221 = vmatpush.msra.mxu0 %v362
        %2222 = vmatpush.msra.mxu0 %v344
        %2223 = vmatpush.msra.mxu0 %v326
        %2224 = vmatpush.msra.mxu0 %v308
        %2225 = vmatpush.msra.mxu0 %v290
        %2226 = vmatpush.msra.mxu0 %v272
        %2227 = vmatpush.msra.mxu0 %v254
        %2228 = vmatmul.f32.gmra.mxu0 %v2090
        %v2229 = vpop.f32.mrf.mxu0
        %v2230 = vadd.f32 0.0, %v2229
        %2231 = vdwg.mxu0
        %2232 = vmatpush.msra.mxu0 0.0
        %2233 = vmatpush.msra.mxu0 0.0
        %2234 = vmatpush.msra.mxu0 0.0
        %2235 = vmatpush.msra.mxu0 0.0
        %2236 = vmatpush.msra.mxu0 0.0
        %2237 = vmatpush.msra.mxu0 0.0
        %2238 = vmatpush.msra.mxu0 0.0
        %2239 = vmatpush.msra.mxu0 0.0
        %2240 = vmatpush.msra.mxu0 %v381
        %2241 = vmatpush.msra.mxu0 %v363
        %2242 = vmatpush.msra.mxu0 %v345
        %2243 = vmatpush.msra.mxu0 %v327
        %2244 = vmatpush.msra.mxu0 %v309
        %2245 = vmatpush.msra.mxu0 %v291
        %2246 = vmatpush.msra.mxu0 %v273
        %2247 = vmatpush.msra.mxu0 %v255
        %2248 = vmatmul.f32.gmra.mxu0 %v2090
        %v2249 = vpop.f32.mrf.mxu0
        %v2250 = vadd.f32 0.0, %v2249
        %2251 = vdwg.mxu0
        %2252 = vmatpush.msra.mxu0 0.0
        %2253 = vmatpush.msra.mxu0 0.0
        %2254 = vmatpush.msra.mxu0 0.0
        %2255 = vmatpush.msra.mxu0 0.0
        %2256 = vmatpush.msra.mxu0 0.0
        %2257 = vmatpush.msra.mxu0 0.0
        %2258 = vmatpush.msra.mxu0 0.0
        %2259 = vmatpush.msra.mxu0 0.0
        %2260 = vmatpush.msra.mxu0 %v382
        %2261 = vmatpush.msra.mxu0 %v364
        %2262 = vmatpush.msra.mxu0 %v346
        %2263 = vmatpush.msra.mxu0 %v328
        %2264 = vmatpush.msra.mxu0 %v310
        %2265 = vmatpush.msra.mxu0 %v292
        %2266 = vmatpush.msra.mxu0 %v274
        %2267 = vmatpush.msra.mxu0 %v256
        %2268 = vmatmul.f32.gmra.mxu0 %v2090
        %v2269 = vpop.f32.mrf.mxu0
        %v2270 = vadd.f32 0.0, %v2269
        %2271 = vdwg.mxu0
        %2272 = vmatpush.msra.mxu0 0.0
        %2273 = vmatpush.msra.mxu0 0.0
        %2274 = vmatpush.msra.mxu0 0.0
        %2275 = vmatpush.msra.mxu0 0.0
        %2276 = vmatpush.msra.mxu0 0.0
        %2277 = vmatpush.msra.mxu0 0.0
        %2278 = vmatpush.msra.mxu0 0.0
        %2279 = vmatpush.msra.mxu0 0.0
        %2280 = vmatpush.msra.mxu0 %v383
        %2281 = vmatpush.msra.mxu0 %v365
        %2282 = vmatpush.msra.mxu0 %v347
        %2283 = vmatpush.msra.mxu0 %v329
        %2284 = vmatpush.msra.mxu0 %v311
        %2285 = vmatpush.msra.mxu0 %v293
        %2286 = vmatpush.msra.mxu0 %v275
        %2287 = vmatpush.msra.mxu0 %v257
        %2288 = vmatmul.f32.gmra.mxu0 %v2090
        %v2289 = vpop.f32.mrf.mxu0
        %v2290 = vadd.f32 0.0, %v2289
        %2291 = vdwg.mxu0
        %2292 = vmatpush.msra.mxu0 0.0
        %2293 = vmatpush.msra.mxu0 0.0
        %2294 = vmatpush.msra.mxu0 0.0
        %2295 = vmatpush.msra.mxu0 0.0
        %2296 = vmatpush.msra.mxu0 0.0
        %2297 = vmatpush.msra.mxu0 0.0
        %2298 = vmatpush.msra.mxu0 0.0
        %2299 = vmatpush.msra.mxu0 0.0
        %2300 = vmatpush.msra.mxu0 %v384
        %2301 = vmatpush.msra.mxu0 %v366
        %2302 = vmatpush.msra.mxu0 %v348
        %2303 = vmatpush.msra.mxu0 %v330
        %2304 = vmatpush.msra.mxu0 %v312
        %2305 = vmatpush.msra.mxu0 %v294
        %2306 = vmatpush.msra.mxu0 %v276
        %2307 = vmatpush.msra.mxu0 %v258
        %2308 = vmatmul.f32.gmra.mxu0 %v2090
        %v2309 = vpop.f32.mrf.mxu0
        %v2310 = vadd.f32 0.0, %v2309
        %2311 = vdwg.mxu0
        %2312 = vmatpush.msra.mxu0 0.0
        %2313 = vmatpush.msra.mxu0 0.0
        %2314 = vmatpush.msra.mxu0 0.0
        %2315 = vmatpush.msra.mxu0 0.0
        %2316 = vmatpush.msra.mxu0 0.0
        %2317 = vmatpush.msra.mxu0 0.0
        %2318 = vmatpush.msra.mxu0 0.0
        %2319 = vmatpush.msra.mxu0 0.0
        %2320 = vmatpush.msra.mxu0 %v385
        %2321 = vmatpush.msra.mxu0 %v367
        %2322 = vmatpush.msra.mxu0 %v349
        %2323 = vmatpush.msra.mxu0 %v331
        %2324 = vmatpush.msra.mxu0 %v313
        %2325 = vmatpush.msra.mxu0 %v295
        %2326 = vmatpush.msra.mxu0 %v277
        %2327 = vmatpush.msra.mxu0 %v259
        %2328 = vmatmul.f32.gmra.mxu0 %v2090
        %v2329 = vpop.f32.mrf.mxu0
        %v2330 = vadd.f32 0.0, %v2329
        %2331 = vdwg.mxu0
        %2332 = vmatpush.msra.mxu0 0.0
        %2333 = vmatpush.msra.mxu0 0.0
        %2334 = vmatpush.msra.mxu0 0.0
        %2335 = vmatpush.msra.mxu0 0.0
        %2336 = vmatpush.msra.mxu0 0.0
        %2337 = vmatpush.msra.mxu0 0.0
        %2338 = vmatpush.msra.mxu0 0.0
        %2339 = vmatpush.msra.mxu0 0.0
        %2340 = vmatpush.msra.mxu0 %v386
        %2341 = vmatpush.msra.mxu0 %v368
        %2342 = vmatpush.msra.mxu0 %v350
        %2343 = vmatpush.msra.mxu0 %v332
        %2344 = vmatpush.msra.mxu0 %v314
        %2345 = vmatpush.msra.mxu0 %v296
        %2346 = vmatpush.msra.mxu0 %v278
        %2347 = vmatpush.msra.mxu0 %v260
        %2348 = vmatmul.f32.gmra.mxu0 %v2090
        %v2349 = vpop.f32.mrf.mxu0
        %v2350 = vadd.f32 0.0, %v2349
        %2351 = vdwg.mxu0
        %2352 = vmatpush.msra.mxu0 0.0
        %2353 = vmatpush.msra.mxu0 0.0
        %2354 = vmatpush.msra.mxu0 0.0
        %2355 = vmatpush.msra.mxu0 0.0
        %2356 = vmatpush.msra.mxu0 0.0
        %2357 = vmatpush.msra.mxu0 0.0
        %2358 = vmatpush.msra.mxu0 0.0
        %2359 = vmatpush.msra.mxu0 0.0
        %2360 = vmatpush.msra.mxu0 %v387
        %2361 = vmatpush.msra.mxu0 %v369
        %2362 = vmatpush.msra.mxu0 %v351
        %2363 = vmatpush.msra.mxu0 %v333
        %2364 = vmatpush.msra.mxu0 %v315
        %2365 = vmatpush.msra.mxu0 %v297
        %2366 = vmatpush.msra.mxu0 %v279
        %2367 = vmatpush.msra.mxu0 %v261
        %2368 = vmatmul.f32.gmra.mxu0 %v2090
        %v2369 = vpop.f32.mrf.mxu0
        %v2370 = vadd.f32 0.0, %v2369
        %2371 = vdwg.mxu0
        %2372 = vmatpush.msra.mxu0 0.0
        %2373 = vmatpush.msra.mxu0 0.0
        %2374 = vmatpush.msra.mxu0 0.0
        %2375 = vmatpush.msra.mxu0 0.0
        %2376 = vmatpush.msra.mxu0 0.0
        %2377 = vmatpush.msra.mxu0 0.0
        %2378 = vmatpush.msra.mxu0 0.0
        %2379 = vmatpush.msra.mxu0 0.0
        %2380 = vmatpush.msra.mxu0 %v388
        %2381 = vmatpush.msra.mxu0 %v370
        %2382 = vmatpush.msra.mxu0 %v352
        %2383 = vmatpush.msra.mxu0 %v334
        %2384 = vmatpush.msra.mxu0 %v316
        %2385 = vmatpush.msra.mxu0 %v298
        %2386 = vmatpush.msra.mxu0 %v280
        %2387 = vmatpush.msra.mxu0 %v262
        %2388 = vmatmul.f32.gmra.mxu0 %v2090
        %v2389 = vpop.f32.mrf.mxu0
        %v2390 = vadd.f32 0.0, %v2389
        %2391 = vdwg.mxu0
        %2392 = vmatpush.msra.mxu0 0.0
        %2393 = vmatpush.msra.mxu0 0.0
        %2394 = vmatpush.msra.mxu0 0.0
        %2395 = vmatpush.msra.mxu0 0.0
        %2396 = vmatpush.msra.mxu0 0.0
        %2397 = vmatpush.msra.mxu0 0.0
        %2398 = vmatpush.msra.mxu0 0.0
        %2399 = vmatpush.msra.mxu0 0.0
        %2400 = vmatpush.msra.mxu0 %v389
        %2401 = vmatpush.msra.mxu0 %v371
        %2402 = vmatpush.msra.mxu0 %v353
        %2403 = vmatpush.msra.mxu0 %v335
        %2404 = vmatpush.msra.mxu0 %v317
        %2405 = vmatpush.msra.mxu0 %v299
        %2406 = vmatpush.msra.mxu0 %v281
        %2407 = vmatpush.msra.mxu0 %v263
        %2408 = vmatmul.f32.gmra.mxu0 %v2090
        %v2409 = vpop.f32.mrf.mxu0
        %v2410 = vadd.f32 0.0, %v2409
        %2411 = vdwg.mxu0
        %2412 = vmatpush.msra.mxu0 0.0
        %2413 = vmatpush.msra.mxu0 0.0
        %2414 = vmatpush.msra.mxu0 0.0
        %2415 = vmatpush.msra.mxu0 0.0
        %2416 = vmatpush.msra.mxu0 0.0
        %2417 = vmatpush.msra.mxu0 0.0
        %2418 = vmatpush.msra.mxu0 0.0
        %2419 = vmatpush.msra.mxu0 0.0
        %2420 = vmatpush.msra.mxu0 %v390
        %2421 = vmatpush.msra.mxu0 %v372
        %2422 = vmatpush.msra.mxu0 %v354
        %2423 = vmatpush.msra.mxu0 %v336
        %2424 = vmatpush.msra.mxu0 %v318
        %2425 = vmatpush.msra.mxu0 %v300
        %2426 = vmatpush.msra.mxu0 %v282
        %2427 = vmatpush.msra.mxu0 %v264
        %2428 = vmatmul.f32.gmra.mxu0 %v2090
        %v2429 = vpop.f32.mrf.mxu0
        %v2430 = vadd.f32 0.0, %v2429
        %2431 = vdwg.mxu0
        %2432 = vmatpush.msra.mxu0 0.0
        %2433 = vmatpush.msra.mxu0 0.0
        %2434 = vmatpush.msra.mxu0 0.0
        %2435 = vmatpush.msra.mxu0 0.0
        %2436 = vmatpush.msra.mxu0 0.0
        %2437 = vmatpush.msra.mxu0 0.0
        %2438 = vmatpush.msra.mxu0 0.0
        %2439 = vmatpush.msra.mxu0 0.0
        %2440 = vmatpush.msra.mxu0 %v391
        %2441 = vmatpush.msra.mxu0 %v373
        %2442 = vmatpush.msra.mxu0 %v355
        %2443 = vmatpush.msra.mxu0 %v337
        %2444 = vmatpush.msra.mxu0 %v319
        %2445 = vmatpush.msra.mxu0 %v301
        %2446 = vmatpush.msra.mxu0 %v283
        %2447 = vmatpush.msra.mxu0 %v265
        %2448 = vmatmul.f32.gmra.mxu0 %v2090
        %v2449 = vpop.f32.mrf.mxu0
        %v2450 = vadd.f32 0.0, %v2449
        %2451 = vdwg.mxu0
        %v2470 = vrot.slane %v2130, 4
        %v2471 = vrot.slane %v2170, 4
        %v2472 = vrot.slane %v2210, 4
        %v2473 = vrot.slane %v2250, 4
        %v2474 = vrot.slane %v2290, 4
        %v2475 = vrot.slane %v2330, 4
        %v2476 = vrot.slane %v2370, 4
        %v2477 = vrot.slane %v2410, 4
        %v2478 = vrot.slane %v2450, 4
        %v2479 = vsel %vm787, %v2110, %v2470
        %v2480 = vsel %vm787, %v2150, %v2471
        %v2481 = vsel %vm787, %v2190, %v2472
        %v2482 = vsel %vm787, %v2230, %v2473
        %v2483 = vsel %vm787, %v2270, %v2474
        %v2484 = vsel %vm787, %v2310, %v2475
        %v2485 = vsel %vm787, %v2350, %v2476
        %v2486 = vsel %vm787, %v2390, %v2477
        %v2487 = vsel %vm787, %v2430, %v2478
        %s2497 = scalar_lea.vmem [#allocation2], 288
        %2498 = vst [vmem:[%s2497] sm:$0xff] %v2479
        %2499 = vst [vmem:[%s2497 + $0x8] sm:$0xff] %v2480
        %2500 = vst [vmem:[%s2497 + $0x10] sm:$0xff] %v2481
        %2501 = vst [vmem:[%s2497 + $0x18] sm:$0xff] %v2482
        %2502 = vst [vmem:[%s2497 + $0x20] sm:$0xff] %v2483
        %2503 = vst [vmem:[%s2497 + $0x28] sm:$0xff] %v2484
        %2504 = vst [vmem:[%s2497 + $0x30] sm:$0xff] %v2485
        %2505 = vst [vmem:[%s2497 + $0x38] sm:$0xff] %v2486
        %2506 = vst [vmem:[%s2497 + $0x40] sm:$0xff] %v2487
        %s2507 = sadd.s32 %s247, 5
        %s2508 = sld [smem:[#allocation4 + %s2507]]
        %s2509 = smul.u32 %s2508, 4
        %s2510 = scalar_lea.vmem %s236, %s2509
        %v2511 = vld [vmem:[%s2510] sm:$0xf]
        %v2513 = vsel %vm396, %v2511, 0
        %2515 = vmatpush.msra.mxu0 0.0
        %2516 = vmatpush.msra.mxu0 0.0
        %2517 = vmatpush.msra.mxu0 0.0
        %2518 = vmatpush.msra.mxu0 0.0
        %2519 = vmatpush.msra.mxu0 0.0
        %2520 = vmatpush.msra.mxu0 0.0
        %2521 = vmatpush.msra.mxu0 0.0
        %2522 = vmatpush.msra.mxu0 0.0
        %2523 = vmatpush.msra.mxu0 %v374
        %2524 = vmatpush.msra.mxu0 %v356
        %2525 = vmatpush.msra.mxu0 %v338
        %2526 = vmatpush.msra.mxu0 %v320
        %2527 = vmatpush.msra.mxu0 %v302
        %2528 = vmatpush.msra.mxu0 %v284
        %2529 = vmatpush.msra.mxu0 %v266
        %2530 = vmatpush.msra.mxu0 %v248
        %2531 = vmatmul.f32.gmra.mxu0 %v2513
        %v2532 = vpop.f32.mrf.mxu0
        %v2533 = vadd.f32 0.0, %v2532
        %2534 = vdwg.mxu0
        %2535 = vmatpush.msra.mxu0 0.0
        %2536 = vmatpush.msra.mxu0 0.0
        %2537 = vmatpush.msra.mxu0 0.0
        %2538 = vmatpush.msra.mxu0 0.0
        %2539 = vmatpush.msra.mxu0 0.0
        %2540 = vmatpush.msra.mxu0 0.0
        %2541 = vmatpush.msra.mxu0 0.0
        %2542 = vmatpush.msra.mxu0 0.0
        %2543 = vmatpush.msra.mxu0 %v375
        %2544 = vmatpush.msra.mxu0 %v357
        %2545 = vmatpush.msra.mxu0 %v339
        %2546 = vmatpush.msra.mxu0 %v321
        %2547 = vmatpush.msra.mxu0 %v303
        %2548 = vmatpush.msra.mxu0 %v285
        %2549 = vmatpush.msra.mxu0 %v267
        %2550 = vmatpush.msra.mxu0 %v249
        %2551 = vmatmul.f32.gmra.mxu0 %v2513
        %v2552 = vpop.f32.mrf.mxu0
        %v2553 = vadd.f32 0.0, %v2552
        %2554 = vdwg.mxu0
        %2555 = vmatpush.msra.mxu0 0.0
        %2556 = vmatpush.msra.mxu0 0.0
        %2557 = vmatpush.msra.mxu0 0.0
        %2558 = vmatpush.msra.mxu0 0.0
        %2559 = vmatpush.msra.mxu0 0.0
        %2560 = vmatpush.msra.mxu0 0.0
        %2561 = vmatpush.msra.mxu0 0.0
        %2562 = vmatpush.msra.mxu0 0.0
        %2563 = vmatpush.msra.mxu0 %v376
        %2564 = vmatpush.msra.mxu0 %v358
        %2565 = vmatpush.msra.mxu0 %v340
        %2566 = vmatpush.msra.mxu0 %v322
        %2567 = vmatpush.msra.mxu0 %v304
        %2568 = vmatpush.msra.mxu0 %v286
        %2569 = vmatpush.msra.mxu0 %v268
        %2570 = vmatpush.msra.mxu0 %v250
        %2571 = vmatmul.f32.gmra.mxu0 %v2513
        %v2572 = vpop.f32.mrf.mxu0
        %v2573 = vadd.f32 0.0, %v2572
        %2574 = vdwg.mxu0
        %2575 = vmatpush.msra.mxu0 0.0
        %2576 = vmatpush.msra.mxu0 0.0
        %2577 = vmatpush.msra.mxu0 0.0
        %2578 = vmatpush.msra.mxu0 0.0
        %2579 = vmatpush.msra.mxu0 0.0
        %2580 = vmatpush.msra.mxu0 0.0
        %2581 = vmatpush.msra.mxu0 0.0
        %2582 = vmatpush.msra.mxu0 0.0
        %2583 = vmatpush.msra.mxu0 %v377
        %2584 = vmatpush.msra.mxu0 %v359
        %2585 = vmatpush.msra.mxu0 %v341
        %2586 = vmatpush.msra.mxu0 %v323
        %2587 = vmatpush.msra.mxu0 %v305
        %2588 = vmatpush.msra.mxu0 %v287
        %2589 = vmatpush.msra.mxu0 %v269
        %2590 = vmatpush.msra.mxu0 %v251
        %2591 = vmatmul.f32.gmra.mxu0 %v2513
        %v2592 = vpop.f32.mrf.mxu0
        %v2593 = vadd.f32 0.0, %v2592
        %2594 = vdwg.mxu0
        %2595 = vmatpush.msra.mxu0 0.0
        %2596 = vmatpush.msra.mxu0 0.0
        %2597 = vmatpush.msra.mxu0 0.0
        %2598 = vmatpush.msra.mxu0 0.0
        %2599 = vmatpush.msra.mxu0 0.0
        %2600 = vmatpush.msra.mxu0 0.0
        %2601 = vmatpush.msra.mxu0 0.0
        %2602 = vmatpush.msra.mxu0 0.0
        %2603 = vmatpush.msra.mxu0 %v378
        %2604 = vmatpush.msra.mxu0 %v360
        %2605 = vmatpush.msra.mxu0 %v342
        %2606 = vmatpush.msra.mxu0 %v324
        %2607 = vmatpush.msra.mxu0 %v306
        %2608 = vmatpush.msra.mxu0 %v288
        %2609 = vmatpush.msra.mxu0 %v270
        %2610 = vmatpush.msra.mxu0 %v252
        %2611 = vmatmul.f32.gmra.mxu0 %v2513
        %v2612 = vpop.f32.mrf.mxu0
        %v2613 = vadd.f32 0.0, %v2612
        %2614 = vdwg.mxu0
        %2615 = vmatpush.msra.mxu0 0.0
        %2616 = vmatpush.msra.mxu0 0.0
        %2617 = vmatpush.msra.mxu0 0.0
        %2618 = vmatpush.msra.mxu0 0.0
        %2619 = vmatpush.msra.mxu0 0.0
        %2620 = vmatpush.msra.mxu0 0.0
        %2621 = vmatpush.msra.mxu0 0.0
        %2622 = vmatpush.msra.mxu0 0.0
        %2623 = vmatpush.msra.mxu0 %v379
        %2624 = vmatpush.msra.mxu0 %v361
        %2625 = vmatpush.msra.mxu0 %v343
        %2626 = vmatpush.msra.mxu0 %v325
        %2627 = vmatpush.msra.mxu0 %v307
        %2628 = vmatpush.msra.mxu0 %v289
        %2629 = vmatpush.msra.mxu0 %v271
        %2630 = vmatpush.msra.mxu0 %v253
        %2631 = vmatmul.f32.gmra.mxu0 %v2513
        %v2632 = vpop.f32.mrf.mxu0
        %v2633 = vadd.f32 0.0, %v2632
        %2634 = vdwg.mxu0
        %2635 = vmatpush.msra.mxu0 0.0
        %2636 = vmatpush.msra.mxu0 0.0
        %2637 = vmatpush.msra.mxu0 0.0
        %2638 = vmatpush.msra.mxu0 0.0
        %2639 = vmatpush.msra.mxu0 0.0
        %2640 = vmatpush.msra.mxu0 0.0
        %2641 = vmatpush.msra.mxu0 0.0
        %2642 = vmatpush.msra.mxu0 0.0
        %2643 = vmatpush.msra.mxu0 %v380
        %2644 = vmatpush.msra.mxu0 %v362
        %2645 = vmatpush.msra.mxu0 %v344
        %2646 = vmatpush.msra.mxu0 %v326
        %2647 = vmatpush.msra.mxu0 %v308
        %2648 = vmatpush.msra.mxu0 %v290
        %2649 = vmatpush.msra.mxu0 %v272
        %2650 = vmatpush.msra.mxu0 %v254
        %2651 = vmatmul.f32.gmra.mxu0 %v2513
        %v2652 = vpop.f32.mrf.mxu0
        %v2653 = vadd.f32 0.0, %v2652
        %2654 = vdwg.mxu0
        %2655 = vmatpush.msra.mxu0 0.0
        %2656 = vmatpush.msra.mxu0 0.0
        %2657 = vmatpush.msra.mxu0 0.0
        %2658 = vmatpush.msra.mxu0 0.0
        %2659 = vmatpush.msra.mxu0 0.0
        %2660 = vmatpush.msra.mxu0 0.0
        %2661 = vmatpush.msra.mxu0 0.0
        %2662 = vmatpush.msra.mxu0 0.0
        %2663 = vmatpush.msra.mxu0 %v381
        %2664 = vmatpush.msra.mxu0 %v363
        %2665 = vmatpush.msra.mxu0 %v345
        %2666 = vmatpush.msra.mxu0 %v327
        %2667 = vmatpush.msra.mxu0 %v309
        %2668 = vmatpush.msra.mxu0 %v291
        %2669 = vmatpush.msra.mxu0 %v273
        %2670 = vmatpush.msra.mxu0 %v255
        %2671 = vmatmul.f32.gmra.mxu0 %v2513
        %v2672 = vpop.f32.mrf.mxu0
        %v2673 = vadd.f32 0.0, %v2672
        %2674 = vdwg.mxu0
        %2675 = vmatpush.msra.mxu0 0.0
        %2676 = vmatpush.msra.mxu0 0.0
        %2677 = vmatpush.msra.mxu0 0.0
        %2678 = vmatpush.msra.mxu0 0.0
        %2679 = vmatpush.msra.mxu0 0.0
        %2680 = vmatpush.msra.mxu0 0.0
        %2681 = vmatpush.msra.mxu0 0.0
        %2682 = vmatpush.msra.mxu0 0.0
        %2683 = vmatpush.msra.mxu0 %v382
        %2684 = vmatpush.msra.mxu0 %v364
        %2685 = vmatpush.msra.mxu0 %v346
        %2686 = vmatpush.msra.mxu0 %v328
        %2687 = vmatpush.msra.mxu0 %v310
        %2688 = vmatpush.msra.mxu0 %v292
        %2689 = vmatpush.msra.mxu0 %v274
        %2690 = vmatpush.msra.mxu0 %v256
        %2691 = vmatmul.f32.gmra.mxu0 %v2513
        %v2692 = vpop.f32.mrf.mxu0
        %v2693 = vadd.f32 0.0, %v2692
        %2694 = vdwg.mxu0
        %2695 = vmatpush.msra.mxu0 0.0
        %2696 = vmatpush.msra.mxu0 0.0
        %2697 = vmatpush.msra.mxu0 0.0
        %2698 = vmatpush.msra.mxu0 0.0
        %2699 = vmatpush.msra.mxu0 0.0
        %2700 = vmatpush.msra.mxu0 0.0
        %2701 = vmatpush.msra.mxu0 0.0
        %2702 = vmatpush.msra.mxu0 0.0
        %2703 = vmatpush.msra.mxu0 %v383
        %2704 = vmatpush.msra.mxu0 %v365
        %2705 = vmatpush.msra.mxu0 %v347
        %2706 = vmatpush.msra.mxu0 %v329
        %2707 = vmatpush.msra.mxu0 %v311
        %2708 = vmatpush.msra.mxu0 %v293
        %2709 = vmatpush.msra.mxu0 %v275
        %2710 = vmatpush.msra.mxu0 %v257
        %2711 = vmatmul.f32.gmra.mxu0 %v2513
        %v2712 = vpop.f32.mrf.mxu0
        %v2713 = vadd.f32 0.0, %v2712
        %2714 = vdwg.mxu0
        %2715 = vmatpush.msra.mxu0 0.0
        %2716 = vmatpush.msra.mxu0 0.0
        %2717 = vmatpush.msra.mxu0 0.0
        %2718 = vmatpush.msra.mxu0 0.0
        %2719 = vmatpush.msra.mxu0 0.0
        %2720 = vmatpush.msra.mxu0 0.0
        %2721 = vmatpush.msra.mxu0 0.0
        %2722 = vmatpush.msra.mxu0 0.0
        %2723 = vmatpush.msra.mxu0 %v384
        %2724 = vmatpush.msra.mxu0 %v366
        %2725 = vmatpush.msra.mxu0 %v348
        %2726 = vmatpush.msra.mxu0 %v330
        %2727 = vmatpush.msra.mxu0 %v312
        %2728 = vmatpush.msra.mxu0 %v294
        %2729 = vmatpush.msra.mxu0 %v276
        %2730 = vmatpush.msra.mxu0 %v258
        %2731 = vmatmul.f32.gmra.mxu0 %v2513
        %v2732 = vpop.f32.mrf.mxu0
        %v2733 = vadd.f32 0.0, %v2732
        %2734 = vdwg.mxu0
        %2735 = vmatpush.msra.mxu0 0.0
        %2736 = vmatpush.msra.mxu0 0.0
        %2737 = vmatpush.msra.mxu0 0.0
        %2738 = vmatpush.msra.mxu0 0.0
        %2739 = vmatpush.msra.mxu0 0.0
        %2740 = vmatpush.msra.mxu0 0.0
        %2741 = vmatpush.msra.mxu0 0.0
        %2742 = vmatpush.msra.mxu0 0.0
        %2743 = vmatpush.msra.mxu0 %v385
        %2744 = vmatpush.msra.mxu0 %v367
        %2745 = vmatpush.msra.mxu0 %v349
        %2746 = vmatpush.msra.mxu0 %v331
        %2747 = vmatpush.msra.mxu0 %v313
        %2748 = vmatpush.msra.mxu0 %v295
        %2749 = vmatpush.msra.mxu0 %v277
        %2750 = vmatpush.msra.mxu0 %v259
        %2751 = vmatmul.f32.gmra.mxu0 %v2513
        %v2752 = vpop.f32.mrf.mxu0
        %v2753 = vadd.f32 0.0, %v2752
        %2754 = vdwg.mxu0
        %2755 = vmatpush.msra.mxu0 0.0
        %2756 = vmatpush.msra.mxu0 0.0
        %2757 = vmatpush.msra.mxu0 0.0
        %2758 = vmatpush.msra.mxu0 0.0
        %2759 = vmatpush.msra.mxu0 0.0
        %2760 = vmatpush.msra.mxu0 0.0
        %2761 = vmatpush.msra.mxu0 0.0
        %2762 = vmatpush.msra.mxu0 0.0
        %2763 = vmatpush.msra.mxu0 %v386
        %2764 = vmatpush.msra.mxu0 %v368
        %2765 = vmatpush.msra.mxu0 %v350
        %2766 = vmatpush.msra.mxu0 %v332
        %2767 = vmatpush.msra.mxu0 %v314
        %2768 = vmatpush.msra.mxu0 %v296
        %2769 = vmatpush.msra.mxu0 %v278
        %2770 = vmatpush.msra.mxu0 %v260
        %2771 = vmatmul.f32.gmra.mxu0 %v2513
        %v2772 = vpop.f32.mrf.mxu0
        %v2773 = vadd.f32 0.0, %v2772
        %2774 = vdwg.mxu0
        %2775 = vmatpush.msra.mxu0 0.0
        %2776 = vmatpush.msra.mxu0 0.0
        %2777 = vmatpush.msra.mxu0 0.0
        %2778 = vmatpush.msra.mxu0 0.0
        %2779 = vmatpush.msra.mxu0 0.0
        %2780 = vmatpush.msra.mxu0 0.0
        %2781 = vmatpush.msra.mxu0 0.0
        %2782 = vmatpush.msra.mxu0 0.0
        %2783 = vmatpush.msra.mxu0 %v387
        %2784 = vmatpush.msra.mxu0 %v369
        %2785 = vmatpush.msra.mxu0 %v351
        %2786 = vmatpush.msra.mxu0 %v333
        %2787 = vmatpush.msra.mxu0 %v315
        %2788 = vmatpush.msra.mxu0 %v297
        %2789 = vmatpush.msra.mxu0 %v279
        %2790 = vmatpush.msra.mxu0 %v261
        %2791 = vmatmul.f32.gmra.mxu0 %v2513
        %v2792 = vpop.f32.mrf.mxu0
        %v2793 = vadd.f32 0.0, %v2792
        %2794 = vdwg.mxu0
        %2795 = vmatpush.msra.mxu0 0.0
        %2796 = vmatpush.msra.mxu0 0.0
        %2797 = vmatpush.msra.mxu0 0.0
        %2798 = vmatpush.msra.mxu0 0.0
        %2799 = vmatpush.msra.mxu0 0.0
        %2800 = vmatpush.msra.mxu0 0.0
        %2801 = vmatpush.msra.mxu0 0.0
        %2802 = vmatpush.msra.mxu0 0.0
        %2803 = vmatpush.msra.mxu0 %v388
        %2804 = vmatpush.msra.mxu0 %v370
        %2805 = vmatpush.msra.mxu0 %v352
        %2806 = vmatpush.msra.mxu0 %v334
        %2807 = vmatpush.msra.mxu0 %v316
        %2808 = vmatpush.msra.mxu0 %v298
        %2809 = vmatpush.msra.mxu0 %v280
        %2810 = vmatpush.msra.mxu0 %v262
        %2811 = vmatmul.f32.gmra.mxu0 %v2513
        %v2812 = vpop.f32.mrf.mxu0
        %v2813 = vadd.f32 0.0, %v2812
        %2814 = vdwg.mxu0
        %2815 = vmatpush.msra.mxu0 0.0
        %2816 = vmatpush.msra.mxu0 0.0
        %2817 = vmatpush.msra.mxu0 0.0
        %2818 = vmatpush.msra.mxu0 0.0
        %2819 = vmatpush.msra.mxu0 0.0
        %2820 = vmatpush.msra.mxu0 0.0
        %2821 = vmatpush.msra.mxu0 0.0
        %2822 = vmatpush.msra.mxu0 0.0
        %2823 = vmatpush.msra.mxu0 %v389
        %2824 = vmatpush.msra.mxu0 %v371
        %2825 = vmatpush.msra.mxu0 %v353
        %2826 = vmatpush.msra.mxu0 %v335
        %2827 = vmatpush.msra.mxu0 %v317
        %2828 = vmatpush.msra.mxu0 %v299
        %2829 = vmatpush.msra.mxu0 %v281
        %2830 = vmatpush.msra.mxu0 %v263
        %2831 = vmatmul.f32.gmra.mxu0 %v2513
        %v2832 = vpop.f32.mrf.mxu0
        %v2833 = vadd.f32 0.0, %v2832
        %2834 = vdwg.mxu0
        %2835 = vmatpush.msra.mxu0 0.0
        %2836 = vmatpush.msra.mxu0 0.0
        %2837 = vmatpush.msra.mxu0 0.0
        %2838 = vmatpush.msra.mxu0 0.0
        %2839 = vmatpush.msra.mxu0 0.0
        %2840 = vmatpush.msra.mxu0 0.0
        %2841 = vmatpush.msra.mxu0 0.0
        %2842 = vmatpush.msra.mxu0 0.0
        %2843 = vmatpush.msra.mxu0 %v390
        %2844 = vmatpush.msra.mxu0 %v372
        %2845 = vmatpush.msra.mxu0 %v354
        %2846 = vmatpush.msra.mxu0 %v336
        %2847 = vmatpush.msra.mxu0 %v318
        %2848 = vmatpush.msra.mxu0 %v300
        %2849 = vmatpush.msra.mxu0 %v282
        %2850 = vmatpush.msra.mxu0 %v264
        %2851 = vmatmul.f32.gmra.mxu0 %v2513
        %v2852 = vpop.f32.mrf.mxu0
        %v2853 = vadd.f32 0.0, %v2852
        %2854 = vdwg.mxu0
        %2855 = vmatpush.msra.mxu0 0.0
        %2856 = vmatpush.msra.mxu0 0.0
        %2857 = vmatpush.msra.mxu0 0.0
        %2858 = vmatpush.msra.mxu0 0.0
        %2859 = vmatpush.msra.mxu0 0.0
        %2860 = vmatpush.msra.mxu0 0.0
        %2861 = vmatpush.msra.mxu0 0.0
        %2862 = vmatpush.msra.mxu0 0.0
        %2863 = vmatpush.msra.mxu0 %v391
        %2864 = vmatpush.msra.mxu0 %v373
        %2865 = vmatpush.msra.mxu0 %v355
        %2866 = vmatpush.msra.mxu0 %v337
        %2867 = vmatpush.msra.mxu0 %v319
        %2868 = vmatpush.msra.mxu0 %v301
        %2869 = vmatpush.msra.mxu0 %v283
        %2870 = vmatpush.msra.mxu0 %v265
        %2871 = vmatmul.f32.gmra.mxu0 %v2513
        %v2872 = vpop.f32.mrf.mxu0
        %v2873 = vadd.f32 0.0, %v2872
        %2874 = vdwg.mxu0
        %v2893 = vrot.slane %v2553, 4
        %v2894 = vrot.slane %v2593, 4
        %v2895 = vrot.slane %v2633, 4
        %v2896 = vrot.slane %v2673, 4
        %v2897 = vrot.slane %v2713, 4
        %v2898 = vrot.slane %v2753, 4
        %v2899 = vrot.slane %v2793, 4
        %v2900 = vrot.slane %v2833, 4
        %v2901 = vrot.slane %v2873, 4
        %v2902 = vsel %vm787, %v2533, %v2893
        %v2903 = vsel %vm787, %v2573, %v2894
        %v2904 = vsel %vm787, %v2613, %v2895
        %v2905 = vsel %vm787, %v2653, %v2896
        %v2906 = vsel %vm787, %v2693, %v2897
        %v2907 = vsel %vm787, %v2733, %v2898
        %v2908 = vsel %vm787, %v2773, %v2899
        %v2909 = vsel %vm787, %v2813, %v2900
        %v2910 = vsel %vm787, %v2853, %v2901
        %s2920 = scalar_lea.vmem [#allocation2], 360
        %2921 = vst [vmem:[%s2920] sm:$0xff] %v2902
        %2922 = vst [vmem:[%s2920 + $0x8] sm:$0xff] %v2903
        %2923 = vst [vmem:[%s2920 + $0x10] sm:$0xff] %v2904
        %2924 = vst [vmem:[%s2920 + $0x18] sm:$0xff] %v2905
        %2925 = vst [vmem:[%s2920 + $0x20] sm:$0xff] %v2906
        %2926 = vst [vmem:[%s2920 + $0x28] sm:$0xff] %v2907
        %2927 = vst [vmem:[%s2920 + $0x30] sm:$0xff] %v2908
        %2928 = vst [vmem:[%s2920 + $0x38] sm:$0xff] %v2909
        %2929 = vst [vmem:[%s2920 + $0x40] sm:$0xff] %v2910
        %s2930 = sadd.s32 %s247, 6
        %s2931 = sld [smem:[#allocation4 + %s2930]]
        %s2932 = smul.u32 %s2931, 4
        %s2933 = scalar_lea.vmem %s236, %s2932
        %v2934 = vld [vmem:[%s2933] sm:$0xf]
        %v2936 = vsel %vm396, %v2934, 0
        %2938 = vmatpush.msra.mxu0 0.0
        %2939 = vmatpush.msra.mxu0 0.0
        %2940 = vmatpush.msra.mxu0 0.0
        %2941 = vmatpush.msra.mxu0 0.0
        %2942 = vmatpush.msra.mxu0 0.0
        %2943 = vmatpush.msra.mxu0 0.0
        %2944 = vmatpush.msra.mxu0 0.0
        %2945 = vmatpush.msra.mxu0 0.0
        %2946 = vmatpush.msra.mxu0 %v374
        %2947 = vmatpush.msra.mxu0 %v356
        %2948 = vmatpush.msra.mxu0 %v338
        %2949 = vmatpush.msra.mxu0 %v320
        %2950 = vmatpush.msra.mxu0 %v302
        %2951 = vmatpush.msra.mxu0 %v284
        %2952 = vmatpush.msra.mxu0 %v266
        %2953 = vmatpush.msra.mxu0 %v248
        %2954 = vmatmul.f32.gmra.mxu0 %v2936
        %v2955 = vpop.f32.mrf.mxu0
        %v2956 = vadd.f32 0.0, %v2955
        %2957 = vdwg.mxu0
        %2958 = vmatpush.msra.mxu0 0.0
        %2959 = vmatpush.msra.mxu0 0.0
        %2960 = vmatpush.msra.mxu0 0.0
        %2961 = vmatpush.msra.mxu0 0.0
        %2962 = vmatpush.msra.mxu0 0.0
        %2963 = vmatpush.msra.mxu0 0.0
        %2964 = vmatpush.msra.mxu0 0.0
        %2965 = vmatpush.msra.mxu0 0.0
        %2966 = vmatpush.msra.mxu0 %v375
        %2967 = vmatpush.msra.mxu0 %v357
        %2968 = vmatpush.msra.mxu0 %v339
        %2969 = vmatpush.msra.mxu0 %v321
        %2970 = vmatpush.msra.mxu0 %v303
        %2971 = vmatpush.msra.mxu0 %v285
        %2972 = vmatpush.msra.mxu0 %v267
        %2973 = vmatpush.msra.mxu0 %v249
        %2974 = vmatmul.f32.gmra.mxu0 %v2936
        %v2975 = vpop.f32.mrf.mxu0
        %v2976 = vadd.f32 0.0, %v2975
        %2977 = vdwg.mxu0
        %2978 = vmatpush.msra.mxu0 0.0
        %2979 = vmatpush.msra.mxu0 0.0
        %2980 = vmatpush.msra.mxu0 0.0
        %2981 = vmatpush.msra.mxu0 0.0
        %2982 = vmatpush.msra.mxu0 0.0
        %2983 = vmatpush.msra.mxu0 0.0
        %2984 = vmatpush.msra.mxu0 0.0
        %2985 = vmatpush.msra.mxu0 0.0
        %2986 = vmatpush.msra.mxu0 %v376
        %2987 = vmatpush.msra.mxu0 %v358
        %2988 = vmatpush.msra.mxu0 %v340
        %2989 = vmatpush.msra.mxu0 %v322
        %2990 = vmatpush.msra.mxu0 %v304
        %2991 = vmatpush.msra.mxu0 %v286
        %2992 = vmatpush.msra.mxu0 %v268
        %2993 = vmatpush.msra.mxu0 %v250
        %2994 = vmatmul.f32.gmra.mxu0 %v2936
        %v2995 = vpop.f32.mrf.mxu0
        %v2996 = vadd.f32 0.0, %v2995
        %2997 = vdwg.mxu0
        %2998 = vmatpush.msra.mxu0 0.0
        %2999 = vmatpush.msra.mxu0 0.0
        %3000 = vmatpush.msra.mxu0 0.0
        %3001 = vmatpush.msra.mxu0 0.0
        %3002 = vmatpush.msra.mxu0 0.0
        %3003 = vmatpush.msra.mxu0 0.0
        %3004 = vmatpush.msra.mxu0 0.0
        %3005 = vmatpush.msra.mxu0 0.0
        %3006 = vmatpush.msra.mxu0 %v377
        %3007 = vmatpush.msra.mxu0 %v359
        %3008 = vmatpush.msra.mxu0 %v341
        %3009 = vmatpush.msra.mxu0 %v323
        %3010 = vmatpush.msra.mxu0 %v305
        %3011 = vmatpush.msra.mxu0 %v287
        %3012 = vmatpush.msra.mxu0 %v269
        %3013 = vmatpush.msra.mxu0 %v251
        %3014 = vmatmul.f32.gmra.mxu0 %v2936
        %v3015 = vpop.f32.mrf.mxu0
        %v3016 = vadd.f32 0.0, %v3015
        %3017 = vdwg.mxu0
        %3018 = vmatpush.msra.mxu0 0.0
        %3019 = vmatpush.msra.mxu0 0.0
        %3020 = vmatpush.msra.mxu0 0.0
        %3021 = vmatpush.msra.mxu0 0.0
        %3022 = vmatpush.msra.mxu0 0.0
        %3023 = vmatpush.msra.mxu0 0.0
        %3024 = vmatpush.msra.mxu0 0.0
        %3025 = vmatpush.msra.mxu0 0.0
        %3026 = vmatpush.msra.mxu0 %v378
        %3027 = vmatpush.msra.mxu0 %v360
        %3028 = vmatpush.msra.mxu0 %v342
        %3029 = vmatpush.msra.mxu0 %v324
        %3030 = vmatpush.msra.mxu0 %v306
        %3031 = vmatpush.msra.mxu0 %v288
        %3032 = vmatpush.msra.mxu0 %v270
        %3033 = vmatpush.msra.mxu0 %v252
        %3034 = vmatmul.f32.gmra.mxu0 %v2936
        %v3035 = vpop.f32.mrf.mxu0
        %v3036 = vadd.f32 0.0, %v3035
        %3037 = vdwg.mxu0
        %3038 = vmatpush.msra.mxu0 0.0
        %3039 = vmatpush.msra.mxu0 0.0
        %3040 = vmatpush.msra.mxu0 0.0
        %3041 = vmatpush.msra.mxu0 0.0
        %3042 = vmatpush.msra.mxu0 0.0
        %3043 = vmatpush.msra.mxu0 0.0
        %3044 = vmatpush.msra.mxu0 0.0
        %3045 = vmatpush.msra.mxu0 0.0
        %3046 = vmatpush.msra.mxu0 %v379
        %3047 = vmatpush.msra.mxu0 %v361
        %3048 = vmatpush.msra.mxu0 %v343
        %3049 = vmatpush.msra.mxu0 %v325
        %3050 = vmatpush.msra.mxu0 %v307
        %3051 = vmatpush.msra.mxu0 %v289
        %3052 = vmatpush.msra.mxu0 %v271
        %3053 = vmatpush.msra.mxu0 %v253
        %3054 = vmatmul.f32.gmra.mxu0 %v2936
        %v3055 = vpop.f32.mrf.mxu0
        %v3056 = vadd.f32 0.0, %v3055
        %3057 = vdwg.mxu0
        %3058 = vmatpush.msra.mxu0 0.0
        %3059 = vmatpush.msra.mxu0 0.0
        %3060 = vmatpush.msra.mxu0 0.0
        %3061 = vmatpush.msra.mxu0 0.0
        %3062 = vmatpush.msra.mxu0 0.0
        %3063 = vmatpush.msra.mxu0 0.0
        %3064 = vmatpush.msra.mxu0 0.0
        %3065 = vmatpush.msra.mxu0 0.0
        %3066 = vmatpush.msra.mxu0 %v380
        %3067 = vmatpush.msra.mxu0 %v362
        %3068 = vmatpush.msra.mxu0 %v344
        %3069 = vmatpush.msra.mxu0 %v326
        %3070 = vmatpush.msra.mxu0 %v308
        %3071 = vmatpush.msra.mxu0 %v290
        %3072 = vmatpush.msra.mxu0 %v272
        %3073 = vmatpush.msra.mxu0 %v254
        %3074 = vmatmul.f32.gmra.mxu0 %v2936
        %v3075 = vpop.f32.mrf.mxu0
        %v3076 = vadd.f32 0.0, %v3075
        %3077 = vdwg.mxu0
        %3078 = vmatpush.msra.mxu0 0.0
        %3079 = vmatpush.msra.mxu0 0.0
        %3080 = vmatpush.msra.mxu0 0.0
        %3081 = vmatpush.msra.mxu0 0.0
        %3082 = vmatpush.msra.mxu0 0.0
        %3083 = vmatpush.msra.mxu0 0.0
        %3084 = vmatpush.msra.mxu0 0.0
        %3085 = vmatpush.msra.mxu0 0.0
        %3086 = vmatpush.msra.mxu0 %v381
        %3087 = vmatpush.msra.mxu0 %v363
        %3088 = vmatpush.msra.mxu0 %v345
        %3089 = vmatpush.msra.mxu0 %v327
        %3090 = vmatpush.msra.mxu0 %v309
        %3091 = vmatpush.msra.mxu0 %v291
        %3092 = vmatpush.msra.mxu0 %v273
        %3093 = vmatpush.msra.mxu0 %v255
        %3094 = vmatmul.f32.gmra.mxu0 %v2936
        %v3095 = vpop.f32.mrf.mxu0
        %v3096 = vadd.f32 0.0, %v3095
        %3097 = vdwg.mxu0
        %3098 = vmatpush.msra.mxu0 0.0
        %3099 = vmatpush.msra.mxu0 0.0
        %3100 = vmatpush.msra.mxu0 0.0
        %3101 = vmatpush.msra.mxu0 0.0
        %3102 = vmatpush.msra.mxu0 0.0
        %3103 = vmatpush.msra.mxu0 0.0
        %3104 = vmatpush.msra.mxu0 0.0
        %3105 = vmatpush.msra.mxu0 0.0
        %3106 = vmatpush.msra.mxu0 %v382
        %3107 = vmatpush.msra.mxu0 %v364
        %3108 = vmatpush.msra.mxu0 %v346
        %3109 = vmatpush.msra.mxu0 %v328
        %3110 = vmatpush.msra.mxu0 %v310
        %3111 = vmatpush.msra.mxu0 %v292
        %3112 = vmatpush.msra.mxu0 %v274
        %3113 = vmatpush.msra.mxu0 %v256
        %3114 = vmatmul.f32.gmra.mxu0 %v2936
        %v3115 = vpop.f32.mrf.mxu0
        %v3116 = vadd.f32 0.0, %v3115
        %3117 = vdwg.mxu0
        %3118 = vmatpush.msra.mxu0 0.0
        %3119 = vmatpush.msra.mxu0 0.0
        %3120 = vmatpush.msra.mxu0 0.0
        %3121 = vmatpush.msra.mxu0 0.0
        %3122 = vmatpush.msra.mxu0 0.0
        %3123 = vmatpush.msra.mxu0 0.0
        %3124 = vmatpush.msra.mxu0 0.0
        %3125 = vmatpush.msra.mxu0 0.0
        %3126 = vmatpush.msra.mxu0 %v383
        %3127 = vmatpush.msra.mxu0 %v365
        %3128 = vmatpush.msra.mxu0 %v347
        %3129 = vmatpush.msra.mxu0 %v329
        %3130 = vmatpush.msra.mxu0 %v311
        %3131 = vmatpush.msra.mxu0 %v293
        %3132 = vmatpush.msra.mxu0 %v275
        %3133 = vmatpush.msra.mxu0 %v257
        %3134 = vmatmul.f32.gmra.mxu0 %v2936
        %v3135 = vpop.f32.mrf.mxu0
        %v3136 = vadd.f32 0.0, %v3135
        %3137 = vdwg.mxu0
        %3138 = vmatpush.msra.mxu0 0.0
        %3139 = vmatpush.msra.mxu0 0.0
        %3140 = vmatpush.msra.mxu0 0.0
        %3141 = vmatpush.msra.mxu0 0.0
        %3142 = vmatpush.msra.mxu0 0.0
        %3143 = vmatpush.msra.mxu0 0.0
        %3144 = vmatpush.msra.mxu0 0.0
        %3145 = vmatpush.msra.mxu0 0.0
        %3146 = vmatpush.msra.mxu0 %v384
        %3147 = vmatpush.msra.mxu0 %v366
        %3148 = vmatpush.msra.mxu0 %v348
        %3149 = vmatpush.msra.mxu0 %v330
        %3150 = vmatpush.msra.mxu0 %v312
        %3151 = vmatpush.msra.mxu0 %v294
        %3152 = vmatpush.msra.mxu0 %v276
        %3153 = vmatpush.msra.mxu0 %v258
        %3154 = vmatmul.f32.gmra.mxu0 %v2936
        %v3155 = vpop.f32.mrf.mxu0
        %v3156 = vadd.f32 0.0, %v3155
        %3157 = vdwg.mxu0
        %3158 = vmatpush.msra.mxu0 0.0
        %3159 = vmatpush.msra.mxu0 0.0
        %3160 = vmatpush.msra.mxu0 0.0
        %3161 = vmatpush.msra.mxu0 0.0
        %3162 = vmatpush.msra.mxu0 0.0
        %3163 = vmatpush.msra.mxu0 0.0
        %3164 = vmatpush.msra.mxu0 0.0
        %3165 = vmatpush.msra.mxu0 0.0
        %3166 = vmatpush.msra.mxu0 %v385
        %3167 = vmatpush.msra.mxu0 %v367
        %3168 = vmatpush.msra.mxu0 %v349
        %3169 = vmatpush.msra.mxu0 %v331
        %3170 = vmatpush.msra.mxu0 %v313
        %3171 = vmatpush.msra.mxu0 %v295
        %3172 = vmatpush.msra.mxu0 %v277
        %3173 = vmatpush.msra.mxu0 %v259
        %3174 = vmatmul.f32.gmra.mxu0 %v2936
        %v3175 = vpop.f32.mrf.mxu0
        %v3176 = vadd.f32 0.0, %v3175
        %3177 = vdwg.mxu0
        %3178 = vmatpush.msra.mxu0 0.0
        %3179 = vmatpush.msra.mxu0 0.0
        %3180 = vmatpush.msra.mxu0 0.0
        %3181 = vmatpush.msra.mxu0 0.0
        %3182 = vmatpush.msra.mxu0 0.0
        %3183 = vmatpush.msra.mxu0 0.0
        %3184 = vmatpush.msra.mxu0 0.0
        %3185 = vmatpush.msra.mxu0 0.0
        %3186 = vmatpush.msra.mxu0 %v386
        %3187 = vmatpush.msra.mxu0 %v368
        %3188 = vmatpush.msra.mxu0 %v350
        %3189 = vmatpush.msra.mxu0 %v332
        %3190 = vmatpush.msra.mxu0 %v314
        %3191 = vmatpush.msra.mxu0 %v296
        %3192 = vmatpush.msra.mxu0 %v278
        %3193 = vmatpush.msra.mxu0 %v260
        %3194 = vmatmul.f32.gmra.mxu0 %v2936
        %v3195 = vpop.f32.mrf.mxu0
        %v3196 = vadd.f32 0.0, %v3195
        %3197 = vdwg.mxu0
        %3198 = vmatpush.msra.mxu0 0.0
        %3199 = vmatpush.msra.mxu0 0.0
        %3200 = vmatpush.msra.mxu0 0.0
        %3201 = vmatpush.msra.mxu0 0.0
        %3202 = vmatpush.msra.mxu0 0.0
        %3203 = vmatpush.msra.mxu0 0.0
        %3204 = vmatpush.msra.mxu0 0.0
        %3205 = vmatpush.msra.mxu0 0.0
        %3206 = vmatpush.msra.mxu0 %v387
        %3207 = vmatpush.msra.mxu0 %v369
        %3208 = vmatpush.msra.mxu0 %v351
        %3209 = vmatpush.msra.mxu0 %v333
        %3210 = vmatpush.msra.mxu0 %v315
        %3211 = vmatpush.msra.mxu0 %v297
        %3212 = vmatpush.msra.mxu0 %v279
        %3213 = vmatpush.msra.mxu0 %v261
        %3214 = vmatmul.f32.gmra.mxu0 %v2936
        %v3215 = vpop.f32.mrf.mxu0
        %v3216 = vadd.f32 0.0, %v3215
        %3217 = vdwg.mxu0
        %3218 = vmatpush.msra.mxu0 0.0
        %3219 = vmatpush.msra.mxu0 0.0
        %3220 = vmatpush.msra.mxu0 0.0
        %3221 = vmatpush.msra.mxu0 0.0
        %3222 = vmatpush.msra.mxu0 0.0
        %3223 = vmatpush.msra.mxu0 0.0
        %3224 = vmatpush.msra.mxu0 0.0
        %3225 = vmatpush.msra.mxu0 0.0
        %3226 = vmatpush.msra.mxu0 %v388
        %3227 = vmatpush.msra.mxu0 %v370
        %3228 = vmatpush.msra.mxu0 %v352
        %3229 = vmatpush.msra.mxu0 %v334
        %3230 = vmatpush.msra.mxu0 %v316
        %3231 = vmatpush.msra.mxu0 %v298
        %3232 = vmatpush.msra.mxu0 %v280
        %3233 = vmatpush.msra.mxu0 %v262
        %3234 = vmatmul.f32.gmra.mxu0 %v2936
        %v3235 = vpop.f32.mrf.mxu0
        %v3236 = vadd.f32 0.0, %v3235
        %3237 = vdwg.mxu0
        %3238 = vmatpush.msra.mxu0 0.0
        %3239 = vmatpush.msra.mxu0 0.0
        %3240 = vmatpush.msra.mxu0 0.0
        %3241 = vmatpush.msra.mxu0 0.0
        %3242 = vmatpush.msra.mxu0 0.0
        %3243 = vmatpush.msra.mxu0 0.0
        %3244 = vmatpush.msra.mxu0 0.0
        %3245 = vmatpush.msra.mxu0 0.0
        %3246 = vmatpush.msra.mxu0 %v389
        %3247 = vmatpush.msra.mxu0 %v371
        %3248 = vmatpush.msra.mxu0 %v353
        %3249 = vmatpush.msra.mxu0 %v335
        %3250 = vmatpush.msra.mxu0 %v317
        %3251 = vmatpush.msra.mxu0 %v299
        %3252 = vmatpush.msra.mxu0 %v281
        %3253 = vmatpush.msra.mxu0 %v263
        %3254 = vmatmul.f32.gmra.mxu0 %v2936
        %v3255 = vpop.f32.mrf.mxu0
        %v3256 = vadd.f32 0.0, %v3255
        %3257 = vdwg.mxu0
        %3258 = vmatpush.msra.mxu0 0.0
        %3259 = vmatpush.msra.mxu0 0.0
        %3260 = vmatpush.msra.mxu0 0.0
        %3261 = vmatpush.msra.mxu0 0.0
        %3262 = vmatpush.msra.mxu0 0.0
        %3263 = vmatpush.msra.mxu0 0.0
        %3264 = vmatpush.msra.mxu0 0.0
        %3265 = vmatpush.msra.mxu0 0.0
        %3266 = vmatpush.msra.mxu0 %v390
        %3267 = vmatpush.msra.mxu0 %v372
        %3268 = vmatpush.msra.mxu0 %v354
        %3269 = vmatpush.msra.mxu0 %v336
        %3270 = vmatpush.msra.mxu0 %v318
        %3271 = vmatpush.msra.mxu0 %v300
        %3272 = vmatpush.msra.mxu0 %v282
        %3273 = vmatpush.msra.mxu0 %v264
        %3274 = vmatmul.f32.gmra.mxu0 %v2936
        %v3275 = vpop.f32.mrf.mxu0
        %v3276 = vadd.f32 0.0, %v3275
        %3277 = vdwg.mxu0
        %3278 = vmatpush.msra.mxu0 0.0
        %3279 = vmatpush.msra.mxu0 0.0
        %3280 = vmatpush.msra.mxu0 0.0
        %3281 = vmatpush.msra.mxu0 0.0
        %3282 = vmatpush.msra.mxu0 0.0
        %3283 = vmatpush.msra.mxu0 0.0
        %3284 = vmatpush.msra.mxu0 0.0
        %3285 = vmatpush.msra.mxu0 0.0
        %3286 = vmatpush.msra.mxu0 %v391
        %3287 = vmatpush.msra.mxu0 %v373
        %3288 = vmatpush.msra.mxu0 %v355
        %3289 = vmatpush.msra.mxu0 %v337
        %3290 = vmatpush.msra.mxu0 %v319
        %3291 = vmatpush.msra.mxu0 %v301
        %3292 = vmatpush.msra.mxu0 %v283
        %3293 = vmatpush.msra.mxu0 %v265
        %3294 = vmatmul.f32.gmra.mxu0 %v2936
        %v3295 = vpop.f32.mrf.mxu0
        %v3296 = vadd.f32 0.0, %v3295
        %3297 = vdwg.mxu0
        %v3316 = vrot.slane %v2976, 4
        %v3317 = vrot.slane %v3016, 4
        %v3318 = vrot.slane %v3056, 4
        %v3319 = vrot.slane %v3096, 4
        %v3320 = vrot.slane %v3136, 4
        %v3321 = vrot.slane %v3176, 4
        %v3322 = vrot.slane %v3216, 4
        %v3323 = vrot.slane %v3256, 4
        %v3324 = vrot.slane %v3296, 4
        %v3325 = vsel %vm787, %v2956, %v3316
        %v3326 = vsel %vm787, %v2996, %v3317
        %v3327 = vsel %vm787, %v3036, %v3318
        %v3328 = vsel %vm787, %v3076, %v3319
        %v3329 = vsel %vm787, %v3116, %v3320
        %v3330 = vsel %vm787, %v3156, %v3321
        %v3331 = vsel %vm787, %v3196, %v3322
        %v3332 = vsel %vm787, %v3236, %v3323
        %v3333 = vsel %vm787, %v3276, %v3324
        %s3343 = scalar_lea.vmem [#allocation2], 432
        %3344 = vst [vmem:[%s3343] sm:$0xff] %v3325
        %3345 = vst [vmem:[%s3343 + $0x8] sm:$0xff] %v3326
        %3346 = vst [vmem:[%s3343 + $0x10] sm:$0xff] %v3327
        %3347 = vst [vmem:[%s3343 + $0x18] sm:$0xff] %v3328
        %3348 = vst [vmem:[%s3343 + $0x20] sm:$0xff] %v3329
        %3349 = vst [vmem:[%s3343 + $0x28] sm:$0xff] %v3330
        %3350 = vst [vmem:[%s3343 + $0x30] sm:$0xff] %v3331
        %3351 = vst [vmem:[%s3343 + $0x38] sm:$0xff] %v3332
        %3352 = vst [vmem:[%s3343 + $0x40] sm:$0xff] %v3333
        %s3353 = sadd.s32 %s247, 7
        %s3354 = sld [smem:[#allocation4 + %s3353]]
        %s3355 = smul.u32 %s3354, 4
        %s3356 = scalar_lea.vmem %s236, %s3355
        %v3357 = vld [vmem:[%s3356] sm:$0xf]
        %v3359 = vsel %vm396, %v3357, 0
        %3361 = vmatpush.msra.mxu0 0.0
        %3362 = vmatpush.msra.mxu0 0.0
        %3363 = vmatpush.msra.mxu0 0.0
        %3364 = vmatpush.msra.mxu0 0.0
        %3365 = vmatpush.msra.mxu0 0.0
        %3366 = vmatpush.msra.mxu0 0.0
        %3367 = vmatpush.msra.mxu0 0.0
        %3368 = vmatpush.msra.mxu0 0.0
        %3369 = vmatpush.msra.mxu0 %v374
        %3370 = vmatpush.msra.mxu0 %v356
        %3371 = vmatpush.msra.mxu0 %v338
        %3372 = vmatpush.msra.mxu0 %v320
        %3373 = vmatpush.msra.mxu0 %v302
        %3374 = vmatpush.msra.mxu0 %v284
        %3375 = vmatpush.msra.mxu0 %v266
        %3376 = vmatpush.msra.mxu0 %v248
        %3377 = vmatmul.f32.gmra.mxu0 %v3359
        %v3378 = vpop.f32.mrf.mxu0
        %v3379 = vadd.f32 0.0, %v3378
        %3380 = vdwg.mxu0
        %3381 = vmatpush.msra.mxu0 0.0
        %3382 = vmatpush.msra.mxu0 0.0
        %3383 = vmatpush.msra.mxu0 0.0
        %3384 = vmatpush.msra.mxu0 0.0
        %3385 = vmatpush.msra.mxu0 0.0
        %3386 = vmatpush.msra.mxu0 0.0
        %3387 = vmatpush.msra.mxu0 0.0
        %3388 = vmatpush.msra.mxu0 0.0
        %3389 = vmatpush.msra.mxu0 %v375
        %3390 = vmatpush.msra.mxu0 %v357
        %3391 = vmatpush.msra.mxu0 %v339
        %3392 = vmatpush.msra.mxu0 %v321
        %3393 = vmatpush.msra.mxu0 %v303
        %3394 = vmatpush.msra.mxu0 %v285
        %3395 = vmatpush.msra.mxu0 %v267
        %3396 = vmatpush.msra.mxu0 %v249
        %3397 = vmatmul.f32.gmra.mxu0 %v3359
        %v3398 = vpop.f32.mrf.mxu0
        %v3399 = vadd.f32 0.0, %v3398
        %3400 = vdwg.mxu0
        %3401 = vmatpush.msra.mxu0 0.0
        %3402 = vmatpush.msra.mxu0 0.0
        %3403 = vmatpush.msra.mxu0 0.0
        %3404 = vmatpush.msra.mxu0 0.0
        %3405 = vmatpush.msra.mxu0 0.0
        %3406 = vmatpush.msra.mxu0 0.0
        %3407 = vmatpush.msra.mxu0 0.0
        %3408 = vmatpush.msra.mxu0 0.0
        %3409 = vmatpush.msra.mxu0 %v376
        %3410 = vmatpush.msra.mxu0 %v358
        %3411 = vmatpush.msra.mxu0 %v340
        %3412 = vmatpush.msra.mxu0 %v322
        %3413 = vmatpush.msra.mxu0 %v304
        %3414 = vmatpush.msra.mxu0 %v286
        %3415 = vmatpush.msra.mxu0 %v268
        %3416 = vmatpush.msra.mxu0 %v250
        %3417 = vmatmul.f32.gmra.mxu0 %v3359
        %v3418 = vpop.f32.mrf.mxu0
        %v3419 = vadd.f32 0.0, %v3418
        %3420 = vdwg.mxu0
        %3421 = vmatpush.msra.mxu0 0.0
        %3422 = vmatpush.msra.mxu0 0.0
        %3423 = vmatpush.msra.mxu0 0.0
        %3424 = vmatpush.msra.mxu0 0.0
        %3425 = vmatpush.msra.mxu0 0.0
        %3426 = vmatpush.msra.mxu0 0.0
        %3427 = vmatpush.msra.mxu0 0.0
        %3428 = vmatpush.msra.mxu0 0.0
        %3429 = vmatpush.msra.mxu0 %v377
        %3430 = vmatpush.msra.mxu0 %v359
        %3431 = vmatpush.msra.mxu0 %v341
        %3432 = vmatpush.msra.mxu0 %v323
        %3433 = vmatpush.msra.mxu0 %v305
        %3434 = vmatpush.msra.mxu0 %v287
        %3435 = vmatpush.msra.mxu0 %v269
        %3436 = vmatpush.msra.mxu0 %v251
        %3437 = vmatmul.f32.gmra.mxu0 %v3359
        %v3438 = vpop.f32.mrf.mxu0
        %v3439 = vadd.f32 0.0, %v3438
        %3440 = vdwg.mxu0
        %3441 = vmatpush.msra.mxu0 0.0
        %3442 = vmatpush.msra.mxu0 0.0
        %3443 = vmatpush.msra.mxu0 0.0
        %3444 = vmatpush.msra.mxu0 0.0
        %3445 = vmatpush.msra.mxu0 0.0
        %3446 = vmatpush.msra.mxu0 0.0
        %3447 = vmatpush.msra.mxu0 0.0
        %3448 = vmatpush.msra.mxu0 0.0
        %3449 = vmatpush.msra.mxu0 %v378
        %3450 = vmatpush.msra.mxu0 %v360
        %3451 = vmatpush.msra.mxu0 %v342
        %3452 = vmatpush.msra.mxu0 %v324
        %3453 = vmatpush.msra.mxu0 %v306
        %3454 = vmatpush.msra.mxu0 %v288
        %3455 = vmatpush.msra.mxu0 %v270
        %3456 = vmatpush.msra.mxu0 %v252
        %3457 = vmatmul.f32.gmra.mxu0 %v3359
        %v3458 = vpop.f32.mrf.mxu0
        %v3459 = vadd.f32 0.0, %v3458
        %3460 = vdwg.mxu0
        %3461 = vmatpush.msra.mxu0 0.0
        %3462 = vmatpush.msra.mxu0 0.0
        %3463 = vmatpush.msra.mxu0 0.0
        %3464 = vmatpush.msra.mxu0 0.0
        %3465 = vmatpush.msra.mxu0 0.0
        %3466 = vmatpush.msra.mxu0 0.0
        %3467 = vmatpush.msra.mxu0 0.0
        %3468 = vmatpush.msra.mxu0 0.0
        %3469 = vmatpush.msra.mxu0 %v379
        %3470 = vmatpush.msra.mxu0 %v361
        %3471 = vmatpush.msra.mxu0 %v343
        %3472 = vmatpush.msra.mxu0 %v325
        %3473 = vmatpush.msra.mxu0 %v307
        %3474 = vmatpush.msra.mxu0 %v289
        %3475 = vmatpush.msra.mxu0 %v271
        %3476 = vmatpush.msra.mxu0 %v253
        %3477 = vmatmul.f32.gmra.mxu0 %v3359
        %v3478 = vpop.f32.mrf.mxu0
        %v3479 = vadd.f32 0.0, %v3478
        %3480 = vdwg.mxu0
        %3481 = vmatpush.msra.mxu0 0.0
        %3482 = vmatpush.msra.mxu0 0.0
        %3483 = vmatpush.msra.mxu0 0.0
        %3484 = vmatpush.msra.mxu0 0.0
        %3485 = vmatpush.msra.mxu0 0.0
        %3486 = vmatpush.msra.mxu0 0.0
        %3487 = vmatpush.msra.mxu0 0.0
        %3488 = vmatpush.msra.mxu0 0.0
        %3489 = vmatpush.msra.mxu0 %v380
        %3490 = vmatpush.msra.mxu0 %v362
        %3491 = vmatpush.msra.mxu0 %v344
        %3492 = vmatpush.msra.mxu0 %v326
        %3493 = vmatpush.msra.mxu0 %v308
        %3494 = vmatpush.msra.mxu0 %v290
        %3495 = vmatpush.msra.mxu0 %v272
        %3496 = vmatpush.msra.mxu0 %v254
        %3497 = vmatmul.f32.gmra.mxu0 %v3359
        %v3498 = vpop.f32.mrf.mxu0
        %v3499 = vadd.f32 0.0, %v3498
        %3500 = vdwg.mxu0
        %3501 = vmatpush.msra.mxu0 0.0
        %3502 = vmatpush.msra.mxu0 0.0
        %3503 = vmatpush.msra.mxu0 0.0
        %3504 = vmatpush.msra.mxu0 0.0
        %3505 = vmatpush.msra.mxu0 0.0
        %3506 = vmatpush.msra.mxu0 0.0
        %3507 = vmatpush.msra.mxu0 0.0
        %3508 = vmatpush.msra.mxu0 0.0
        %3509 = vmatpush.msra.mxu0 %v381
        %3510 = vmatpush.msra.mxu0 %v363
        %3511 = vmatpush.msra.mxu0 %v345
        %3512 = vmatpush.msra.mxu0 %v327
        %3513 = vmatpush.msra.mxu0 %v309
        %3514 = vmatpush.msra.mxu0 %v291
        %3515 = vmatpush.msra.mxu0 %v273
        %3516 = vmatpush.msra.mxu0 %v255
        %3517 = vmatmul.f32.gmra.mxu0 %v3359
        %v3518 = vpop.f32.mrf.mxu0
        %v3519 = vadd.f32 0.0, %v3518
        %3520 = vdwg.mxu0
        %3521 = vmatpush.msra.mxu0 0.0
        %3522 = vmatpush.msra.mxu0 0.0
        %3523 = vmatpush.msra.mxu0 0.0
        %3524 = vmatpush.msra.mxu0 0.0
        %3525 = vmatpush.msra.mxu0 0.0
        %3526 = vmatpush.msra.mxu0 0.0
        %3527 = vmatpush.msra.mxu0 0.0
        %3528 = vmatpush.msra.mxu0 0.0
        %3529 = vmatpush.msra.mxu0 %v382
        %3530 = vmatpush.msra.mxu0 %v364
        %3531 = vmatpush.msra.mxu0 %v346
        %3532 = vmatpush.msra.mxu0 %v328
        %3533 = vmatpush.msra.mxu0 %v310
        %3534 = vmatpush.msra.mxu0 %v292
        %3535 = vmatpush.msra.mxu0 %v274
        %3536 = vmatpush.msra.mxu0 %v256
        %3537 = vmatmul.f32.gmra.mxu0 %v3359
        %v3538 = vpop.f32.mrf.mxu0
        %v3539 = vadd.f32 0.0, %v3538
        %3540 = vdwg.mxu0
        %3541 = vmatpush.msra.mxu0 0.0
        %3542 = vmatpush.msra.mxu0 0.0
        %3543 = vmatpush.msra.mxu0 0.0
        %3544 = vmatpush.msra.mxu0 0.0
        %3545 = vmatpush.msra.mxu0 0.0
        %3546 = vmatpush.msra.mxu0 0.0
        %3547 = vmatpush.msra.mxu0 0.0
        %3548 = vmatpush.msra.mxu0 0.0
        %3549 = vmatpush.msra.mxu0 %v383
        %3550 = vmatpush.msra.mxu0 %v365
        %3551 = vmatpush.msra.mxu0 %v347
        %3552 = vmatpush.msra.mxu0 %v329
        %3553 = vmatpush.msra.mxu0 %v311
        %3554 = vmatpush.msra.mxu0 %v293
        %3555 = vmatpush.msra.mxu0 %v275
        %3556 = vmatpush.msra.mxu0 %v257
        %3557 = vmatmul.f32.gmra.mxu0 %v3359
        %v3558 = vpop.f32.mrf.mxu0
        %v3559 = vadd.f32 0.0, %v3558
        %3560 = vdwg.mxu0
        %3561 = vmatpush.msra.mxu0 0.0
        %3562 = vmatpush.msra.mxu0 0.0
        %3563 = vmatpush.msra.mxu0 0.0
        %3564 = vmatpush.msra.mxu0 0.0
        %3565 = vmatpush.msra.mxu0 0.0
        %3566 = vmatpush.msra.mxu0 0.0
        %3567 = vmatpush.msra.mxu0 0.0
        %3568 = vmatpush.msra.mxu0 0.0
        %3569 = vmatpush.msra.mxu0 %v384
        %3570 = vmatpush.msra.mxu0 %v366
        %3571 = vmatpush.msra.mxu0 %v348
        %3572 = vmatpush.msra.mxu0 %v330
        %3573 = vmatpush.msra.mxu0 %v312
        %3574 = vmatpush.msra.mxu0 %v294
        %3575 = vmatpush.msra.mxu0 %v276
        %3576 = vmatpush.msra.mxu0 %v258
        %3577 = vmatmul.f32.gmra.mxu0 %v3359
        %v3578 = vpop.f32.mrf.mxu0
        %v3579 = vadd.f32 0.0, %v3578
        %3580 = vdwg.mxu0
        %3581 = vmatpush.msra.mxu0 0.0
        %3582 = vmatpush.msra.mxu0 0.0
        %3583 = vmatpush.msra.mxu0 0.0
        %3584 = vmatpush.msra.mxu0 0.0
        %3585 = vmatpush.msra.mxu0 0.0
        %3586 = vmatpush.msra.mxu0 0.0
        %3587 = vmatpush.msra.mxu0 0.0
        %3588 = vmatpush.msra.mxu0 0.0
        %3589 = vmatpush.msra.mxu0 %v385
        %3590 = vmatpush.msra.mxu0 %v367
        %3591 = vmatpush.msra.mxu0 %v349
        %3592 = vmatpush.msra.mxu0 %v331
        %3593 = vmatpush.msra.mxu0 %v313
        %3594 = vmatpush.msra.mxu0 %v295
        %3595 = vmatpush.msra.mxu0 %v277
        %3596 = vmatpush.msra.mxu0 %v259
        %3597 = vmatmul.f32.gmra.mxu0 %v3359
        %v3598 = vpop.f32.mrf.mxu0
        %v3599 = vadd.f32 0.0, %v3598
        %3600 = vdwg.mxu0
        %3601 = vmatpush.msra.mxu0 0.0
        %3602 = vmatpush.msra.mxu0 0.0
        %3603 = vmatpush.msra.mxu0 0.0
        %3604 = vmatpush.msra.mxu0 0.0
        %3605 = vmatpush.msra.mxu0 0.0
        %3606 = vmatpush.msra.mxu0 0.0
        %3607 = vmatpush.msra.mxu0 0.0
        %3608 = vmatpush.msra.mxu0 0.0
        %3609 = vmatpush.msra.mxu0 %v386
        %3610 = vmatpush.msra.mxu0 %v368
        %3611 = vmatpush.msra.mxu0 %v350
        %3612 = vmatpush.msra.mxu0 %v332
        %3613 = vmatpush.msra.mxu0 %v314
        %3614 = vmatpush.msra.mxu0 %v296
        %3615 = vmatpush.msra.mxu0 %v278
        %3616 = vmatpush.msra.mxu0 %v260
        %3617 = vmatmul.f32.gmra.mxu0 %v3359
        %v3618 = vpop.f32.mrf.mxu0
        %v3619 = vadd.f32 0.0, %v3618
        %3620 = vdwg.mxu0
        %3621 = vmatpush.msra.mxu0 0.0
        %3622 = vmatpush.msra.mxu0 0.0
        %3623 = vmatpush.msra.mxu0 0.0
        %3624 = vmatpush.msra.mxu0 0.0
        %3625 = vmatpush.msra.mxu0 0.0
        %3626 = vmatpush.msra.mxu0 0.0
        %3627 = vmatpush.msra.mxu0 0.0
        %3628 = vmatpush.msra.mxu0 0.0
        %3629 = vmatpush.msra.mxu0 %v387
        %3630 = vmatpush.msra.mxu0 %v369
        %3631 = vmatpush.msra.mxu0 %v351
        %3632 = vmatpush.msra.mxu0 %v333
        %3633 = vmatpush.msra.mxu0 %v315
        %3634 = vmatpush.msra.mxu0 %v297
        %3635 = vmatpush.msra.mxu0 %v279
        %3636 = vmatpush.msra.mxu0 %v261
        %3637 = vmatmul.f32.gmra.mxu0 %v3359
        %v3638 = vpop.f32.mrf.mxu0
        %v3639 = vadd.f32 0.0, %v3638
        %3640 = vdwg.mxu0
        %3641 = vmatpush.msra.mxu0 0.0
        %3642 = vmatpush.msra.mxu0 0.0
        %3643 = vmatpush.msra.mxu0 0.0
        %3644 = vmatpush.msra.mxu0 0.0
        %3645 = vmatpush.msra.mxu0 0.0
        %3646 = vmatpush.msra.mxu0 0.0
        %3647 = vmatpush.msra.mxu0 0.0
        %3648 = vmatpush.msra.mxu0 0.0
        %3649 = vmatpush.msra.mxu0 %v388
        %3650 = vmatpush.msra.mxu0 %v370
        %3651 = vmatpush.msra.mxu0 %v352
        %3652 = vmatpush.msra.mxu0 %v334
        %3653 = vmatpush.msra.mxu0 %v316
        %3654 = vmatpush.msra.mxu0 %v298
        %3655 = vmatpush.msra.mxu0 %v280
        %3656 = vmatpush.msra.mxu0 %v262
        %3657 = vmatmul.f32.gmra.mxu0 %v3359
        %v3658 = vpop.f32.mrf.mxu0
        %v3659 = vadd.f32 0.0, %v3658
        %3660 = vdwg.mxu0
        %3661 = vmatpush.msra.mxu0 0.0
        %3662 = vmatpush.msra.mxu0 0.0
        %3663 = vmatpush.msra.mxu0 0.0
        %3664 = vmatpush.msra.mxu0 0.0
        %3665 = vmatpush.msra.mxu0 0.0
        %3666 = vmatpush.msra.mxu0 0.0
        %3667 = vmatpush.msra.mxu0 0.0
        %3668 = vmatpush.msra.mxu0 0.0
        %3669 = vmatpush.msra.mxu0 %v389
        %3670 = vmatpush.msra.mxu0 %v371
        %3671 = vmatpush.msra.mxu0 %v353
        %3672 = vmatpush.msra.mxu0 %v335
        %3673 = vmatpush.msra.mxu0 %v317
        %3674 = vmatpush.msra.mxu0 %v299
        %3675 = vmatpush.msra.mxu0 %v281
        %3676 = vmatpush.msra.mxu0 %v263
        %3677 = vmatmul.f32.gmra.mxu0 %v3359
        %v3678 = vpop.f32.mrf.mxu0
        %v3679 = vadd.f32 0.0, %v3678
        %3680 = vdwg.mxu0
        %3681 = vmatpush.msra.mxu0 0.0
        %3682 = vmatpush.msra.mxu0 0.0
        %3683 = vmatpush.msra.mxu0 0.0
        %3684 = vmatpush.msra.mxu0 0.0
        %3685 = vmatpush.msra.mxu0 0.0
        %3686 = vmatpush.msra.mxu0 0.0
        %3687 = vmatpush.msra.mxu0 0.0
        %3688 = vmatpush.msra.mxu0 0.0
        %3689 = vmatpush.msra.mxu0 %v390
        %3690 = vmatpush.msra.mxu0 %v372
        %3691 = vmatpush.msra.mxu0 %v354
        %3692 = vmatpush.msra.mxu0 %v336
        %3693 = vmatpush.msra.mxu0 %v318
        %3694 = vmatpush.msra.mxu0 %v300
        %3695 = vmatpush.msra.mxu0 %v282
        %3696 = vmatpush.msra.mxu0 %v264
        %3697 = vmatmul.f32.gmra.mxu0 %v3359
        %v3698 = vpop.f32.mrf.mxu0
        %v3699 = vadd.f32 0.0, %v3698
        %3700 = vdwg.mxu0
        %3701 = vmatpush.msra.mxu0 0.0
        %3702 = vmatpush.msra.mxu0 0.0
        %3703 = vmatpush.msra.mxu0 0.0
        %3704 = vmatpush.msra.mxu0 0.0
        %3705 = vmatpush.msra.mxu0 0.0
        %3706 = vmatpush.msra.mxu0 0.0
        %3707 = vmatpush.msra.mxu0 0.0
        %3708 = vmatpush.msra.mxu0 0.0
        %3709 = vmatpush.msra.mxu0 %v391
        %3710 = vmatpush.msra.mxu0 %v373
        %3711 = vmatpush.msra.mxu0 %v355
        %3712 = vmatpush.msra.mxu0 %v337
        %3713 = vmatpush.msra.mxu0 %v319
        %3714 = vmatpush.msra.mxu0 %v301
        %3715 = vmatpush.msra.mxu0 %v283
        %3716 = vmatpush.msra.mxu0 %v265
        %3717 = vmatmul.f32.gmra.mxu0 %v3359
        %v3718 = vpop.f32.mrf.mxu0
        %v3719 = vadd.f32 0.0, %v3718
        %3720 = vdwg.mxu0
        %v3739 = vrot.slane %v3399, 4
        %v3740 = vrot.slane %v3439, 4
        %v3741 = vrot.slane %v3479, 4
        %v3742 = vrot.slane %v3519, 4
        %v3743 = vrot.slane %v3559, 4
        %v3744 = vrot.slane %v3599, 4
        %v3745 = vrot.slane %v3639, 4
        %v3746 = vrot.slane %v3679, 4
        %v3747 = vrot.slane %v3719, 4
        %v3748 = vsel %vm787, %v3379, %v3739
        %v3749 = vsel %vm787, %v3419, %v3740
        %v3750 = vsel %vm787, %v3459, %v3741
        %v3751 = vsel %vm787, %v3499, %v3742
        %v3752 = vsel %vm787, %v3539, %v3743
        %v3753 = vsel %vm787, %v3579, %v3744
        %v3754 = vsel %vm787, %v3619, %v3745
        %v3755 = vsel %vm787, %v3659, %v3746
        %v3756 = vsel %vm787, %v3699, %v3747
        %s3766 = scalar_lea.vmem [#allocation2], 504
        %3767 = vst [vmem:[%s3766] sm:$0xff] %v3748
        %3768 = vst [vmem:[%s3766 + $0x8] sm:$0xff] %v3749
        %3769 = vst [vmem:[%s3766 + $0x10] sm:$0xff] %v3750
        %3770 = vst [vmem:[%s3766 + $0x18] sm:$0xff] %v3751
        %3771 = vst [vmem:[%s3766 + $0x20] sm:$0xff] %v3752
        %3772 = vst [vmem:[%s3766 + $0x28] sm:$0xff] %v3753
        %3773 = vst [vmem:[%s3766 + $0x30] sm:$0xff] %v3754
        %3774 = vst [vmem:[%s3766 + $0x38] sm:$0xff] %v3755
        %3775 = vst [vmem:[%s3766 + $0x40] sm:$0xff] %v3756
        %s3776 = sadd.s32 %s247, 8
        %s3777 = sld [smem:[#allocation4 + %s3776]]
        %s3778 = smul.u32 %s3777, 4
        %s3779 = scalar_lea.vmem %s236, %s3778
        %v3780 = vld [vmem:[%s3779] sm:$0xf]
        %v3782 = vsel %vm396, %v3780, 0
        %3784 = vmatpush.msra.mxu0 0.0
        %3785 = vmatpush.msra.mxu0 0.0
        %3786 = vmatpush.msra.mxu0 0.0
        %3787 = vmatpush.msra.mxu0 0.0
        %3788 = vmatpush.msra.mxu0 0.0
        %3789 = vmatpush.msra.mxu0 0.0
        %3790 = vmatpush.msra.mxu0 0.0
        %3791 = vmatpush.msra.mxu0 0.0
        %3792 = vmatpush.msra.mxu0 %v374
        %3793 = vmatpush.msra.mxu0 %v356
        %3794 = vmatpush.msra.mxu0 %v338
        %3795 = vmatpush.msra.mxu0 %v320
        %3796 = vmatpush.msra.mxu0 %v302
        %3797 = vmatpush.msra.mxu0 %v284
        %3798 = vmatpush.msra.mxu0 %v266
        %3799 = vmatpush.msra.mxu0 %v248
        %3800 = vmatmul.f32.gmra.mxu0 %v3782
        %v3801 = vpop.f32.mrf.mxu0
        %v3802 = vadd.f32 0.0, %v3801
        %3803 = vdwg.mxu0
        %3804 = vmatpush.msra.mxu0 0.0
        %3805 = vmatpush.msra.mxu0 0.0
        %3806 = vmatpush.msra.mxu0 0.0
        %3807 = vmatpush.msra.mxu0 0.0
        %3808 = vmatpush.msra.mxu0 0.0
        %3809 = vmatpush.msra.mxu0 0.0
        %3810 = vmatpush.msra.mxu0 0.0
        %3811 = vmatpush.msra.mxu0 0.0
        %3812 = vmatpush.msra.mxu0 %v375
        %3813 = vmatpush.msra.mxu0 %v357
        %3814 = vmatpush.msra.mxu0 %v339
        %3815 = vmatpush.msra.mxu0 %v321
        %3816 = vmatpush.msra.mxu0 %v303
        %3817 = vmatpush.msra.mxu0 %v285
        %3818 = vmatpush.msra.mxu0 %v267
        %3819 = vmatpush.msra.mxu0 %v249
        %3820 = vmatmul.f32.gmra.mxu0 %v3782
        %v3821 = vpop.f32.mrf.mxu0
        %v3822 = vadd.f32 0.0, %v3821
        %3823 = vdwg.mxu0
        %3824 = vmatpush.msra.mxu0 0.0
        %3825 = vmatpush.msra.mxu0 0.0
        %3826 = vmatpush.msra.mxu0 0.0
        %3827 = vmatpush.msra.mxu0 0.0
        %3828 = vmatpush.msra.mxu0 0.0
        %3829 = vmatpush.msra.mxu0 0.0
        %3830 = vmatpush.msra.mxu0 0.0
        %3831 = vmatpush.msra.mxu0 0.0
        %3832 = vmatpush.msra.mxu0 %v376
        %3833 = vmatpush.msra.mxu0 %v358
        %3834 = vmatpush.msra.mxu0 %v340
        %3835 = vmatpush.msra.mxu0 %v322
        %3836 = vmatpush.msra.mxu0 %v304
        %3837 = vmatpush.msra.mxu0 %v286
        %3838 = vmatpush.msra.mxu0 %v268
        %3839 = vmatpush.msra.mxu0 %v250
        %3840 = vmatmul.f32.gmra.mxu0 %v3782
        %v3841 = vpop.f32.mrf.mxu0
        %v3842 = vadd.f32 0.0, %v3841
        %3843 = vdwg.mxu0
        %3844 = vmatpush.msra.mxu0 0.0
        %3845 = vmatpush.msra.mxu0 0.0
        %3846 = vmatpush.msra.mxu0 0.0
        %3847 = vmatpush.msra.mxu0 0.0
        %3848 = vmatpush.msra.mxu0 0.0
        %3849 = vmatpush.msra.mxu0 0.0
        %3850 = vmatpush.msra.mxu0 0.0
        %3851 = vmatpush.msra.mxu0 0.0
        %3852 = vmatpush.msra.mxu0 %v377
        %3853 = vmatpush.msra.mxu0 %v359
        %3854 = vmatpush.msra.mxu0 %v341
        %3855 = vmatpush.msra.mxu0 %v323
        %3856 = vmatpush.msra.mxu0 %v305
        %3857 = vmatpush.msra.mxu0 %v287
        %3858 = vmatpush.msra.mxu0 %v269
        %3859 = vmatpush.msra.mxu0 %v251
        %3860 = vmatmul.f32.gmra.mxu0 %v3782
        %v3861 = vpop.f32.mrf.mxu0
        %v3862 = vadd.f32 0.0, %v3861
        %3863 = vdwg.mxu0
        %3864 = vmatpush.msra.mxu0 0.0
        %3865 = vmatpush.msra.mxu0 0.0
        %3866 = vmatpush.msra.mxu0 0.0
        %3867 = vmatpush.msra.mxu0 0.0
        %3868 = vmatpush.msra.mxu0 0.0
        %3869 = vmatpush.msra.mxu0 0.0
        %3870 = vmatpush.msra.mxu0 0.0
        %3871 = vmatpush.msra.mxu0 0.0
        %3872 = vmatpush.msra.mxu0 %v378
        %3873 = vmatpush.msra.mxu0 %v360
        %3874 = vmatpush.msra.mxu0 %v342
        %3875 = vmatpush.msra.mxu0 %v324
        %3876 = vmatpush.msra.mxu0 %v306
        %3877 = vmatpush.msra.mxu0 %v288
        %3878 = vmatpush.msra.mxu0 %v270
        %3879 = vmatpush.msra.mxu0 %v252
        %3880 = vmatmul.f32.gmra.mxu0 %v3782
        %v3881 = vpop.f32.mrf.mxu0
        %v3882 = vadd.f32 0.0, %v3881
        %3883 = vdwg.mxu0
        %3884 = vmatpush.msra.mxu0 0.0
        %3885 = vmatpush.msra.mxu0 0.0
        %3886 = vmatpush.msra.mxu0 0.0
        %3887 = vmatpush.msra.mxu0 0.0
        %3888 = vmatpush.msra.mxu0 0.0
        %3889 = vmatpush.msra.mxu0 0.0
        %3890 = vmatpush.msra.mxu0 0.0
        %3891 = vmatpush.msra.mxu0 0.0
        %3892 = vmatpush.msra.mxu0 %v379
        %3893 = vmatpush.msra.mxu0 %v361
        %3894 = vmatpush.msra.mxu0 %v343
        %3895 = vmatpush.msra.mxu0 %v325
        %3896 = vmatpush.msra.mxu0 %v307
        %3897 = vmatpush.msra.mxu0 %v289
        %3898 = vmatpush.msra.mxu0 %v271
        %3899 = vmatpush.msra.mxu0 %v253
        %3900 = vmatmul.f32.gmra.mxu0 %v3782
        %v3901 = vpop.f32.mrf.mxu0
        %v3902 = vadd.f32 0.0, %v3901
        %3903 = vdwg.mxu0
        %3904 = vmatpush.msra.mxu0 0.0
        %3905 = vmatpush.msra.mxu0 0.0
        %3906 = vmatpush.msra.mxu0 0.0
        %3907 = vmatpush.msra.mxu0 0.0
        %3908 = vmatpush.msra.mxu0 0.0
        %3909 = vmatpush.msra.mxu0 0.0
        %3910 = vmatpush.msra.mxu0 0.0
        %3911 = vmatpush.msra.mxu0 0.0
        %3912 = vmatpush.msra.mxu0 %v380
        %3913 = vmatpush.msra.mxu0 %v362
        %3914 = vmatpush.msra.mxu0 %v344
        %3915 = vmatpush.msra.mxu0 %v326
        %3916 = vmatpush.msra.mxu0 %v308
        %3917 = vmatpush.msra.mxu0 %v290
        %3918 = vmatpush.msra.mxu0 %v272
        %3919 = vmatpush.msra.mxu0 %v254
        %3920 = vmatmul.f32.gmra.mxu0 %v3782
        %v3921 = vpop.f32.mrf.mxu0
        %v3922 = vadd.f32 0.0, %v3921
        %3923 = vdwg.mxu0
        %3924 = vmatpush.msra.mxu0 0.0
        %3925 = vmatpush.msra.mxu0 0.0
        %3926 = vmatpush.msra.mxu0 0.0
        %3927 = vmatpush.msra.mxu0 0.0
        %3928 = vmatpush.msra.mxu0 0.0
        %3929 = vmatpush.msra.mxu0 0.0
        %3930 = vmatpush.msra.mxu0 0.0
        %3931 = vmatpush.msra.mxu0 0.0
        %3932 = vmatpush.msra.mxu0 %v381
        %3933 = vmatpush.msra.mxu0 %v363
        %3934 = vmatpush.msra.mxu0 %v345
        %3935 = vmatpush.msra.mxu0 %v327
        %3936 = vmatpush.msra.mxu0 %v309
        %3937 = vmatpush.msra.mxu0 %v291
        %3938 = vmatpush.msra.mxu0 %v273
        %3939 = vmatpush.msra.mxu0 %v255
        %3940 = vmatmul.f32.gmra.mxu0 %v3782
        %v3941 = vpop.f32.mrf.mxu0
        %v3942 = vadd.f32 0.0, %v3941
        %3943 = vdwg.mxu0
        %3944 = vmatpush.msra.mxu0 0.0
        %3945 = vmatpush.msra.mxu0 0.0
        %3946 = vmatpush.msra.mxu0 0.0
        %3947 = vmatpush.msra.mxu0 0.0
        %3948 = vmatpush.msra.mxu0 0.0
        %3949 = vmatpush.msra.mxu0 0.0
        %3950 = vmatpush.msra.mxu0 0.0
        %3951 = vmatpush.msra.mxu0 0.0
        %3952 = vmatpush.msra.mxu0 %v382
        %3953 = vmatpush.msra.mxu0 %v364
        %3954 = vmatpush.msra.mxu0 %v346
        %3955 = vmatpush.msra.mxu0 %v328
        %3956 = vmatpush.msra.mxu0 %v310
        %3957 = vmatpush.msra.mxu0 %v292
        %3958 = vmatpush.msra.mxu0 %v274
        %3959 = vmatpush.msra.mxu0 %v256
        %3960 = vmatmul.f32.gmra.mxu0 %v3782
        %v3961 = vpop.f32.mrf.mxu0
        %v3962 = vadd.f32 0.0, %v3961
        %3963 = vdwg.mxu0
        %3964 = vmatpush.msra.mxu0 0.0
        %3965 = vmatpush.msra.mxu0 0.0
        %3966 = vmatpush.msra.mxu0 0.0
        %3967 = vmatpush.msra.mxu0 0.0
        %3968 = vmatpush.msra.mxu0 0.0
        %3969 = vmatpush.msra.mxu0 0.0
        %3970 = vmatpush.msra.mxu0 0.0
        %3971 = vmatpush.msra.mxu0 0.0
        %3972 = vmatpush.msra.mxu0 %v383
        %3973 = vmatpush.msra.mxu0 %v365
        %3974 = vmatpush.msra.mxu0 %v347
        %3975 = vmatpush.msra.mxu0 %v329
        %3976 = vmatpush.msra.mxu0 %v311
        %3977 = vmatpush.msra.mxu0 %v293
        %3978 = vmatpush.msra.mxu0 %v275
        %3979 = vmatpush.msra.mxu0 %v257
        %3980 = vmatmul.f32.gmra.mxu0 %v3782
        %v3981 = vpop.f32.mrf.mxu0
        %v3982 = vadd.f32 0.0, %v3981
        %3983 = vdwg.mxu0
        %3984 = vmatpush.msra.mxu0 0.0
        %3985 = vmatpush.msra.mxu0 0.0
        %3986 = vmatpush.msra.mxu0 0.0
        %3987 = vmatpush.msra.mxu0 0.0
        %3988 = vmatpush.msra.mxu0 0.0
        %3989 = vmatpush.msra.mxu0 0.0
        %3990 = vmatpush.msra.mxu0 0.0
        %3991 = vmatpush.msra.mxu0 0.0
        %3992 = vmatpush.msra.mxu0 %v384
        %3993 = vmatpush.msra.mxu0 %v366
        %3994 = vmatpush.msra.mxu0 %v348
        %3995 = vmatpush.msra.mxu0 %v330
        %3996 = vmatpush.msra.mxu0 %v312
        %3997 = vmatpush.msra.mxu0 %v294
        %3998 = vmatpush.msra.mxu0 %v276
        %3999 = vmatpush.msra.mxu0 %v258
        %4000 = vmatmul.f32.gmra.mxu0 %v3782
        %v4001 = vpop.f32.mrf.mxu0
        %v4002 = vadd.f32 0.0, %v4001
        %4003 = vdwg.mxu0
        %4004 = vmatpush.msra.mxu0 0.0
        %4005 = vmatpush.msra.mxu0 0.0
        %4006 = vmatpush.msra.mxu0 0.0
        %4007 = vmatpush.msra.mxu0 0.0
        %4008 = vmatpush.msra.mxu0 0.0
        %4009 = vmatpush.msra.mxu0 0.0
        %4010 = vmatpush.msra.mxu0 0.0
        %4011 = vmatpush.msra.mxu0 0.0
        %4012 = vmatpush.msra.mxu0 %v385
        %4013 = vmatpush.msra.mxu0 %v367
        %4014 = vmatpush.msra.mxu0 %v349
        %4015 = vmatpush.msra.mxu0 %v331
        %4016 = vmatpush.msra.mxu0 %v313
        %4017 = vmatpush.msra.mxu0 %v295
        %4018 = vmatpush.msra.mxu0 %v277
        %4019 = vmatpush.msra.mxu0 %v259
        %4020 = vmatmul.f32.gmra.mxu0 %v3782
        %v4021 = vpop.f32.mrf.mxu0
        %v4022 = vadd.f32 0.0, %v4021
        %4023 = vdwg.mxu0
        %4024 = vmatpush.msra.mxu0 0.0
        %4025 = vmatpush.msra.mxu0 0.0
        %4026 = vmatpush.msra.mxu0 0.0
        %4027 = vmatpush.msra.mxu0 0.0
        %4028 = vmatpush.msra.mxu0 0.0
        %4029 = vmatpush.msra.mxu0 0.0
        %4030 = vmatpush.msra.mxu0 0.0
        %4031 = vmatpush.msra.mxu0 0.0
        %4032 = vmatpush.msra.mxu0 %v386
        %4033 = vmatpush.msra.mxu0 %v368
        %4034 = vmatpush.msra.mxu0 %v350
        %4035 = vmatpush.msra.mxu0 %v332
        %4036 = vmatpush.msra.mxu0 %v314
        %4037 = vmatpush.msra.mxu0 %v296
        %4038 = vmatpush.msra.mxu0 %v278
        %4039 = vmatpush.msra.mxu0 %v260
        %4040 = vmatmul.f32.gmra.mxu0 %v3782
        %v4041 = vpop.f32.mrf.mxu0
        %v4042 = vadd.f32 0.0, %v4041
        %4043 = vdwg.mxu0
        %4044 = vmatpush.msra.mxu0 0.0
        %4045 = vmatpush.msra.mxu0 0.0
        %4046 = vmatpush.msra.mxu0 0.0
        %4047 = vmatpush.msra.mxu0 0.0
        %4048 = vmatpush.msra.mxu0 0.0
        %4049 = vmatpush.msra.mxu0 0.0
        %4050 = vmatpush.msra.mxu0 0.0
        %4051 = vmatpush.msra.mxu0 0.0
        %4052 = vmatpush.msra.mxu0 %v387
        %4053 = vmatpush.msra.mxu0 %v369
        %4054 = vmatpush.msra.mxu0 %v351
        %4055 = vmatpush.msra.mxu0 %v333
        %4056 = vmatpush.msra.mxu0 %v315
        %4057 = vmatpush.msra.mxu0 %v297
        %4058 = vmatpush.msra.mxu0 %v279
        %4059 = vmatpush.msra.mxu0 %v261
        %4060 = vmatmul.f32.gmra.mxu0 %v3782
        %v4061 = vpop.f32.mrf.mxu0
        %v4062 = vadd.f32 0.0, %v4061
        %4063 = vdwg.mxu0
        %4064 = vmatpush.msra.mxu0 0.0
        %4065 = vmatpush.msra.mxu0 0.0
        %4066 = vmatpush.msra.mxu0 0.0
        %4067 = vmatpush.msra.mxu0 0.0
        %4068 = vmatpush.msra.mxu0 0.0
        %4069 = vmatpush.msra.mxu0 0.0
        %4070 = vmatpush.msra.mxu0 0.0
        %4071 = vmatpush.msra.mxu0 0.0
        %4072 = vmatpush.msra.mxu0 %v388
        %4073 = vmatpush.msra.mxu0 %v370
        %4074 = vmatpush.msra.mxu0 %v352
        %4075 = vmatpush.msra.mxu0 %v334
        %4076 = vmatpush.msra.mxu0 %v316
        %4077 = vmatpush.msra.mxu0 %v298
        %4078 = vmatpush.msra.mxu0 %v280
        %4079 = vmatpush.msra.mxu0 %v262
        %4080 = vmatmul.f32.gmra.mxu0 %v3782
        %v4081 = vpop.f32.mrf.mxu0
        %v4082 = vadd.f32 0.0, %v4081
        %4083 = vdwg.mxu0
        %4084 = vmatpush.msra.mxu0 0.0
        %4085 = vmatpush.msra.mxu0 0.0
        %4086 = vmatpush.msra.mxu0 0.0
        %4087 = vmatpush.msra.mxu0 0.0
        %4088 = vmatpush.msra.mxu0 0.0
        %4089 = vmatpush.msra.mxu0 0.0
        %4090 = vmatpush.msra.mxu0 0.0
        %4091 = vmatpush.msra.mxu0 0.0
        %4092 = vmatpush.msra.mxu0 %v389
        %4093 = vmatpush.msra.mxu0 %v371
        %4094 = vmatpush.msra.mxu0 %v353
        %4095 = vmatpush.msra.mxu0 %v335
        %4096 = vmatpush.msra.mxu0 %v317
        %4097 = vmatpush.msra.mxu0 %v299
        %4098 = vmatpush.msra.mxu0 %v281
        %4099 = vmatpush.msra.mxu0 %v263
        %4100 = vmatmul.f32.gmra.mxu0 %v3782
        %v4101 = vpop.f32.mrf.mxu0
        %v4102 = vadd.f32 0.0, %v4101
        %4103 = vdwg.mxu0
        %4104 = vmatpush.msra.mxu0 0.0
        %4105 = vmatpush.msra.mxu0 0.0
        %4106 = vmatpush.msra.mxu0 0.0
        %4107 = vmatpush.msra.mxu0 0.0
        %4108 = vmatpush.msra.mxu0 0.0
        %4109 = vmatpush.msra.mxu0 0.0
        %4110 = vmatpush.msra.mxu0 0.0
        %4111 = vmatpush.msra.mxu0 0.0
        %4112 = vmatpush.msra.mxu0 %v390
        %4113 = vmatpush.msra.mxu0 %v372
        %4114 = vmatpush.msra.mxu0 %v354
        %4115 = vmatpush.msra.mxu0 %v336
        %4116 = vmatpush.msra.mxu0 %v318
        %4117 = vmatpush.msra.mxu0 %v300
        %4118 = vmatpush.msra.mxu0 %v282
        %4119 = vmatpush.msra.mxu0 %v264
        %4120 = vmatmul.f32.gmra.mxu0 %v3782
        %v4121 = vpop.f32.mrf.mxu0
        %v4122 = vadd.f32 0.0, %v4121
        %4123 = vdwg.mxu0
        %4124 = vmatpush.msra.mxu0 0.0
        %4125 = vmatpush.msra.mxu0 0.0
        %4126 = vmatpush.msra.mxu0 0.0
        %4127 = vmatpush.msra.mxu0 0.0
        %4128 = vmatpush.msra.mxu0 0.0
        %4129 = vmatpush.msra.mxu0 0.0
        %4130 = vmatpush.msra.mxu0 0.0
        %4131 = vmatpush.msra.mxu0 0.0
        %4132 = vmatpush.msra.mxu0 %v391
        %4133 = vmatpush.msra.mxu0 %v373
        %4134 = vmatpush.msra.mxu0 %v355
        %4135 = vmatpush.msra.mxu0 %v337
        %4136 = vmatpush.msra.mxu0 %v319
        %4137 = vmatpush.msra.mxu0 %v301
        %4138 = vmatpush.msra.mxu0 %v283
        %4139 = vmatpush.msra.mxu0 %v265
        %4140 = vmatmul.f32.gmra.mxu0 %v3782
        %v4141 = vpop.f32.mrf.mxu0
        %v4142 = vadd.f32 0.0, %v4141
        %4143 = vdwg.mxu0
        %v4162 = vrot.slane %v3822, 4
        %v4163 = vrot.slane %v3862, 4
        %v4164 = vrot.slane %v3902, 4
        %v4165 = vrot.slane %v3942, 4
        %v4166 = vrot.slane %v3982, 4
        %v4167 = vrot.slane %v4022, 4
        %v4168 = vrot.slane %v4062, 4
        %v4169 = vrot.slane %v4102, 4
        %v4170 = vrot.slane %v4142, 4
        %v4171 = vsel %vm787, %v3802, %v4162
        %v4172 = vsel %vm787, %v3842, %v4163
        %v4173 = vsel %vm787, %v3882, %v4164
        %v4174 = vsel %vm787, %v3922, %v4165
        %v4175 = vsel %vm787, %v3962, %v4166
        %v4176 = vsel %vm787, %v4002, %v4167
        %v4177 = vsel %vm787, %v4042, %v4168
        %v4178 = vsel %vm787, %v4082, %v4169
        %v4179 = vsel %vm787, %v4122, %v4170
        %s4189 = scalar_lea.vmem [#allocation2], 576
        %4190 = vst [vmem:[%s4189] sm:$0xff] %v4171
        %4191 = vst [vmem:[%s4189 + $0x8] sm:$0xff] %v4172
        %4192 = vst [vmem:[%s4189 + $0x10] sm:$0xff] %v4173
        %4193 = vst [vmem:[%s4189 + $0x18] sm:$0xff] %v4174
        %4194 = vst [vmem:[%s4189 + $0x20] sm:$0xff] %v4175
        %4195 = vst [vmem:[%s4189 + $0x28] sm:$0xff] %v4176
        %4196 = vst [vmem:[%s4189 + $0x30] sm:$0xff] %v4177
        %4197 = vst [vmem:[%s4189 + $0x38] sm:$0xff] %v4178
        %4198 = vst [vmem:[%s4189 + $0x40] sm:$0xff] %v4179
        %s4199 = sadd.s32 %s247, 9
        %s4200 = sld [smem:[#allocation4 + %s4199]]
        %s4201 = smul.u32 %s4200, 4
        %s4202 = scalar_lea.vmem %s236, %s4201
        %v4203 = vld [vmem:[%s4202] sm:$0xf]
        %v4205 = vsel %vm396, %v4203, 0
        %4207 = vmatpush.msra.mxu0 0.0
        %4208 = vmatpush.msra.mxu0 0.0
        %4209 = vmatpush.msra.mxu0 0.0
        %4210 = vmatpush.msra.mxu0 0.0
        %4211 = vmatpush.msra.mxu0 0.0
        %4212 = vmatpush.msra.mxu0 0.0
        %4213 = vmatpush.msra.mxu0 0.0
        %4214 = vmatpush.msra.mxu0 0.0
        %4215 = vmatpush.msra.mxu0 %v374
        %4216 = vmatpush.msra.mxu0 %v356
        %4217 = vmatpush.msra.mxu0 %v338
        %4218 = vmatpush.msra.mxu0 %v320
        %4219 = vmatpush.msra.mxu0 %v302
        %4220 = vmatpush.msra.mxu0 %v284
        %4221 = vmatpush.msra.mxu0 %v266
        %4222 = vmatpush.msra.mxu0 %v248
        %4223 = vmatmul.f32.gmra.mxu0 %v4205
        %v4224 = vpop.f32.mrf.mxu0
        %v4225 = vadd.f32 0.0, %v4224
        %4226 = vdwg.mxu0
        %4227 = vmatpush.msra.mxu0 0.0
        %4228 = vmatpush.msra.mxu0 0.0
        %4229 = vmatpush.msra.mxu0 0.0
        %4230 = vmatpush.msra.mxu0 0.0
        %4231 = vmatpush.msra.mxu0 0.0
        %4232 = vmatpush.msra.mxu0 0.0
        %4233 = vmatpush.msra.mxu0 0.0
        %4234 = vmatpush.msra.mxu0 0.0
        %4235 = vmatpush.msra.mxu0 %v375
        %4236 = vmatpush.msra.mxu0 %v357
        %4237 = vmatpush.msra.mxu0 %v339
        %4238 = vmatpush.msra.mxu0 %v321
        %4239 = vmatpush.msra.mxu0 %v303
        %4240 = vmatpush.msra.mxu0 %v285
        %4241 = vmatpush.msra.mxu0 %v267
        %4242 = vmatpush.msra.mxu0 %v249
        %4243 = vmatmul.f32.gmra.mxu0 %v4205
        %v4244 = vpop.f32.mrf.mxu0
        %v4245 = vadd.f32 0.0, %v4244
        %4246 = vdwg.mxu0
        %4247 = vmatpush.msra.mxu0 0.0
        %4248 = vmatpush.msra.mxu0 0.0
        %4249 = vmatpush.msra.mxu0 0.0
        %4250 = vmatpush.msra.mxu0 0.0
        %4251 = vmatpush.msra.mxu0 0.0
        %4252 = vmatpush.msra.mxu0 0.0
        %4253 = vmatpush.msra.mxu0 0.0
        %4254 = vmatpush.msra.mxu0 0.0
        %4255 = vmatpush.msra.mxu0 %v376
        %4256 = vmatpush.msra.mxu0 %v358
        %4257 = vmatpush.msra.mxu0 %v340
        %4258 = vmatpush.msra.mxu0 %v322
        %4259 = vmatpush.msra.mxu0 %v304
        %4260 = vmatpush.msra.mxu0 %v286
        %4261 = vmatpush.msra.mxu0 %v268
        %4262 = vmatpush.msra.mxu0 %v250
        %4263 = vmatmul.f32.gmra.mxu0 %v4205
        %v4264 = vpop.f32.mrf.mxu0
        %v4265 = vadd.f32 0.0, %v4264
        %4266 = vdwg.mxu0
        %4267 = vmatpush.msra.mxu0 0.0
        %4268 = vmatpush.msra.mxu0 0.0
        %4269 = vmatpush.msra.mxu0 0.0
        %4270 = vmatpush.msra.mxu0 0.0
        %4271 = vmatpush.msra.mxu0 0.0
        %4272 = vmatpush.msra.mxu0 0.0
        %4273 = vmatpush.msra.mxu0 0.0
        %4274 = vmatpush.msra.mxu0 0.0
        %4275 = vmatpush.msra.mxu0 %v377
        %4276 = vmatpush.msra.mxu0 %v359
        %4277 = vmatpush.msra.mxu0 %v341
        %4278 = vmatpush.msra.mxu0 %v323
        %4279 = vmatpush.msra.mxu0 %v305
        %4280 = vmatpush.msra.mxu0 %v287
        %4281 = vmatpush.msra.mxu0 %v269
        %4282 = vmatpush.msra.mxu0 %v251
        %4283 = vmatmul.f32.gmra.mxu0 %v4205
        %v4284 = vpop.f32.mrf.mxu0
        %v4285 = vadd.f32 0.0, %v4284
        %4286 = vdwg.mxu0
        %4287 = vmatpush.msra.mxu0 0.0
        %4288 = vmatpush.msra.mxu0 0.0
        %4289 = vmatpush.msra.mxu0 0.0
        %4290 = vmatpush.msra.mxu0 0.0
        %4291 = vmatpush.msra.mxu0 0.0
        %4292 = vmatpush.msra.mxu0 0.0
        %4293 = vmatpush.msra.mxu0 0.0
        %4294 = vmatpush.msra.mxu0 0.0
        %4295 = vmatpush.msra.mxu0 %v378
        %4296 = vmatpush.msra.mxu0 %v360
        %4297 = vmatpush.msra.mxu0 %v342
        %4298 = vmatpush.msra.mxu0 %v324
        %4299 = vmatpush.msra.mxu0 %v306
        %4300 = vmatpush.msra.mxu0 %v288
        %4301 = vmatpush.msra.mxu0 %v270
        %4302 = vmatpush.msra.mxu0 %v252
        %4303 = vmatmul.f32.gmra.mxu0 %v4205
        %v4304 = vpop.f32.mrf.mxu0
        %v4305 = vadd.f32 0.0, %v4304
        %4306 = vdwg.mxu0
        %4307 = vmatpush.msra.mxu0 0.0
        %4308 = vmatpush.msra.mxu0 0.0
        %4309 = vmatpush.msra.mxu0 0.0
        %4310 = vmatpush.msra.mxu0 0.0
        %4311 = vmatpush.msra.mxu0 0.0
        %4312 = vmatpush.msra.mxu0 0.0
        %4313 = vmatpush.msra.mxu0 0.0
        %4314 = vmatpush.msra.mxu0 0.0
        %4315 = vmatpush.msra.mxu0 %v379
        %4316 = vmatpush.msra.mxu0 %v361
        %4317 = vmatpush.msra.mxu0 %v343
        %4318 = vmatpush.msra.mxu0 %v325
        %4319 = vmatpush.msra.mxu0 %v307
        %4320 = vmatpush.msra.mxu0 %v289
        %4321 = vmatpush.msra.mxu0 %v271
        %4322 = vmatpush.msra.mxu0 %v253
        %4323 = vmatmul.f32.gmra.mxu0 %v4205
        %v4324 = vpop.f32.mrf.mxu0
        %v4325 = vadd.f32 0.0, %v4324
        %4326 = vdwg.mxu0
        %4327 = vmatpush.msra.mxu0 0.0
        %4328 = vmatpush.msra.mxu0 0.0
        %4329 = vmatpush.msra.mxu0 0.0
        %4330 = vmatpush.msra.mxu0 0.0
        %4331 = vmatpush.msra.mxu0 0.0
        %4332 = vmatpush.msra.mxu0 0.0
        %4333 = vmatpush.msra.mxu0 0.0
        %4334 = vmatpush.msra.mxu0 0.0
        %4335 = vmatpush.msra.mxu0 %v380
        %4336 = vmatpush.msra.mxu0 %v362
        %4337 = vmatpush.msra.mxu0 %v344
        %4338 = vmatpush.msra.mxu0 %v326
        %4339 = vmatpush.msra.mxu0 %v308
        %4340 = vmatpush.msra.mxu0 %v290
        %4341 = vmatpush.msra.mxu0 %v272
        %4342 = vmatpush.msra.mxu0 %v254
        %4343 = vmatmul.f32.gmra.mxu0 %v4205
        %v4344 = vpop.f32.mrf.mxu0
        %v4345 = vadd.f32 0.0, %v4344
        %4346 = vdwg.mxu0
        %4347 = vmatpush.msra.mxu0 0.0
        %4348 = vmatpush.msra.mxu0 0.0
        %4349 = vmatpush.msra.mxu0 0.0
        %4350 = vmatpush.msra.mxu0 0.0
        %4351 = vmatpush.msra.mxu0 0.0
        %4352 = vmatpush.msra.mxu0 0.0
        %4353 = vmatpush.msra.mxu0 0.0
        %4354 = vmatpush.msra.mxu0 0.0
        %4355 = vmatpush.msra.mxu0 %v381
        %4356 = vmatpush.msra.mxu0 %v363
        %4357 = vmatpush.msra.mxu0 %v345
        %4358 = vmatpush.msra.mxu0 %v327
        %4359 = vmatpush.msra.mxu0 %v309
        %4360 = vmatpush.msra.mxu0 %v291
        %4361 = vmatpush.msra.mxu0 %v273
        %4362 = vmatpush.msra.mxu0 %v255
        %4363 = vmatmul.f32.gmra.mxu0 %v4205
        %v4364 = vpop.f32.mrf.mxu0
        %v4365 = vadd.f32 0.0, %v4364
        %4366 = vdwg.mxu0
        %4367 = vmatpush.msra.mxu0 0.0
        %4368 = vmatpush.msra.mxu0 0.0
        %4369 = vmatpush.msra.mxu0 0.0
        %4370 = vmatpush.msra.mxu0 0.0
        %4371 = vmatpush.msra.mxu0 0.0
        %4372 = vmatpush.msra.mxu0 0.0
        %4373 = vmatpush.msra.mxu0 0.0
        %4374 = vmatpush.msra.mxu0 0.0
        %4375 = vmatpush.msra.mxu0 %v382
        %4376 = vmatpush.msra.mxu0 %v364
        %4377 = vmatpush.msra.mxu0 %v346
        %4378 = vmatpush.msra.mxu0 %v328
        %4379 = vmatpush.msra.mxu0 %v310
        %4380 = vmatpush.msra.mxu0 %v292
        %4381 = vmatpush.msra.mxu0 %v274
        %4382 = vmatpush.msra.mxu0 %v256
        %4383 = vmatmul.f32.gmra.mxu0 %v4205
        %v4384 = vpop.f32.mrf.mxu0
        %v4385 = vadd.f32 0.0, %v4384
        %4386 = vdwg.mxu0
        %4387 = vmatpush.msra.mxu0 0.0
        %4388 = vmatpush.msra.mxu0 0.0
        %4389 = vmatpush.msra.mxu0 0.0
        %4390 = vmatpush.msra.mxu0 0.0
        %4391 = vmatpush.msra.mxu0 0.0
        %4392 = vmatpush.msra.mxu0 0.0
        %4393 = vmatpush.msra.mxu0 0.0
        %4394 = vmatpush.msra.mxu0 0.0
        %4395 = vmatpush.msra.mxu0 %v383
        %4396 = vmatpush.msra.mxu0 %v365
        %4397 = vmatpush.msra.mxu0 %v347
        %4398 = vmatpush.msra.mxu0 %v329
        %4399 = vmatpush.msra.mxu0 %v311
        %4400 = vmatpush.msra.mxu0 %v293
        %4401 = vmatpush.msra.mxu0 %v275
        %4402 = vmatpush.msra.mxu0 %v257
        %4403 = vmatmul.f32.gmra.mxu0 %v4205
        %v4404 = vpop.f32.mrf.mxu0
        %v4405 = vadd.f32 0.0, %v4404
        %4406 = vdwg.mxu0
        %4407 = vmatpush.msra.mxu0 0.0
        %4408 = vmatpush.msra.mxu0 0.0
        %4409 = vmatpush.msra.mxu0 0.0
        %4410 = vmatpush.msra.mxu0 0.0
        %4411 = vmatpush.msra.mxu0 0.0
        %4412 = vmatpush.msra.mxu0 0.0
        %4413 = vmatpush.msra.mxu0 0.0
        %4414 = vmatpush.msra.mxu0 0.0
        %4415 = vmatpush.msra.mxu0 %v384
        %4416 = vmatpush.msra.mxu0 %v366
        %4417 = vmatpush.msra.mxu0 %v348
        %4418 = vmatpush.msra.mxu0 %v330
        %4419 = vmatpush.msra.mxu0 %v312
        %4420 = vmatpush.msra.mxu0 %v294
        %4421 = vmatpush.msra.mxu0 %v276
        %4422 = vmatpush.msra.mxu0 %v258
        %4423 = vmatmul.f32.gmra.mxu0 %v4205
        %v4424 = vpop.f32.mrf.mxu0
        %v4425 = vadd.f32 0.0, %v4424
        %4426 = vdwg.mxu0
        %4427 = vmatpush.msra.mxu0 0.0
        %4428 = vmatpush.msra.mxu0 0.0
        %4429 = vmatpush.msra.mxu0 0.0
        %4430 = vmatpush.msra.mxu0 0.0
        %4431 = vmatpush.msra.mxu0 0.0
        %4432 = vmatpush.msra.mxu0 0.0
        %4433 = vmatpush.msra.mxu0 0.0
        %4434 = vmatpush.msra.mxu0 0.0
        %4435 = vmatpush.msra.mxu0 %v385
        %4436 = vmatpush.msra.mxu0 %v367
        %4437 = vmatpush.msra.mxu0 %v349
        %4438 = vmatpush.msra.mxu0 %v331
        %4439 = vmatpush.msra.mxu0 %v313
        %4440 = vmatpush.msra.mxu0 %v295
        %4441 = vmatpush.msra.mxu0 %v277
        %4442 = vmatpush.msra.mxu0 %v259
        %4443 = vmatmul.f32.gmra.mxu0 %v4205
        %v4444 = vpop.f32.mrf.mxu0
        %v4445 = vadd.f32 0.0, %v4444
        %4446 = vdwg.mxu0
        %4447 = vmatpush.msra.mxu0 0.0
        %4448 = vmatpush.msra.mxu0 0.0
        %4449 = vmatpush.msra.mxu0 0.0
        %4450 = vmatpush.msra.mxu0 0.0
        %4451 = vmatpush.msra.mxu0 0.0
        %4452 = vmatpush.msra.mxu0 0.0
        %4453 = vmatpush.msra.mxu0 0.0
        %4454 = vmatpush.msra.mxu0 0.0
        %4455 = vmatpush.msra.mxu0 %v386
        %4456 = vmatpush.msra.mxu0 %v368
        %4457 = vmatpush.msra.mxu0 %v350
        %4458 = vmatpush.msra.mxu0 %v332
        %4459 = vmatpush.msra.mxu0 %v314
        %4460 = vmatpush.msra.mxu0 %v296
        %4461 = vmatpush.msra.mxu0 %v278
        %4462 = vmatpush.msra.mxu0 %v260
        %4463 = vmatmul.f32.gmra.mxu0 %v4205
        %v4464 = vpop.f32.mrf.mxu0
        %v4465 = vadd.f32 0.0, %v4464
        %4466 = vdwg.mxu0
        %4467 = vmatpush.msra.mxu0 0.0
        %4468 = vmatpush.msra.mxu0 0.0
        %4469 = vmatpush.msra.mxu0 0.0
        %4470 = vmatpush.msra.mxu0 0.0
        %4471 = vmatpush.msra.mxu0 0.0
        %4472 = vmatpush.msra.mxu0 0.0
        %4473 = vmatpush.msra.mxu0 0.0
        %4474 = vmatpush.msra.mxu0 0.0
        %4475 = vmatpush.msra.mxu0 %v387
        %4476 = vmatpush.msra.mxu0 %v369
        %4477 = vmatpush.msra.mxu0 %v351
        %4478 = vmatpush.msra.mxu0 %v333
        %4479 = vmatpush.msra.mxu0 %v315
        %4480 = vmatpush.msra.mxu0 %v297
        %4481 = vmatpush.msra.mxu0 %v279
        %4482 = vmatpush.msra.mxu0 %v261
        %4483 = vmatmul.f32.gmra.mxu0 %v4205
        %v4484 = vpop.f32.mrf.mxu0
        %v4485 = vadd.f32 0.0, %v4484
        %4486 = vdwg.mxu0
        %4487 = vmatpush.msra.mxu0 0.0
        %4488 = vmatpush.msra.mxu0 0.0
        %4489 = vmatpush.msra.mxu0 0.0
        %4490 = vmatpush.msra.mxu0 0.0
        %4491 = vmatpush.msra.mxu0 0.0
        %4492 = vmatpush.msra.mxu0 0.0
        %4493 = vmatpush.msra.mxu0 0.0
        %4494 = vmatpush.msra.mxu0 0.0
        %4495 = vmatpush.msra.mxu0 %v388
        %4496 = vmatpush.msra.mxu0 %v370
        %4497 = vmatpush.msra.mxu0 %v352
        %4498 = vmatpush.msra.mxu0 %v334
        %4499 = vmatpush.msra.mxu0 %v316
        %4500 = vmatpush.msra.mxu0 %v298
        %4501 = vmatpush.msra.mxu0 %v280
        %4502 = vmatpush.msra.mxu0 %v262
        %4503 = vmatmul.f32.gmra.mxu0 %v4205
        %v4504 = vpop.f32.mrf.mxu0
        %v4505 = vadd.f32 0.0, %v4504
        %4506 = vdwg.mxu0
        %4507 = vmatpush.msra.mxu0 0.0
        %4508 = vmatpush.msra.mxu0 0.0
        %4509 = vmatpush.msra.mxu0 0.0
        %4510 = vmatpush.msra.mxu0 0.0
        %4511 = vmatpush.msra.mxu0 0.0
        %4512 = vmatpush.msra.mxu0 0.0
        %4513 = vmatpush.msra.mxu0 0.0
        %4514 = vmatpush.msra.mxu0 0.0
        %4515 = vmatpush.msra.mxu0 %v389
        %4516 = vmatpush.msra.mxu0 %v371
        %4517 = vmatpush.msra.mxu0 %v353
        %4518 = vmatpush.msra.mxu0 %v335
        %4519 = vmatpush.msra.mxu0 %v317
        %4520 = vmatpush.msra.mxu0 %v299
        %4521 = vmatpush.msra.mxu0 %v281
        %4522 = vmatpush.msra.mxu0 %v263
        %4523 = vmatmul.f32.gmra.mxu0 %v4205
        %v4524 = vpop.f32.mrf.mxu0
        %v4525 = vadd.f32 0.0, %v4524
        %4526 = vdwg.mxu0
        %4527 = vmatpush.msra.mxu0 0.0
        %4528 = vmatpush.msra.mxu0 0.0
        %4529 = vmatpush.msra.mxu0 0.0
        %4530 = vmatpush.msra.mxu0 0.0
        %4531 = vmatpush.msra.mxu0 0.0
        %4532 = vmatpush.msra.mxu0 0.0
        %4533 = vmatpush.msra.mxu0 0.0
        %4534 = vmatpush.msra.mxu0 0.0
        %4535 = vmatpush.msra.mxu0 %v390
        %4536 = vmatpush.msra.mxu0 %v372
        %4537 = vmatpush.msra.mxu0 %v354
        %4538 = vmatpush.msra.mxu0 %v336
        %4539 = vmatpush.msra.mxu0 %v318
        %4540 = vmatpush.msra.mxu0 %v300
        %4541 = vmatpush.msra.mxu0 %v282
        %4542 = vmatpush.msra.mxu0 %v264
        %4543 = vmatmul.f32.gmra.mxu0 %v4205
        %v4544 = vpop.f32.mrf.mxu0
        %v4545 = vadd.f32 0.0, %v4544
        %4546 = vdwg.mxu0
        %4547 = vmatpush.msra.mxu0 0.0
        %4548 = vmatpush.msra.mxu0 0.0
        %4549 = vmatpush.msra.mxu0 0.0
        %4550 = vmatpush.msra.mxu0 0.0
        %4551 = vmatpush.msra.mxu0 0.0
        %4552 = vmatpush.msra.mxu0 0.0
        %4553 = vmatpush.msra.mxu0 0.0
        %4554 = vmatpush.msra.mxu0 0.0
        %4555 = vmatpush.msra.mxu0 %v391
        %4556 = vmatpush.msra.mxu0 %v373
        %4557 = vmatpush.msra.mxu0 %v355
        %4558 = vmatpush.msra.mxu0 %v337
        %4559 = vmatpush.msra.mxu0 %v319
        %4560 = vmatpush.msra.mxu0 %v301
        %4561 = vmatpush.msra.mxu0 %v283
        %4562 = vmatpush.msra.mxu0 %v265
        %4563 = vmatmul.f32.gmra.mxu0 %v4205
        %v4564 = vpop.f32.mrf.mxu0
        %v4565 = vadd.f32 0.0, %v4564
        %4566 = vdwg.mxu0
        %v4585 = vrot.slane %v4245, 4
        %v4586 = vrot.slane %v4285, 4
        %v4587 = vrot.slane %v4325, 4
        %v4588 = vrot.slane %v4365, 4
        %v4589 = vrot.slane %v4405, 4
        %v4590 = vrot.slane %v4445, 4
        %v4591 = vrot.slane %v4485, 4
        %v4592 = vrot.slane %v4525, 4
        %v4593 = vrot.slane %v4565, 4
        %v4594 = vsel %vm787, %v4225, %v4585
        %v4595 = vsel %vm787, %v4265, %v4586
        %v4596 = vsel %vm787, %v4305, %v4587
        %v4597 = vsel %vm787, %v4345, %v4588
        %v4598 = vsel %vm787, %v4385, %v4589
        %v4599 = vsel %vm787, %v4425, %v4590
        %v4600 = vsel %vm787, %v4465, %v4591
        %v4601 = vsel %vm787, %v4505, %v4592
        %v4602 = vsel %vm787, %v4545, %v4593
        %s4612 = scalar_lea.vmem [#allocation2], 648
        %4613 = vst [vmem:[%s4612] sm:$0xff] %v4594
        %4614 = vst [vmem:[%s4612 + $0x8] sm:$0xff] %v4595
        %4615 = vst [vmem:[%s4612 + $0x10] sm:$0xff] %v4596
        %4616 = vst [vmem:[%s4612 + $0x18] sm:$0xff] %v4597
        %4617 = vst [vmem:[%s4612 + $0x20] sm:$0xff] %v4598
        %4618 = vst [vmem:[%s4612 + $0x28] sm:$0xff] %v4599
        %4619 = vst [vmem:[%s4612 + $0x30] sm:$0xff] %v4600
        %4620 = vst [vmem:[%s4612 + $0x38] sm:$0xff] %v4601
        %4621 = vst [vmem:[%s4612 + $0x40] sm:$0xff] %v4602
        %v4622 = vld [vmem:[%s3] sm:$0xff]
        %v4623 = vld [vmem:[%s4] sm:$0xff]
        %v4624 = vld [vmem:[#allocation2] sm:$0xff]
        %v4625 = vld [vmem:[#allocation2 + $0x8] sm:$0xff]
        %v4626 = vld [vmem:[#allocation2 + $0x10] sm:$0xff]
        %v4627 = vld [vmem:[#allocation2 + $0x18] sm:$0xff]
        %v4628 = vld [vmem:[#allocation2 + $0x20] sm:$0xff]
        %v4629 = vld [vmem:[#allocation2 + $0x28] sm:$0xff]
        %v4630 = vld [vmem:[#allocation2 + $0x30] sm:$0xff]
        %v4631 = vld [vmem:[#allocation2 + $0x38] sm:$0xff]
        %v4632 = vld [vmem:[#allocation2 + $0x40] sm:$0xff]
        %v4633 = vld [vmem:[%s1228] sm:$0xff]
        %v4634 = vld [vmem:[%s1228 + $0x8] sm:$0xff]
        %v4635 = vld [vmem:[%s1228 + $0x10] sm:$0xff]
        %v4636 = vld [vmem:[%s1228 + $0x18] sm:$0xff]
        %v4637 = vld [vmem:[%s1228 + $0x20] sm:$0xff]
        %v4638 = vld [vmem:[%s1228 + $0x28] sm:$0xff]
        %v4639 = vld [vmem:[%s1228 + $0x30] sm:$0xff]
        %v4640 = vld [vmem:[%s1228 + $0x38] sm:$0xff]
        %v4641 = vld [vmem:[%s1228 + $0x40] sm:$0xff]
        %v4642 = vld [vmem:[%s1651] sm:$0xff]
        %v4643 = vld [vmem:[%s1651 + $0x8] sm:$0xff]
        %v4644 = vld [vmem:[%s1651 + $0x10] sm:$0xff]
        %v4645 = vld [vmem:[%s1651 + $0x18] sm:$0xff]
        %v4646 = vld [vmem:[%s1651 + $0x20] sm:$0xff]
        %v4647 = vld [vmem:[%s1651 + $0x28] sm:$0xff]
        %v4648 = vld [vmem:[%s1651 + $0x30] sm:$0xff]
        %v4649 = vld [vmem:[%s1651 + $0x38] sm:$0xff]
        %v4650 = vld [vmem:[%s1651 + $0x40] sm:$0xff]
        %4660 = vst [vmem:[#allocation1] ss:$2 sm:$0xff] %v4624
        %s4661 = scalar_lea.vmem [#allocation1], 16
        %4662 = vst [vmem:[%s4661] ss:$2 sm:$0xff] %v4625
        %s4663 = scalar_lea.vmem [#allocation1], 32
        %4664 = vst [vmem:[%s4663] ss:$2 sm:$0xff] %v4626
        %s4665 = scalar_lea.vmem [#allocation1], 48
        %4666 = vst [vmem:[%s4665] ss:$2 sm:$0xff] %v4627
        %v4667 = vld.sshfl [vmem:[#allocation1] sm:$0xff pattern:$0x75316420]
        %v4668 = vld.sshfl [vmem:[#allocation1 + $0x8] sm:$0xff pattern:$0x75316420]
        %v4669 = vld.sshfl [vmem:[#allocation1 + $0x10] sm:$0xff pattern:$0x75316420]
        %v4670 = vld.sshfl [vmem:[#allocation1 + $0x18] sm:$0xff pattern:$0x75316420]
        %v4671 = vld.sshfl [vmem:[#allocation1 + $0x20] sm:$0xff pattern:$0x75316420]
        %v4672 = vld.sshfl [vmem:[#allocation1 + $0x28] sm:$0xff pattern:$0x75316420]
        %v4673 = vld.sshfl [vmem:[#allocation1 + $0x30] sm:$0xff pattern:$0x75316420]
        %v4674 = vld.sshfl [vmem:[#allocation1 + $0x38] sm:$0xff pattern:$0x75316420]
        %4675 = vst [vmem:[#allocation1] ss:$2 sm:$0xff] %v4628
        %4676 = vst [vmem:[%s4661] ss:$2 sm:$0xff] %v4629
        %4677 = vst [vmem:[%s4663] ss:$2 sm:$0xff] %v4630
        %4678 = vst [vmem:[%s4665] ss:$2 sm:$0xff] %v4631
        %v4679 = vld.sshfl [vmem:[#allocation1] sm:$0xff pattern:$0x75316420]
        %v4680 = vld.sshfl [vmem:[#allocation1 + $0x8] sm:$0xff pattern:$0x75316420]
        %v4681 = vld.sshfl [vmem:[#allocation1 + $0x10] sm:$0xff pattern:$0x75316420]
        %v4682 = vld.sshfl [vmem:[#allocation1 + $0x18] sm:$0xff pattern:$0x75316420]
        %v4683 = vld.sshfl [vmem:[#allocation1 + $0x20] sm:$0xff pattern:$0x75316420]
        %v4684 = vld.sshfl [vmem:[#allocation1 + $0x28] sm:$0xff pattern:$0x75316420]
        %v4685 = vld.sshfl [vmem:[#allocation1 + $0x30] sm:$0xff pattern:$0x75316420]
        %v4686 = vld.sshfl [vmem:[#allocation1 + $0x38] sm:$0xff pattern:$0x75316420]
        %4687 = vst [vmem:[#allocation1] ss:$2 sm:$0xff] %v4632
        %v4688 = vld.sshfl [vmem:[#allocation1] sm:$0xff pattern:$0x75316420]
        %v4689 = vld.sshfl [vmem:[#allocation1 + $0x8] sm:$0xff pattern:$0x75316420]
        %4717 = vst [vmem:[#allocation1] ss:$2 sm:$0xff] %v4633
        %s4718 = scalar_lea.vmem [#allocation1], 16
        %4719 = vst [vmem:[%s4718] ss:$2 sm:$0xff] %v4634
        %s4720 = scalar_lea.vmem [#allocation1], 32
        %4721 = vst [vmem:[%s4720] ss:$2 sm:$0xff] %v4635
        %s4722 = scalar_lea.vmem [#allocation1], 48
        %4723 = vst [vmem:[%s4722] ss:$2 sm:$0xff] %v4636
        %v4724 = vld.sshfl [vmem:[#allocation1] sm:$0xff pattern:$0x75316420]
        %v4725 = vld.sshfl [vmem:[#allocation1 + $0x8] sm:$0xff pattern:$0x75316420]
        %v4726 = vld.sshfl [vmem:[#allocation1 + $0x10] sm:$0xff pattern:$0x75316420]
        %v4727 = vld.sshfl [vmem:[#allocation1 + $0x18] sm:$0xff pattern:$0x75316420]
        %v4728 = vld.sshfl [vmem:[#allocation1 + $0x20] sm:$0xff pattern:$0x75316420]
        %v4729 = vld.sshfl [vmem:[#allocation1 + $0x28] sm:$0xff pattern:$0x75316420]
        %v4730 = vld.sshfl [vmem:[#allocation1 + $0x30] sm:$0xff pattern:$0x75316420]
        %v4731 = vld.sshfl [vmem:[#allocation1 + $0x38] sm:$0xff pattern:$0x75316420]
        %4732 = vst [vmem:[#allocation1] ss:$2 sm:$0xff] %v4637
        %4733 = vst [vmem:[%s4718] ss:$2 sm:$0xff] %v4638
        %4734 = vst [vmem:[%s4720] ss:$2 sm:$0xff] %v4639
        %4735 = vst [vmem:[%s4722] ss:$2 sm:$0xff] %v4640
        %v4736 = vld.sshfl [vmem:[#allocation1] sm:$0xff pattern:$0x75316420]
        %v4737 = vld.sshfl [vmem:[#allocation1 + $0x8] sm:$0xff pattern:$0x75316420]
        %v4738 = vld.sshfl [vmem:[#allocation1 + $0x10] sm:$0xff pattern:$0x75316420]
        %v4739 = vld.sshfl [vmem:[#allocation1 + $0x18] sm:$0xff pattern:$0x75316420]
        %v4740 = vld.sshfl [vmem:[#allocation1 + $0x20] sm:$0xff pattern:$0x75316420]
        %v4741 = vld.sshfl [vmem:[#allocation1 + $0x28] sm:$0xff pattern:$0x75316420]
        %v4742 = vld.sshfl [vmem:[#allocation1 + $0x30] sm:$0xff pattern:$0x75316420]
        %v4743 = vld.sshfl [vmem:[#allocation1 + $0x38] sm:$0xff pattern:$0x75316420]
        %4744 = vst [vmem:[#allocation1] ss:$2 sm:$0xff] %v4641
        %v4745 = vld.sshfl [vmem:[#allocation1] sm:$0xff pattern:$0x75316420]
        %v4746 = vld.sshfl [vmem:[#allocation1 + $0x8] sm:$0xff pattern:$0x75316420]
        %4774 = vst [vmem:[#allocation1] ss:$2 sm:$0xff] %v4642
        %s4775 = scalar_lea.vmem [#allocation1], 16
        %4776 = vst [vmem:[%s4775] ss:$2 sm:$0xff] %v4643
        %s4777 = scalar_lea.vmem [#allocation1], 32
        %4778 = vst [vmem:[%s4777] ss:$2 sm:$0xff] %v4644
        %s4779 = scalar_lea.vmem [#allocation1], 48
        %4780 = vst [vmem:[%s4779] ss:$2 sm:$0xff] %v4645
        %v4781 = vld.sshfl [vmem:[#allocation1] sm:$0xff pattern:$0x75316420]
        %v4782 = vld.sshfl [vmem:[#allocation1 + $0x8] sm:$0xff pattern:$0x75316420]
        %v4783 = vld.sshfl [vmem:[#allocation1 + $0x10] sm:$0xff pattern:$0x75316420]
        %v4784 = vld.sshfl [vmem:[#allocation1 + $0x18] sm:$0xff pattern:$0x75316420]
        %v4785 = vld.sshfl [vmem:[#allocation1 + $0x20] sm:$0xff pattern:$0x75316420]
        %v4786 = vld.sshfl [vmem:[#allocation1 + $0x28] sm:$0xff pattern:$0x75316420]
        %v4787 = vld.sshfl [vmem:[#allocation1 + $0x30] sm:$0xff pattern:$0x75316420]
        %v4788 = vld.sshfl [vmem:[#allocation1 + $0x38] sm:$0xff pattern:$0x75316420]
        %4789 = vst [vmem:[#allocation1] ss:$2 sm:$0xff] %v4646
        %4790 = vst [vmem:[%s4775] ss:$2 sm:$0xff] %v4647
        %4791 = vst [vmem:[%s4777] ss:$2 sm:$0xff] %v4648
        %4792 = vst [vmem:[%s4779] ss:$2 sm:$0xff] %v4649
        %v4793 = vld.sshfl [vmem:[#allocation1] sm:$0xff pattern:$0x75316420]
        %v4794 = vld.sshfl [vmem:[#allocation1 + $0x8] sm:$0xff pattern:$0x75316420]
        %v4795 = vld.sshfl [vmem:[#allocation1 + $0x10] sm:$0xff pattern:$0x75316420]
        %v4796 = vld.sshfl [vmem:[#allocation1 + $0x18] sm:$0xff pattern:$0x75316420]
        %v4797 = vld.sshfl [vmem:[#allocation1 + $0x20] sm:$0xff pattern:$0x75316420]
        %v4798 = vld.sshfl [vmem:[#allocation1 + $0x28] sm:$0xff pattern:$0x75316420]
        %v4799 = vld.sshfl [vmem:[#allocation1 + $0x30] sm:$0xff pattern:$0x75316420]
        %v4800 = vld.sshfl [vmem:[#allocation1 + $0x38] sm:$0xff pattern:$0x75316420]
        %4801 = vst [vmem:[#allocation1] ss:$2 sm:$0xff] %v4650
        %v4802 = vld.sshfl [vmem:[#allocation1] sm:$0xff pattern:$0x75316420]
        %v4803 = vld.sshfl [vmem:[#allocation1 + $0x8] sm:$0xff pattern:$0x75316420]
        %vm4822 = vcmask 1040384
        %v4823 = vsel %vm4822, %v4667, 0.0
        %v4824 = vrot.slane %v4669, 7
        %vm4825 = vcmask 1041409
        %v4826 = vsel %vm4825, %v4824, %v4823
        %v4827 = vrot.slane %v4671, 6
        %vm4828 = vcmask 1042434
        %v4829 = vsel %vm4828, %v4827, %v4826
        %v4830 = vrot.slane %v4673, 5
        %vm4831 = vcmask 1043459
        %v4832 = vsel %vm4831, %v4830, %v4829
        %v4833 = vrot.slane %v4679, 4
        %vm4834 = vcmask 1044484
        %v4835 = vsel %vm4834, %v4833, %v4832
        %v4836 = vrot.slane %v4681, 3
        %vm4837 = vcmask 1045509
        %v4838 = vsel %vm4837, %v4836, %v4835
        %v4839 = vrot.slane %v4683, 2
        %vm4840 = vcmask 1046534
        %v4841 = vsel %vm4840, %v4839, %v4838
        %v4842 = vrot.slane %v4685, 1
        %vm4843 = vcmask 1047559
        %v4844 = vsel %vm4843, %v4842, %v4841
        %v4845 = vsel %vm4822, %v4668, 0.0
        %v4846 = vrot.slane %v4670, 7
        %v4847 = vsel %vm4825, %v4846, %v4845
        %v4848 = vrot.slane %v4672, 6
        %v4849 = vsel %vm4828, %v4848, %v4847
        %v4850 = vrot.slane %v4674, 5
        %v4851 = vsel %vm4831, %v4850, %v4849
        %v4852 = vrot.slane %v4680, 4
        %v4853 = vsel %vm4834, %v4852, %v4851
        %v4854 = vrot.slane %v4682, 3
        %v4855 = vsel %vm4837, %v4854, %v4853
        %v4856 = vrot.slane %v4684, 2
        %v4857 = vsel %vm4840, %v4856, %v4855
        %v4858 = vrot.slane %v4686, 1
        %v4859 = vsel %vm4843, %v4858, %v4857
        %v4860 = vsel %vm4822, %v4688, 0.0
        %v4861 = vrot.slane %v4724, 7
        %v4862 = vsel %vm4825, %v4861, %v4860
        %v4863 = vrot.slane %v4726, 6
        %v4864 = vsel %vm4828, %v4863, %v4862
        %v4865 = vrot.slane %v4728, 5
        %v4866 = vsel %vm4831, %v4865, %v4864
        %v4867 = vrot.slane %v4730, 4
        %v4868 = vsel %vm4834, %v4867, %v4866
        %v4869 = vrot.slane %v4736, 3
        %v4870 = vsel %vm4837, %v4869, %v4868
        %v4871 = vrot.slane %v4738, 2
        %v4872 = vsel %vm4840, %v4871, %v4870
        %v4873 = vrot.slane %v4740, 1
        %v4874 = vsel %vm4843, %v4873, %v4872
        %v4875 = vsel %vm4822, %v4689, 0.0
        %v4876 = vrot.slane %v4725, 7
        %v4877 = vsel %vm4825, %v4876, %v4875
        %v4878 = vrot.slane %v4727, 6
        %v4879 = vsel %vm4828, %v4878, %v4877
        %v4880 = vrot.slane %v4729, 5
        %v4881 = vsel %vm4831, %v4880, %v4879
        %v4882 = vrot.slane %v4731, 4
        %v4883 = vsel %vm4834, %v4882, %v4881
        %v4884 = vrot.slane %v4737, 3
        %v4885 = vsel %vm4837, %v4884, %v4883
        %v4886 = vrot.slane %v4739, 2
        %v4887 = vsel %vm4840, %v4886, %v4885
        %v4888 = vrot.slane %v4741, 1
        %v4889 = vsel %vm4843, %v4888, %v4887
        %v4890 = vsel %vm4822, %v4742, 0.0
        %v4891 = vrot.slane %v4745, 7
        %v4892 = vsel %vm4825, %v4891, %v4890
        %v4893 = vrot.slane %v4781, 6
        %v4894 = vsel %vm4828, %v4893, %v4892
        %v4895 = vrot.slane %v4783, 5
        %v4896 = vsel %vm4831, %v4895, %v4894
        %v4897 = vrot.slane %v4785, 4
        %v4898 = vsel %vm4834, %v4897, %v4896
        %v4899 = vrot.slane %v4787, 3
        %v4900 = vsel %vm4837, %v4899, %v4898
        %v4901 = vrot.slane %v4793, 2
        %v4902 = vsel %vm4840, %v4901, %v4900
        %v4903 = vrot.slane %v4795, 1
        %v4904 = vsel %vm4843, %v4903, %v4902
        %v4905 = vsel %vm4822, %v4743, 0.0
        %v4906 = vrot.slane %v4746, 7
        %v4907 = vsel %vm4825, %v4906, %v4905
        %v4908 = vrot.slane %v4782, 6
        %v4909 = vsel %vm4828, %v4908, %v4907
        %v4910 = vrot.slane %v4784, 5
        %v4911 = vsel %vm4831, %v4910, %v4909
        %v4912 = vrot.slane %v4786, 4
        %v4913 = vsel %vm4834, %v4912, %v4911
        %v4914 = vrot.slane %v4788, 3
        %v4915 = vsel %vm4837, %v4914, %v4913
        %v4916 = vrot.slane %v4794, 2
        %v4917 = vsel %vm4840, %v4916, %v4915
        %v4918 = vrot.slane %v4796, 1
        %v4919 = vsel %vm4843, %v4918, %v4917
        %v4920 = vsel %vm4822, %v4797, 0.0
        %v4921 = vrot.slane %v4799, 7
        %v4922 = vsel %vm4825, %v4921, %v4920
        %v4923 = vrot.slane %v4802, 6
        %v4924 = vsel %vm4828, %v4923, %v4922
        %v4925 = vrot.slane %v4667, 6
        %v4926 = vsel %vm4831, %v4925, %v4924
        %v4927 = vrot.slane %v4669, 5
        %v4928 = vsel %vm4834, %v4927, %v4926
        %v4929 = vrot.slane %v4671, 4
        %v4930 = vsel %vm4837, %v4929, %v4928
        %v4931 = vrot.slane %v4673, 3
        %v4932 = vsel %vm4840, %v4931, %v4930
        %v4933 = vrot.slane %v4679, 2
        %v4934 = vsel %vm4843, %v4933, %v4932
        %v4935 = vsel %vm4822, %v4798, 0.0
        %v4936 = vrot.slane %v4800, 7
        %v4937 = vsel %vm4825, %v4936, %v4935
        %v4938 = vrot.slane %v4803, 6
        %v4939 = vsel %vm4828, %v4938, %v4937
        %v4940 = vrot.slane %v4668, 6
        %v4941 = vsel %vm4831, %v4940, %v4939
        %v4942 = vrot.slane %v4670, 5
        %v4943 = vsel %vm4834, %v4942, %v4941
        %v4944 = vrot.slane %v4672, 4
        %v4945 = vsel %vm4837, %v4944, %v4943
        %v4946 = vrot.slane %v4674, 3
        %v4947 = vsel %vm4840, %v4946, %v4945
        %v4948 = vrot.slane %v4680, 2
        %v4949 = vsel %vm4843, %v4948, %v4947
        %v4950 = vrot.slane %v4681, 1
        %v4951 = vsel %vm4822, %v4950, 0.0
        %v4952 = vsel %vm4825, %v4683, %v4951
        %v4953 = vrot.slane %v4685, 7
        %v4954 = vsel %vm4828, %v4953, %v4952
        %v4955 = vrot.slane %v4688, 6
        %v4956 = vsel %vm4831, %v4955, %v4954
        %v4957 = vrot.slane %v4724, 5
        %v4958 = vsel %vm4834, %v4957, %v4956
        %v4959 = vrot.slane %v4726, 4
        %v4960 = vsel %vm4837, %v4959, %v4958
        %v4961 = vrot.slane %v4728, 3
        %v4962 = vsel %vm4840, %v4961, %v4960
        %v4963 = vrot.slane %v4730, 2
        %v4964 = vsel %vm4843, %v4963, %v4962
        %v4965 = vrot.slane %v4682, 1
        %v4966 = vsel %vm4822, %v4965, 0.0
        %v4967 = vsel %vm4825, %v4684, %v4966
        %v4968 = vrot.slane %v4686, 7
        %v4969 = vsel %vm4828, %v4968, %v4967
        %v4970 = vrot.slane %v4689, 6
        %v4971 = vsel %vm4831, %v4970, %v4969
        %v4972 = vrot.slane %v4725, 5
        %v4973 = vsel %vm4834, %v4972, %v4971
        %v4974 = vrot.slane %v4727, 4
        %v4975 = vsel %vm4837, %v4974, %v4973
        %v4976 = vrot.slane %v4729, 3
        %v4977 = vsel %vm4840, %v4976, %v4975
        %v4978 = vrot.slane %v4731, 2
        %v4979 = vsel %vm4843, %v4978, %v4977
        %v4980 = vrot.slane %v4736, 1
        %v4981 = vsel %vm4822, %v4980, 0.0
        %v4982 = vsel %vm4825, %v4738, %v4981
        %v4983 = vrot.slane %v4740, 7
        %v4984 = vsel %vm4828, %v4983, %v4982
        %v4985 = vrot.slane %v4742, 6
        %v4986 = vsel %vm4831, %v4985, %v4984
        %v4987 = vrot.slane %v4745, 5
        %v4988 = vsel %vm4834, %v4987, %v4986
        %v4989 = vrot.slane %v4781, 4
        %v4990 = vsel %vm4837, %v4989, %v4988
        %v4991 = vrot.slane %v4783, 3
        %v4992 = vsel %vm4840, %v4991, %v4990
        %v4993 = vrot.slane %v4785, 2
        %v4994 = vsel %vm4843, %v4993, %v4992
        %v4995 = vrot.slane %v4737, 1
        %v4996 = vsel %vm4822, %v4995, 0.0
        %v4997 = vsel %vm4825, %v4739, %v4996
        %v4998 = vrot.slane %v4741, 7
        %v4999 = vsel %vm4828, %v4998, %v4997
        %v5000 = vrot.slane %v4743, 6
        %v5001 = vsel %vm4831, %v5000, %v4999
        %v5002 = vrot.slane %v4746, 5
        %v5003 = vsel %vm4834, %v5002, %v5001
        %v5004 = vrot.slane %v4782, 4
        %v5005 = vsel %vm4837, %v5004, %v5003
        %v5006 = vrot.slane %v4784, 3
        %v5007 = vsel %vm4840, %v5006, %v5005
        %v5008 = vrot.slane %v4786, 2
        %v5009 = vsel %vm4843, %v5008, %v5007
        %v5010 = vrot.slane %v4787, 1
        %v5011 = vsel %vm4822, %v5010, 0.0
        %v5012 = vsel %vm4825, %v4793, %v5011
        %v5013 = vrot.slane %v4795, 7
        %v5014 = vsel %vm4828, %v5013, %v5012
        %v5015 = vrot.slane %v4797, 6
        %v5016 = vsel %vm4831, %v5015, %v5014
        %v5017 = vrot.slane %v4799, 5
        %v5018 = vsel %vm4834, %v5017, %v5016
        %v5019 = vrot.slane %v4802, 4
        %v5020 = vsel %vm4837, %v5019, %v5018
        %v5021 = vrot.slane %v4667, 4
        %v5022 = vsel %vm4840, %v5021, %v5020
        %v5023 = vrot.slane %v4669, 3
        %v5024 = vsel %vm4843, %v5023, %v5022
        %v5025 = vrot.slane %v4788, 1
        %v5026 = vsel %vm4822, %v5025, 0.0
        %v5027 = vsel %vm4825, %v4794, %v5026
        %v5028 = vrot.slane %v4796, 7
        %v5029 = vsel %vm4828, %v5028, %v5027
        %v5030 = vrot.slane %v4798, 6
        %v5031 = vsel %vm4831, %v5030, %v5029
        %v5032 = vrot.slane %v4800, 5
        %v5033 = vsel %vm4834, %v5032, %v5031
        %v5034 = vrot.slane %v4803, 4
        %v5035 = vsel %vm4837, %v5034, %v5033
        %v5036 = vrot.slane %v4668, 4
        %v5037 = vsel %vm4840, %v5036, %v5035
        %v5038 = vrot.slane %v4670, 3
        %v5039 = vsel %vm4843, %v5038, %v5037
        %v5040 = vrot.slane %v4671, 2
        %v5041 = vsel %vm4822, %v5040, 0.0
        %v5042 = vrot.slane %v4673, 1
        %v5043 = vsel %vm4825, %v5042, %v5041
        %v5044 = vsel %vm4828, %v4679, %v5043
        %v5045 = vrot.slane %v4681, 7
        %v5046 = vsel %vm4831, %v5045, %v5044
        %v5047 = vrot.slane %v4683, 6
        %v5048 = vsel %vm4834, %v5047, %v5046
        %v5049 = vrot.slane %v4685, 5
        %v5050 = vsel %vm4837, %v5049, %v5048
        %v5051 = vrot.slane %v4688, 4
        %v5052 = vsel %vm4840, %v5051, %v5050
        %v5053 = vrot.slane %v4724, 3
        %v5054 = vsel %vm4843, %v5053, %v5052
        %v5055 = vrot.slane %v4672, 2
        %v5056 = vsel %vm4822, %v5055, 0.0
        %v5057 = vrot.slane %v4674, 1
        %v5058 = vsel %vm4825, %v5057, %v5056
        %v5059 = vsel %vm4828, %v4680, %v5058
        %v5060 = vrot.slane %v4682, 7
        %v5061 = vsel %vm4831, %v5060, %v5059
        %v5062 = vrot.slane %v4684, 6
        %v5063 = vsel %vm4834, %v5062, %v5061
        %v5064 = vrot.slane %v4686, 5
        %v5065 = vsel %vm4837, %v5064, %v5063
        %v5066 = vrot.slane %v4689, 4
        %v5067 = vsel %vm4840, %v5066, %v5065
        %v5068 = vrot.slane %v4725, 3
        %v5069 = vsel %vm4843, %v5068, %v5067
        %v5070 = vrot.slane %v4726, 2
        %v5071 = vsel %vm4822, %v5070, 0.0
        %v5072 = vrot.slane %v4728, 1
        %v5073 = vsel %vm4825, %v5072, %v5071
        %v5074 = vsel %vm4828, %v4730, %v5073
        %v5075 = vrot.slane %v4736, 7
        %v5076 = vsel %vm4831, %v5075, %v5074
        %v5077 = vrot.slane %v4738, 6
        %v5078 = vsel %vm4834, %v5077, %v5076
        %v5079 = vrot.slane %v4740, 5
        %v5080 = vsel %vm4837, %v5079, %v5078
        %v5081 = vrot.slane %v4742, 4
        %v5082 = vsel %vm4840, %v5081, %v5080
        %v5083 = vrot.slane %v4745, 3
        %v5084 = vsel %vm4843, %v5083, %v5082
        %v5085 = vrot.slane %v4727, 2
        %v5086 = vsel %vm4822, %v5085, 0.0
        %v5087 = vrot.slane %v4729, 1
        %v5088 = vsel %vm4825, %v5087, %v5086
        %v5089 = vsel %vm4828, %v4731, %v5088
        %v5090 = vrot.slane %v4737, 7
        %v5091 = vsel %vm4831, %v5090, %v5089
        %v5092 = vrot.slane %v4739, 6
        %v5093 = vsel %vm4834, %v5092, %v5091
        %v5094 = vrot.slane %v4741, 5
        %v5095 = vsel %vm4837, %v5094, %v5093
        %v5096 = vrot.slane %v4743, 4
        %v5097 = vsel %vm4840, %v5096, %v5095
        %v5098 = vrot.slane %v4746, 3
        %v5099 = vsel %vm4843, %v5098, %v5097
        %v5100 = vrot.slane %v4781, 2
        %v5101 = vsel %vm4822, %v5100, 0.0
        %v5102 = vrot.slane %v4783, 1
        %v5103 = vsel %vm4825, %v5102, %v5101
        %v5104 = vsel %vm4828, %v4785, %v5103
        %v5105 = vrot.slane %v4787, 7
        %v5106 = vsel %vm4831, %v5105, %v5104
        %v5107 = vrot.slane %v4793, 6
        %v5108 = vsel %vm4834, %v5107, %v5106
        %v5109 = vrot.slane %v4795, 5
        %v5110 = vsel %vm4837, %v5109, %v5108
        %v5111 = vrot.slane %v4797, 4
        %v5112 = vsel %vm4840, %v5111, %v5110
        %v5113 = vrot.slane %v4799, 3
        %v5114 = vsel %vm4843, %v5113, %v5112
        %v5115 = vrot.slane %v4782, 2
        %v5116 = vsel %vm4822, %v5115, 0.0
        %v5117 = vrot.slane %v4784, 1
        %v5118 = vsel %vm4825, %v5117, %v5116
        %v5119 = vsel %vm4828, %v4786, %v5118
        %v5120 = vrot.slane %v4788, 7
        %v5121 = vsel %vm4831, %v5120, %v5119
        %v5122 = vrot.slane %v4794, 6
        %v5123 = vsel %vm4834, %v5122, %v5121
        %v5124 = vrot.slane %v4796, 5
        %v5125 = vsel %vm4837, %v5124, %v5123
        %v5126 = vrot.slane %v4798, 4
        %v5127 = vsel %vm4840, %v5126, %v5125
        %v5128 = vrot.slane %v4800, 3
        %v5129 = vsel %vm4843, %v5128, %v5127
        %v5130 = vrot.slane %v4802, 2
        %v5131 = vsel %vm4822, %v5130, 0.0
        %v5132 = vrot.slane %v4667, 2
        %v5133 = vsel %vm4825, %v5132, %v5131
        %v5134 = vrot.slane %v4669, 1
        %v5135 = vsel %vm4828, %v5134, %v5133
        %v5136 = vsel %vm4831, %v4671, %v5135
        %v5137 = vrot.slane %v4673, 7
        %v5138 = vsel %vm4834, %v5137, %v5136
        %v5139 = vrot.slane %v4679, 6
        %v5140 = vsel %vm4837, %v5139, %v5138
        %v5141 = vrot.slane %v4681, 5
        %v5142 = vsel %vm4840, %v5141, %v5140
        %v5143 = vrot.slane %v4683, 4
        %v5144 = vsel %vm4843, %v5143, %v5142
        %v5145 = vrot.slane %v4803, 2
        %v5146 = vsel %vm4822, %v5145, 0.0
        %v5147 = vrot.slane %v4668, 2
        %v5148 = vsel %vm4825, %v5147, %v5146
        %v5149 = vrot.slane %v4670, 1
        %v5150 = vsel %vm4828, %v5149, %v5148
        %v5151 = vsel %vm4831, %v4672, %v5150
        %v5152 = vrot.slane %v4674, 7
        %v5153 = vsel %vm4834, %v5152, %v5151
        %v5154 = vrot.slane %v4680, 6
        %v5155 = vsel %vm4837, %v5154, %v5153
        %v5156 = vrot.slane %v4682, 5
        %v5157 = vsel %vm4840, %v5156, %v5155
        %v5158 = vrot.slane %v4684, 4
        %v5159 = vsel %vm4843, %v5158, %v5157
        %v5160 = vrot.slane %v4685, 3
        %v5161 = vsel %vm4822, %v5160, 0.0
        %v5162 = vrot.slane %v4688, 2
        %v5163 = vsel %vm4825, %v5162, %v5161
        %v5164 = vrot.slane %v4724, 1
        %v5165 = vsel %vm4828, %v5164, %v5163
        %v5166 = vsel %vm4831, %v4726, %v5165
        %v5167 = vrot.slane %v4728, 7
        %v5168 = vsel %vm4834, %v5167, %v5166
        %v5169 = vrot.slane %v4730, 6
        %v5170 = vsel %vm4837, %v5169, %v5168
        %v5171 = vrot.slane %v4736, 5
        %v5172 = vsel %vm4840, %v5171, %v5170
        %v5173 = vrot.slane %v4738, 4
        %v5174 = vsel %vm4843, %v5173, %v5172
        %v5175 = vrot.slane %v4686, 3
        %v5176 = vsel %vm4822, %v5175, 0.0
        %v5177 = vrot.slane %v4689, 2
        %v5178 = vsel %vm4825, %v5177, %v5176
        %v5179 = vrot.slane %v4725, 1
        %v5180 = vsel %vm4828, %v5179, %v5178
        %v5181 = vsel %vm4831, %v4727, %v5180
        %v5182 = vrot.slane %v4729, 7
        %v5183 = vsel %vm4834, %v5182, %v5181
        %v5184 = vrot.slane %v4731, 6
        %v5185 = vsel %vm4837, %v5184, %v5183
        %v5186 = vrot.slane %v4737, 5
        %v5187 = vsel %vm4840, %v5186, %v5185
        %v5188 = vrot.slane %v4739, 4
        %v5189 = vsel %vm4843, %v5188, %v5187
        %v5190 = vrot.slane %v4740, 3
        %v5191 = vsel %vm4822, %v5190, 0.0
        %v5192 = vrot.slane %v4742, 2
        %v5193 = vsel %vm4825, %v5192, %v5191
        %v5194 = vrot.slane %v4745, 1
        %v5195 = vsel %vm4828, %v5194, %v5193
        %v5196 = vsel %vm4831, %v4781, %v5195
        %v5197 = vrot.slane %v4783, 7
        %v5198 = vsel %vm4834, %v5197, %v5196
        %v5199 = vrot.slane %v4785, 6
        %v5200 = vsel %vm4837, %v5199, %v5198
        %v5201 = vrot.slane %v4787, 5
        %v5202 = vsel %vm4840, %v5201, %v5200
        %v5203 = vrot.slane %v4793, 4
        %v5204 = vsel %vm4843, %v5203, %v5202
        %v5205 = vrot.slane %v4741, 3
        %v5206 = vsel %vm4822, %v5205, 0.0
        %v5207 = vrot.slane %v4743, 2
        %v5208 = vsel %vm4825, %v5207, %v5206
        %v5209 = vrot.slane %v4746, 1
        %v5210 = vsel %vm4828, %v5209, %v5208
        %v5211 = vsel %vm4831, %v4782, %v5210
        %v5212 = vrot.slane %v4784, 7
        %v5213 = vsel %vm4834, %v5212, %v5211
        %v5214 = vrot.slane %v4786, 6
        %v5215 = vsel %vm4837, %v5214, %v5213
        %v5216 = vrot.slane %v4788, 5
        %v5217 = vsel %vm4840, %v5216, %v5215
        %v5218 = vrot.slane %v4794, 4
        %v5219 = vsel %vm4843, %v5218, %v5217
        %v5220 = vrot.slane %v4795, 3
        %v5221 = vsel %vm4822, %v5220, 0.0
        %v5222 = vrot.slane %v4797, 2
        %v5223 = vsel %vm4825, %v5222, %v5221
        %v5224 = vrot.slane %v4799, 1
        %v5225 = vsel %vm4828, %v5224, %v5223
        %v5226 = vsel %vm4831, %v4802, %v5225
        %v5227 = vrot.slane %v4796, 3
        %v5228 = vsel %vm4822, %v5227, 0.0
        %v5229 = vrot.slane %v4798, 2
        %v5230 = vsel %vm4825, %v5229, %v5228
        %v5231 = vrot.slane %v4800, 1
        %v5232 = vsel %vm4828, %v5231, %v5230
        %v5233 = vsel %vm4831, %v4803, %v5232
        %5235 = vset.pattern.permute.xlu0 0
        %5236 = vperm.xlu0 %5235, %v4623
        %v5237 = vpop.permute.xlu0 %5236
        %vm5239 = vcmask 883712
        %v5241 = vsel %vm5239, %v4622, 0
        %v5244 = vsel %vm787, %v5226, 0
        %v5247 = vsel %vm787, %v5233, 0
        %5249 = vmatpush.msra.mxu0 0.0
        %5250 = vmatpush.msra.mxu0 0.0
        %5251 = vmatpush.msra.mxu0 %v5244
        %5252 = vmatpush.msra.mxu0 %v5204
        %5253 = vmatpush.msra.mxu0 %v5174
        %5254 = vmatpush.msra.mxu0 %v5144
        %5255 = vmatpush.msra.mxu0 %v5114
        %5256 = vmatpush.msra.mxu0 %v5084
        %5257 = vmatpush.msra.mxu0 %v5054
        %5258 = vmatpush.msra.mxu0 %v5024
        %5259 = vmatpush.msra.mxu0 %v4994
        %5260 = vmatpush.msra.mxu0 %v4964
        %5261 = vmatpush.msra.mxu0 %v4934
        %5262 = vmatpush.msra.mxu0 %v4904
        %5263 = vmatpush.msra.mxu0 %v4874
        %5264 = vmatpush.msra.mxu0 %v4844
        %5265 = vmatmul.f32.gmra.mxu0 %v5241
        %v5266 = vpop.f32.mrf.mxu0
        %v5267 = vadd.f32 %v5237, %v5266
        %5268 = vdwg.mxu0
        %5269 = vmatpush.msra.mxu0 0.0
        %5270 = vmatpush.msra.mxu0 0.0
        %5271 = vmatpush.msra.mxu0 %v5247
        %5272 = vmatpush.msra.mxu0 %v5219
        %5273 = vmatpush.msra.mxu0 %v5189
        %5274 = vmatpush.msra.mxu0 %v5159
        %5275 = vmatpush.msra.mxu0 %v5129
        %5276 = vmatpush.msra.mxu0 %v5099
        %5277 = vmatpush.msra.mxu0 %v5069
        %5278 = vmatpush.msra.mxu0 %v5039
        %5279 = vmatpush.msra.mxu0 %v5009
        %5280 = vmatpush.msra.mxu0 %v4979
        %5281 = vmatpush.msra.mxu0 %v4949
        %5282 = vmatpush.msra.mxu0 %v4919
        %5283 = vmatpush.msra.mxu0 %v4889
        %5284 = vmatpush.msra.mxu0 %v4859
        %5285 = vmatmul.f32.gmra.mxu0 %v5241
        %v5286 = vpop.f32.mrf.mxu0
        %v5287 = vadd.f32 %v5237, %v5286
        %5288 = vdwg.mxu0
        %5289 = vst [vmem:[%s245] sm:$0xff] %v5267
        %5290 = vst [vmem:[%s245 + $0x8] sm:$0xff] %v5287
        %v5291 = vld [vmem:[%s1228] sm:$0xff]
        %v5292 = vld [vmem:[%s1228 + $0x8] sm:$0xff]
        %v5293 = vld [vmem:[%s1228 + $0x10] sm:$0xff]
        %v5294 = vld [vmem:[%s1228 + $0x18] sm:$0xff]
        %v5295 = vld [vmem:[%s1228 + $0x20] sm:$0xff]
        %v5296 = vld [vmem:[%s1228 + $0x28] sm:$0xff]
        %v5297 = vld [vmem:[%s1228 + $0x30] sm:$0xff]
        %v5298 = vld [vmem:[%s1228 + $0x38] sm:$0xff]
        %v5299 = vld [vmem:[%s1228 + $0x40] sm:$0xff]
        %v5300 = vld [vmem:[%s1651] sm:$0xff]
        %v5301 = vld [vmem:[%s1651 + $0x8] sm:$0xff]
        %v5302 = vld [vmem:[%s1651 + $0x10] sm:$0xff]
        %v5303 = vld [vmem:[%s1651 + $0x18] sm:$0xff]
        %v5304 = vld [vmem:[%s1651 + $0x20] sm:$0xff]
        %v5305 = vld [vmem:[%s1651 + $0x28] sm:$0xff]
        %v5306 = vld [vmem:[%s1651 + $0x30] sm:$0xff]
        %v5307 = vld [vmem:[%s1651 + $0x38] sm:$0xff]
        %v5308 = vld [vmem:[%s1651 + $0x40] sm:$0xff]
        %v5309 = vld [vmem:[%s2074] sm:$0xff]
        %v5310 = vld [vmem:[%s2074 + $0x8] sm:$0xff]
        %v5311 = vld [vmem:[%s2074 + $0x10] sm:$0xff]
        %v5312 = vld [vmem:[%s2074 + $0x18] sm:$0xff]
        %v5313 = vld [vmem:[%s2074 + $0x20] sm:$0xff]
        %v5314 = vld [vmem:[%s2074 + $0x28] sm:$0xff]
        %v5315 = vld [vmem:[%s2074 + $0x30] sm:$0xff]
        %v5316 = vld [vmem:[%s2074 + $0x38] sm:$0xff]
        %v5317 = vld [vmem:[%s2074 + $0x40] sm:$0xff]
        %5327 = vst [vmem:[#allocation1] ss:$2 sm:$0xff] %v5291
        %s5328 = scalar_lea.vmem [#allocation1], 16
        %5329 = vst [vmem:[%s5328] ss:$2 sm:$0xff] %v5292
        %s5330 = scalar_lea.vmem [#allocation1], 32
        %5331 = vst [vmem:[%s5330] ss:$2 sm:$0xff] %v5293
        %s5332 = scalar_lea.vmem [#allocation1], 48
        %5333 = vst [vmem:[%s5332] ss:$2 sm:$0xff] %v5294
        %v5334 = vld.sshfl [vmem:[#allocation1] sm:$0xff pattern:$0x75316420]
        %v5335 = vld.sshfl [vmem:[#allocation1 + $0x8] sm:$0xff pattern:$0x75316420]
        %v5336 = vld.sshfl [vmem:[#allocation1 + $0x10] sm:$0xff pattern:$0x75316420]
        %v5337 = vld.sshfl [vmem:[#allocation1 + $0x18] sm:$0xff pattern:$0x75316420]
        %v5338 = vld.sshfl [vmem:[#allocation1 + $0x20] sm:$0xff pattern:$0x75316420]
        %v5339 = vld.sshfl [vmem:[#allocation1 + $0x28] sm:$0xff pattern:$0x75316420]
        %v5340 = vld.sshfl [vmem:[#allocation1 + $0x30] sm:$0xff pattern:$0x75316420]
        %v5341 = vld.sshfl [vmem:[#allocation1 + $0x38] sm:$0xff pattern:$0x75316420]
        %5342 = vst [vmem:[#allocation1] ss:$2 sm:$0xff] %v5295
        %5343 = vst [vmem:[%s5328] ss:$2 sm:$0xff] %v5296
        %5344 = vst [vmem:[%s5330] ss:$2 sm:$0xff] %v5297
        %5345 = vst [vmem:[%s5332] ss:$2 sm:$0xff] %v5298
        %v5346 = vld.sshfl [vmem:[#allocation1] sm:$0xff pattern:$0x75316420]
        %v5347 = vld.sshfl [vmem:[#allocation1 + $0x8] sm:$0xff pattern:$0x75316420]
        %v5348 = vld.sshfl [vmem:[#allocation1 + $0x10] sm:$0xff pattern:$0x75316420]
        %v5349 = vld.sshfl [vmem:[#allocation1 + $0x18] sm:$0xff pattern:$0x75316420]
        %v5350 = vld.sshfl [vmem:[#allocation1 + $0x20] sm:$0xff pattern:$0x75316420]
        %v5351 = vld.sshfl [vmem:[#allocation1 + $0x28] sm:$0xff pattern:$0x75316420]
        %v5352 = vld.sshfl [vmem:[#allocation1 + $0x30] sm:$0xff pattern:$0x75316420]
        %v5353 = vld.sshfl [vmem:[#allocation1 + $0x38] sm:$0xff pattern:$0x75316420]
        %5354 = vst [vmem:[#allocation1] ss:$2 sm:$0xff] %v5299
        %v5355 = vld.sshfl [vmem:[#allocation1] sm:$0xff pattern:$0x75316420]
        %v5356 = vld.sshfl [vmem:[#allocation1 + $0x8] sm:$0xff pattern:$0x75316420]
        %5384 = vst [vmem:[#allocation1] ss:$2 sm:$0xff] %v5300
        %s5385 = scalar_lea.vmem [#allocation1], 16
        %5386 = vst [vmem:[%s5385] ss:$2 sm:$0xff] %v5301
        %s5387 = scalar_lea.vmem [#allocation1], 32
        %5388 = vst [vmem:[%s5387] ss:$2 sm:$0xff] %v5302
        %s5389 = scalar_lea.vmem [#allocation1], 48
        %5390 = vst [vmem:[%s5389] ss:$2 sm:$0xff] %v5303
        %v5391 = vld.sshfl [vmem:[#allocation1] sm:$0xff pattern:$0x75316420]
        %v5392 = vld.sshfl [vmem:[#allocation1 + $0x8] sm:$0xff pattern:$0x75316420]
        %v5393 = vld.sshfl [vmem:[#allocation1 + $0x10] sm:$0xff pattern:$0x75316420]
        %v5394 = vld.sshfl [vmem:[#allocation1 + $0x18] sm:$0xff pattern:$0x75316420]
        %v5395 = vld.sshfl [vmem:[#allocation1 + $0x20] sm:$0xff pattern:$0x75316420]
        %v5396 = vld.sshfl [vmem:[#allocation1 + $0x28] sm:$0xff pattern:$0x75316420]
        %v5397 = vld.sshfl [vmem:[#allocation1 + $0x30] sm:$0xff pattern:$0x75316420]
        %v5398 = vld.sshfl [vmem:[#allocation1 + $0x38] sm:$0xff pattern:$0x75316420]
        %5399 = vst [vmem:[#allocation1] ss:$2 sm:$0xff] %v5304
        %5400 = vst [vmem:[%s5385] ss:$2 sm:$0xff] %v5305
        %5401 = vst [vmem:[%s5387] ss:$2 sm:$0xff] %v5306
        %5402 = vst [vmem:[%s5389] ss:$2 sm:$0xff] %v5307
        %v5403 = vld.sshfl [vmem:[#allocation1] sm:$0xff pattern:$0x75316420]
        %v5404 = vld.sshfl [vmem:[#allocation1 + $0x8] sm:$0xff pattern:$0x75316420]
        %v5405 = vld.sshfl [vmem:[#allocation1 + $0x10] sm:$0xff pattern:$0x75316420]
        %v5406 = vld.sshfl [vmem:[#allocation1 + $0x18] sm:$0xff pattern:$0x75316420]
        %v5407 = vld.sshfl [vmem:[#allocation1 + $0x20] sm:$0xff pattern:$0x75316420]
        %v5408 = vld.sshfl [vmem:[#allocation1 + $0x28] sm:$0xff pattern:$0x75316420]
        %v5409 = vld.sshfl [vmem:[#allocation1 + $0x30] sm:$0xff pattern:$0x75316420]
        %v5410 = vld.sshfl [vmem:[#allocation1 + $0x38] sm:$0xff pattern:$0x75316420]
        %5411 = vst [vmem:[#allocation1] ss:$2 sm:$0xff] %v5308
        %v5412 = vld.sshfl [vmem:[#allocation1] sm:$0xff pattern:$0x75316420]
        %v5413 = vld.sshfl [vmem:[#allocation1 + $0x8] sm:$0xff pattern:$0x75316420]
        %5441 = vst [vmem:[#allocation1] ss:$2 sm:$0xff] %v5309
        %s5442 = scalar_lea.vmem [#allocation1], 16
        %5443 = vst [vmem:[%s5442] ss:$2 sm:$0xff] %v5310
        %s5444 = scalar_lea.vmem [#allocation1], 32
        %5445 = vst [vmem:[%s5444] ss:$2 sm:$0xff] %v5311
        %s5446 = scalar_lea.vmem [#allocation1], 48
        %5447 = vst [vmem:[%s5446] ss:$2 sm:$0xff] %v5312
        %v5448 = vld.sshfl [vmem:[#allocation1] sm:$0xff pattern:$0x75316420]
        %v5449 = vld.sshfl [vmem:[#allocation1 + $0x8] sm:$0xff pattern:$0x75316420]
        %v5450 = vld.sshfl [vmem:[#allocation1 + $0x10] sm:$0xff pattern:$0x75316420]
        %v5451 = vld.sshfl [vmem:[#allocation1 + $0x18] sm:$0xff pattern:$0x75316420]
        %v5452 = vld.sshfl [vmem:[#allocation1 + $0x20] sm:$0xff pattern:$0x75316420]
        %v5453 = vld.sshfl [vmem:[#allocation1 + $0x28] sm:$0xff pattern:$0x75316420]
        %v5454 = vld.sshfl [vmem:[#allocation1 + $0x30] sm:$0xff pattern:$0x75316420]
        %v5455 = vld.sshfl [vmem:[#allocation1 + $0x38] sm:$0xff pattern:$0x75316420]
        %5456 = vst [vmem:[#allocation1] ss:$2 sm:$0xff] %v5313
        %5457 = vst [vmem:[%s5442] ss:$2 sm:$0xff] %v5314
        %5458 = vst [vmem:[%s5444] ss:$2 sm:$0xff] %v5315
        %5459 = vst [vmem:[%s5446] ss:$2 sm:$0xff] %v5316
        %v5460 = vld.sshfl [vmem:[#allocation1] sm:$0xff pattern:$0x75316420]
        %v5461 = vld.sshfl [vmem:[#allocation1 + $0x8] sm:$0xff pattern:$0x75316420]
        %v5462 = vld.sshfl [vmem:[#allocation1 + $0x10] sm:$0xff pattern:$0x75316420]
        %v5463 = vld.sshfl [vmem:[#allocation1 + $0x18] sm:$0xff pattern:$0x75316420]
        %v5464 = vld.sshfl [vmem:[#allocation1 + $0x20] sm:$0xff pattern:$0x75316420]
        %v5465 = vld.sshfl [vmem:[#allocation1 + $0x28] sm:$0xff pattern:$0x75316420]
        %v5466 = vld.sshfl [vmem:[#allocation1 + $0x30] sm:$0xff pattern:$0x75316420]
        %v5467 = vld.sshfl [vmem:[#allocation1 + $0x38] sm:$0xff pattern:$0x75316420]
        %5468 = vst [vmem:[#allocation1] ss:$2 sm:$0xff] %v5317
        %v5469 = vld.sshfl [vmem:[#allocation1] sm:$0xff pattern:$0x75316420]
        %v5470 = vld.sshfl [vmem:[#allocation1 + $0x8] sm:$0xff pattern:$0x75316420]
        %v5489 = vsel %vm4822, %v5334, 0.0
        %v5490 = vrot.slane %v5336, 7
        %v5491 = vsel %vm4825, %v5490, %v5489
        %v5492 = vrot.slane %v5338, 6
        %v5493 = vsel %vm4828, %v5492, %v5491
        %v5494 = vrot.slane %v5340, 5
        %v5495 = vsel %vm4831, %v5494, %v5493
        %v5496 = vrot.slane %v5346, 4
        %v5497 = vsel %vm4834, %v5496, %v5495
        %v5498 = vrot.slane %v5348, 3
        %v5499 = vsel %vm4837, %v5498, %v5497
        %v5500 = vrot.slane %v5350, 2
        %v5501 = vsel %vm4840, %v5500, %v5499
        %v5502 = vrot.slane %v5352, 1
        %v5503 = vsel %vm4843, %v5502, %v5501
        %v5504 = vsel %vm4822, %v5335, 0.0
        %v5505 = vrot.slane %v5337, 7
        %v5506 = vsel %vm4825, %v5505, %v5504
        %v5507 = vrot.slane %v5339, 6
        %v5508 = vsel %vm4828, %v5507, %v5506
        %v5509 = vrot.slane %v5341, 5
        %v5510 = vsel %vm4831, %v5509, %v5508
        %v5511 = vrot.slane %v5347, 4
        %v5512 = vsel %vm4834, %v5511, %v5510
        %v5513 = vrot.slane %v5349, 3
        %v5514 = vsel %vm4837, %v5513, %v5512
        %v5515 = vrot.slane %v5351, 2
        %v5516 = vsel %vm4840, %v5515, %v5514
        %v5517 = vrot.slane %v5353, 1
        %v5518 = vsel %vm4843, %v5517, %v5516
        %v5519 = vsel %vm4822, %v5355, 0.0
        %v5520 = vrot.slane %v5391, 7
        %v5521 = vsel %vm4825, %v5520, %v5519
        %v5522 = vrot.slane %v5393, 6
        %v5523 = vsel %vm4828, %v5522, %v5521
        %v5524 = vrot.slane %v5395, 5
        %v5525 = vsel %vm4831, %v5524, %v5523
        %v5526 = vrot.slane %v5397, 4
        %v5527 = vsel %vm4834, %v5526, %v5525
        %v5528 = vrot.slane %v5403, 3
        %v5529 = vsel %vm4837, %v5528, %v5527
        %v5530 = vrot.slane %v5405, 2
        %v5531 = vsel %vm4840, %v5530, %v5529
        %v5532 = vrot.slane %v5407, 1
        %v5533 = vsel %vm4843, %v5532, %v5531
        %v5534 = vsel %vm4822, %v5356, 0.0
        %v5535 = vrot.slane %v5392, 7
        %v5536 = vsel %vm4825, %v5535, %v5534
        %v5537 = vrot.slane %v5394, 6
        %v5538 = vsel %vm4828, %v5537, %v5536
        %v5539 = vrot.slane %v5396, 5
        %v5540 = vsel %vm4831, %v5539, %v5538
        %v5541 = vrot.slane %v5398, 4
        %v5542 = vsel %vm4834, %v5541, %v5540
        %v5543 = vrot.slane %v5404, 3
        %v5544 = vsel %vm4837, %v5543, %v5542
        %v5545 = vrot.slane %v5406, 2
        %v5546 = vsel %vm4840, %v5545, %v5544
        %v5547 = vrot.slane %v5408, 1
        %v5548 = vsel %vm4843, %v5547, %v5546
        %v5549 = vsel %vm4822, %v5409, 0.0
        %v5550 = vrot.slane %v5412, 7
        %v5551 = vsel %vm4825, %v5550, %v5549
        %v5552 = vrot.slane %v5448, 6
        %v5553 = vsel %vm4828, %v5552, %v5551
        %v5554 = vrot.slane %v5450, 5
        %v5555 = vsel %vm4831, %v5554, %v5553
        %v5556 = vrot.slane %v5452, 4
        %v5557 = vsel %vm4834, %v5556, %v5555
        %v5558 = vrot.slane %v5454, 3
        %v5559 = vsel %vm4837, %v5558, %v5557
        %v5560 = vrot.slane %v5460, 2
        %v5561 = vsel %vm4840, %v5560, %v5559
        %v5562 = vrot.slane %v5462, 1
        %v5563 = vsel %vm4843, %v5562, %v5561
        %v5564 = vsel %vm4822, %v5410, 0.0
        %v5565 = vrot.slane %v5413, 7
        %v5566 = vsel %vm4825, %v5565, %v5564
        %v5567 = vrot.slane %v5449, 6
        %v5568 = vsel %vm4828, %v5567, %v5566
        %v5569 = vrot.slane %v5451, 5
        %v5570 = vsel %vm4831, %v5569, %v5568
        %v5571 = vrot.slane %v5453, 4
        %v5572 = vsel %vm4834, %v5571, %v5570
        %v5573 = vrot.slane %v5455, 3
        %v5574 = vsel %vm4837, %v5573, %v5572
        %v5575 = vrot.slane %v5461, 2
        %v5576 = vsel %vm4840, %v5575, %v5574
        %v5577 = vrot.slane %v5463, 1
        %v5578 = vsel %vm4843, %v5577, %v5576
        %v5579 = vsel %vm4822, %v5464, 0.0
        %v5580 = vrot.slane %v5466, 7
        %v5581 = vsel %vm4825, %v5580, %v5579
        %v5582 = vrot.slane %v5469, 6
        %v5583 = vsel %vm4828, %v5582, %v5581
        %v5584 = vrot.slane %v5334, 6
        %v5585 = vsel %vm4831, %v5584, %v5583
        %v5586 = vrot.slane %v5336, 5
        %v5587 = vsel %vm4834, %v5586, %v5585
        %v5588 = vrot.slane %v5338, 4
        %v5589 = vsel %vm4837, %v5588, %v5587
        %v5590 = vrot.slane %v5340, 3
        %v5591 = vsel %vm4840, %v5590, %v5589
        %v5592 = vrot.slane %v5346, 2
        %v5593 = vsel %vm4843, %v5592, %v5591
        %v5594 = vsel %vm4822, %v5465, 0.0
        %v5595 = vrot.slane %v5467, 7
        %v5596 = vsel %vm4825, %v5595, %v5594
        %v5597 = vrot.slane %v5470, 6
        %v5598 = vsel %vm4828, %v5597, %v5596
        %v5599 = vrot.slane %v5335, 6
        %v5600 = vsel %vm4831, %v5599, %v5598
        %v5601 = vrot.slane %v5337, 5
        %v5602 = vsel %vm4834, %v5601, %v5600
        %v5603 = vrot.slane %v5339, 4
        %v5604 = vsel %vm4837, %v5603, %v5602
        %v5605 = vrot.slane %v5341, 3
        %v5606 = vsel %vm4840, %v5605, %v5604
        %v5607 = vrot.slane %v5347, 2
        %v5608 = vsel %vm4843, %v5607, %v5606
        %v5609 = vrot.slane %v5348, 1
        %v5610 = vsel %vm4822, %v5609, 0.0
        %v5611 = vsel %vm4825, %v5350, %v5610
        %v5612 = vrot.slane %v5352, 7
        %v5613 = vsel %vm4828, %v5612, %v5611
        %v5614 = vrot.slane %v5355, 6
        %v5615 = vsel %vm4831, %v5614, %v5613
        %v5616 = vrot.slane %v5391, 5
        %v5617 = vsel %vm4834, %v5616, %v5615
        %v5618 = vrot.slane %v5393, 4
        %v5619 = vsel %vm4837, %v5618, %v5617
        %v5620 = vrot.slane %v5395, 3
        %v5621 = vsel %vm4840, %v5620, %v5619
        %v5622 = vrot.slane %v5397, 2
        %v5623 = vsel %vm4843, %v5622, %v5621
        %v5624 = vrot.slane %v5349, 1
        %v5625 = vsel %vm4822, %v5624, 0.0
        %v5626 = vsel %vm4825, %v5351, %v5625
        %v5627 = vrot.slane %v5353, 7
        %v5628 = vsel %vm4828, %v5627, %v5626
        %v5629 = vrot.slane %v5356, 6
        %v5630 = vsel %vm4831, %v5629, %v5628
        %v5631 = vrot.slane %v5392, 5
        %v5632 = vsel %vm4834, %v5631, %v5630
        %v5633 = vrot.slane %v5394, 4
        %v5634 = vsel %vm4837, %v5633, %v5632
        %v5635 = vrot.slane %v5396, 3
        %v5636 = vsel %vm4840, %v5635, %v5634
        %v5637 = vrot.slane %v5398, 2
        %v5638 = vsel %vm4843, %v5637, %v5636
        %v5639 = vrot.slane %v5403, 1
        %v5640 = vsel %vm4822, %v5639, 0.0
        %v5641 = vsel %vm4825, %v5405, %v5640
        %v5642 = vrot.slane %v5407, 7
        %v5643 = vsel %vm4828, %v5642, %v5641
        %v5644 = vrot.slane %v5409, 6
        %v5645 = vsel %vm4831, %v5644, %v5643
        %v5646 = vrot.slane %v5412, 5
        %v5647 = vsel %vm4834, %v5646, %v5645
        %v5648 = vrot.slane %v5448, 4
        %v5649 = vsel %vm4837, %v5648, %v5647
        %v5650 = vrot.slane %v5450, 3
        %v5651 = vsel %vm4840, %v5650, %v5649
        %v5652 = vrot.slane %v5452, 2
        %v5653 = vsel %vm4843, %v5652, %v5651
        %v5654 = vrot.slane %v5404, 1
        %v5655 = vsel %vm4822, %v5654, 0.0
        %v5656 = vsel %vm4825, %v5406, %v5655
        %v5657 = vrot.slane %v5408, 7
        %v5658 = vsel %vm4828, %v5657, %v5656
        %v5659 = vrot.slane %v5410, 6
        %v5660 = vsel %vm4831, %v5659, %v5658
        %v5661 = vrot.slane %v5413, 5
        %v5662 = vsel %vm4834, %v5661, %v5660
        %v5663 = vrot.slane %v5449, 4
        %v5664 = vsel %vm4837, %v5663, %v5662
        %v5665 = vrot.slane %v5451, 3
        %v5666 = vsel %vm4840, %v5665, %v5664
        %v5667 = vrot.slane %v5453, 2
        %v5668 = vsel %vm4843, %v5667, %v5666
        %v5669 = vrot.slane %v5454, 1
        %v5670 = vsel %vm4822, %v5669, 0.0
        %v5671 = vsel %vm4825, %v5460, %v5670
        %v5672 = vrot.slane %v5462, 7
        %v5673 = vsel %vm4828, %v5672, %v5671
        %v5674 = vrot.slane %v5464, 6
        %v5675 = vsel %vm4831, %v5674, %v5673
        %v5676 = vrot.slane %v5466, 5
        %v5677 = vsel %vm4834, %v5676, %v5675
        %v5678 = vrot.slane %v5469, 4
        %v5679 = vsel %vm4837, %v5678, %v5677
        %v5680 = vrot.slane %v5334, 4
        %v5681 = vsel %vm4840, %v5680, %v5679
        %v5682 = vrot.slane %v5336, 3
        %v5683 = vsel %vm4843, %v5682, %v5681
        %v5684 = vrot.slane %v5455, 1
        %v5685 = vsel %vm4822, %v5684, 0.0
        %v5686 = vsel %vm4825, %v5461, %v5685
        %v5687 = vrot.slane %v5463, 7
        %v5688 = vsel %vm4828, %v5687, %v5686
        %v5689 = vrot.slane %v5465, 6
        %v5690 = vsel %vm4831, %v5689, %v5688
        %v5691 = vrot.slane %v5467, 5
        %v5692 = vsel %vm4834, %v5691, %v5690
        %v5693 = vrot.slane %v5470, 4
        %v5694 = vsel %vm4837, %v5693, %v5692
        %v5695 = vrot.slane %v5335, 4
        %v5696 = vsel %vm4840, %v5695, %v5694
        %v5697 = vrot.slane %v5337, 3
        %v5698 = vsel %vm4843, %v5697, %v5696
        %v5699 = vrot.slane %v5338, 2
        %v5700 = vsel %vm4822, %v5699, 0.0
        %v5701 = vrot.slane %v5340, 1
        %v5702 = vsel %vm4825, %v5701, %v5700
        %v5703 = vsel %vm4828, %v5346, %v5702
        %v5704 = vrot.slane %v5348, 7
        %v5705 = vsel %vm4831, %v5704, %v5703
        %v5706 = vrot.slane %v5350, 6
        %v5707 = vsel %vm4834, %v5706, %v5705
        %v5708 = vrot.slane %v5352, 5
        %v5709 = vsel %vm4837, %v5708, %v5707
        %v5710 = vrot.slane %v5355, 4
        %v5711 = vsel %vm4840, %v5710, %v5709
        %v5712 = vrot.slane %v5391, 3
        %v5713 = vsel %vm4843, %v5712, %v5711
        %v5714 = vrot.slane %v5339, 2
        %v5715 = vsel %vm4822, %v5714, 0.0
        %v5716 = vrot.slane %v5341, 1
        %v5717 = vsel %vm4825, %v5716, %v5715
        %v5718 = vsel %vm4828, %v5347, %v5717
        %v5719 = vrot.slane %v5349, 7
        %v5720 = vsel %vm4831, %v5719, %v5718
        %v5721 = vrot.slane %v5351, 6
        %v5722 = vsel %vm4834, %v5721, %v5720
        %v5723 = vrot.slane %v5353, 5
        %v5724 = vsel %vm4837, %v5723, %v5722
        %v5725 = vrot.slane %v5356, 4
        %v5726 = vsel %vm4840, %v5725, %v5724
        %v5727 = vrot.slane %v5392, 3
        %v5728 = vsel %vm4843, %v5727, %v5726
        %v5729 = vrot.slane %v5393, 2
        %v5730 = vsel %vm4822, %v5729, 0.0
        %v5731 = vrot.slane %v5395, 1
        %v5732 = vsel %vm4825, %v5731, %v5730
        %v5733 = vsel %vm4828, %v5397, %v5732
        %v5734 = vrot.slane %v5403, 7
        %v5735 = vsel %vm4831, %v5734, %v5733
        %v5736 = vrot.slane %v5405, 6
        %v5737 = vsel %vm4834, %v5736, %v5735
        %v5738 = vrot.slane %v5407, 5
        %v5739 = vsel %vm4837, %v5738, %v5737
        %v5740 = vrot.slane %v5409, 4
        %v5741 = vsel %vm4840, %v5740, %v5739
        %v5742 = vrot.slane %v5412, 3
        %v5743 = vsel %vm4843, %v5742, %v5741
        %v5744 = vrot.slane %v5394, 2
        %v5745 = vsel %vm4822, %v5744, 0.0
        %v5746 = vrot.slane %v5396, 1
        %v5747 = vsel %vm4825, %v5746, %v5745
        %v5748 = vsel %vm4828, %v5398, %v5747
        %v5749 = vrot.slane %v5404, 7
        %v5750 = vsel %vm4831, %v5749, %v5748
        %v5751 = vrot.slane %v5406, 6
        %v5752 = vsel %vm4834, %v5751, %v5750
        %v5753 = vrot.slane %v5408, 5
        %v5754 = vsel %vm4837, %v5753, %v5752
        %v5755 = vrot.slane %v5410, 4
        %v5756 = vsel %vm4840, %v5755, %v5754
        %v5757 = vrot.slane %v5413, 3
        %v5758 = vsel %vm4843, %v5757, %v5756
        %v5759 = vrot.slane %v5448, 2
        %v5760 = vsel %vm4822, %v5759, 0.0
        %v5761 = vrot.slane %v5450, 1
        %v5762 = vsel %vm4825, %v5761, %v5760
        %v5763 = vsel %vm4828, %v5452, %v5762
        %v5764 = vrot.slane %v5454, 7
        %v5765 = vsel %vm4831, %v5764, %v5763
        %v5766 = vrot.slane %v5460, 6
        %v5767 = vsel %vm4834, %v5766, %v5765
        %v5768 = vrot.slane %v5462, 5
        %v5769 = vsel %vm4837, %v5768, %v5767
        %v5770 = vrot.slane %v5464, 4
        %v5771 = vsel %vm4840, %v5770, %v5769
        %v5772 = vrot.slane %v5466, 3
        %v5773 = vsel %vm4843, %v5772, %v5771
        %v5774 = vrot.slane %v5449, 2
        %v5775 = vsel %vm4822, %v5774, 0.0
        %v5776 = vrot.slane %v5451, 1
        %v5777 = vsel %vm4825, %v5776, %v5775
        %v5778 = vsel %vm4828, %v5453, %v5777
        %v5779 = vrot.slane %v5455, 7
        %v5780 = vsel %vm4831, %v5779, %v5778
        %v5781 = vrot.slane %v5461, 6
        %v5782 = vsel %vm4834, %v5781, %v5780
        %v5783 = vrot.slane %v5463, 5
        %v5784 = vsel %vm4837, %v5783, %v5782
        %v5785 = vrot.slane %v5465, 4
        %v5786 = vsel %vm4840, %v5785, %v5784
        %v5787 = vrot.slane %v5467, 3
        %v5788 = vsel %vm4843, %v5787, %v5786
        %v5789 = vrot.slane %v5469, 2
        %v5790 = vsel %vm4822, %v5789, 0.0
        %v5791 = vrot.slane %v5334, 2
        %v5792 = vsel %vm4825, %v5791, %v5790
        %v5793 = vrot.slane %v5336, 1
        %v5794 = vsel %vm4828, %v5793, %v5792
        %v5795 = vsel %vm4831, %v5338, %v5794
        %v5796 = vrot.slane %v5340, 7
        %v5797 = vsel %vm4834, %v5796, %v5795
        %v5798 = vrot.slane %v5346, 6
        %v5799 = vsel %vm4837, %v5798, %v5797
        %v5800 = vrot.slane %v5348, 5
        %v5801 = vsel %vm4840, %v5800, %v5799
        %v5802 = vrot.slane %v5350, 4
        %v5803 = vsel %vm4843, %v5802, %v5801
        %v5804 = vrot.slane %v5470, 2
        %v5805 = vsel %vm4822, %v5804, 0.0
        %v5806 = vrot.slane %v5335, 2
        %v5807 = vsel %vm4825, %v5806, %v5805
        %v5808 = vrot.slane %v5337, 1
        %v5809 = vsel %vm4828, %v5808, %v5807
        %v5810 = vsel %vm4831, %v5339, %v5809
        %v5811 = vrot.slane %v5341, 7
        %v5812 = vsel %vm4834, %v5811, %v5810
        %v5813 = vrot.slane %v5347, 6
        %v5814 = vsel %vm4837, %v5813, %v5812
        %v5815 = vrot.slane %v5349, 5
        %v5816 = vsel %vm4840, %v5815, %v5814
        %v5817 = vrot.slane %v5351, 4
        %v5818 = vsel %vm4843, %v5817, %v5816
        %v5819 = vrot.slane %v5352, 3
        %v5820 = vsel %vm4822, %v5819, 0.0
        %v5821 = vrot.slane %v5355, 2
        %v5822 = vsel %vm4825, %v5821, %v5820
        %v5823 = vrot.slane %v5391, 1
        %v5824 = vsel %vm4828, %v5823, %v5822
        %v5825 = vsel %vm4831, %v5393, %v5824
        %v5826 = vrot.slane %v5395, 7
        %v5827 = vsel %vm4834, %v5826, %v5825
        %v5828 = vrot.slane %v5397, 6
        %v5829 = vsel %vm4837, %v5828, %v5827
        %v5830 = vrot.slane %v5403, 5
        %v5831 = vsel %vm4840, %v5830, %v5829
        %v5832 = vrot.slane %v5405, 4
        %v5833 = vsel %vm4843, %v5832, %v5831
        %v5834 = vrot.slane %v5353, 3
        %v5835 = vsel %vm4822, %v5834, 0.0
        %v5836 = vrot.slane %v5356, 2
        %v5837 = vsel %vm4825, %v5836, %v5835
        %v5838 = vrot.slane %v5392, 1
        %v5839 = vsel %vm4828, %v5838, %v5837
        %v5840 = vsel %vm4831, %v5394, %v5839
        %v5841 = vrot.slane %v5396, 7
        %v5842 = vsel %vm4834, %v5841, %v5840
        %v5843 = vrot.slane %v5398, 6
        %v5844 = vsel %vm4837, %v5843, %v5842
        %v5845 = vrot.slane %v5404, 5
        %v5846 = vsel %vm4840, %v5845, %v5844
        %v5847 = vrot.slane %v5406, 4
        %v5848 = vsel %vm4843, %v5847, %v5846
        %v5849 = vrot.slane %v5407, 3
        %v5850 = vsel %vm4822, %v5849, 0.0
        %v5851 = vrot.slane %v5409, 2
        %v5852 = vsel %vm4825, %v5851, %v5850
        %v5853 = vrot.slane %v5412, 1
        %v5854 = vsel %vm4828, %v5853, %v5852
        %v5855 = vsel %vm4831, %v5448, %v5854
        %v5856 = vrot.slane %v5450, 7
        %v5857 = vsel %vm4834, %v5856, %v5855
        %v5858 = vrot.slane %v5452, 6
        %v5859 = vsel %vm4837, %v5858, %v5857
        %v5860 = vrot.slane %v5454, 5
        %v5861 = vsel %vm4840, %v5860, %v5859
        %v5862 = vrot.slane %v5460, 4
        %v5863 = vsel %vm4843, %v5862, %v5861
        %v5864 = vrot.slane %v5408, 3
        %v5865 = vsel %vm4822, %v5864, 0.0
        %v5866 = vrot.slane %v5410, 2
        %v5867 = vsel %vm4825, %v5866, %v5865
        %v5868 = vrot.slane %v5413, 1
        %v5869 = vsel %vm4828, %v5868, %v5867
        %v5870 = vsel %vm4831, %v5449, %v5869
        %v5871 = vrot.slane %v5451, 7
        %v5872 = vsel %vm4834, %v5871, %v5870
        %v5873 = vrot.slane %v5453, 6
        %v5874 = vsel %vm4837, %v5873, %v5872
        %v5875 = vrot.slane %v5455, 5
        %v5876 = vsel %vm4840, %v5875, %v5874
        %v5877 = vrot.slane %v5461, 4
        %v5878 = vsel %vm4843, %v5877, %v5876
        %v5879 = vrot.slane %v5462, 3
        %v5880 = vsel %vm4822, %v5879, 0.0
        %v5881 = vrot.slane %v5464, 2
        %v5882 = vsel %vm4825, %v5881, %v5880
        %v5883 = vrot.slane %v5466, 1
        %v5884 = vsel %vm4828, %v5883, %v5882
        %v5885 = vsel %vm4831, %v5469, %v5884
        %v5886 = vrot.slane %v5463, 3
        %v5887 = vsel %vm4822, %v5886, 0.0
        %v5888 = vrot.slane %v5465, 2
        %v5889 = vsel %vm4825, %v5888, %v5887
        %v5890 = vrot.slane %v5467, 1
        %v5891 = vsel %vm4828, %v5890, %v5889
        %v5892 = vsel %vm4831, %v5470, %v5891
        %v5894 = vsel %vm787, %v5885, 0
        %v5897 = vsel %vm787, %v5892, 0
        %5899 = vmatpush.msra.mxu0 0.0
        %5900 = vmatpush.msra.mxu0 0.0
        %5901 = vmatpush.msra.mxu0 %v5894
        %5902 = vmatpush.msra.mxu0 %v5863
        %5903 = vmatpush.msra.mxu0 %v5833
        %5904 = vmatpush.msra.mxu0 %v5803
        %5905 = vmatpush.msra.mxu0 %v5773
        %5906 = vmatpush.msra.mxu0 %v5743
        %5907 = vmatpush.msra.mxu0 %v5713
        %5908 = vmatpush.msra.mxu0 %v5683
        %5909 = vmatpush.msra.mxu0 %v5653
        %5910 = vmatpush.msra.mxu0 %v5623
        %5911 = vmatpush.msra.mxu0 %v5593
        %5912 = vmatpush.msra.mxu0 %v5563
        %5913 = vmatpush.msra.mxu0 %v5533
        %5914 = vmatpush.msra.mxu0 %v5503
        %5915 = vmatmul.f32.gmra.mxu0 %v5241
        %v5916 = vpop.f32.mrf.mxu0
        %v5917 = vadd.f32 %v5237, %v5916
        %5918 = vdwg.mxu0
        %5919 = vmatpush.msra.mxu0 0.0
        %5920 = vmatpush.msra.mxu0 0.0
        %5921 = vmatpush.msra.mxu0 %v5897
        %5922 = vmatpush.msra.mxu0 %v5878
        %5923 = vmatpush.msra.mxu0 %v5848
        %5924 = vmatpush.msra.mxu0 %v5818
        %5925 = vmatpush.msra.mxu0 %v5788
        %5926 = vmatpush.msra.mxu0 %v5758
        %5927 = vmatpush.msra.mxu0 %v5728
        %5928 = vmatpush.msra.mxu0 %v5698
        %5929 = vmatpush.msra.mxu0 %v5668
        %5930 = vmatpush.msra.mxu0 %v5638
        %5931 = vmatpush.msra.mxu0 %v5608
        %5932 = vmatpush.msra.mxu0 %v5578
        %5933 = vmatpush.msra.mxu0 %v5548
        %5934 = vmatpush.msra.mxu0 %v5518
        %5935 = vmatmul.f32.gmra.mxu0 %v5241
        %v5936 = vpop.f32.mrf.mxu0
        %v5937 = vadd.f32 %v5237, %v5936
        %5938 = vdwg.mxu0
        %5939 = vst [vmem:[%s245 + $0x10] sm:$0xff] %v5917
        %5940 = vst [vmem:[%s245 + $0x18] sm:$0xff] %v5937
        %v5941 = vld [vmem:[%s1651] sm:$0xff]
        %v5942 = vld [vmem:[%s1651 + $0x8] sm:$0xff]
        %v5943 = vld [vmem:[%s1651 + $0x10] sm:$0xff]
        %v5944 = vld [vmem:[%s1651 + $0x18] sm:$0xff]
        %v5945 = vld [vmem:[%s1651 + $0x20] sm:$0xff]
        %v5946 = vld [vmem:[%s1651 + $0x28] sm:$0xff]
        %v5947 = vld [vmem:[%s1651 + $0x30] sm:$0xff]
        %v5948 = vld [vmem:[%s1651 + $0x38] sm:$0xff]
        %v5949 = vld [vmem:[%s1651 + $0x40] sm:$0xff]
        %v5950 = vld [vmem:[%s2074] sm:$0xff]
        %v5951 = vld [vmem:[%s2074 + $0x8] sm:$0xff]
        %v5952 = vld [vmem:[%s2074 + $0x10] sm:$0xff]
        %v5953 = vld [vmem:[%s2074 + $0x18] sm:$0xff]
        %v5954 = vld [vmem:[%s2074 + $0x20] sm:$0xff]
        %v5955 = vld [vmem:[%s2074 + $0x28] sm:$0xff]
        %v5956 = vld [vmem:[%s2074 + $0x30] sm:$0xff]
        %v5957 = vld [vmem:[%s2074 + $0x38] sm:$0xff]
        %v5958 = vld [vmem:[%s2074 + $0x40] sm:$0xff]
        %v5959 = vld [vmem:[%s2497] sm:$0xff]
        %v5960 = vld [vmem:[%s2497 + $0x8] sm:$0xff]
        %v5961 = vld [vmem:[%s2497 + $0x10] sm:$0xff]
        %v5962 = vld [vmem:[%s2497 + $0x18] sm:$0xff]
        %v5963 = vld [vmem:[%s2497 + $0x20] sm:$0xff]
        %v5964 = vld [vmem:[%s2497 + $0x28] sm:$0xff]
        %v5965 = vld [vmem:[%s2497 + $0x30] sm:$0xff]
        %v5966 = vld [vmem:[%s2497 + $0x38] sm:$0xff]
        %v5967 = vld [vmem:[%s2497 + $0x40] sm:$0xff]
        %5977 = vst [vmem:[#allocation1] ss:$2 sm:$0xff] %v5941
        %s5978 = scalar_lea.vmem [#allocation1], 16
        %5979 = vst [vmem:[%s5978] ss:$2 sm:$0xff] %v5942
        %s5980 = scalar_lea.vmem [#allocation1], 32
        %5981 = vst [vmem:[%s5980] ss:$2 sm:$0xff] %v5943
        %s5982 = scalar_lea.vmem [#allocation1], 48
        %5983 = vst [vmem:[%s5982] ss:$2 sm:$0xff] %v5944
        %v5984 = vld.sshfl [vmem:[#allocation1] sm:$0xff pattern:$0x75316420]
        %v5985 = vld.sshfl [vmem:[#allocation1 + $0x8] sm:$0xff pattern:$0x75316420]
        %v5986 = vld.sshfl [vmem:[#allocation1 + $0x10] sm:$0xff pattern:$0x75316420]
        %v5987 = vld.sshfl [vmem:[#allocation1 + $0x18] sm:$0xff pattern:$0x75316420]
        %v5988 = vld.sshfl [vmem:[#allocation1 + $0x20] sm:$0xff pattern:$0x75316420]
        %v5989 = vld.sshfl [vmem:[#allocation1 + $0x28] sm:$0xff pattern:$0x75316420]
        %v5990 = vld.sshfl [vmem:[#allocation1 + $0x30] sm:$0xff pattern:$0x75316420]
        %v5991 = vld.sshfl [vmem:[#allocation1 + $0x38] sm:$0xff pattern:$0x75316420]
        %5992 = vst [vmem:[#allocation1] ss:$2 sm:$0xff] %v5945
        %5993 = vst [vmem:[%s5978] ss:$2 sm:$0xff] %v5946
        %5994 = vst [vmem:[%s5980] ss:$2 sm:$0xff] %v5947
        %5995 = vst [vmem:[%s5982] ss:$2 sm:$0xff] %v5948
        %v5996 = vld.sshfl [vmem:[#allocation1] sm:$0xff pattern:$0x75316420]
        %v5997 = vld.sshfl [vmem:[#allocation1 + $0x8] sm:$0xff pattern:$0x75316420]
        %v5998 = vld.sshfl [vmem:[#allocation1 + $0x10] sm:$0xff pattern:$0x75316420]
        %v5999 = vld.sshfl [vmem:[#allocation1 + $0x18] sm:$0xff pattern:$0x75316420]
        %v6000 = vld.sshfl [vmem:[#allocation1 + $0x20] sm:$0xff pattern:$0x75316420]
        %v6001 = vld.sshfl [vmem:[#allocation1 + $0x28] sm:$0xff pattern:$0x75316420]
        %v6002 = vld.sshfl [vmem:[#allocation1 + $0x30] sm:$0xff pattern:$0x75316420]
        %v6003 = vld.sshfl [vmem:[#allocation1 + $0x38] sm:$0xff pattern:$0x75316420]
        %6004 = vst [vmem:[#allocation1] ss:$2 sm:$0xff] %v5949
        %v6005 = vld.sshfl [vmem:[#allocation1] sm:$0xff pattern:$0x75316420]
        %v6006 = vld.sshfl [vmem:[#allocation1 + $0x8] sm:$0xff pattern:$0x75316420]
        %6034 = vst [vmem:[#allocation1] ss:$2 sm:$0xff] %v5950
        %s6035 = scalar_lea.vmem [#allocation1], 16
        %6036 = vst [vmem:[%s6035] ss:$2 sm:$0xff] %v5951
        %s6037 = scalar_lea.vmem [#allocation1], 32
        %6038 = vst [vmem:[%s6037] ss:$2 sm:$0xff] %v5952
        %s6039 = scalar_lea.vmem [#allocation1], 48
        %6040 = vst [vmem:[%s6039] ss:$2 sm:$0xff] %v5953
        %v6041 = vld.sshfl [vmem:[#allocation1] sm:$0xff pattern:$0x75316420]
        %v6042 = vld.sshfl [vmem:[#allocation1 + $0x8] sm:$0xff pattern:$0x75316420]
        %v6043 = vld.sshfl [vmem:[#allocation1 + $0x10] sm:$0xff pattern:$0x75316420]
        %v6044 = vld.sshfl [vmem:[#allocation1 + $0x18] sm:$0xff pattern:$0x75316420]
        %v6045 = vld.sshfl [vmem:[#allocation1 + $0x20] sm:$0xff pattern:$0x75316420]
        %v6046 = vld.sshfl [vmem:[#allocation1 + $0x28] sm:$0xff pattern:$0x75316420]
        %v6047 = vld.sshfl [vmem:[#allocation1 + $0x30] sm:$0xff pattern:$0x75316420]
        %v6048 = vld.sshfl [vmem:[#allocation1 + $0x38] sm:$0xff pattern:$0x75316420]
        %6049 = vst [vmem:[#allocation1] ss:$2 sm:$0xff] %v5954
        %6050 = vst [vmem:[%s6035] ss:$2 sm:$0xff] %v5955
        %6051 = vst [vmem:[%s6037] ss:$2 sm:$0xff] %v5956
        %6052 = vst [vmem:[%s6039] ss:$2 sm:$0xff] %v5957
        %v6053 = vld.sshfl [vmem:[#allocation1] sm:$0xff pattern:$0x75316420]
        %v6054 = vld.sshfl [vmem:[#allocation1 + $0x8] sm:$0xff pattern:$0x75316420]
        %v6055 = vld.sshfl [vmem:[#allocation1 + $0x10] sm:$0xff pattern:$0x75316420]
        %v6056 = vld.sshfl [vmem:[#allocation1 + $0x18] sm:$0xff pattern:$0x75316420]
        %v6057 = vld.sshfl [vmem:[#allocation1 + $0x20] sm:$0xff pattern:$0x75316420]
        %v6058 = vld.sshfl [vmem:[#allocation1 + $0x28] sm:$0xff pattern:$0x75316420]
        %v6059 = vld.sshfl [vmem:[#allocation1 + $0x30] sm:$0xff pattern:$0x75316420]
        %v6060 = vld.sshfl [vmem:[#allocation1 + $0x38] sm:$0xff pattern:$0x75316420]
        %6061 = vst [vmem:[#allocation1] ss:$2 sm:$0xff] %v5958
        %v6062 = vld.sshfl [vmem:[#allocation1] sm:$0xff pattern:$0x75316420]
        %v6063 = vld.sshfl [vmem:[#allocation1 + $0x8] sm:$0xff pattern:$0x75316420]
        %6091 = vst [vmem:[#allocation1] ss:$2 sm:$0xff] %v5959
        %s6092 = scalar_lea.vmem [#allocation1], 16
        %6093 = vst [vmem:[%s6092] ss:$2 sm:$0xff] %v5960
        %s6094 = scalar_lea.vmem [#allocation1], 32
        %6095 = vst [vmem:[%s6094] ss:$2 sm:$0xff] %v5961
        %s6096 = scalar_lea.vmem [#allocation1], 48
        %6097 = vst [vmem:[%s6096] ss:$2 sm:$0xff] %v5962
        %v6098 = vld.sshfl [vmem:[#allocation1] sm:$0xff pattern:$0x75316420]
        %v6099 = vld.sshfl [vmem:[#allocation1 + $0x8] sm:$0xff pattern:$0x75316420]
        %v6100 = vld.sshfl [vmem:[#allocation1 + $0x10] sm:$0xff pattern:$0x75316420]
        %v6101 = vld.sshfl [vmem:[#allocation1 + $0x18] sm:$0xff pattern:$0x75316420]
        %v6102 = vld.sshfl [vmem:[#allocation1 + $0x20] sm:$0xff pattern:$0x75316420]
        %v6103 = vld.sshfl [vmem:[#allocation1 + $0x28] sm:$0xff pattern:$0x75316420]
        %v6104 = vld.sshfl [vmem:[#allocation1 + $0x30] sm:$0xff pattern:$0x75316420]
        %v6105 = vld.sshfl [vmem:[#allocation1 + $0x38] sm:$0xff pattern:$0x75316420]
        %6106 = vst [vmem:[#allocation1] ss:$2 sm:$0xff] %v5963
        %6107 = vst [vmem:[%s6092] ss:$2 sm:$0xff] %v5964
        %6108 = vst [vmem:[%s6094] ss:$2 sm:$0xff] %v5965
        %6109 = vst [vmem:[%s6096] ss:$2 sm:$0xff] %v5966
        %v6110 = vld.sshfl [vmem:[#allocation1] sm:$0xff pattern:$0x75316420]
        %v6111 = vld.sshfl [vmem:[#allocation1 + $0x8] sm:$0xff pattern:$0x75316420]
        %v6112 = vld.sshfl [vmem:[#allocation1 + $0x10] sm:$0xff pattern:$0x75316420]
        %v6113 = vld.sshfl [vmem:[#allocation1 + $0x18] sm:$0xff pattern:$0x75316420]
        %v6114 = vld.sshfl [vmem:[#allocation1 + $0x20] sm:$0xff pattern:$0x75316420]
        %v6115 = vld.sshfl [vmem:[#allocation1 + $0x28] sm:$0xff pattern:$0x75316420]
        %v6116 = vld.sshfl [vmem:[#allocation1 + $0x30] sm:$0xff pattern:$0x75316420]
        %v6117 = vld.sshfl [vmem:[#allocation1 + $0x38] sm:$0xff pattern:$0x75316420]
        %6118 = vst [vmem:[#allocation1] ss:$2 sm:$0xff] %v5967
        %v6119 = vld.sshfl [vmem:[#allocation1] sm:$0xff pattern:$0x75316420]
        %v6120 = vld.sshfl [vmem:[#allocation1 + $0x8] sm:$0xff pattern:$0x75316420]
        %v6139 = vsel %vm4822, %v5984, 0.0
        %v6140 = vrot.slane %v5986, 7
        %v6141 = vsel %vm4825, %v6140, %v6139
        %v6142 = vrot.slane %v5988, 6
        %v6143 = vsel %vm4828, %v6142, %v6141
        %v6144 = vrot.slane %v5990, 5
        %v6145 = vsel %vm4831, %v6144, %v6143
        %v6146 = vrot.slane %v5996, 4
        %v6147 = vsel %vm4834, %v6146, %v6145
        %v6148 = vrot.slane %v5998, 3
        %v6149 = vsel %vm4837, %v6148, %v6147
        %v6150 = vrot.slane %v6000, 2
        %v6151 = vsel %vm4840, %v6150, %v6149
        %v6152 = vrot.slane %v6002, 1
        %v6153 = vsel %vm4843, %v6152, %v6151
        %v6154 = vsel %vm4822, %v5985, 0.0
        %v6155 = vrot.slane %v5987, 7
        %v6156 = vsel %vm4825, %v6155, %v6154
        %v6157 = vrot.slane %v5989, 6
        %v6158 = vsel %vm4828, %v6157, %v6156
        %v6159 = vrot.slane %v5991, 5
        %v6160 = vsel %vm4831, %v6159, %v6158
        %v6161 = vrot.slane %v5997, 4
        %v6162 = vsel %vm4834, %v6161, %v6160
        %v6163 = vrot.slane %v5999, 3
        %v6164 = vsel %vm4837, %v6163, %v6162
        %v6165 = vrot.slane %v6001, 2
        %v6166 = vsel %vm4840, %v6165, %v6164
        %v6167 = vrot.slane %v6003, 1
        %v6168 = vsel %vm4843, %v6167, %v6166
        %v6169 = vsel %vm4822, %v6005, 0.0
        %v6170 = vrot.slane %v6041, 7
        %v6171 = vsel %vm4825, %v6170, %v6169
        %v6172 = vrot.slane %v6043, 6
        %v6173 = vsel %vm4828, %v6172, %v6171
        %v6174 = vrot.slane %v6045, 5
        %v6175 = vsel %vm4831, %v6174, %v6173
        %v6176 = vrot.slane %v6047, 4
        %v6177 = vsel %vm4834, %v6176, %v6175
        %v6178 = vrot.slane %v6053, 3
        %v6179 = vsel %vm4837, %v6178, %v6177
        %v6180 = vrot.slane %v6055, 2
        %v6181 = vsel %vm4840, %v6180, %v6179
        %v6182 = vrot.slane %v6057, 1
        %v6183 = vsel %vm4843, %v6182, %v6181
        %v6184 = vsel %vm4822, %v6006, 0.0
        %v6185 = vrot.slane %v6042, 7
        %v6186 = vsel %vm4825, %v6185, %v6184
        %v6187 = vrot.slane %v6044, 6
        %v6188 = vsel %vm4828, %v6187, %v6186
        %v6189 = vrot.slane %v6046, 5
        %v6190 = vsel %vm4831, %v6189, %v6188
        %v6191 = vrot.slane %v6048, 4
        %v6192 = vsel %vm4834, %v6191, %v6190
        %v6193 = vrot.slane %v6054, 3
        %v6194 = vsel %vm4837, %v6193, %v6192
        %v6195 = vrot.slane %v6056, 2
        %v6196 = vsel %vm4840, %v6195, %v6194
        %v6197 = vrot.slane %v6058, 1
        %v6198 = vsel %vm4843, %v6197, %v6196
        %v6199 = vsel %vm4822, %v6059, 0.0
        %v6200 = vrot.slane %v6062, 7
        %v6201 = vsel %vm4825, %v6200, %v6199
        %v6202 = vrot.slane %v6098, 6
        %v6203 = vsel %vm4828, %v6202, %v6201
        %v6204 = vrot.slane %v6100, 5
        %v6205 = vsel %vm4831, %v6204, %v6203
        %v6206 = vrot.slane %v6102, 4
        %v6207 = vsel %vm4834, %v6206, %v6205
        %v6208 = vrot.slane %v6104, 3
        %v6209 = vsel %vm4837, %v6208, %v6207
        %v6210 = vrot.slane %v6110, 2
        %v6211 = vsel %vm4840, %v6210, %v6209
        %v6212 = vrot.slane %v6112, 1
        %v6213 = vsel %vm4843, %v6212, %v6211
        %v6214 = vsel %vm4822, %v6060, 0.0
        %v6215 = vrot.slane %v6063, 7
        %v6216 = vsel %vm4825, %v6215, %v6214
        %v6217 = vrot.slane %v6099, 6
        %v6218 = vsel %vm4828, %v6217, %v6216
        %v6219 = vrot.slane %v6101, 5
        %v6220 = vsel %vm4831, %v6219, %v6218
        %v6221 = vrot.slane %v6103, 4
        %v6222 = vsel %vm4834, %v6221, %v6220
        %v6223 = vrot.slane %v6105, 3
        %v6224 = vsel %vm4837, %v6223, %v6222
        %v6225 = vrot.slane %v6111, 2
        %v6226 = vsel %vm4840, %v6225, %v6224
        %v6227 = vrot.slane %v6113, 1
        %v6228 = vsel %vm4843, %v6227, %v6226
        %v6229 = vsel %vm4822, %v6114, 0.0
        %v6230 = vrot.slane %v6116, 7
        %v6231 = vsel %vm4825, %v6230, %v6229
        %v6232 = vrot.slane %v6119, 6
        %v6233 = vsel %vm4828, %v6232, %v6231
        %v6234 = vrot.slane %v5984, 6
        %v6235 = vsel %vm4831, %v6234, %v6233
        %v6236 = vrot.slane %v5986, 5
        %v6237 = vsel %vm4834, %v6236, %v6235
        %v6238 = vrot.slane %v5988, 4
        %v6239 = vsel %vm4837, %v6238, %v6237
        %v6240 = vrot.slane %v5990, 3
        %v6241 = vsel %vm4840, %v6240, %v6239
        %v6242 = vrot.slane %v5996, 2
        %v6243 = vsel %vm4843, %v6242, %v6241
        %v6244 = vsel %vm4822, %v6115, 0.0
        %v6245 = vrot.slane %v6117, 7
        %v6246 = vsel %vm4825, %v6245, %v6244
        %v6247 = vrot.slane %v6120, 6
        %v6248 = vsel %vm4828, %v6247, %v6246
        %v6249 = vrot.slane %v5985, 6
        %v6250 = vsel %vm4831, %v6249, %v6248
        %v6251 = vrot.slane %v5987, 5
        %v6252 = vsel %vm4834, %v6251, %v6250
        %v6253 = vrot.slane %v5989, 4
        %v6254 = vsel %vm4837, %v6253, %v6252
        %v6255 = vrot.slane %v5991, 3
        %v6256 = vsel %vm4840, %v6255, %v6254
        %v6257 = vrot.slane %v5997, 2
        %v6258 = vsel %vm4843, %v6257, %v6256
        %v6259 = vrot.slane %v5998, 1
        %v6260 = vsel %vm4822, %v6259, 0.0
        %v6261 = vsel %vm4825, %v6000, %v6260
        %v6262 = vrot.slane %v6002, 7
        %v6263 = vsel %vm4828, %v6262, %v6261
        %v6264 = vrot.slane %v6005, 6
        %v6265 = vsel %vm4831, %v6264, %v6263
        %v6266 = vrot.slane %v6041, 5
        %v6267 = vsel %vm4834, %v6266, %v6265
        %v6268 = vrot.slane %v6043, 4
        %v6269 = vsel %vm4837, %v6268, %v6267
        %v6270 = vrot.slane %v6045, 3
        %v6271 = vsel %vm4840, %v6270, %v6269
        %v6272 = vrot.slane %v6047, 2
        %v6273 = vsel %vm4843, %v6272, %v6271
        %v6274 = vrot.slane %v5999, 1
        %v6275 = vsel %vm4822, %v6274, 0.0
        %v6276 = vsel %vm4825, %v6001, %v6275
        %v6277 = vrot.slane %v6003, 7
        %v6278 = vsel %vm4828, %v6277, %v6276
        %v6279 = vrot.slane %v6006, 6
        %v6280 = vsel %vm4831, %v6279, %v6278
        %v6281 = vrot.slane %v6042, 5
        %v6282 = vsel %vm4834, %v6281, %v6280
        %v6283 = vrot.slane %v6044, 4
        %v6284 = vsel %vm4837, %v6283, %v6282
        %v6285 = vrot.slane %v6046, 3
        %v6286 = vsel %vm4840, %v6285, %v6284
        %v6287 = vrot.slane %v6048, 2
        %v6288 = vsel %vm4843, %v6287, %v6286
        %v6289 = vrot.slane %v6053, 1
        %v6290 = vsel %vm4822, %v6289, 0.0
        %v6291 = vsel %vm4825, %v6055, %v6290
        %v6292 = vrot.slane %v6057, 7
        %v6293 = vsel %vm4828, %v6292, %v6291
        %v6294 = vrot.slane %v6059, 6
        %v6295 = vsel %vm4831, %v6294, %v6293
        %v6296 = vrot.slane %v6062, 5
        %v6297 = vsel %vm4834, %v6296, %v6295
        %v6298 = vrot.slane %v6098, 4
        %v6299 = vsel %vm4837, %v6298, %v6297
        %v6300 = vrot.slane %v6100, 3
        %v6301 = vsel %vm4840, %v6300, %v6299
        %v6302 = vrot.slane %v6102, 2
        %v6303 = vsel %vm4843, %v6302, %v6301
        %v6304 = vrot.slane %v6054, 1
        %v6305 = vsel %vm4822, %v6304, 0.0
        %v6306 = vsel %vm4825, %v6056, %v6305
        %v6307 = vrot.slane %v6058, 7
        %v6308 = vsel %vm4828, %v6307, %v6306
        %v6309 = vrot.slane %v6060, 6
        %v6310 = vsel %vm4831, %v6309, %v6308
        %v6311 = vrot.slane %v6063, 5
        %v6312 = vsel %vm4834, %v6311, %v6310
        %v6313 = vrot.slane %v6099, 4
        %v6314 = vsel %vm4837, %v6313, %v6312
        %v6315 = vrot.slane %v6101, 3
        %v6316 = vsel %vm4840, %v6315, %v6314
        %v6317 = vrot.slane %v6103, 2
        %v6318 = vsel %vm4843, %v6317, %v6316
        %v6319 = vrot.slane %v6104, 1
        %v6320 = vsel %vm4822, %v6319, 0.0
        %v6321 = vsel %vm4825, %v6110, %v6320
        %v6322 = vrot.slane %v6112, 7
        %v6323 = vsel %vm4828, %v6322, %v6321
        %v6324 = vrot.slane %v6114, 6
        %v6325 = vsel %vm4831, %v6324, %v6323
        %v6326 = vrot.slane %v6116, 5
        %v6327 = vsel %vm4834, %v6326, %v6325
        %v6328 = vrot.slane %v6119, 4
        %v6329 = vsel %vm4837, %v6328, %v6327
        %v6330 = vrot.slane %v5984, 4
        %v6331 = vsel %vm4840, %v6330, %v6329
        %v6332 = vrot.slane %v5986, 3
        %v6333 = vsel %vm4843, %v6332, %v6331
        %v6334 = vrot.slane %v6105, 1
        %v6335 = vsel %vm4822, %v6334, 0.0
        %v6336 = vsel %vm4825, %v6111, %v6335
        %v6337 = vrot.slane %v6113, 7
        %v6338 = vsel %vm4828, %v6337, %v6336
        %v6339 = vrot.slane %v6115, 6
        %v6340 = vsel %vm4831, %v6339, %v6338
        %v6341 = vrot.slane %v6117, 5
        %v6342 = vsel %vm4834, %v6341, %v6340
        %v6343 = vrot.slane %v6120, 4
        %v6344 = vsel %vm4837, %v6343, %v6342
        %v6345 = vrot.slane %v5985, 4
        %v6346 = vsel %vm4840, %v6345, %v6344
        %v6347 = vrot.slane %v5987, 3
        %v6348 = vsel %vm4843, %v6347, %v6346
        %v6349 = vrot.slane %v5988, 2
        %v6350 = vsel %vm4822, %v6349, 0.0
        %v6351 = vrot.slane %v5990, 1
        %v6352 = vsel %vm4825, %v6351, %v6350
        %v6353 = vsel %vm4828, %v5996, %v6352
        %v6354 = vrot.slane %v5998, 7
        %v6355 = vsel %vm4831, %v6354, %v6353
        %v6356 = vrot.slane %v6000, 6
        %v6357 = vsel %vm4834, %v6356, %v6355
        %v6358 = vrot.slane %v6002, 5
        %v6359 = vsel %vm4837, %v6358, %v6357
        %v6360 = vrot.slane %v6005, 4
        %v6361 = vsel %vm4840, %v6360, %v6359
        %v6362 = vrot.slane %v6041, 3
        %v6363 = vsel %vm4843, %v6362, %v6361
        %v6364 = vrot.slane %v5989, 2
        %v6365 = vsel %vm4822, %v6364, 0.0
        %v6366 = vrot.slane %v5991, 1
        %v6367 = vsel %vm4825, %v6366, %v6365
        %v6368 = vsel %vm4828, %v5997, %v6367
        %v6369 = vrot.slane %v5999, 7
        %v6370 = vsel %vm4831, %v6369, %v6368
        %v6371 = vrot.slane %v6001, 6
        %v6372 = vsel %vm4834, %v6371, %v6370
        %v6373 = vrot.slane %v6003, 5
        %v6374 = vsel %vm4837, %v6373, %v6372
        %v6375 = vrot.slane %v6006, 4
        %v6376 = vsel %vm4840, %v6375, %v6374
        %v6377 = vrot.slane %v6042, 3
        %v6378 = vsel %vm4843, %v6377, %v6376
        %v6379 = vrot.slane %v6043, 2
        %v6380 = vsel %vm4822, %v6379, 0.0
        %v6381 = vrot.slane %v6045, 1
        %v6382 = vsel %vm4825, %v6381, %v6380
        %v6383 = vsel %vm4828, %v6047, %v6382
        %v6384 = vrot.slane %v6053, 7
        %v6385 = vsel %vm4831, %v6384, %v6383
        %v6386 = vrot.slane %v6055, 6
        %v6387 = vsel %vm4834, %v6386, %v6385
        %v6388 = vrot.slane %v6057, 5
        %v6389 = vsel %vm4837, %v6388, %v6387
        %v6390 = vrot.slane %v6059, 4
        %v6391 = vsel %vm4840, %v6390, %v6389
        %v6392 = vrot.slane %v6062, 3
        %v6393 = vsel %vm4843, %v6392, %v6391
        %v6394 = vrot.slane %v6044, 2
        %v6395 = vsel %vm4822, %v6394, 0.0
        %v6396 = vrot.slane %v6046, 1
        %v6397 = vsel %vm4825, %v6396, %v6395
        %v6398 = vsel %vm4828, %v6048, %v6397
        %v6399 = vrot.slane %v6054, 7
        %v6400 = vsel %vm4831, %v6399, %v6398
        %v6401 = vrot.slane %v6056, 6
        %v6402 = vsel %vm4834, %v6401, %v6400
        %v6403 = vrot.slane %v6058, 5
        %v6404 = vsel %vm4837, %v6403, %v6402
        %v6405 = vrot.slane %v6060, 4
        %v6406 = vsel %vm4840, %v6405, %v6404
        %v6407 = vrot.slane %v6063, 3
        %v6408 = vsel %vm4843, %v6407, %v6406
        %v6409 = vrot.slane %v6098, 2
        %v6410 = vsel %vm4822, %v6409, 0.0
        %v6411 = vrot.slane %v6100, 1
        %v6412 = vsel %vm4825, %v6411, %v6410
        %v6413 = vsel %vm4828, %v6102, %v6412
        %v6414 = vrot.slane %v6104, 7
        %v6415 = vsel %vm4831, %v6414, %v6413
        %v6416 = vrot.slane %v6110, 6
        %v6417 = vsel %vm4834, %v6416, %v6415
        %v6418 = vrot.slane %v6112, 5
        %v6419 = vsel %vm4837, %v6418, %v6417
        %v6420 = vrot.slane %v6114, 4
        %v6421 = vsel %vm4840, %v6420, %v6419
        %v6422 = vrot.slane %v6116, 3
        %v6423 = vsel %vm4843, %v6422, %v6421
        %v6424 = vrot.slane %v6099, 2
        %v6425 = vsel %vm4822, %v6424, 0.0
        %v6426 = vrot.slane %v6101, 1
        %v6427 = vsel %vm4825, %v6426, %v6425
        %v6428 = vsel %vm4828, %v6103, %v6427
        %v6429 = vrot.slane %v6105, 7
        %v6430 = vsel %vm4831, %v6429, %v6428
        %v6431 = vrot.slane %v6111, 6
        %v6432 = vsel %vm4834, %v6431, %v6430
        %v6433 = vrot.slane %v6113, 5
        %v6434 = vsel %vm4837, %v6433, %v6432
        %v6435 = vrot.slane %v6115, 4
        %v6436 = vsel %vm4840, %v6435, %v6434
        %v6437 = vrot.slane %v6117, 3
        %v6438 = vsel %vm4843, %v6437, %v6436
        %v6439 = vrot.slane %v6119, 2
        %v6440 = vsel %vm4822, %v6439, 0.0
        %v6441 = vrot.slane %v5984, 2
        %v6442 = vsel %vm4825, %v6441, %v6440
        %v6443 = vrot.slane %v5986, 1
        %v6444 = vsel %vm4828, %v6443, %v6442
        %v6445 = vsel %vm4831, %v5988, %v6444
        %v6446 = vrot.slane %v5990, 7
        %v6447 = vsel %vm4834, %v6446, %v6445
        %v6448 = vrot.slane %v5996, 6
        %v6449 = vsel %vm4837, %v6448, %v6447
        %v6450 = vrot.slane %v5998, 5
        %v6451 = vsel %vm4840, %v6450, %v6449
        %v6452 = vrot.slane %v6000, 4
        %v6453 = vsel %vm4843, %v6452, %v6451
        %v6454 = vrot.slane %v6120, 2
        %v6455 = vsel %vm4822, %v6454, 0.0
        %v6456 = vrot.slane %v5985, 2
        %v6457 = vsel %vm4825, %v6456, %v6455
        %v6458 = vrot.slane %v5987, 1
        %v6459 = vsel %vm4828, %v6458, %v6457
        %v6460 = vsel %vm4831, %v5989, %v6459
        %v6461 = vrot.slane %v5991, 7
        %v6462 = vsel %vm4834, %v6461, %v6460
        %v6463 = vrot.slane %v5997, 6
        %v6464 = vsel %vm4837, %v6463, %v6462
        %v6465 = vrot.slane %v5999, 5
        %v6466 = vsel %vm4840, %v6465, %v6464
        %v6467 = vrot.slane %v6001, 4
        %v6468 = vsel %vm4843, %v6467, %v6466
        %v6469 = vrot.slane %v6002, 3
        %v6470 = vsel %vm4822, %v6469, 0.0
        %v6471 = vrot.slane %v6005, 2
        %v6472 = vsel %vm4825, %v6471, %v6470
        %v6473 = vrot.slane %v6041, 1
        %v6474 = vsel %vm4828, %v6473, %v6472
        %v6475 = vsel %vm4831, %v6043, %v6474
        %v6476 = vrot.slane %v6045, 7
        %v6477 = vsel %vm4834, %v6476, %v6475
        %v6478 = vrot.slane %v6047, 6
        %v6479 = vsel %vm4837, %v6478, %v6477
        %v6480 = vrot.slane %v6053, 5
        %v6481 = vsel %vm4840, %v6480, %v6479
        %v6482 = vrot.slane %v6055, 4
        %v6483 = vsel %vm4843, %v6482, %v6481
        %v6484 = vrot.slane %v6003, 3
        %v6485 = vsel %vm4822, %v6484, 0.0
        %v6486 = vrot.slane %v6006, 2
        %v6487 = vsel %vm4825, %v6486, %v6485
        %v6488 = vrot.slane %v6042, 1
        %v6489 = vsel %vm4828, %v6488, %v6487
        %v6490 = vsel %vm4831, %v6044, %v6489
        %v6491 = vrot.slane %v6046, 7
        %v6492 = vsel %vm4834, %v6491, %v6490
        %v6493 = vrot.slane %v6048, 6
        %v6494 = vsel %vm4837, %v6493, %v6492
        %v6495 = vrot.slane %v6054, 5
        %v6496 = vsel %vm4840, %v6495, %v6494
        %v6497 = vrot.slane %v6056, 4
        %v6498 = vsel %vm4843, %v6497, %v6496
        %v6499 = vrot.slane %v6057, 3
        %v6500 = vsel %vm4822, %v6499, 0.0
        %v6501 = vrot.slane %v6059, 2
        %v6502 = vsel %vm4825, %v6501, %v6500
        %v6503 = vrot.slane %v6062, 1
        %v6504 = vsel %vm4828, %v6503, %v6502
        %v6505 = vsel %vm4831, %v6098, %v6504
        %v6506 = vrot.slane %v6100, 7
        %v6507 = vsel %vm4834, %v6506, %v6505
        %v6508 = vrot.slane %v6102, 6
        %v6509 = vsel %vm4837, %v6508, %v6507
        %v6510 = vrot.slane %v6104, 5
        %v6511 = vsel %vm4840, %v6510, %v6509
        %v6512 = vrot.slane %v6110, 4
        %v6513 = vsel %vm4843, %v6512, %v6511
        %v6514 = vrot.slane %v6058, 3
        %v6515 = vsel %vm4822, %v6514, 0.0
        %v6516 = vrot.slane %v6060, 2
        %v6517 = vsel %vm4825, %v6516, %v6515
        %v6518 = vrot.slane %v6063, 1
        %v6519 = vsel %vm4828, %v6518, %v6517
        %v6520 = vsel %vm4831, %v6099, %v6519
        %v6521 = vrot.slane %v6101, 7
        %v6522 = vsel %vm4834, %v6521, %v6520
        %v6523 = vrot.slane %v6103, 6
        %v6524 = vsel %vm4837, %v6523, %v6522
        %v6525 = vrot.slane %v6105, 5
        %v6526 = vsel %vm4840, %v6525, %v6524
        %v6527 = vrot.slane %v6111, 4
        %v6528 = vsel %vm4843, %v6527, %v6526
        %v6529 = vrot.slane %v6112, 3
        %v6530 = vsel %vm4822, %v6529, 0.0
        %v6531 = vrot.slane %v6114, 2
        %v6532 = vsel %vm4825, %v6531, %v6530
        %v6533 = vrot.slane %v6116, 1
        %v6534 = vsel %vm4828, %v6533, %v6532
        %v6535 = vsel %vm4831, %v6119, %v6534
        %v6536 = vrot.slane %v6113, 3
        %v6537 = vsel %vm4822, %v6536, 0.0
        %v6538 = vrot.slane %v6115, 2
        %v6539 = vsel %vm4825, %v6538, %v6537
        %v6540 = vrot.slane %v6117, 1
        %v6541 = vsel %vm4828, %v6540, %v6539
        %v6542 = vsel %vm4831, %v6120, %v6541
        %v6544 = vsel %vm787, %v6535, 0
        %v6547 = vsel %vm787, %v6542, 0
        %6549 = vmatpush.msra.mxu0 0.0
        %6550 = vmatpush.msra.mxu0 0.0
        %6551 = vmatpush.msra.mxu0 %v6544
        %6552 = vmatpush.msra.mxu0 %v6513
        %6553 = vmatpush.msra.mxu0 %v6483
        %6554 = vmatpush.msra.mxu0 %v6453
        %6555 = vmatpush.msra.mxu0 %v6423
        %6556 = vmatpush.msra.mxu0 %v6393
        %6557 = vmatpush.msra.mxu0 %v6363
        %6558 = vmatpush.msra.mxu0 %v6333
        %6559 = vmatpush.msra.mxu0 %v6303
        %6560 = vmatpush.msra.mxu0 %v6273
        %6561 = vmatpush.msra.mxu0 %v6243
        %6562 = vmatpush.msra.mxu0 %v6213
        %6563 = vmatpush.msra.mxu0 %v6183
        %6564 = vmatpush.msra.mxu0 %v6153
        %6565 = vmatmul.f32.gmra.mxu0 %v5241
        %v6566 = vpop.f32.mrf.mxu0
        %v6567 = vadd.f32 %v5237, %v6566
        %6568 = vdwg.mxu0
        %6569 = vmatpush.msra.mxu0 0.0
        %6570 = vmatpush.msra.mxu0 0.0
        %6571 = vmatpush.msra.mxu0 %v6547
        %6572 = vmatpush.msra.mxu0 %v6528
        %6573 = vmatpush.msra.mxu0 %v6498
        %6574 = vmatpush.msra.mxu0 %v6468
        %6575 = vmatpush.msra.mxu0 %v6438
        %6576 = vmatpush.msra.mxu0 %v6408
        %6577 = vmatpush.msra.mxu0 %v6378
        %6578 = vmatpush.msra.mxu0 %v6348
        %6579 = vmatpush.msra.mxu0 %v6318
        %6580 = vmatpush.msra.mxu0 %v6288
        %6581 = vmatpush.msra.mxu0 %v6258
        %6582 = vmatpush.msra.mxu0 %v6228
        %6583 = vmatpush.msra.mxu0 %v6198
        %6584 = vmatpush.msra.mxu0 %v6168
        %6585 = vmatmul.f32.gmra.mxu0 %v5241
        %v6586 = vpop.f32.mrf.mxu0
        %v6587 = vadd.f32 %v5237, %v6586
        %6588 = vdwg.mxu0
        %6589 = vst [vmem:[%s245 + $0x20] sm:$0xff] %v6567
        %6590 = vst [vmem:[%s245 + $0x28] sm:$0xff] %v6587
        %v6591 = vld [vmem:[%s2074] sm:$0xff]
        %v6592 = vld [vmem:[%s2074 + $0x8] sm:$0xff]
        %v6593 = vld [vmem:[%s2074 + $0x10] sm:$0xff]
        %v6594 = vld [vmem:[%s2074 + $0x18] sm:$0xff]
        %v6595 = vld [vmem:[%s2074 + $0x20] sm:$0xff]
        %v6596 = vld [vmem:[%s2074 + $0x28] sm:$0xff]
        %v6597 = vld [vmem:[%s2074 + $0x30] sm:$0xff]
        %v6598 = vld [vmem:[%s2074 + $0x38] sm:$0xff]
        %v6599 = vld [vmem:[%s2074 + $0x40] sm:$0xff]
        %v6600 = vld [vmem:[%s2497] sm:$0xff]
        %v6601 = vld [vmem:[%s2497 + $0x8] sm:$0xff]
        %v6602 = vld [vmem:[%s2497 + $0x10] sm:$0xff]
        %v6603 = vld [vmem:[%s2497 + $0x18] sm:$0xff]
        %v6604 = vld [vmem:[%s2497 + $0x20] sm:$0xff]
        %v6605 = vld [vmem:[%s2497 + $0x28] sm:$0xff]
        %v6606 = vld [vmem:[%s2497 + $0x30] sm:$0xff]
        %v6607 = vld [vmem:[%s2497 + $0x38] sm:$0xff]
        %v6608 = vld [vmem:[%s2497 + $0x40] sm:$0xff]
        %v6609 = vld [vmem:[%s2920] sm:$0xff]
        %v6610 = vld [vmem:[%s2920 + $0x8] sm:$0xff]
        %v6611 = vld [vmem:[%s2920 + $0x10] sm:$0xff]
        %v6612 = vld [vmem:[%s2920 + $0x18] sm:$0xff]
        %v6613 = vld [vmem:[%s2920 + $0x20] sm:$0xff]
        %v6614 = vld [vmem:[%s2920 + $0x28] sm:$0xff]
        %v6615 = vld [vmem:[%s2920 + $0x30] sm:$0xff]
        %v6616 = vld [vmem:[%s2920 + $0x38] sm:$0xff]
        %v6617 = vld [vmem:[%s2920 + $0x40] sm:$0xff]
        %6627 = vst [vmem:[#allocation1] ss:$2 sm:$0xff] %v6591
        %s6628 = scalar_lea.vmem [#allocation1], 16
        %6629 = vst [vmem:[%s6628] ss:$2 sm:$0xff] %v6592
        %s6630 = scalar_lea.vmem [#allocation1], 32
        %6631 = vst [vmem:[%s6630] ss:$2 sm:$0xff] %v6593
        %s6632 = scalar_lea.vmem [#allocation1], 48
        %6633 = vst [vmem:[%s6632] ss:$2 sm:$0xff] %v6594
        %v6634 = vld.sshfl [vmem:[#allocation1] sm:$0xff pattern:$0x75316420]
        %v6635 = vld.sshfl [vmem:[#allocation1 + $0x8] sm:$0xff pattern:$0x75316420]
        %v6636 = vld.sshfl [vmem:[#allocation1 + $0x10] sm:$0xff pattern:$0x75316420]
        %v6637 = vld.sshfl [vmem:[#allocation1 + $0x18] sm:$0xff pattern:$0x75316420]
        %v6638 = vld.sshfl [vmem:[#allocation1 + $0x20] sm:$0xff pattern:$0x75316420]
        %v6639 = vld.sshfl [vmem:[#allocation1 + $0x28] sm:$0xff pattern:$0x75316420]
        %v6640 = vld.sshfl [vmem:[#allocation1 + $0x30] sm:$0xff pattern:$0x75316420]
        %v6641 = vld.sshfl [vmem:[#allocation1 + $0x38] sm:$0xff pattern:$0x75316420]
        %6642 = vst [vmem:[#allocation1] ss:$2 sm:$0xff] %v6595
        %6643 = vst [vmem:[%s6628] ss:$2 sm:$0xff] %v6596
        %6644 = vst [vmem:[%s6630] ss:$2 sm:$0xff] %v6597
        %6645 = vst [vmem:[%s6632] ss:$2 sm:$0xff] %v6598
        %v6646 = vld.sshfl [vmem:[#allocation1] sm:$0xff pattern:$0x75316420]
        %v6647 = vld.sshfl [vmem:[#allocation1 + $0x8] sm:$0xff pattern:$0x75316420]
        %v6648 = vld.sshfl [vmem:[#allocation1 + $0x10] sm:$0xff pattern:$0x75316420]
        %v6649 = vld.sshfl [vmem:[#allocation1 + $0x18] sm:$0xff pattern:$0x75316420]
        %v6650 = vld.sshfl [vmem:[#allocation1 + $0x20] sm:$0xff pattern:$0x75316420]
        %v6651 = vld.sshfl [vmem:[#allocation1 + $0x28] sm:$0xff pattern:$0x75316420]
        %v6652 = vld.sshfl [vmem:[#allocation1 + $0x30] sm:$0xff pattern:$0x75316420]
        %v6653 = vld.sshfl [vmem:[#allocation1 + $0x38] sm:$0xff pattern:$0x75316420]
        %6654 = vst [vmem:[#allocation1] ss:$2 sm:$0xff] %v6599
        %v6655 = vld.sshfl [vmem:[#allocation1] sm:$0xff pattern:$0x75316420]
        %v6656 = vld.sshfl [vmem:[#allocation1 + $0x8] sm:$0xff pattern:$0x75316420]
        %6684 = vst [vmem:[#allocation1] ss:$2 sm:$0xff] %v6600
        %s6685 = scalar_lea.vmem [#allocation1], 16
        %6686 = vst [vmem:[%s6685] ss:$2 sm:$0xff] %v6601
        %s6687 = scalar_lea.vmem [#allocation1], 32
        %6688 = vst [vmem:[%s6687] ss:$2 sm:$0xff] %v6602
        %s6689 = scalar_lea.vmem [#allocation1], 48
        %6690 = vst [vmem:[%s6689] ss:$2 sm:$0xff] %v6603
        %v6691 = vld.sshfl [vmem:[#allocation1] sm:$0xff pattern:$0x75316420]
        %v6692 = vld.sshfl [vmem:[#allocation1 + $0x8] sm:$0xff pattern:$0x75316420]
        %v6693 = vld.sshfl [vmem:[#allocation1 + $0x10] sm:$0xff pattern:$0x75316420]
        %v6694 = vld.sshfl [vmem:[#allocation1 + $0x18] sm:$0xff pattern:$0x75316420]
        %v6695 = vld.sshfl [vmem:[#allocation1 + $0x20] sm:$0xff pattern:$0x75316420]
        %v6696 = vld.sshfl [vmem:[#allocation1 + $0x28] sm:$0xff pattern:$0x75316420]
        %v6697 = vld.sshfl [vmem:[#allocation1 + $0x30] sm:$0xff pattern:$0x75316420]
        %v6698 = vld.sshfl [vmem:[#allocation1 + $0x38] sm:$0xff pattern:$0x75316420]
        %6699 = vst [vmem:[#allocation1] ss:$2 sm:$0xff] %v6604
        %6700 = vst [vmem:[%s6685] ss:$2 sm:$0xff] %v6605
        %6701 = vst [vmem:[%s6687] ss:$2 sm:$0xff] %v6606
        %6702 = vst [vmem:[%s6689] ss:$2 sm:$0xff] %v6607
        %v6703 = vld.sshfl [vmem:[#allocation1] sm:$0xff pattern:$0x75316420]
        %v6704 = vld.sshfl [vmem:[#allocation1 + $0x8] sm:$0xff pattern:$0x75316420]
        %v6705 = vld.sshfl [vmem:[#allocation1 + $0x10] sm:$0xff pattern:$0x75316420]
        %v6706 = vld.sshfl [vmem:[#allocation1 + $0x18] sm:$0xff pattern:$0x75316420]
        %v6707 = vld.sshfl [vmem:[#allocation1 + $0x20] sm:$0xff pattern:$0x75316420]
        %v6708 = vld.sshfl [vmem:[#allocation1 + $0x28] sm:$0xff pattern:$0x75316420]
        %v6709 = vld.sshfl [vmem:[#allocation1 + $0x30] sm:$0xff pattern:$0x75316420]
        %v6710 = vld.sshfl [vmem:[#allocation1 + $0x38] sm:$0xff pattern:$0x75316420]
        %6711 = vst [vmem:[#allocation1] ss:$2 sm:$0xff] %v6608
        %v6712 = vld.sshfl [vmem:[#allocation1] sm:$0xff pattern:$0x75316420]
        %v6713 = vld.sshfl [vmem:[#allocation1 + $0x8] sm:$0xff pattern:$0x75316420]
        %6741 = vst [vmem:[#allocation1] ss:$2 sm:$0xff] %v6609
        %s6742 = scalar_lea.vmem [#allocation1], 16
        %6743 = vst [vmem:[%s6742] ss:$2 sm:$0xff] %v6610
        %s6744 = scalar_lea.vmem [#allocation1], 32
        %6745 = vst [vmem:[%s6744] ss:$2 sm:$0xff] %v6611
        %s6746 = scalar_lea.vmem [#allocation1], 48
        %6747 = vst [vmem:[%s6746] ss:$2 sm:$0xff] %v6612
        %v6748 = vld.sshfl [vmem:[#allocation1] sm:$0xff pattern:$0x75316420]
        %v6749 = vld.sshfl [vmem:[#allocation1 + $0x8] sm:$0xff pattern:$0x75316420]
        %v6750 = vld.sshfl [vmem:[#allocation1 + $0x10] sm:$0xff pattern:$0x75316420]
        %v6751 = vld.sshfl [vmem:[#allocation1 + $0x18] sm:$0xff pattern:$0x75316420]
        %v6752 = vld.sshfl [vmem:[#allocation1 + $0x20] sm:$0xff pattern:$0x75316420]
        %v6753 = vld.sshfl [vmem:[#allocation1 + $0x28] sm:$0xff pattern:$0x75316420]
        %v6754 = vld.sshfl [vmem:[#allocation1 + $0x30] sm:$0xff pattern:$0x75316420]
        %v6755 = vld.sshfl [vmem:[#allocation1 + $0x38] sm:$0xff pattern:$0x75316420]
        %6756 = vst [vmem:[#allocation1] ss:$2 sm:$0xff] %v6613
        %6757 = vst [vmem:[%s6742] ss:$2 sm:$0xff] %v6614
        %6758 = vst [vmem:[%s6744] ss:$2 sm:$0xff] %v6615
        %6759 = vst [vmem:[%s6746] ss:$2 sm:$0xff] %v6616
        %v6760 = vld.sshfl [vmem:[#allocation1] sm:$0xff pattern:$0x75316420]
        %v6761 = vld.sshfl [vmem:[#allocation1 + $0x8] sm:$0xff pattern:$0x75316420]
        %v6762 = vld.sshfl [vmem:[#allocation1 + $0x10] sm:$0xff pattern:$0x75316420]
        %v6763 = vld.sshfl [vmem:[#allocation1 + $0x18] sm:$0xff pattern:$0x75316420]
        %v6764 = vld.sshfl [vmem:[#allocation1 + $0x20] sm:$0xff pattern:$0x75316420]
        %v6765 = vld.sshfl [vmem:[#allocation1 + $0x28] sm:$0xff pattern:$0x75316420]
        %v6766 = vld.sshfl [vmem:[#allocation1 + $0x30] sm:$0xff pattern:$0x75316420]
        %v6767 = vld.sshfl [vmem:[#allocation1 + $0x38] sm:$0xff pattern:$0x75316420]
        %6768 = vst [vmem:[#allocation1] ss:$2 sm:$0xff] %v6617
        %v6769 = vld.sshfl [vmem:[#allocation1] sm:$0xff pattern:$0x75316420]
        %v6770 = vld.sshfl [vmem:[#allocation1 + $0x8] sm:$0xff pattern:$0x75316420]
        %v6789 = vsel %vm4822, %v6634, 0.0
        %v6790 = vrot.slane %v6636, 7
        %v6791 = vsel %vm4825, %v6790, %v6789
        %v6792 = vrot.slane %v6638, 6
        %v6793 = vsel %vm4828, %v6792, %v6791
        %v6794 = vrot.slane %v6640, 5
        %v6795 = vsel %vm4831, %v6794, %v6793
        %v6796 = vrot.slane %v6646, 4
        %v6797 = vsel %vm4834, %v6796, %v6795
        %v6798 = vrot.slane %v6648, 3
        %v6799 = vsel %vm4837, %v6798, %v6797
        %v6800 = vrot.slane %v6650, 2
        %v6801 = vsel %vm4840, %v6800, %v6799
        %v6802 = vrot.slane %v6652, 1
        %v6803 = vsel %vm4843, %v6802, %v6801
        %v6804 = vsel %vm4822, %v6635, 0.0
        %v6805 = vrot.slane %v6637, 7
        %v6806 = vsel %vm4825, %v6805, %v6804
        %v6807 = vrot.slane %v6639, 6
        %v6808 = vsel %vm4828, %v6807, %v6806
        %v6809 = vrot.slane %v6641, 5
        %v6810 = vsel %vm4831, %v6809, %v6808
        %v6811 = vrot.slane %v6647, 4
        %v6812 = vsel %vm4834, %v6811, %v6810
        %v6813 = vrot.slane %v6649, 3
        %v6814 = vsel %vm4837, %v6813, %v6812
        %v6815 = vrot.slane %v6651, 2
        %v6816 = vsel %vm4840, %v6815, %v6814
        %v6817 = vrot.slane %v6653, 1
        %v6818 = vsel %vm4843, %v6817, %v6816
        %v6819 = vsel %vm4822, %v6655, 0.0
        %v6820 = vrot.slane %v6691, 7
        %v6821 = vsel %vm4825, %v6820, %v6819
        %v6822 = vrot.slane %v6693, 6
        %v6823 = vsel %vm4828, %v6822, %v6821
        %v6824 = vrot.slane %v6695, 5
        %v6825 = vsel %vm4831, %v6824, %v6823
        %v6826 = vrot.slane %v6697, 4
        %v6827 = vsel %vm4834, %v6826, %v6825
        %v6828 = vrot.slane %v6703, 3
        %v6829 = vsel %vm4837, %v6828, %v6827
        %v6830 = vrot.slane %v6705, 2
        %v6831 = vsel %vm4840, %v6830, %v6829
        %v6832 = vrot.slane %v6707, 1
        %v6833 = vsel %vm4843, %v6832, %v6831
        %v6834 = vsel %vm4822, %v6656, 0.0
        %v6835 = vrot.slane %v6692, 7
        %v6836 = vsel %vm4825, %v6835, %v6834
        %v6837 = vrot.slane %v6694, 6
        %v6838 = vsel %vm4828, %v6837, %v6836
        %v6839 = vrot.slane %v6696, 5
        %v6840 = vsel %vm4831, %v6839, %v6838
        %v6841 = vrot.slane %v6698, 4
        %v6842 = vsel %vm4834, %v6841, %v6840
        %v6843 = vrot.slane %v6704, 3
        %v6844 = vsel %vm4837, %v6843, %v6842
        %v6845 = vrot.slane %v6706, 2
        %v6846 = vsel %vm4840, %v6845, %v6844
        %v6847 = vrot.slane %v6708, 1
        %v6848 = vsel %vm4843, %v6847, %v6846
        %v6849 = vsel %vm4822, %v6709, 0.0
        %v6850 = vrot.slane %v6712, 7
        %v6851 = vsel %vm4825, %v6850, %v6849
        %v6852 = vrot.slane %v6748, 6
        %v6853 = vsel %vm4828, %v6852, %v6851
        %v6854 = vrot.slane %v6750, 5
        %v6855 = vsel %vm4831, %v6854, %v6853
        %v6856 = vrot.slane %v6752, 4
        %v6857 = vsel %vm4834, %v6856, %v6855
        %v6858 = vrot.slane %v6754, 3
        %v6859 = vsel %vm4837, %v6858, %v6857
        %v6860 = vrot.slane %v6760, 2
        %v6861 = vsel %vm4840, %v6860, %v6859
        %v6862 = vrot.slane %v6762, 1
        %v6863 = vsel %vm4843, %v6862, %v6861
        %v6864 = vsel %vm4822, %v6710, 0.0
        %v6865 = vrot.slane %v6713, 7
        %v6866 = vsel %vm4825, %v6865, %v6864
        %v6867 = vrot.slane %v6749, 6
        %v6868 = vsel %vm4828, %v6867, %v6866
        %v6869 = vrot.slane %v6751, 5
        %v6870 = vsel %vm4831, %v6869, %v6868
        %v6871 = vrot.slane %v6753, 4
        %v6872 = vsel %vm4834, %v6871, %v6870
        %v6873 = vrot.slane %v6755, 3
        %v6874 = vsel %vm4837, %v6873, %v6872
        %v6875 = vrot.slane %v6761, 2
        %v6876 = vsel %vm4840, %v6875, %v6874
        %v6877 = vrot.slane %v6763, 1
        %v6878 = vsel %vm4843, %v6877, %v6876
        %v6879 = vsel %vm4822, %v6764, 0.0
        %v6880 = vrot.slane %v6766, 7
        %v6881 = vsel %vm4825, %v6880, %v6879
        %v6882 = vrot.slane %v6769, 6
        %v6883 = vsel %vm4828, %v6882, %v6881
        %v6884 = vrot.slane %v6634, 6
        %v6885 = vsel %vm4831, %v6884, %v6883
        %v6886 = vrot.slane %v6636, 5
        %v6887 = vsel %vm4834, %v6886, %v6885
        %v6888 = vrot.slane %v6638, 4
        %v6889 = vsel %vm4837, %v6888, %v6887
        %v6890 = vrot.slane %v6640, 3
        %v6891 = vsel %vm4840, %v6890, %v6889
        %v6892 = vrot.slane %v6646, 2
        %v6893 = vsel %vm4843, %v6892, %v6891
        %v6894 = vsel %vm4822, %v6765, 0.0
        %v6895 = vrot.slane %v6767, 7
        %v6896 = vsel %vm4825, %v6895, %v6894
        %v6897 = vrot.slane %v6770, 6
        %v6898 = vsel %vm4828, %v6897, %v6896
        %v6899 = vrot.slane %v6635, 6
        %v6900 = vsel %vm4831, %v6899, %v6898
        %v6901 = vrot.slane %v6637, 5
        %v6902 = vsel %vm4834, %v6901, %v6900
        %v6903 = vrot.slane %v6639, 4
        %v6904 = vsel %vm4837, %v6903, %v6902
        %v6905 = vrot.slane %v6641, 3
        %v6906 = vsel %vm4840, %v6905, %v6904
        %v6907 = vrot.slane %v6647, 2
        %v6908 = vsel %vm4843, %v6907, %v6906
        %v6909 = vrot.slane %v6648, 1
        %v6910 = vsel %vm4822, %v6909, 0.0
        %v6911 = vsel %vm4825, %v6650, %v6910
        %v6912 = vrot.slane %v6652, 7
        %v6913 = vsel %vm4828, %v6912, %v6911
        %v6914 = vrot.slane %v6655, 6
        %v6915 = vsel %vm4831, %v6914, %v6913
        %v6916 = vrot.slane %v6691, 5
        %v6917 = vsel %vm4834, %v6916, %v6915
        %v6918 = vrot.slane %v6693, 4
        %v6919 = vsel %vm4837, %v6918, %v6917
        %v6920 = vrot.slane %v6695, 3
        %v6921 = vsel %vm4840, %v6920, %v6919
        %v6922 = vrot.slane %v6697, 2
        %v6923 = vsel %vm4843, %v6922, %v6921
        %v6924 = vrot.slane %v6649, 1
        %v6925 = vsel %vm4822, %v6924, 0.0
        %v6926 = vsel %vm4825, %v6651, %v6925
        %v6927 = vrot.slane %v6653, 7
        %v6928 = vsel %vm4828, %v6927, %v6926
        %v6929 = vrot.slane %v6656, 6
        %v6930 = vsel %vm4831, %v6929, %v6928
        %v6931 = vrot.slane %v6692, 5
        %v6932 = vsel %vm4834, %v6931, %v6930
        %v6933 = vrot.slane %v6694, 4
        %v6934 = vsel %vm4837, %v6933, %v6932
        %v6935 = vrot.slane %v6696, 3
        %v6936 = vsel %vm4840, %v6935, %v6934
        %v6937 = vrot.slane %v6698, 2
        %v6938 = vsel %vm4843, %v6937, %v6936
        %v6939 = vrot.slane %v6703, 1
        %v6940 = vsel %vm4822, %v6939, 0.0
        %v6941 = vsel %vm4825, %v6705, %v6940
        %v6942 = vrot.slane %v6707, 7
        %v6943 = vsel %vm4828, %v6942, %v6941
        %v6944 = vrot.slane %v6709, 6
        %v6945 = vsel %vm4831, %v6944, %v6943
        %v6946 = vrot.slane %v6712, 5
        %v6947 = vsel %vm4834, %v6946, %v6945
        %v6948 = vrot.slane %v6748, 4
        %v6949 = vsel %vm4837, %v6948, %v6947
        %v6950 = vrot.slane %v6750, 3
        %v6951 = vsel %vm4840, %v6950, %v6949
        %v6952 = vrot.slane %v6752, 2
        %v6953 = vsel %vm4843, %v6952, %v6951
        %v6954 = vrot.slane %v6704, 1
        %v6955 = vsel %vm4822, %v6954, 0.0
        %v6956 = vsel %vm4825, %v6706, %v6955
        %v6957 = vrot.slane %v6708, 7
        %v6958 = vsel %vm4828, %v6957, %v6956
        %v6959 = vrot.slane %v6710, 6
        %v6960 = vsel %vm4831, %v6959, %v6958
        %v6961 = vrot.slane %v6713, 5
        %v6962 = vsel %vm4834, %v6961, %v6960
        %v6963 = vrot.slane %v6749, 4
        %v6964 = vsel %vm4837, %v6963, %v6962
        %v6965 = vrot.slane %v6751, 3
        %v6966 = vsel %vm4840, %v6965, %v6964
        %v6967 = vrot.slane %v6753, 2
        %v6968 = vsel %vm4843, %v6967, %v6966
        %v6969 = vrot.slane %v6754, 1
        %v6970 = vsel %vm4822, %v6969, 0.0
        %v6971 = vsel %vm4825, %v6760, %v6970
        %v6972 = vrot.slane %v6762, 7
        %v6973 = vsel %vm4828, %v6972, %v6971
        %v6974 = vrot.slane %v6764, 6
        %v6975 = vsel %vm4831, %v6974, %v6973
        %v6976 = vrot.slane %v6766, 5
        %v6977 = vsel %vm4834, %v6976, %v6975
        %v6978 = vrot.slane %v6769, 4
        %v6979 = vsel %vm4837, %v6978, %v6977
        %v6980 = vrot.slane %v6634, 4
        %v6981 = vsel %vm4840, %v6980, %v6979
        %v6982 = vrot.slane %v6636, 3
        %v6983 = vsel %vm4843, %v6982, %v6981
        %v6984 = vrot.slane %v6755, 1
        %v6985 = vsel %vm4822, %v6984, 0.0
        %v6986 = vsel %vm4825, %v6761, %v6985
        %v6987 = vrot.slane %v6763, 7
        %v6988 = vsel %vm4828, %v6987, %v6986
        %v6989 = vrot.slane %v6765, 6
        %v6990 = vsel %vm4831, %v6989, %v6988
        %v6991 = vrot.slane %v6767, 5
        %v6992 = vsel %vm4834, %v6991, %v6990
        %v6993 = vrot.slane %v6770, 4
        %v6994 = vsel %vm4837, %v6993, %v6992
        %v6995 = vrot.slane %v6635, 4
        %v6996 = vsel %vm4840, %v6995, %v6994
        %v6997 = vrot.slane %v6637, 3
        %v6998 = vsel %vm4843, %v6997, %v6996
        %v6999 = vrot.slane %v6638, 2
        %v7000 = vsel %vm4822, %v6999, 0.0
        %v7001 = vrot.slane %v6640, 1
        %v7002 = vsel %vm4825, %v7001, %v7000
        %v7003 = vsel %vm4828, %v6646, %v7002
        %v7004 = vrot.slane %v6648, 7
        %v7005 = vsel %vm4831, %v7004, %v7003
        %v7006 = vrot.slane %v6650, 6
        %v7007 = vsel %vm4834, %v7006, %v7005
        %v7008 = vrot.slane %v6652, 5
        %v7009 = vsel %vm4837, %v7008, %v7007
        %v7010 = vrot.slane %v6655, 4
        %v7011 = vsel %vm4840, %v7010, %v7009
        %v7012 = vrot.slane %v6691, 3
        %v7013 = vsel %vm4843, %v7012, %v7011
        %v7014 = vrot.slane %v6639, 2
        %v7015 = vsel %vm4822, %v7014, 0.0
        %v7016 = vrot.slane %v6641, 1
        %v7017 = vsel %vm4825, %v7016, %v7015
        %v7018 = vsel %vm4828, %v6647, %v7017
        %v7019 = vrot.slane %v6649, 7
        %v7020 = vsel %vm4831, %v7019, %v7018
        %v7021 = vrot.slane %v6651, 6
        %v7022 = vsel %vm4834, %v7021, %v7020
        %v7023 = vrot.slane %v6653, 5
        %v7024 = vsel %vm4837, %v7023, %v7022
        %v7025 = vrot.slane %v6656, 4
        %v7026 = vsel %vm4840, %v7025, %v7024
        %v7027 = vrot.slane %v6692, 3
        %v7028 = vsel %vm4843, %v7027, %v7026
        %v7029 = vrot.slane %v6693, 2
        %v7030 = vsel %vm4822, %v7029, 0.0
        %v7031 = vrot.slane %v6695, 1
        %v7032 = vsel %vm4825, %v7031, %v7030
        %v7033 = vsel %vm4828, %v6697, %v7032
        %v7034 = vrot.slane %v6703, 7
        %v7035 = vsel %vm4831, %v7034, %v7033
        %v7036 = vrot.slane %v6705, 6
        %v7037 = vsel %vm4834, %v7036, %v7035
        %v7038 = vrot.slane %v6707, 5
        %v7039 = vsel %vm4837, %v7038, %v7037
        %v7040 = vrot.slane %v6709, 4
        %v7041 = vsel %vm4840, %v7040, %v7039
        %v7042 = vrot.slane %v6712, 3
        %v7043 = vsel %vm4843, %v7042, %v7041
        %v7044 = vrot.slane %v6694, 2
        %v7045 = vsel %vm4822, %v7044, 0.0
        %v7046 = vrot.slane %v6696, 1
        %v7047 = vsel %vm4825, %v7046, %v7045
        %v7048 = vsel %vm4828, %v6698, %v7047
        %v7049 = vrot.slane %v6704, 7
        %v7050 = vsel %vm4831, %v7049, %v7048
        %v7051 = vrot.slane %v6706, 6
        %v7052 = vsel %vm4834, %v7051, %v7050
        %v7053 = vrot.slane %v6708, 5
        %v7054 = vsel %vm4837, %v7053, %v7052
        %v7055 = vrot.slane %v6710, 4
        %v7056 = vsel %vm4840, %v7055, %v7054
        %v7057 = vrot.slane %v6713, 3
        %v7058 = vsel %vm4843, %v7057, %v7056
        %v7059 = vrot.slane %v6748, 2
        %v7060 = vsel %vm4822, %v7059, 0.0
        %v7061 = vrot.slane %v6750, 1
        %v7062 = vsel %vm4825, %v7061, %v7060
        %v7063 = vsel %vm4828, %v6752, %v7062
        %v7064 = vrot.slane %v6754, 7
        %v7065 = vsel %vm4831, %v7064, %v7063
        %v7066 = vrot.slane %v6760, 6
        %v7067 = vsel %vm4834, %v7066, %v7065
        %v7068 = vrot.slane %v6762, 5
        %v7069 = vsel %vm4837, %v7068, %v7067
        %v7070 = vrot.slane %v6764, 4
        %v7071 = vsel %vm4840, %v7070, %v7069
        %v7072 = vrot.slane %v6766, 3
        %v7073 = vsel %vm4843, %v7072, %v7071
        %v7074 = vrot.slane %v6749, 2
        %v7075 = vsel %vm4822, %v7074, 0.0
        %v7076 = vrot.slane %v6751, 1
        %v7077 = vsel %vm4825, %v7076, %v7075
        %v7078 = vsel %vm4828, %v6753, %v7077
        %v7079 = vrot.slane %v6755, 7
        %v7080 = vsel %vm4831, %v7079, %v7078
        %v7081 = vrot.slane %v6761, 6
        %v7082 = vsel %vm4834, %v7081, %v7080
        %v7083 = vrot.slane %v6763, 5
        %v7084 = vsel %vm4837, %v7083, %v7082
        %v7085 = vrot.slane %v6765, 4
        %v7086 = vsel %vm4840, %v7085, %v7084
        %v7087 = vrot.slane %v6767, 3
        %v7088 = vsel %vm4843, %v7087, %v7086
        %v7089 = vrot.slane %v6769, 2
        %v7090 = vsel %vm4822, %v7089, 0.0
        %v7091 = vrot.slane %v6634, 2
        %v7092 = vsel %vm4825, %v7091, %v7090
        %v7093 = vrot.slane %v6636, 1
        %v7094 = vsel %vm4828, %v7093, %v7092
        %v7095 = vsel %vm4831, %v6638, %v7094
        %v7096 = vrot.slane %v6640, 7
        %v7097 = vsel %vm4834, %v7096, %v7095
        %v7098 = vrot.slane %v6646, 6
        %v7099 = vsel %vm4837, %v7098, %v7097
        %v7100 = vrot.slane %v6648, 5
        %v7101 = vsel %vm4840, %v7100, %v7099
        %v7102 = vrot.slane %v6650, 4
        %v7103 = vsel %vm4843, %v7102, %v7101
        %v7104 = vrot.slane %v6770, 2
        %v7105 = vsel %vm4822, %v7104, 0.0
        %v7106 = vrot.slane %v6635, 2
        %v7107 = vsel %vm4825, %v7106, %v7105
        %v7108 = vrot.slane %v6637, 1
        %v7109 = vsel %vm4828, %v7108, %v7107
        %v7110 = vsel %vm4831, %v6639, %v7109
        %v7111 = vrot.slane %v6641, 7
        %v7112 = vsel %vm4834, %v7111, %v7110
        %v7113 = vrot.slane %v6647, 6
        %v7114 = vsel %vm4837, %v7113, %v7112
        %v7115 = vrot.slane %v6649, 5
        %v7116 = vsel %vm4840, %v7115, %v7114
        %v7117 = vrot.slane %v6651, 4
        %v7118 = vsel %vm4843, %v7117, %v7116
        %v7119 = vrot.slane %v6652, 3
        %v7120 = vsel %vm4822, %v7119, 0.0
        %v7121 = vrot.slane %v6655, 2
        %v7122 = vsel %vm4825, %v7121, %v7120
        %v7123 = vrot.slane %v6691, 1
        %v7124 = vsel %vm4828, %v7123, %v7122
        %v7125 = vsel %vm4831, %v6693, %v7124
        %v7126 = vrot.slane %v6695, 7
        %v7127 = vsel %vm4834, %v7126, %v7125
        %v7128 = vrot.slane %v6697, 6
        %v7129 = vsel %vm4837, %v7128, %v7127
        %v7130 = vrot.slane %v6703, 5
        %v7131 = vsel %vm4840, %v7130, %v7129
        %v7132 = vrot.slane %v6705, 4
        %v7133 = vsel %vm4843, %v7132, %v7131
        %v7134 = vrot.slane %v6653, 3
        %v7135 = vsel %vm4822, %v7134, 0.0
        %v7136 = vrot.slane %v6656, 2
        %v7137 = vsel %vm4825, %v7136, %v7135
        %v7138 = vrot.slane %v6692, 1
        %v7139 = vsel %vm4828, %v7138, %v7137
        %v7140 = vsel %vm4831, %v6694, %v7139
        %v7141 = vrot.slane %v6696, 7
        %v7142 = vsel %vm4834, %v7141, %v7140
        %v7143 = vrot.slane %v6698, 6
        %v7144 = vsel %vm4837, %v7143, %v7142
        %v7145 = vrot.slane %v6704, 5
        %v7146 = vsel %vm4840, %v7145, %v7144
        %v7147 = vrot.slane %v6706, 4
        %v7148 = vsel %vm4843, %v7147, %v7146
        %v7149 = vrot.slane %v6707, 3
        %v7150 = vsel %vm4822, %v7149, 0.0
        %v7151 = vrot.slane %v6709, 2
        %v7152 = vsel %vm4825, %v7151, %v7150
        %v7153 = vrot.slane %v6712, 1
        %v7154 = vsel %vm4828, %v7153, %v7152
        %v7155 = vsel %vm4831, %v6748, %v7154
        %v7156 = vrot.slane %v6750, 7
        %v7157 = vsel %vm4834, %v7156, %v7155
        %v7158 = vrot.slane %v6752, 6
        %v7159 = vsel %vm4837, %v7158, %v7157
        %v7160 = vrot.slane %v6754, 5
        %v7161 = vsel %vm4840, %v7160, %v7159
        %v7162 = vrot.slane %v6760, 4
        %v7163 = vsel %vm4843, %v7162, %v7161
        %v7164 = vrot.slane %v6708, 3
        %v7165 = vsel %vm4822, %v7164, 0.0
        %v7166 = vrot.slane %v6710, 2
        %v7167 = vsel %vm4825, %v7166, %v7165
        %v7168 = vrot.slane %v6713, 1
        %v7169 = vsel %vm4828, %v7168, %v7167
        %v7170 = vsel %vm4831, %v6749, %v7169
        %v7171 = vrot.slane %v6751, 7
        %v7172 = vsel %vm4834, %v7171, %v7170
        %v7173 = vrot.slane %v6753, 6
        %v7174 = vsel %vm4837, %v7173, %v7172
        %v7175 = vrot.slane %v6755, 5
        %v7176 = vsel %vm4840, %v7175, %v7174
        %v7177 = vrot.slane %v6761, 4
        %v7178 = vsel %vm4843, %v7177, %v7176
        %v7179 = vrot.slane %v6762, 3
        %v7180 = vsel %vm4822, %v7179, 0.0
        %v7181 = vrot.slane %v6764, 2
        %v7182 = vsel %vm4825, %v7181, %v7180
        %v7183 = vrot.slane %v6766, 1
        %v7184 = vsel %vm4828, %v7183, %v7182
        %v7185 = vsel %vm4831, %v6769, %v7184
        %v7186 = vrot.slane %v6763, 3
        %v7187 = vsel %vm4822, %v7186, 0.0
        %v7188 = vrot.slane %v6765, 2
        %v7189 = vsel %vm4825, %v7188, %v7187
        %v7190 = vrot.slane %v6767, 1
        %v7191 = vsel %vm4828, %v7190, %v7189
        %v7192 = vsel %vm4831, %v6770, %v7191
        %v7194 = vsel %vm787, %v7185, 0
        %v7197 = vsel %vm787, %v7192, 0
        %7199 = vmatpush.msra.mxu0 0.0
        %7200 = vmatpush.msra.mxu0 0.0
        %7201 = vmatpush.msra.mxu0 %v7194
        %7202 = vmatpush.msra.mxu0 %v7163
        %7203 = vmatpush.msra.mxu0 %v7133
        %7204 = vmatpush.msra.mxu0 %v7103
        %7205 = vmatpush.msra.mxu0 %v7073
        %7206 = vmatpush.msra.mxu0 %v7043
        %7207 = vmatpush.msra.mxu0 %v7013
        %7208 = vmatpush.msra.mxu0 %v6983
        %7209 = vmatpush.msra.mxu0 %v6953
        %7210 = vmatpush.msra.mxu0 %v6923
        %7211 = vmatpush.msra.mxu0 %v6893
        %7212 = vmatpush.msra.mxu0 %v6863
        %7213 = vmatpush.msra.mxu0 %v6833
        %7214 = vmatpush.msra.mxu0 %v6803
        %7215 = vmatmul.f32.gmra.mxu0 %v5241
        %v7216 = vpop.f32.mrf.mxu0
        %v7217 = vadd.f32 %v5237, %v7216
        %7218 = vdwg.mxu0
        %7219 = vmatpush.msra.mxu0 0.0
        %7220 = vmatpush.msra.mxu0 0.0
        %7221 = vmatpush.msra.mxu0 %v7197
        %7222 = vmatpush.msra.mxu0 %v7178
        %7223 = vmatpush.msra.mxu0 %v7148
        %7224 = vmatpush.msra.mxu0 %v7118
        %7225 = vmatpush.msra.mxu0 %v7088
        %7226 = vmatpush.msra.mxu0 %v7058
        %7227 = vmatpush.msra.mxu0 %v7028
        %7228 = vmatpush.msra.mxu0 %v6998
        %7229 = vmatpush.msra.mxu0 %v6968
        %7230 = vmatpush.msra.mxu0 %v6938
        %7231 = vmatpush.msra.mxu0 %v6908
        %7232 = vmatpush.msra.mxu0 %v6878
        %7233 = vmatpush.msra.mxu0 %v6848
        %7234 = vmatpush.msra.mxu0 %v6818
        %7235 = vmatmul.f32.gmra.mxu0 %v5241
        %v7236 = vpop.f32.mrf.mxu0
        %v7237 = vadd.f32 %v5237, %v7236
        %7238 = vdwg.mxu0
        %7239 = vst [vmem:[%s245 + $0x30] sm:$0xff] %v7217
        %7240 = vst [vmem:[%s245 + $0x38] sm:$0xff] %v7237
        %v7241 = vld [vmem:[%s2497] sm:$0xff]
        %v7242 = vld [vmem:[%s2497 + $0x8] sm:$0xff]
        %v7243 = vld [vmem:[%s2497 + $0x10] sm:$0xff]
        %v7244 = vld [vmem:[%s2497 + $0x18] sm:$0xff]
        %v7245 = vld [vmem:[%s2497 + $0x20] sm:$0xff]
        %v7246 = vld [vmem:[%s2497 + $0x28] sm:$0xff]
        %v7247 = vld [vmem:[%s2497 + $0x30] sm:$0xff]
        %v7248 = vld [vmem:[%s2497 + $0x38] sm:$0xff]
        %v7249 = vld [vmem:[%s2497 + $0x40] sm:$0xff]
        %v7250 = vld [vmem:[%s2920] sm:$0xff]
        %v7251 = vld [vmem:[%s2920 + $0x8] sm:$0xff]
        %v7252 = vld [vmem:[%s2920 + $0x10] sm:$0xff]
        %v7253 = vld [vmem:[%s2920 + $0x18] sm:$0xff]
        %v7254 = vld [vmem:[%s2920 + $0x20] sm:$0xff]
        %v7255 = vld [vmem:[%s2920 + $0x28] sm:$0xff]
        %v7256 = vld [vmem:[%s2920 + $0x30] sm:$0xff]
        %v7257 = vld [vmem:[%s2920 + $0x38] sm:$0xff]
        %v7258 = vld [vmem:[%s2920 + $0x40] sm:$0xff]
        %v7259 = vld [vmem:[%s3343] sm:$0xff]
        %v7260 = vld [vmem:[%s3343 + $0x8] sm:$0xff]
        %v7261 = vld [vmem:[%s3343 + $0x10] sm:$0xff]
        %v7262 = vld [vmem:[%s3343 + $0x18] sm:$0xff]
        %v7263 = vld [vmem:[%s3343 + $0x20] sm:$0xff]
        %v7264 = vld [vmem:[%s3343 + $0x28] sm:$0xff]
        %v7265 = vld [vmem:[%s3343 + $0x30] sm:$0xff]
        %v7266 = vld [vmem:[%s3343 + $0x38] sm:$0xff]
        %v7267 = vld [vmem:[%s3343 + $0x40] sm:$0xff]
        %7277 = vst [vmem:[#allocation1] ss:$2 sm:$0xff] %v7241
        %s7278 = scalar_lea.vmem [#allocation1], 16
        %7279 = vst [vmem:[%s7278] ss:$2 sm:$0xff] %v7242
        %s7280 = scalar_lea.vmem [#allocation1], 32
        %7281 = vst [vmem:[%s7280] ss:$2 sm:$0xff] %v7243
        %s7282 = scalar_lea.vmem [#allocation1], 48
        %7283 = vst [vmem:[%s7282] ss:$2 sm:$0xff] %v7244
        %v7284 = vld.sshfl [vmem:[#allocation1] sm:$0xff pattern:$0x75316420]
        %v7285 = vld.sshfl [vmem:[#allocation1 + $0x8] sm:$0xff pattern:$0x75316420]
        %v7286 = vld.sshfl [vmem:[#allocation1 + $0x10] sm:$0xff pattern:$0x75316420]
        %v7287 = vld.sshfl [vmem:[#allocation1 + $0x18] sm:$0xff pattern:$0x75316420]
        %v7288 = vld.sshfl [vmem:[#allocation1 + $0x20] sm:$0xff pattern:$0x75316420]
        %v7289 = vld.sshfl [vmem:[#allocation1 + $0x28] sm:$0xff pattern:$0x75316420]
        %v7290 = vld.sshfl [vmem:[#allocation1 + $0x30] sm:$0xff pattern:$0x75316420]
        %v7291 = vld.sshfl [vmem:[#allocation1 + $0x38] sm:$0xff pattern:$0x75316420]
        %7292 = vst [vmem:[#allocation1] ss:$2 sm:$0xff] %v7245
        %7293 = vst [vmem:[%s7278] ss:$2 sm:$0xff] %v7246
        %7294 = vst [vmem:[%s7280] ss:$2 sm:$0xff] %v7247
        %7295 = vst [vmem:[%s7282] ss:$2 sm:$0xff] %v7248
        %v7296 = vld.sshfl [vmem:[#allocation1] sm:$0xff pattern:$0x75316420]
        %v7297 = vld.sshfl [vmem:[#allocation1 + $0x8] sm:$0xff pattern:$0x75316420]
        %v7298 = vld.sshfl [vmem:[#allocation1 + $0x10] sm:$0xff pattern:$0x75316420]
        %v7299 = vld.sshfl [vmem:[#allocation1 + $0x18] sm:$0xff pattern:$0x75316420]
        %v7300 = vld.sshfl [vmem:[#allocation1 + $0x20] sm:$0xff pattern:$0x75316420]
        %v7301 = vld.sshfl [vmem:[#allocation1 + $0x28] sm:$0xff pattern:$0x75316420]
        %v7302 = vld.sshfl [vmem:[#allocation1 + $0x30] sm:$0xff pattern:$0x75316420]
        %v7303 = vld.sshfl [vmem:[#allocation1 + $0x38] sm:$0xff pattern:$0x75316420]
        %7304 = vst [vmem:[#allocation1] ss:$2 sm:$0xff] %v7249
        %v7305 = vld.sshfl [vmem:[#allocation1] sm:$0xff pattern:$0x75316420]
        %v7306 = vld.sshfl [vmem:[#allocation1 + $0x8] sm:$0xff pattern:$0x75316420]
        %7334 = vst [vmem:[#allocation1] ss:$2 sm:$0xff] %v7250
        %s7335 = scalar_lea.vmem [#allocation1], 16
        %7336 = vst [vmem:[%s7335] ss:$2 sm:$0xff] %v7251
        %s7337 = scalar_lea.vmem [#allocation1], 32
        %7338 = vst [vmem:[%s7337] ss:$2 sm:$0xff] %v7252
        %s7339 = scalar_lea.vmem [#allocation1], 48
        %7340 = vst [vmem:[%s7339] ss:$2 sm:$0xff] %v7253
        %v7341 = vld.sshfl [vmem:[#allocation1] sm:$0xff pattern:$0x75316420]
        %v7342 = vld.sshfl [vmem:[#allocation1 + $0x8] sm:$0xff pattern:$0x75316420]
        %v7343 = vld.sshfl [vmem:[#allocation1 + $0x10] sm:$0xff pattern:$0x75316420]
        %v7344 = vld.sshfl [vmem:[#allocation1 + $0x18] sm:$0xff pattern:$0x75316420]
        %v7345 = vld.sshfl [vmem:[#allocation1 + $0x20] sm:$0xff pattern:$0x75316420]
        %v7346 = vld.sshfl [vmem:[#allocation1 + $0x28] sm:$0xff pattern:$0x75316420]
        %v7347 = vld.sshfl [vmem:[#allocation1 + $0x30] sm:$0xff pattern:$0x75316420]
        %v7348 = vld.sshfl [vmem:[#allocation1 + $0x38] sm:$0xff pattern:$0x75316420]
        %7349 = vst [vmem:[#allocation1] ss:$2 sm:$0xff] %v7254
        %7350 = vst [vmem:[%s7335] ss:$2 sm:$0xff] %v7255
        %7351 = vst [vmem:[%s7337] ss:$2 sm:$0xff] %v7256
        %7352 = vst [vmem:[%s7339] ss:$2 sm:$0xff] %v7257
        %v7353 = vld.sshfl [vmem:[#allocation1] sm:$0xff pattern:$0x75316420]
        %v7354 = vld.sshfl [vmem:[#allocation1 + $0x8] sm:$0xff pattern:$0x75316420]
        %v7355 = vld.sshfl [vmem:[#allocation1 + $0x10] sm:$0xff pattern:$0x75316420]
        %v7356 = vld.sshfl [vmem:[#allocation1 + $0x18] sm:$0xff pattern:$0x75316420]
        %v7357 = vld.sshfl [vmem:[#allocation1 + $0x20] sm:$0xff pattern:$0x75316420]
        %v7358 = vld.sshfl [vmem:[#allocation1 + $0x28] sm:$0xff pattern:$0x75316420]
        %v7359 = vld.sshfl [vmem:[#allocation1 + $0x30] sm:$0xff pattern:$0x75316420]
        %v7360 = vld.sshfl [vmem:[#allocation1 + $0x38] sm:$0xff pattern:$0x75316420]
        %7361 = vst [vmem:[#allocation1] ss:$2 sm:$0xff] %v7258
        %v7362 = vld.sshfl [vmem:[#allocation1] sm:$0xff pattern:$0x75316420]
        %v7363 = vld.sshfl [vmem:[#allocation1 + $0x8] sm:$0xff pattern:$0x75316420]
        %7391 = vst [vmem:[#allocation1] ss:$2 sm:$0xff] %v7259
        %s7392 = scalar_lea.vmem [#allocation1], 16
        %7393 = vst [vmem:[%s7392] ss:$2 sm:$0xff] %v7260
        %s7394 = scalar_lea.vmem [#allocation1], 32
        %7395 = vst [vmem:[%s7394] ss:$2 sm:$0xff] %v7261
        %s7396 = scalar_lea.vmem [#allocation1], 48
        %7397 = vst [vmem:[%s7396] ss:$2 sm:$0xff] %v7262
        %v7398 = vld.sshfl [vmem:[#allocation1] sm:$0xff pattern:$0x75316420]
        %v7399 = vld.sshfl [vmem:[#allocation1 + $0x8] sm:$0xff pattern:$0x75316420]
        %v7400 = vld.sshfl [vmem:[#allocation1 + $0x10] sm:$0xff pattern:$0x75316420]
        %v7401 = vld.sshfl [vmem:[#allocation1 + $0x18] sm:$0xff pattern:$0x75316420]
        %v7402 = vld.sshfl [vmem:[#allocation1 + $0x20] sm:$0xff pattern:$0x75316420]
        %v7403 = vld.sshfl [vmem:[#allocation1 + $0x28] sm:$0xff pattern:$0x75316420]
        %v7404 = vld.sshfl [vmem:[#allocation1 + $0x30] sm:$0xff pattern:$0x75316420]
        %v7405 = vld.sshfl [vmem:[#allocation1 + $0x38] sm:$0xff pattern:$0x75316420]
        %7406 = vst [vmem:[#allocation1] ss:$2 sm:$0xff] %v7263
        %7407 = vst [vmem:[%s7392] ss:$2 sm:$0xff] %v7264
        %7408 = vst [vmem:[%s7394] ss:$2 sm:$0xff] %v7265
        %7409 = vst [vmem:[%s7396] ss:$2 sm:$0xff] %v7266
        %v7410 = vld.sshfl [vmem:[#allocation1] sm:$0xff pattern:$0x75316420]
        %v7411 = vld.sshfl [vmem:[#allocation1 + $0x8] sm:$0xff pattern:$0x75316420]
        %v7412 = vld.sshfl [vmem:[#allocation1 + $0x10] sm:$0xff pattern:$0x75316420]
        %v7413 = vld.sshfl [vmem:[#allocation1 + $0x18] sm:$0xff pattern:$0x75316420]
        %v7414 = vld.sshfl [vmem:[#allocation1 + $0x20] sm:$0xff pattern:$0x75316420]
        %v7415 = vld.sshfl [vmem:[#allocation1 + $0x28] sm:$0xff pattern:$0x75316420]
        %v7416 = vld.sshfl [vmem:[#allocation1 + $0x30] sm:$0xff pattern:$0x75316420]
        %v7417 = vld.sshfl [vmem:[#allocation1 + $0x38] sm:$0xff pattern:$0x75316420]
        %7418 = vst [vmem:[#allocation1] ss:$2 sm:$0xff] %v7267
        %v7419 = vld.sshfl [vmem:[#allocation1] sm:$0xff pattern:$0x75316420]
        %v7420 = vld.sshfl [vmem:[#allocation1 + $0x8] sm:$0xff pattern:$0x75316420]
        %v7439 = vsel %vm4822, %v7284, 0.0
        %v7440 = vrot.slane %v7286, 7
        %v7441 = vsel %vm4825, %v7440, %v7439
        %v7442 = vrot.slane %v7288, 6
        %v7443 = vsel %vm4828, %v7442, %v7441
        %v7444 = vrot.slane %v7290, 5
        %v7445 = vsel %vm4831, %v7444, %v7443
        %v7446 = vrot.slane %v7296, 4
        %v7447 = vsel %vm4834, %v7446, %v7445
        %v7448 = vrot.slane %v7298, 3
        %v7449 = vsel %vm4837, %v7448, %v7447
        %v7450 = vrot.slane %v7300, 2
        %v7451 = vsel %vm4840, %v7450, %v7449
        %v7452 = vrot.slane %v7302, 1
        %v7453 = vsel %vm4843, %v7452, %v7451
        %v7454 = vsel %vm4822, %v7285, 0.0
        %v7455 = vrot.slane %v7287, 7
        %v7456 = vsel %vm4825, %v7455, %v7454
        %v7457 = vrot.slane %v7289, 6
        %v7458 = vsel %vm4828, %v7457, %v7456
        %v7459 = vrot.slane %v7291, 5
        %v7460 = vsel %vm4831, %v7459, %v7458
        %v7461 = vrot.slane %v7297, 4
        %v7462 = vsel %vm4834, %v7461, %v7460
        %v7463 = vrot.slane %v7299, 3
        %v7464 = vsel %vm4837, %v7463, %v7462
        %v7465 = vrot.slane %v7301, 2
        %v7466 = vsel %vm4840, %v7465, %v7464
        %v7467 = vrot.slane %v7303, 1
        %v7468 = vsel %vm4843, %v7467, %v7466
        %v7469 = vsel %vm4822, %v7305, 0.0
        %v7470 = vrot.slane %v7341, 7
        %v7471 = vsel %vm4825, %v7470, %v7469
        %v7472 = vrot.slane %v7343, 6
        %v7473 = vsel %vm4828, %v7472, %v7471
        %v7474 = vrot.slane %v7345, 5
        %v7475 = vsel %vm4831, %v7474, %v7473
        %v7476 = vrot.slane %v7347, 4
        %v7477 = vsel %vm4834, %v7476, %v7475
        %v7478 = vrot.slane %v7353, 3
        %v7479 = vsel %vm4837, %v7478, %v7477
        %v7480 = vrot.slane %v7355, 2
        %v7481 = vsel %vm4840, %v7480, %v7479
        %v7482 = vrot.slane %v7357, 1
        %v7483 = vsel %vm4843, %v7482, %v7481
        %v7484 = vsel %vm4822, %v7306, 0.0
        %v7485 = vrot.slane %v7342, 7
        %v7486 = vsel %vm4825, %v7485, %v7484
        %v7487 = vrot.slane %v7344, 6
        %v7488 = vsel %vm4828, %v7487, %v7486
        %v7489 = vrot.slane %v7346, 5
        %v7490 = vsel %vm4831, %v7489, %v7488
        %v7491 = vrot.slane %v7348, 4
        %v7492 = vsel %vm4834, %v7491, %v7490
        %v7493 = vrot.slane %v7354, 3
        %v7494 = vsel %vm4837, %v7493, %v7492
        %v7495 = vrot.slane %v7356, 2
        %v7496 = vsel %vm4840, %v7495, %v7494
        %v7497 = vrot.slane %v7358, 1
        %v7498 = vsel %vm4843, %v7497, %v7496
        %v7499 = vsel %vm4822, %v7359, 0.0
        %v7500 = vrot.slane %v7362, 7
        %v7501 = vsel %vm4825, %v7500, %v7499
        %v7502 = vrot.slane %v7398, 6
        %v7503 = vsel %vm4828, %v7502, %v7501
        %v7504 = vrot.slane %v7400, 5
        %v7505 = vsel %vm4831, %v7504, %v7503
        %v7506 = vrot.slane %v7402, 4
        %v7507 = vsel %vm4834, %v7506, %v7505
        %v7508 = vrot.slane %v7404, 3
        %v7509 = vsel %vm4837, %v7508, %v7507
        %v7510 = vrot.slane %v7410, 2
        %v7511 = vsel %vm4840, %v7510, %v7509
        %v7512 = vrot.slane %v7412, 1
        %v7513 = vsel %vm4843, %v7512, %v7511
        %v7514 = vsel %vm4822, %v7360, 0.0
        %v7515 = vrot.slane %v7363, 7
        %v7516 = vsel %vm4825, %v7515, %v7514
        %v7517 = vrot.slane %v7399, 6
        %v7518 = vsel %vm4828, %v7517, %v7516
        %v7519 = vrot.slane %v7401, 5
        %v7520 = vsel %vm4831, %v7519, %v7518
        %v7521 = vrot.slane %v7403, 4
        %v7522 = vsel %vm4834, %v7521, %v7520
        %v7523 = vrot.slane %v7405, 3
        %v7524 = vsel %vm4837, %v7523, %v7522
        %v7525 = vrot.slane %v7411, 2
        %v7526 = vsel %vm4840, %v7525, %v7524
        %v7527 = vrot.slane %v7413, 1
        %v7528 = vsel %vm4843, %v7527, %v7526
        %v7529 = vsel %vm4822, %v7414, 0.0
        %v7530 = vrot.slane %v7416, 7
        %v7531 = vsel %vm4825, %v7530, %v7529
        %v7532 = vrot.slane %v7419, 6
        %v7533 = vsel %vm4828, %v7532, %v7531
        %v7534 = vrot.slane %v7284, 6
        %v7535 = vsel %vm4831, %v7534, %v7533
        %v7536 = vrot.slane %v7286, 5
        %v7537 = vsel %vm4834, %v7536, %v7535
        %v7538 = vrot.slane %v7288, 4
        %v7539 = vsel %vm4837, %v7538, %v7537
        %v7540 = vrot.slane %v7290, 3
        %v7541 = vsel %vm4840, %v7540, %v7539
        %v7542 = vrot.slane %v7296, 2
        %v7543 = vsel %vm4843, %v7542, %v7541
        %v7544 = vsel %vm4822, %v7415, 0.0
        %v7545 = vrot.slane %v7417, 7
        %v7546 = vsel %vm4825, %v7545, %v7544
        %v7547 = vrot.slane %v7420, 6
        %v7548 = vsel %vm4828, %v7547, %v7546
        %v7549 = vrot.slane %v7285, 6
        %v7550 = vsel %vm4831, %v7549, %v7548
        %v7551 = vrot.slane %v7287, 5
        %v7552 = vsel %vm4834, %v7551, %v7550
        %v7553 = vrot.slane %v7289, 4
        %v7554 = vsel %vm4837, %v7553, %v7552
        %v7555 = vrot.slane %v7291, 3
        %v7556 = vsel %vm4840, %v7555, %v7554
        %v7557 = vrot.slane %v7297, 2
        %v7558 = vsel %vm4843, %v7557, %v7556
        %v7559 = vrot.slane %v7298, 1
        %v7560 = vsel %vm4822, %v7559, 0.0
        %v7561 = vsel %vm4825, %v7300, %v7560
        %v7562 = vrot.slane %v7302, 7
        %v7563 = vsel %vm4828, %v7562, %v7561
        %v7564 = vrot.slane %v7305, 6
        %v7565 = vsel %vm4831, %v7564, %v7563
        %v7566 = vrot.slane %v7341, 5
        %v7567 = vsel %vm4834, %v7566, %v7565
        %v7568 = vrot.slane %v7343, 4
        %v7569 = vsel %vm4837, %v7568, %v7567
        %v7570 = vrot.slane %v7345, 3
        %v7571 = vsel %vm4840, %v7570, %v7569
        %v7572 = vrot.slane %v7347, 2
        %v7573 = vsel %vm4843, %v7572, %v7571
        %v7574 = vrot.slane %v7299, 1
        %v7575 = vsel %vm4822, %v7574, 0.0
        %v7576 = vsel %vm4825, %v7301, %v7575
        %v7577 = vrot.slane %v7303, 7
        %v7578 = vsel %vm4828, %v7577, %v7576
        %v7579 = vrot.slane %v7306, 6
        %v7580 = vsel %vm4831, %v7579, %v7578
        %v7581 = vrot.slane %v7342, 5
        %v7582 = vsel %vm4834, %v7581, %v7580
        %v7583 = vrot.slane %v7344, 4
        %v7584 = vsel %vm4837, %v7583, %v7582
        %v7585 = vrot.slane %v7346, 3
        %v7586 = vsel %vm4840, %v7585, %v7584
        %v7587 = vrot.slane %v7348, 2
        %v7588 = vsel %vm4843, %v7587, %v7586
        %v7589 = vrot.slane %v7353, 1
        %v7590 = vsel %vm4822, %v7589, 0.0
        %v7591 = vsel %vm4825, %v7355, %v7590
        %v7592 = vrot.slane %v7357, 7
        %v7593 = vsel %vm4828, %v7592, %v7591
        %v7594 = vrot.slane %v7359, 6
        %v7595 = vsel %vm4831, %v7594, %v7593
        %v7596 = vrot.slane %v7362, 5
        %v7597 = vsel %vm4834, %v7596, %v7595
        %v7598 = vrot.slane %v7398, 4
        %v7599 = vsel %vm4837, %v7598, %v7597
        %v7600 = vrot.slane %v7400, 3
        %v7601 = vsel %vm4840, %v7600, %v7599
        %v7602 = vrot.slane %v7402, 2
        %v7603 = vsel %vm4843, %v7602, %v7601
        %v7604 = vrot.slane %v7354, 1
        %v7605 = vsel %vm4822, %v7604, 0.0
        %v7606 = vsel %vm4825, %v7356, %v7605
        %v7607 = vrot.slane %v7358, 7
        %v7608 = vsel %vm4828, %v7607, %v7606
        %v7609 = vrot.slane %v7360, 6
        %v7610 = vsel %vm4831, %v7609, %v7608
        %v7611 = vrot.slane %v7363, 5
        %v7612 = vsel %vm4834, %v7611, %v7610
        %v7613 = vrot.slane %v7399, 4
        %v7614 = vsel %vm4837, %v7613, %v7612
        %v7615 = vrot.slane %v7401, 3
        %v7616 = vsel %vm4840, %v7615, %v7614
        %v7617 = vrot.slane %v7403, 2
        %v7618 = vsel %vm4843, %v7617, %v7616
        %v7619 = vrot.slane %v7404, 1
        %v7620 = vsel %vm4822, %v7619, 0.0
        %v7621 = vsel %vm4825, %v7410, %v7620
        %v7622 = vrot.slane %v7412, 7
        %v7623 = vsel %vm4828, %v7622, %v7621
        %v7624 = vrot.slane %v7414, 6
        %v7625 = vsel %vm4831, %v7624, %v7623
        %v7626 = vrot.slane %v7416, 5
        %v7627 = vsel %vm4834, %v7626, %v7625
        %v7628 = vrot.slane %v7419, 4
        %v7629 = vsel %vm4837, %v7628, %v7627
        %v7630 = vrot.slane %v7284, 4
        %v7631 = vsel %vm4840, %v7630, %v7629
        %v7632 = vrot.slane %v7286, 3
        %v7633 = vsel %vm4843, %v7632, %v7631
        %v7634 = vrot.slane %v7405, 1
        %v7635 = vsel %vm4822, %v7634, 0.0
        %v7636 = vsel %vm4825, %v7411, %v7635
        %v7637 = vrot.slane %v7413, 7
        %v7638 = vsel %vm4828, %v7637, %v7636
        %v7639 = vrot.slane %v7415, 6
        %v7640 = vsel %vm4831, %v7639, %v7638
        %v7641 = vrot.slane %v7417, 5
        %v7642 = vsel %vm4834, %v7641, %v7640
        %v7643 = vrot.slane %v7420, 4
        %v7644 = vsel %vm4837, %v7643, %v7642
        %v7645 = vrot.slane %v7285, 4
        %v7646 = vsel %vm4840, %v7645, %v7644
        %v7647 = vrot.slane %v7287, 3
        %v7648 = vsel %vm4843, %v7647, %v7646
        %v7649 = vrot.slane %v7288, 2
        %v7650 = vsel %vm4822, %v7649, 0.0
        %v7651 = vrot.slane %v7290, 1
        %v7652 = vsel %vm4825, %v7651, %v7650
        %v7653 = vsel %vm4828, %v7296, %v7652
        %v7654 = vrot.slane %v7298, 7
        %v7655 = vsel %vm4831, %v7654, %v7653
        %v7656 = vrot.slane %v7300, 6
        %v7657 = vsel %vm4834, %v7656, %v7655
        %v7658 = vrot.slane %v7302, 5
        %v7659 = vsel %vm4837, %v7658, %v7657
        %v7660 = vrot.slane %v7305, 4
        %v7661 = vsel %vm4840, %v7660, %v7659
        %v7662 = vrot.slane %v7341, 3
        %v7663 = vsel %vm4843, %v7662, %v7661
        %v7664 = vrot.slane %v7289, 2
        %v7665 = vsel %vm4822, %v7664, 0.0
        %v7666 = vrot.slane %v7291, 1
        %v7667 = vsel %vm4825, %v7666, %v7665
        %v7668 = vsel %vm4828, %v7297, %v7667
        %v7669 = vrot.slane %v7299, 7
        %v7670 = vsel %vm4831, %v7669, %v7668
        %v7671 = vrot.slane %v7301, 6
        %v7672 = vsel %vm4834, %v7671, %v7670
        %v7673 = vrot.slane %v7303, 5
        %v7674 = vsel %vm4837, %v7673, %v7672
        %v7675 = vrot.slane %v7306, 4
        %v7676 = vsel %vm4840, %v7675, %v7674
        %v7677 = vrot.slane %v7342, 3
        %v7678 = vsel %vm4843, %v7677, %v7676
        %v7679 = vrot.slane %v7343, 2
        %v7680 = vsel %vm4822, %v7679, 0.0
        %v7681 = vrot.slane %v7345, 1
        %v7682 = vsel %vm4825, %v7681, %v7680
        %v7683 = vsel %vm4828, %v7347, %v7682
        %v7684 = vrot.slane %v7353, 7
        %v7685 = vsel %vm4831, %v7684, %v7683
        %v7686 = vrot.slane %v7355, 6
        %v7687 = vsel %vm4834, %v7686, %v7685
        %v7688 = vrot.slane %v7357, 5
        %v7689 = vsel %vm4837, %v7688, %v7687
        %v7690 = vrot.slane %v7359, 4
        %v7691 = vsel %vm4840, %v7690, %v7689
        %v7692 = vrot.slane %v7362, 3
        %v7693 = vsel %vm4843, %v7692, %v7691
        %v7694 = vrot.slane %v7344, 2
        %v7695 = vsel %vm4822, %v7694, 0.0
        %v7696 = vrot.slane %v7346, 1
        %v7697 = vsel %vm4825, %v7696, %v7695
        %v7698 = vsel %vm4828, %v7348, %v7697
        %v7699 = vrot.slane %v7354, 7
        %v7700 = vsel %vm4831, %v7699, %v7698
        %v7701 = vrot.slane %v7356, 6
        %v7702 = vsel %vm4834, %v7701, %v7700
        %v7703 = vrot.slane %v7358, 5
        %v7704 = vsel %vm4837, %v7703, %v7702
        %v7705 = vrot.slane %v7360, 4
        %v7706 = vsel %vm4840, %v7705, %v7704
        %v7707 = vrot.slane %v7363, 3
        %v7708 = vsel %vm4843, %v7707, %v7706
        %v7709 = vrot.slane %v7398, 2
        %v7710 = vsel %vm4822, %v7709, 0.0
        %v7711 = vrot.slane %v7400, 1
        %v7712 = vsel %vm4825, %v7711, %v7710
        %v7713 = vsel %vm4828, %v7402, %v7712
        %v7714 = vrot.slane %v7404, 7
        %v7715 = vsel %vm4831, %v7714, %v7713
        %v7716 = vrot.slane %v7410, 6
        %v7717 = vsel %vm4834, %v7716, %v7715
        %v7718 = vrot.slane %v7412, 5
        %v7719 = vsel %vm4837, %v7718, %v7717
        %v7720 = vrot.slane %v7414, 4
        %v7721 = vsel %vm4840, %v7720, %v7719
        %v7722 = vrot.slane %v7416, 3
        %v7723 = vsel %vm4843, %v7722, %v7721
        %v7724 = vrot.slane %v7399, 2
        %v7725 = vsel %vm4822, %v7724, 0.0
        %v7726 = vrot.slane %v7401, 1
        %v7727 = vsel %vm4825, %v7726, %v7725
        %v7728 = vsel %vm4828, %v7403, %v7727
        %v7729 = vrot.slane %v7405, 7
        %v7730 = vsel %vm4831, %v7729, %v7728
        %v7731 = vrot.slane %v7411, 6
        %v7732 = vsel %vm4834, %v7731, %v7730
        %v7733 = vrot.slane %v7413, 5
        %v7734 = vsel %vm4837, %v7733, %v7732
        %v7735 = vrot.slane %v7415, 4
        %v7736 = vsel %vm4840, %v7735, %v7734
        %v7737 = vrot.slane %v7417, 3
        %v7738 = vsel %vm4843, %v7737, %v7736
        %v7739 = vrot.slane %v7419, 2
        %v7740 = vsel %vm4822, %v7739, 0.0
        %v7741 = vrot.slane %v7284, 2
        %v7742 = vsel %vm4825, %v7741, %v7740
        %v7743 = vrot.slane %v7286, 1
        %v7744 = vsel %vm4828, %v7743, %v7742
        %v7745 = vsel %vm4831, %v7288, %v7744
        %v7746 = vrot.slane %v7290, 7
        %v7747 = vsel %vm4834, %v7746, %v7745
        %v7748 = vrot.slane %v7296, 6
        %v7749 = vsel %vm4837, %v7748, %v7747
        %v7750 = vrot.slane %v7298, 5
        %v7751 = vsel %vm4840, %v7750, %v7749
        %v7752 = vrot.slane %v7300, 4
        %v7753 = vsel %vm4843, %v7752, %v7751
        %v7754 = vrot.slane %v7420, 2
        %v7755 = vsel %vm4822, %v7754, 0.0
        %v7756 = vrot.slane %v7285, 2
        %v7757 = vsel %vm4825, %v7756, %v7755
        %v7758 = vrot.slane %v7287, 1
        %v7759 = vsel %vm4828, %v7758, %v7757
        %v7760 = vsel %vm4831, %v7289, %v7759
        %v7761 = vrot.slane %v7291, 7
        %v7762 = vsel %vm4834, %v7761, %v7760
        %v7763 = vrot.slane %v7297, 6
        %v7764 = vsel %vm4837, %v7763, %v7762
        %v7765 = vrot.slane %v7299, 5
        %v7766 = vsel %vm4840, %v7765, %v7764
        %v7767 = vrot.slane %v7301, 4
        %v7768 = vsel %vm4843, %v7767, %v7766
        %v7769 = vrot.slane %v7302, 3
        %v7770 = vsel %vm4822, %v7769, 0.0
        %v7771 = vrot.slane %v7305, 2
        %v7772 = vsel %vm4825, %v7771, %v7770
        %v7773 = vrot.slane %v7341, 1
        %v7774 = vsel %vm4828, %v7773, %v7772
        %v7775 = vsel %vm4831, %v7343, %v7774
        %v7776 = vrot.slane %v7345, 7
        %v7777 = vsel %vm4834, %v7776, %v7775
        %v7778 = vrot.slane %v7347, 6
        %v7779 = vsel %vm4837, %v7778, %v7777
        %v7780 = vrot.slane %v7353, 5
        %v7781 = vsel %vm4840, %v7780, %v7779
        %v7782 = vrot.slane %v7355, 4
        %v7783 = vsel %vm4843, %v7782, %v7781
        %v7784 = vrot.slane %v7303, 3
        %v7785 = vsel %vm4822, %v7784, 0.0
        %v7786 = vrot.slane %v7306, 2
        %v7787 = vsel %vm4825, %v7786, %v7785
        %v7788 = vrot.slane %v7342, 1
        %v7789 = vsel %vm4828, %v7788, %v7787
        %v7790 = vsel %vm4831, %v7344, %v7789
        %v7791 = vrot.slane %v7346, 7
        %v7792 = vsel %vm4834, %v7791, %v7790
        %v7793 = vrot.slane %v7348, 6
        %v7794 = vsel %vm4837, %v7793, %v7792
        %v7795 = vrot.slane %v7354, 5
        %v7796 = vsel %vm4840, %v7795, %v7794
        %v7797 = vrot.slane %v7356, 4
        %v7798 = vsel %vm4843, %v7797, %v7796
        %v7799 = vrot.slane %v7357, 3
        %v7800 = vsel %vm4822, %v7799, 0.0
        %v7801 = vrot.slane %v7359, 2
        %v7802 = vsel %vm4825, %v7801, %v7800
        %v7803 = vrot.slane %v7362, 1
        %v7804 = vsel %vm4828, %v7803, %v7802
        %v7805 = vsel %vm4831, %v7398, %v7804
        %v7806 = vrot.slane %v7400, 7
        %v7807 = vsel %vm4834, %v7806, %v7805
        %v7808 = vrot.slane %v7402, 6
        %v7809 = vsel %vm4837, %v7808, %v7807
        %v7810 = vrot.slane %v7404, 5
        %v7811 = vsel %vm4840, %v7810, %v7809
        %v7812 = vrot.slane %v7410, 4
        %v7813 = vsel %vm4843, %v7812, %v7811
        %v7814 = vrot.slane %v7358, 3
        %v7815 = vsel %vm4822, %v7814, 0.0
        %v7816 = vrot.slane %v7360, 2
        %v7817 = vsel %vm4825, %v7816, %v7815
        %v7818 = vrot.slane %v7363, 1
        %v7819 = vsel %vm4828, %v7818, %v7817
        %v7820 = vsel %vm4831, %v7399, %v7819
        %v7821 = vrot.slane %v7401, 7
        %v7822 = vsel %vm4834, %v7821, %v7820
        %v7823 = vrot.slane %v7403, 6
        %v7824 = vsel %vm4837, %v7823, %v7822
        %v7825 = vrot.slane %v7405, 5
        %v7826 = vsel %vm4840, %v7825, %v7824
        %v7827 = vrot.slane %v7411, 4
        %v7828 = vsel %vm4843, %v7827, %v7826
        %v7829 = vrot.slane %v7412, 3
        %v7830 = vsel %vm4822, %v7829, 0.0
        %v7831 = vrot.slane %v7414, 2
        %v7832 = vsel %vm4825, %v7831, %v7830
        %v7833 = vrot.slane %v7416, 1
        %v7834 = vsel %vm4828, %v7833, %v7832
        %v7835 = vsel %vm4831, %v7419, %v7834
        %v7836 = vrot.slane %v7413, 3
        %v7837 = vsel %vm4822, %v7836, 0.0
        %v7838 = vrot.slane %v7415, 2
        %v7839 = vsel %vm4825, %v7838, %v7837
        %v7840 = vrot.slane %v7417, 1
        %v7841 = vsel %vm4828, %v7840, %v7839
        %v7842 = vsel %vm4831, %v7420, %v7841
        %v7844 = vsel %vm787, %v7835, 0
        %v7847 = vsel %vm787, %v7842, 0
        %7849 = vmatpush.msra.mxu0 0.0
        %7850 = vmatpush.msra.mxu0 0.0
        %7851 = vmatpush.msra.mxu0 %v7844
        %7852 = vmatpush.msra.mxu0 %v7813
        %7853 = vmatpush.msra.mxu0 %v7783
        %7854 = vmatpush.msra.mxu0 %v7753
        %7855 = vmatpush.msra.mxu0 %v7723
        %7856 = vmatpush.msra.mxu0 %v7693
        %7857 = vmatpush.msra.mxu0 %v7663
        %7858 = vmatpush.msra.mxu0 %v7633
        %7859 = vmatpush.msra.mxu0 %v7603
        %7860 = vmatpush.msra.mxu0 %v7573
        %7861 = vmatpush.msra.mxu0 %v7543
        %7862 = vmatpush.msra.mxu0 %v7513
        %7863 = vmatpush.msra.mxu0 %v7483
        %7864 = vmatpush.msra.mxu0 %v7453
        %7865 = vmatmul.f32.gmra.mxu0 %v5241
        %v7866 = vpop.f32.mrf.mxu0
        %v7867 = vadd.f32 %v5237, %v7866
        %7868 = vdwg.mxu0
        %7869 = vmatpush.msra.mxu0 0.0
        %7870 = vmatpush.msra.mxu0 0.0
        %7871 = vmatpush.msra.mxu0 %v7847
        %7872 = vmatpush.msra.mxu0 %v7828
        %7873 = vmatpush.msra.mxu0 %v7798
        %7874 = vmatpush.msra.mxu0 %v7768
        %7875 = vmatpush.msra.mxu0 %v7738
        %7876 = vmatpush.msra.mxu0 %v7708
        %7877 = vmatpush.msra.mxu0 %v7678
        %7878 = vmatpush.msra.mxu0 %v7648
        %7879 = vmatpush.msra.mxu0 %v7618
        %7880 = vmatpush.msra.mxu0 %v7588
        %7881 = vmatpush.msra.mxu0 %v7558
        %7882 = vmatpush.msra.mxu0 %v7528
        %7883 = vmatpush.msra.mxu0 %v7498
        %7884 = vmatpush.msra.mxu0 %v7468
        %7885 = vmatmul.f32.gmra.mxu0 %v5241
        %v7886 = vpop.f32.mrf.mxu0
        %v7887 = vadd.f32 %v5237, %v7886
        %7888 = vdwg.mxu0
        %7889 = vst [vmem:[%s245 + $0x40] sm:$0xff] %v7867
        %7890 = vst [vmem:[%s245 + $0x48] sm:$0xff] %v7887
        %v7891 = vld [vmem:[%s2920] sm:$0xff]
        %v7892 = vld [vmem:[%s2920 + $0x8] sm:$0xff]
        %v7893 = vld [vmem:[%s2920 + $0x10] sm:$0xff]
        %v7894 = vld [vmem:[%s2920 + $0x18] sm:$0xff]
        %v7895 = vld [vmem:[%s2920 + $0x20] sm:$0xff]
        %v7896 = vld [vmem:[%s2920 + $0x28] sm:$0xff]
        %v7897 = vld [vmem:[%s2920 + $0x30] sm:$0xff]
        %v7898 = vld [vmem:[%s2920 + $0x38] sm:$0xff]
        %v7899 = vld [vmem:[%s2920 + $0x40] sm:$0xff]
        %v7900 = vld [vmem:[%s3343] sm:$0xff]
        %v7901 = vld [vmem:[%s3343 + $0x8] sm:$0xff]
        %v7902 = vld [vmem:[%s3343 + $0x10] sm:$0xff]
        %v7903 = vld [vmem:[%s3343 + $0x18] sm:$0xff]
        %v7904 = vld [vmem:[%s3343 + $0x20] sm:$0xff]
        %v7905 = vld [vmem:[%s3343 + $0x28] sm:$0xff]
        %v7906 = vld [vmem:[%s3343 + $0x30] sm:$0xff]
        %v7907 = vld [vmem:[%s3343 + $0x38] sm:$0xff]
        %v7908 = vld [vmem:[%s3343 + $0x40] sm:$0xff]
        %v7909 = vld [vmem:[%s3766] sm:$0xff]
        %v7910 = vld [vmem:[%s3766 + $0x8] sm:$0xff]
        %v7911 = vld [vmem:[%s3766 + $0x10] sm:$0xff]
        %v7912 = vld [vmem:[%s3766 + $0x18] sm:$0xff]
        %v7913 = vld [vmem:[%s3766 + $0x20] sm:$0xff]
        %v7914 = vld [vmem:[%s3766 + $0x28] sm:$0xff]
        %v7915 = vld [vmem:[%s3766 + $0x30] sm:$0xff]
        %v7916 = vld [vmem:[%s3766 + $0x38] sm:$0xff]
        %v7917 = vld [vmem:[%s3766 + $0x40] sm:$0xff]
        %7927 = vst [vmem:[#allocation1] ss:$2 sm:$0xff] %v7891
        %s7928 = scalar_lea.vmem [#allocation1], 16
        %7929 = vst [vmem:[%s7928] ss:$2 sm:$0xff] %v7892
        %s7930 = scalar_lea.vmem [#allocation1], 32
        %7931 = vst [vmem:[%s7930] ss:$2 sm:$0xff] %v7893
        %s7932 = scalar_lea.vmem [#allocation1], 48
        %7933 = vst [vmem:[%s7932] ss:$2 sm:$0xff] %v7894
        %v7934 = vld.sshfl [vmem:[#allocation1] sm:$0xff pattern:$0x75316420]
        %v7935 = vld.sshfl [vmem:[#allocation1 + $0x8] sm:$0xff pattern:$0x75316420]
        %v7936 = vld.sshfl [vmem:[#allocation1 + $0x10] sm:$0xff pattern:$0x75316420]
        %v7937 = vld.sshfl [vmem:[#allocation1 + $0x18] sm:$0xff pattern:$0x75316420]
        %v7938 = vld.sshfl [vmem:[#allocation1 + $0x20] sm:$0xff pattern:$0x75316420]
        %v7939 = vld.sshfl [vmem:[#allocation1 + $0x28] sm:$0xff pattern:$0x75316420]
        %v7940 = vld.sshfl [vmem:[#allocation1 + $0x30] sm:$0xff pattern:$0x75316420]
        %v7941 = vld.sshfl [vmem:[#allocation1 + $0x38] sm:$0xff pattern:$0x75316420]
        %7942 = vst [vmem:[#allocation1] ss:$2 sm:$0xff] %v7895
        %7943 = vst [vmem:[%s7928] ss:$2 sm:$0xff] %v7896
        %7944 = vst [vmem:[%s7930] ss:$2 sm:$0xff] %v7897
        %7945 = vst [vmem:[%s7932] ss:$2 sm:$0xff] %v7898
        %v7946 = vld.sshfl [vmem:[#allocation1] sm:$0xff pattern:$0x75316420]
        %v7947 = vld.sshfl [vmem:[#allocation1 + $0x8] sm:$0xff pattern:$0x75316420]
        %v7948 = vld.sshfl [vmem:[#allocation1 + $0x10] sm:$0xff pattern:$0x75316420]
        %v7949 = vld.sshfl [vmem:[#allocation1 + $0x18] sm:$0xff pattern:$0x75316420]
        %v7950 = vld.sshfl [vmem:[#allocation1 + $0x20] sm:$0xff pattern:$0x75316420]
        %v7951 = vld.sshfl [vmem:[#allocation1 + $0x28] sm:$0xff pattern:$0x75316420]
        %v7952 = vld.sshfl [vmem:[#allocation1 + $0x30] sm:$0xff pattern:$0x75316420]
        %v7953 = vld.sshfl [vmem:[#allocation1 + $0x38] sm:$0xff pattern:$0x75316420]
        %7954 = vst [vmem:[#allocation1] ss:$2 sm:$0xff] %v7899
        %v7955 = vld.sshfl [vmem:[#allocation1] sm:$0xff pattern:$0x75316420]
        %v7956 = vld.sshfl [vmem:[#allocation1 + $0x8] sm:$0xff pattern:$0x75316420]
        %7984 = vst [vmem:[#allocation1] ss:$2 sm:$0xff] %v7900
        %s7985 = scalar_lea.vmem [#allocation1], 16
        %7986 = vst [vmem:[%s7985] ss:$2 sm:$0xff] %v7901
        %s7987 = scalar_lea.vmem [#allocation1], 32
        %7988 = vst [vmem:[%s7987] ss:$2 sm:$0xff] %v7902
        %s7989 = scalar_lea.vmem [#allocation1], 48
        %7990 = vst [vmem:[%s7989] ss:$2 sm:$0xff] %v7903
        %v7991 = vld.sshfl [vmem:[#allocation1] sm:$0xff pattern:$0x75316420]
        %v7992 = vld.sshfl [vmem:[#allocation1 + $0x8] sm:$0xff pattern:$0x75316420]
        %v7993 = vld.sshfl [vmem:[#allocation1 + $0x10] sm:$0xff pattern:$0x75316420]
        %v7994 = vld.sshfl [vmem:[#allocation1 + $0x18] sm:$0xff pattern:$0x75316420]
        %v7995 = vld.sshfl [vmem:[#allocation1 + $0x20] sm:$0xff pattern:$0x75316420]
        %v7996 = vld.sshfl [vmem:[#allocation1 + $0x28] sm:$0xff pattern:$0x75316420]
        %v7997 = vld.sshfl [vmem:[#allocation1 + $0x30] sm:$0xff pattern:$0x75316420]
        %v7998 = vld.sshfl [vmem:[#allocation1 + $0x38] sm:$0xff pattern:$0x75316420]
        %7999 = vst [vmem:[#allocation1] ss:$2 sm:$0xff] %v7904
        %8000 = vst [vmem:[%s7985] ss:$2 sm:$0xff] %v7905
        %8001 = vst [vmem:[%s7987] ss:$2 sm:$0xff] %v7906
        %8002 = vst [vmem:[%s7989] ss:$2 sm:$0xff] %v7907
        %v8003 = vld.sshfl [vmem:[#allocation1] sm:$0xff pattern:$0x75316420]
        %v8004 = vld.sshfl [vmem:[#allocation1 + $0x8] sm:$0xff pattern:$0x75316420]
        %v8005 = vld.sshfl [vmem:[#allocation1 + $0x10] sm:$0xff pattern:$0x75316420]
        %v8006 = vld.sshfl [vmem:[#allocation1 + $0x18] sm:$0xff pattern:$0x75316420]
        %v8007 = vld.sshfl [vmem:[#allocation1 + $0x20] sm:$0xff pattern:$0x75316420]
        %v8008 = vld.sshfl [vmem:[#allocation1 + $0x28] sm:$0xff pattern:$0x75316420]
        %v8009 = vld.sshfl [vmem:[#allocation1 + $0x30] sm:$0xff pattern:$0x75316420]
        %v8010 = vld.sshfl [vmem:[#allocation1 + $0x38] sm:$0xff pattern:$0x75316420]
        %8011 = vst [vmem:[#allocation1] ss:$2 sm:$0xff] %v7908
        %v8012 = vld.sshfl [vmem:[#allocation1] sm:$0xff pattern:$0x75316420]
        %v8013 = vld.sshfl [vmem:[#allocation1 + $0x8] sm:$0xff pattern:$0x75316420]
        %8041 = vst [vmem:[#allocation1] ss:$2 sm:$0xff] %v7909
        %s8042 = scalar_lea.vmem [#allocation1], 16
        %8043 = vst [vmem:[%s8042] ss:$2 sm:$0xff] %v7910
        %s8044 = scalar_lea.vmem [#allocation1], 32
        %8045 = vst [vmem:[%s8044] ss:$2 sm:$0xff] %v7911
        %s8046 = scalar_lea.vmem [#allocation1], 48
        %8047 = vst [vmem:[%s8046] ss:$2 sm:$0xff] %v7912
        %v8048 = vld.sshfl [vmem:[#allocation1] sm:$0xff pattern:$0x75316420]
        %v8049 = vld.sshfl [vmem:[#allocation1 + $0x8] sm:$0xff pattern:$0x75316420]
        %v8050 = vld.sshfl [vmem:[#allocation1 + $0x10] sm:$0xff pattern:$0x75316420]
        %v8051 = vld.sshfl [vmem:[#allocation1 + $0x18] sm:$0xff pattern:$0x75316420]
        %v8052 = vld.sshfl [vmem:[#allocation1 + $0x20] sm:$0xff pattern:$0x75316420]
        %v8053 = vld.sshfl [vmem:[#allocation1 + $0x28] sm:$0xff pattern:$0x75316420]
        %v8054 = vld.sshfl [vmem:[#allocation1 + $0x30] sm:$0xff pattern:$0x75316420]
        %v8055 = vld.sshfl [vmem:[#allocation1 + $0x38] sm:$0xff pattern:$0x75316420]
        %8056 = vst [vmem:[#allocation1] ss:$2 sm:$0xff] %v7913
        %8057 = vst [vmem:[%s8042] ss:$2 sm:$0xff] %v7914
        %8058 = vst [vmem:[%s8044] ss:$2 sm:$0xff] %v7915
        %8059 = vst [vmem:[%s8046] ss:$2 sm:$0xff] %v7916
        %v8060 = vld.sshfl [vmem:[#allocation1] sm:$0xff pattern:$0x75316420]
        %v8061 = vld.sshfl [vmem:[#allocation1 + $0x8] sm:$0xff pattern:$0x75316420]
        %v8062 = vld.sshfl [vmem:[#allocation1 + $0x10] sm:$0xff pattern:$0x75316420]
        %v8063 = vld.sshfl [vmem:[#allocation1 + $0x18] sm:$0xff pattern:$0x75316420]
        %v8064 = vld.sshfl [vmem:[#allocation1 + $0x20] sm:$0xff pattern:$0x75316420]
        %v8065 = vld.sshfl [vmem:[#allocation1 + $0x28] sm:$0xff pattern:$0x75316420]
        %v8066 = vld.sshfl [vmem:[#allocation1 + $0x30] sm:$0xff pattern:$0x75316420]
        %v8067 = vld.sshfl [vmem:[#allocation1 + $0x38] sm:$0xff pattern:$0x75316420]
        %8068 = vst [vmem:[#allocation1] ss:$2 sm:$0xff] %v7917
        %v8069 = vld.sshfl [vmem:[#allocation1] sm:$0xff pattern:$0x75316420]
        %v8070 = vld.sshfl [vmem:[#allocation1 + $0x8] sm:$0xff pattern:$0x75316420]
        %v8089 = vsel %vm4822, %v7934, 0.0
        %v8090 = vrot.slane %v7936, 7
        %v8091 = vsel %vm4825, %v8090, %v8089
        %v8092 = vrot.slane %v7938, 6
        %v8093 = vsel %vm4828, %v8092, %v8091
        %v8094 = vrot.slane %v7940, 5
        %v8095 = vsel %vm4831, %v8094, %v8093
        %v8096 = vrot.slane %v7946, 4
        %v8097 = vsel %vm4834, %v8096, %v8095
        %v8098 = vrot.slane %v7948, 3
        %v8099 = vsel %vm4837, %v8098, %v8097
        %v8100 = vrot.slane %v7950, 2
        %v8101 = vsel %vm4840, %v8100, %v8099
        %v8102 = vrot.slane %v7952, 1
        %v8103 = vsel %vm4843, %v8102, %v8101
        %v8104 = vsel %vm4822, %v7935, 0.0
        %v8105 = vrot.slane %v7937, 7
        %v8106 = vsel %vm4825, %v8105, %v8104
        %v8107 = vrot.slane %v7939, 6
        %v8108 = vsel %vm4828, %v8107, %v8106
        %v8109 = vrot.slane %v7941, 5
        %v8110 = vsel %vm4831, %v8109, %v8108
        %v8111 = vrot.slane %v7947, 4
        %v8112 = vsel %vm4834, %v8111, %v8110
        %v8113 = vrot.slane %v7949, 3
        %v8114 = vsel %vm4837, %v8113, %v8112
        %v8115 = vrot.slane %v7951, 2
        %v8116 = vsel %vm4840, %v8115, %v8114
        %v8117 = vrot.slane %v7953, 1
        %v8118 = vsel %vm4843, %v8117, %v8116
        %v8119 = vsel %vm4822, %v7955, 0.0
        %v8120 = vrot.slane %v7991, 7
        %v8121 = vsel %vm4825, %v8120, %v8119
        %v8122 = vrot.slane %v7993, 6
        %v8123 = vsel %vm4828, %v8122, %v8121
        %v8124 = vrot.slane %v7995, 5
        %v8125 = vsel %vm4831, %v8124, %v8123
        %v8126 = vrot.slane %v7997, 4
        %v8127 = vsel %vm4834, %v8126, %v8125
        %v8128 = vrot.slane %v8003, 3
        %v8129 = vsel %vm4837, %v8128, %v8127
        %v8130 = vrot.slane %v8005, 2
        %v8131 = vsel %vm4840, %v8130, %v8129
        %v8132 = vrot.slane %v8007, 1
        %v8133 = vsel %vm4843, %v8132, %v8131
        %v8134 = vsel %vm4822, %v7956, 0.0
        %v8135 = vrot.slane %v7992, 7
        %v8136 = vsel %vm4825, %v8135, %v8134
        %v8137 = vrot.slane %v7994, 6
        %v8138 = vsel %vm4828, %v8137, %v8136
        %v8139 = vrot.slane %v7996, 5
        %v8140 = vsel %vm4831, %v8139, %v8138
        %v8141 = vrot.slane %v7998, 4
        %v8142 = vsel %vm4834, %v8141, %v8140
        %v8143 = vrot.slane %v8004, 3
        %v8144 = vsel %vm4837, %v8143, %v8142
        %v8145 = vrot.slane %v8006, 2
        %v8146 = vsel %vm4840, %v8145, %v8144
        %v8147 = vrot.slane %v8008, 1
        %v8148 = vsel %vm4843, %v8147, %v8146
        %v8149 = vsel %vm4822, %v8009, 0.0
        %v8150 = vrot.slane %v8012, 7
        %v8151 = vsel %vm4825, %v8150, %v8149
        %v8152 = vrot.slane %v8048, 6
        %v8153 = vsel %vm4828, %v8152, %v8151
        %v8154 = vrot.slane %v8050, 5
        %v8155 = vsel %vm4831, %v8154, %v8153
        %v8156 = vrot.slane %v8052, 4
        %v8157 = vsel %vm4834, %v8156, %v8155
        %v8158 = vrot.slane %v8054, 3
        %v8159 = vsel %vm4837, %v8158, %v8157
        %v8160 = vrot.slane %v8060, 2
        %v8161 = vsel %vm4840, %v8160, %v8159
        %v8162 = vrot.slane %v8062, 1
        %v8163 = vsel %vm4843, %v8162, %v8161
        %v8164 = vsel %vm4822, %v8010, 0.0
        %v8165 = vrot.slane %v8013, 7
        %v8166 = vsel %vm4825, %v8165, %v8164
        %v8167 = vrot.slane %v8049, 6
        %v8168 = vsel %vm4828, %v8167, %v8166
        %v8169 = vrot.slane %v8051, 5
        %v8170 = vsel %vm4831, %v8169, %v8168
        %v8171 = vrot.slane %v8053, 4
        %v8172 = vsel %vm4834, %v8171, %v8170
        %v8173 = vrot.slane %v8055, 3
        %v8174 = vsel %vm4837, %v8173, %v8172
        %v8175 = vrot.slane %v8061, 2
        %v8176 = vsel %vm4840, %v8175, %v8174
        %v8177 = vrot.slane %v8063, 1
        %v8178 = vsel %vm4843, %v8177, %v8176
        %v8179 = vsel %vm4822, %v8064, 0.0
        %v8180 = vrot.slane %v8066, 7
        %v8181 = vsel %vm4825, %v8180, %v8179
        %v8182 = vrot.slane %v8069, 6
        %v8183 = vsel %vm4828, %v8182, %v8181
        %v8184 = vrot.slane %v7934, 6
        %v8185 = vsel %vm4831, %v8184, %v8183
        %v8186 = vrot.slane %v7936, 5
        %v8187 = vsel %vm4834, %v8186, %v8185
        %v8188 = vrot.slane %v7938, 4
        %v8189 = vsel %vm4837, %v8188, %v8187
        %v8190 = vrot.slane %v7940, 3
        %v8191 = vsel %vm4840, %v8190, %v8189
        %v8192 = vrot.slane %v7946, 2
        %v8193 = vsel %vm4843, %v8192, %v8191
        %v8194 = vsel %vm4822, %v8065, 0.0
        %v8195 = vrot.slane %v8067, 7
        %v8196 = vsel %vm4825, %v8195, %v8194
        %v8197 = vrot.slane %v8070, 6
        %v8198 = vsel %vm4828, %v8197, %v8196
        %v8199 = vrot.slane %v7935, 6
        %v8200 = vsel %vm4831, %v8199, %v8198
        %v8201 = vrot.slane %v7937, 5
        %v8202 = vsel %vm4834, %v8201, %v8200
        %v8203 = vrot.slane %v7939, 4
        %v8204 = vsel %vm4837, %v8203, %v8202
        %v8205 = vrot.slane %v7941, 3
        %v8206 = vsel %vm4840, %v8205, %v8204
        %v8207 = vrot.slane %v7947, 2
        %v8208 = vsel %vm4843, %v8207, %v8206
        %v8209 = vrot.slane %v7948, 1
        %v8210 = vsel %vm4822, %v8209, 0.0
        %v8211 = vsel %vm4825, %v7950, %v8210
        %v8212 = vrot.slane %v7952, 7
        %v8213 = vsel %vm4828, %v8212, %v8211
        %v8214 = vrot.slane %v7955, 6
        %v8215 = vsel %vm4831, %v8214, %v8213
        %v8216 = vrot.slane %v7991, 5
        %v8217 = vsel %vm4834, %v8216, %v8215
        %v8218 = vrot.slane %v7993, 4
        %v8219 = vsel %vm4837, %v8218, %v8217
        %v8220 = vrot.slane %v7995, 3
        %v8221 = vsel %vm4840, %v8220, %v8219
        %v8222 = vrot.slane %v7997, 2
        %v8223 = vsel %vm4843, %v8222, %v8221
        %v8224 = vrot.slane %v7949, 1
        %v8225 = vsel %vm4822, %v8224, 0.0
        %v8226 = vsel %vm4825, %v7951, %v8225
        %v8227 = vrot.slane %v7953, 7
        %v8228 = vsel %vm4828, %v8227, %v8226
        %v8229 = vrot.slane %v7956, 6
        %v8230 = vsel %vm4831, %v8229, %v8228
        %v8231 = vrot.slane %v7992, 5
        %v8232 = vsel %vm4834, %v8231, %v8230
        %v8233 = vrot.slane %v7994, 4
        %v8234 = vsel %vm4837, %v8233, %v8232
        %v8235 = vrot.slane %v7996, 3
        %v8236 = vsel %vm4840, %v8235, %v8234
        %v8237 = vrot.slane %v7998, 2
        %v8238 = vsel %vm4843, %v8237, %v8236
        %v8239 = vrot.slane %v8003, 1
        %v8240 = vsel %vm4822, %v8239, 0.0
        %v8241 = vsel %vm4825, %v8005, %v8240
        %v8242 = vrot.slane %v8007, 7
        %v8243 = vsel %vm4828, %v8242, %v8241
        %v8244 = vrot.slane %v8009, 6
        %v8245 = vsel %vm4831, %v8244, %v8243
        %v8246 = vrot.slane %v8012, 5
        %v8247 = vsel %vm4834, %v8246, %v8245
        %v8248 = vrot.slane %v8048, 4
        %v8249 = vsel %vm4837, %v8248, %v8247
        %v8250 = vrot.slane %v8050, 3
        %v8251 = vsel %vm4840, %v8250, %v8249
        %v8252 = vrot.slane %v8052, 2
        %v8253 = vsel %vm4843, %v8252, %v8251
        %v8254 = vrot.slane %v8004, 1
        %v8255 = vsel %vm4822, %v8254, 0.0
        %v8256 = vsel %vm4825, %v8006, %v8255
        %v8257 = vrot.slane %v8008, 7
        %v8258 = vsel %vm4828, %v8257, %v8256
        %v8259 = vrot.slane %v8010, 6
        %v8260 = vsel %vm4831, %v8259, %v8258
        %v8261 = vrot.slane %v8013, 5
        %v8262 = vsel %vm4834, %v8261, %v8260
        %v8263 = vrot.slane %v8049, 4
        %v8264 = vsel %vm4837, %v8263, %v8262
        %v8265 = vrot.slane %v8051, 3
        %v8266 = vsel %vm4840, %v8265, %v8264
        %v8267 = vrot.slane %v8053, 2
        %v8268 = vsel %vm4843, %v8267, %v8266
        %v8269 = vrot.slane %v8054, 1
        %v8270 = vsel %vm4822, %v8269, 0.0
        %v8271 = vsel %vm4825, %v8060, %v8270
        %v8272 = vrot.slane %v8062, 7
        %v8273 = vsel %vm4828, %v8272, %v8271
        %v8274 = vrot.slane %v8064, 6
        %v8275 = vsel %vm4831, %v8274, %v8273
        %v8276 = vrot.slane %v8066, 5
        %v8277 = vsel %vm4834, %v8276, %v8275
        %v8278 = vrot.slane %v8069, 4
        %v8279 = vsel %vm4837, %v8278, %v8277
        %v8280 = vrot.slane %v7934, 4
        %v8281 = vsel %vm4840, %v8280, %v8279
        %v8282 = vrot.slane %v7936, 3
        %v8283 = vsel %vm4843, %v8282, %v8281
        %v8284 = vrot.slane %v8055, 1
        %v8285 = vsel %vm4822, %v8284, 0.0
        %v8286 = vsel %vm4825, %v8061, %v8285
        %v8287 = vrot.slane %v8063, 7
        %v8288 = vsel %vm4828, %v8287, %v8286
        %v8289 = vrot.slane %v8065, 6
        %v8290 = vsel %vm4831, %v8289, %v8288
        %v8291 = vrot.slane %v8067, 5
        %v8292 = vsel %vm4834, %v8291, %v8290
        %v8293 = vrot.slane %v8070, 4
        %v8294 = vsel %vm4837, %v8293, %v8292
        %v8295 = vrot.slane %v7935, 4
        %v8296 = vsel %vm4840, %v8295, %v8294
        %v8297 = vrot.slane %v7937, 3
        %v8298 = vsel %vm4843, %v8297, %v8296
        %v8299 = vrot.slane %v7938, 2
        %v8300 = vsel %vm4822, %v8299, 0.0
        %v8301 = vrot.slane %v7940, 1
        %v8302 = vsel %vm4825, %v8301, %v8300
        %v8303 = vsel %vm4828, %v7946, %v8302
        %v8304 = vrot.slane %v7948, 7
        %v8305 = vsel %vm4831, %v8304, %v8303
        %v8306 = vrot.slane %v7950, 6
        %v8307 = vsel %vm4834, %v8306, %v8305
        %v8308 = vrot.slane %v7952, 5
        %v8309 = vsel %vm4837, %v8308, %v8307
        %v8310 = vrot.slane %v7955, 4
        %v8311 = vsel %vm4840, %v8310, %v8309
        %v8312 = vrot.slane %v7991, 3
        %v8313 = vsel %vm4843, %v8312, %v8311
        %v8314 = vrot.slane %v7939, 2
        %v8315 = vsel %vm4822, %v8314, 0.0
        %v8316 = vrot.slane %v7941, 1
        %v8317 = vsel %vm4825, %v8316, %v8315
        %v8318 = vsel %vm4828, %v7947, %v8317
        %v8319 = vrot.slane %v7949, 7
        %v8320 = vsel %vm4831, %v8319, %v8318
        %v8321 = vrot.slane %v7951, 6
        %v8322 = vsel %vm4834, %v8321, %v8320
        %v8323 = vrot.slane %v7953, 5
        %v8324 = vsel %vm4837, %v8323, %v8322
        %v8325 = vrot.slane %v7956, 4
        %v8326 = vsel %vm4840, %v8325, %v8324
        %v8327 = vrot.slane %v7992, 3
        %v8328 = vsel %vm4843, %v8327, %v8326
        %v8329 = vrot.slane %v7993, 2
        %v8330 = vsel %vm4822, %v8329, 0.0
        %v8331 = vrot.slane %v7995, 1
        %v8332 = vsel %vm4825, %v8331, %v8330
        %v8333 = vsel %vm4828, %v7997, %v8332
        %v8334 = vrot.slane %v8003, 7
        %v8335 = vsel %vm4831, %v8334, %v8333
        %v8336 = vrot.slane %v8005, 6
        %v8337 = vsel %vm4834, %v8336, %v8335
        %v8338 = vrot.slane %v8007, 5
        %v8339 = vsel %vm4837, %v8338, %v8337
        %v8340 = vrot.slane %v8009, 4
        %v8341 = vsel %vm4840, %v8340, %v8339
        %v8342 = vrot.slane %v8012, 3
        %v8343 = vsel %vm4843, %v8342, %v8341
        %v8344 = vrot.slane %v7994, 2
        %v8345 = vsel %vm4822, %v8344, 0.0
        %v8346 = vrot.slane %v7996, 1
        %v8347 = vsel %vm4825, %v8346, %v8345
        %v8348 = vsel %vm4828, %v7998, %v8347
        %v8349 = vrot.slane %v8004, 7
        %v8350 = vsel %vm4831, %v8349, %v8348
        %v8351 = vrot.slane %v8006, 6
        %v8352 = vsel %vm4834, %v8351, %v8350
        %v8353 = vrot.slane %v8008, 5
        %v8354 = vsel %vm4837, %v8353, %v8352
        %v8355 = vrot.slane %v8010, 4
        %v8356 = vsel %vm4840, %v8355, %v8354
        %v8357 = vrot.slane %v8013, 3
        %v8358 = vsel %vm4843, %v8357, %v8356
        %v8359 = vrot.slane %v8048, 2
        %v8360 = vsel %vm4822, %v8359, 0.0
        %v8361 = vrot.slane %v8050, 1
        %v8362 = vsel %vm4825, %v8361, %v8360
        %v8363 = vsel %vm4828, %v8052, %v8362
        %v8364 = vrot.slane %v8054, 7
        %v8365 = vsel %vm4831, %v8364, %v8363
        %v8366 = vrot.slane %v8060, 6
        %v8367 = vsel %vm4834, %v8366, %v8365
        %v8368 = vrot.slane %v8062, 5
        %v8369 = vsel %vm4837, %v8368, %v8367
        %v8370 = vrot.slane %v8064, 4
        %v8371 = vsel %vm4840, %v8370, %v8369
        %v8372 = vrot.slane %v8066, 3
        %v8373 = vsel %vm4843, %v8372, %v8371
        %v8374 = vrot.slane %v8049, 2
        %v8375 = vsel %vm4822, %v8374, 0.0
        %v8376 = vrot.slane %v8051, 1
        %v8377 = vsel %vm4825, %v8376, %v8375
        %v8378 = vsel %vm4828, %v8053, %v8377
        %v8379 = vrot.slane %v8055, 7
        %v8380 = vsel %vm4831, %v8379, %v8378
        %v8381 = vrot.slane %v8061, 6
        %v8382 = vsel %vm4834, %v8381, %v8380
        %v8383 = vrot.slane %v8063, 5
        %v8384 = vsel %vm4837, %v8383, %v8382
        %v8385 = vrot.slane %v8065, 4
        %v8386 = vsel %vm4840, %v8385, %v8384
        %v8387 = vrot.slane %v8067, 3
        %v8388 = vsel %vm4843, %v8387, %v8386
        %v8389 = vrot.slane %v8069, 2
        %v8390 = vsel %vm4822, %v8389, 0.0
        %v8391 = vrot.slane %v7934, 2
        %v8392 = vsel %vm4825, %v8391, %v8390
        %v8393 = vrot.slane %v7936, 1
        %v8394 = vsel %vm4828, %v8393, %v8392
        %v8395 = vsel %vm4831, %v7938, %v8394
        %v8396 = vrot.slane %v7940, 7
        %v8397 = vsel %vm4834, %v8396, %v8395
        %v8398 = vrot.slane %v7946, 6
        %v8399 = vsel %vm4837, %v8398, %v8397
        %v8400 = vrot.slane %v7948, 5
        %v8401 = vsel %vm4840, %v8400, %v8399
        %v8402 = vrot.slane %v7950, 4
        %v8403 = vsel %vm4843, %v8402, %v8401
        %v8404 = vrot.slane %v8070, 2
        %v8405 = vsel %vm4822, %v8404, 0.0
        %v8406 = vrot.slane %v7935, 2
        %v8407 = vsel %vm4825, %v8406, %v8405
        %v8408 = vrot.slane %v7937, 1
        %v8409 = vsel %vm4828, %v8408, %v8407
        %v8410 = vsel %vm4831, %v7939, %v8409
        %v8411 = vrot.slane %v7941, 7
        %v8412 = vsel %vm4834, %v8411, %v8410
        %v8413 = vrot.slane %v7947, 6
        %v8414 = vsel %vm4837, %v8413, %v8412
        %v8415 = vrot.slane %v7949, 5
        %v8416 = vsel %vm4840, %v8415, %v8414
        %v8417 = vrot.slane %v7951, 4
        %v8418 = vsel %vm4843, %v8417, %v8416
        %v8419 = vrot.slane %v7952, 3
        %v8420 = vsel %vm4822, %v8419, 0.0
        %v8421 = vrot.slane %v7955, 2
        %v8422 = vsel %vm4825, %v8421, %v8420
        %v8423 = vrot.slane %v7991, 1
        %v8424 = vsel %vm4828, %v8423, %v8422
        %v8425 = vsel %vm4831, %v7993, %v8424
        %v8426 = vrot.slane %v7995, 7
        %v8427 = vsel %vm4834, %v8426, %v8425
        %v8428 = vrot.slane %v7997, 6
        %v8429 = vsel %vm4837, %v8428, %v8427
        %v8430 = vrot.slane %v8003, 5
        %v8431 = vsel %vm4840, %v8430, %v8429
        %v8432 = vrot.slane %v8005, 4
        %v8433 = vsel %vm4843, %v8432, %v8431
        %v8434 = vrot.slane %v7953, 3
        %v8435 = vsel %vm4822, %v8434, 0.0
        %v8436 = vrot.slane %v7956, 2
        %v8437 = vsel %vm4825, %v8436, %v8435
        %v8438 = vrot.slane %v7992, 1
        %v8439 = vsel %vm4828, %v8438, %v8437
        %v8440 = vsel %vm4831, %v7994, %v8439
        %v8441 = vrot.slane %v7996, 7
        %v8442 = vsel %vm4834, %v8441, %v8440
        %v8443 = vrot.slane %v7998, 6
        %v8444 = vsel %vm4837, %v8443, %v8442
        %v8445 = vrot.slane %v8004, 5
        %v8446 = vsel %vm4840, %v8445, %v8444
        %v8447 = vrot.slane %v8006, 4
        %v8448 = vsel %vm4843, %v8447, %v8446
        %v8449 = vrot.slane %v8007, 3
        %v8450 = vsel %vm4822, %v8449, 0.0
        %v8451 = vrot.slane %v8009, 2
        %v8452 = vsel %vm4825, %v8451, %v8450
        %v8453 = vrot.slane %v8012, 1
        %v8454 = vsel %vm4828, %v8453, %v8452
        %v8455 = vsel %vm4831, %v8048, %v8454
        %v8456 = vrot.slane %v8050, 7
        %v8457 = vsel %vm4834, %v8456, %v8455
        %v8458 = vrot.slane %v8052, 6
        %v8459 = vsel %vm4837, %v8458, %v8457
        %v8460 = vrot.slane %v8054, 5
        %v8461 = vsel %vm4840, %v8460, %v8459
        %v8462 = vrot.slane %v8060, 4
        %v8463 = vsel %vm4843, %v8462, %v8461
        %v8464 = vrot.slane %v8008, 3
        %v8465 = vsel %vm4822, %v8464, 0.0
        %v8466 = vrot.slane %v8010, 2
        %v8467 = vsel %vm4825, %v8466, %v8465
        %v8468 = vrot.slane %v8013, 1
        %v8469 = vsel %vm4828, %v8468, %v8467
        %v8470 = vsel %vm4831, %v8049, %v8469
        %v8471 = vrot.slane %v8051, 7
        %v8472 = vsel %vm4834, %v8471, %v8470
        %v8473 = vrot.slane %v8053, 6
        %v8474 = vsel %vm4837, %v8473, %v8472
        %v8475 = vrot.slane %v8055, 5
        %v8476 = vsel %vm4840, %v8475, %v8474
        %v8477 = vrot.slane %v8061, 4
        %v8478 = vsel %vm4843, %v8477, %v8476
        %v8479 = vrot.slane %v8062, 3
        %v8480 = vsel %vm4822, %v8479, 0.0
        %v8481 = vrot.slane %v8064, 2
        %v8482 = vsel %vm4825, %v8481, %v8480
        %v8483 = vrot.slane %v8066, 1
        %v8484 = vsel %vm4828, %v8483, %v8482
        %v8485 = vsel %vm4831, %v8069, %v8484
        %v8486 = vrot.slane %v8063, 3
        %v8487 = vsel %vm4822, %v8486, 0.0
        %v8488 = vrot.slane %v8065, 2
        %v8489 = vsel %vm4825, %v8488, %v8487
        %v8490 = vrot.slane %v8067, 1
        %v8491 = vsel %vm4828, %v8490, %v8489
        %v8492 = vsel %vm4831, %v8070, %v8491
        %v8494 = vsel %vm787, %v8485, 0
        %v8497 = vsel %vm787, %v8492, 0
        %8499 = vmatpush.msra.mxu0 0.0
        %8500 = vmatpush.msra.mxu0 0.0
        %8501 = vmatpush.msra.mxu0 %v8494
        %8502 = vmatpush.msra.mxu0 %v8463
        %8503 = vmatpush.msra.mxu0 %v8433
        %8504 = vmatpush.msra.mxu0 %v8403
        %8505 = vmatpush.msra.mxu0 %v8373
        %8506 = vmatpush.msra.mxu0 %v8343
        %8507 = vmatpush.msra.mxu0 %v8313
        %8508 = vmatpush.msra.mxu0 %v8283
        %8509 = vmatpush.msra.mxu0 %v8253
        %8510 = vmatpush.msra.mxu0 %v8223
        %8511 = vmatpush.msra.mxu0 %v8193
        %8512 = vmatpush.msra.mxu0 %v8163
        %8513 = vmatpush.msra.mxu0 %v8133
        %8514 = vmatpush.msra.mxu0 %v8103
        %8515 = vmatmul.f32.gmra.mxu0 %v5241
        %v8516 = vpop.f32.mrf.mxu0
        %v8517 = vadd.f32 %v5237, %v8516
        %8518 = vdwg.mxu0
        %8519 = vmatpush.msra.mxu0 0.0
        %8520 = vmatpush.msra.mxu0 0.0
        %8521 = vmatpush.msra.mxu0 %v8497
        %8522 = vmatpush.msra.mxu0 %v8478
        %8523 = vmatpush.msra.mxu0 %v8448
        %8524 = vmatpush.msra.mxu0 %v8418
        %8525 = vmatpush.msra.mxu0 %v8388
        %8526 = vmatpush.msra.mxu0 %v8358
        %8527 = vmatpush.msra.mxu0 %v8328
        %8528 = vmatpush.msra.mxu0 %v8298
        %8529 = vmatpush.msra.mxu0 %v8268
        %8530 = vmatpush.msra.mxu0 %v8238
        %8531 = vmatpush.msra.mxu0 %v8208
        %8532 = vmatpush.msra.mxu0 %v8178
        %8533 = vmatpush.msra.mxu0 %v8148
        %8534 = vmatpush.msra.mxu0 %v8118
        %8535 = vmatmul.f32.gmra.mxu0 %v5241
        %v8536 = vpop.f32.mrf.mxu0
        %v8537 = vadd.f32 %v5237, %v8536
        %8538 = vdwg.mxu0
        %8539 = vst [vmem:[%s245 + $0x50] sm:$0xff] %v8517
        %8540 = vst [vmem:[%s245 + $0x58] sm:$0xff] %v8537
        %v8541 = vld [vmem:[%s3343] sm:$0xff]
        %v8542 = vld [vmem:[%s3343 + $0x8] sm:$0xff]
        %v8543 = vld [vmem:[%s3343 + $0x10] sm:$0xff]
        %v8544 = vld [vmem:[%s3343 + $0x18] sm:$0xff]
        %v8545 = vld [vmem:[%s3343 + $0x20] sm:$0xff]
        %v8546 = vld [vmem:[%s3343 + $0x28] sm:$0xff]
        %v8547 = vld [vmem:[%s3343 + $0x30] sm:$0xff]
        %v8548 = vld [vmem:[%s3343 + $0x38] sm:$0xff]
        %v8549 = vld [vmem:[%s3343 + $0x40] sm:$0xff]
        %v8550 = vld [vmem:[%s3766] sm:$0xff]
        %v8551 = vld [vmem:[%s3766 + $0x8] sm:$0xff]
        %v8552 = vld [vmem:[%s3766 + $0x10] sm:$0xff]
        %v8553 = vld [vmem:[%s3766 + $0x18] sm:$0xff]
        %v8554 = vld [vmem:[%s3766 + $0x20] sm:$0xff]
        %v8555 = vld [vmem:[%s3766 + $0x28] sm:$0xff]
        %v8556 = vld [vmem:[%s3766 + $0x30] sm:$0xff]
        %v8557 = vld [vmem:[%s3766 + $0x38] sm:$0xff]
        %v8558 = vld [vmem:[%s3766 + $0x40] sm:$0xff]
        %v8559 = vld [vmem:[%s4189] sm:$0xff]
        %v8560 = vld [vmem:[%s4189 + $0x8] sm:$0xff]
        %v8561 = vld [vmem:[%s4189 + $0x10] sm:$0xff]
        %v8562 = vld [vmem:[%s4189 + $0x18] sm:$0xff]
        %v8563 = vld [vmem:[%s4189 + $0x20] sm:$0xff]
        %v8564 = vld [vmem:[%s4189 + $0x28] sm:$0xff]
        %v8565 = vld [vmem:[%s4189 + $0x30] sm:$0xff]
        %v8566 = vld [vmem:[%s4189 + $0x38] sm:$0xff]
        %v8567 = vld [vmem:[%s4189 + $0x40] sm:$0xff]
        %8577 = vst [vmem:[#allocation1] ss:$2 sm:$0xff] %v8541
        %s8578 = scalar_lea.vmem [#allocation1], 16
        %8579 = vst [vmem:[%s8578] ss:$2 sm:$0xff] %v8542
        %s8580 = scalar_lea.vmem [#allocation1], 32
        %8581 = vst [vmem:[%s8580] ss:$2 sm:$0xff] %v8543
        %s8582 = scalar_lea.vmem [#allocation1], 48
        %8583 = vst [vmem:[%s8582] ss:$2 sm:$0xff] %v8544
        %v8584 = vld.sshfl [vmem:[#allocation1] sm:$0xff pattern:$0x75316420]
        %v8585 = vld.sshfl [vmem:[#allocation1 + $0x8] sm:$0xff pattern:$0x75316420]
        %v8586 = vld.sshfl [vmem:[#allocation1 + $0x10] sm:$0xff pattern:$0x75316420]
        %v8587 = vld.sshfl [vmem:[#allocation1 + $0x18] sm:$0xff pattern:$0x75316420]
        %v8588 = vld.sshfl [vmem:[#allocation1 + $0x20] sm:$0xff pattern:$0x75316420]
        %v8589 = vld.sshfl [vmem:[#allocation1 + $0x28] sm:$0xff pattern:$0x75316420]
        %v8590 = vld.sshfl [vmem:[#allocation1 + $0x30] sm:$0xff pattern:$0x75316420]
        %v8591 = vld.sshfl [vmem:[#allocation1 + $0x38] sm:$0xff pattern:$0x75316420]
        %8592 = vst [vmem:[#allocation1] ss:$2 sm:$0xff] %v8545
        %8593 = vst [vmem:[%s8578] ss:$2 sm:$0xff] %v8546
        %8594 = vst [vmem:[%s8580] ss:$2 sm:$0xff] %v8547
        %8595 = vst [vmem:[%s8582] ss:$2 sm:$0xff] %v8548
        %v8596 = vld.sshfl [vmem:[#allocation1] sm:$0xff pattern:$0x75316420]
        %v8597 = vld.sshfl [vmem:[#allocation1 + $0x8] sm:$0xff pattern:$0x75316420]
        %v8598 = vld.sshfl [vmem:[#allocation1 + $0x10] sm:$0xff pattern:$0x75316420]
        %v8599 = vld.sshfl [vmem:[#allocation1 + $0x18] sm:$0xff pattern:$0x75316420]
        %v8600 = vld.sshfl [vmem:[#allocation1 + $0x20] sm:$0xff pattern:$0x75316420]
        %v8601 = vld.sshfl [vmem:[#allocation1 + $0x28] sm:$0xff pattern:$0x75316420]
        %v8602 = vld.sshfl [vmem:[#allocation1 + $0x30] sm:$0xff pattern:$0x75316420]
        %v8603 = vld.sshfl [vmem:[#allocation1 + $0x38] sm:$0xff pattern:$0x75316420]
        %8604 = vst [vmem:[#allocation1] ss:$2 sm:$0xff] %v8549
        %v8605 = vld.sshfl [vmem:[#allocation1] sm:$0xff pattern:$0x75316420]
        %v8606 = vld.sshfl [vmem:[#allocation1 + $0x8] sm:$0xff pattern:$0x75316420]
        %8634 = vst [vmem:[#allocation1] ss:$2 sm:$0xff] %v8550
        %s8635 = scalar_lea.vmem [#allocation1], 16
        %8636 = vst [vmem:[%s8635] ss:$2 sm:$0xff] %v8551
        %s8637 = scalar_lea.vmem [#allocation1], 32
        %8638 = vst [vmem:[%s8637] ss:$2 sm:$0xff] %v8552
        %s8639 = scalar_lea.vmem [#allocation1], 48
        %8640 = vst [vmem:[%s8639] ss:$2 sm:$0xff] %v8553
        %v8641 = vld.sshfl [vmem:[#allocation1] sm:$0xff pattern:$0x75316420]
        %v8642 = vld.sshfl [vmem:[#allocation1 + $0x8] sm:$0xff pattern:$0x75316420]
        %v8643 = vld.sshfl [vmem:[#allocation1 + $0x10] sm:$0xff pattern:$0x75316420]
        %v8644 = vld.sshfl [vmem:[#allocation1 + $0x18] sm:$0xff pattern:$0x75316420]
        %v8645 = vld.sshfl [vmem:[#allocation1 + $0x20] sm:$0xff pattern:$0x75316420]
        %v8646 = vld.sshfl [vmem:[#allocation1 + $0x28] sm:$0xff pattern:$0x75316420]
        %v8647 = vld.sshfl [vmem:[#allocation1 + $0x30] sm:$0xff pattern:$0x75316420]
        %v8648 = vld.sshfl [vmem:[#allocation1 + $0x38] sm:$0xff pattern:$0x75316420]
        %8649 = vst [vmem:[#allocation1] ss:$2 sm:$0xff] %v8554
        %8650 = vst [vmem:[%s8635] ss:$2 sm:$0xff] %v8555
        %8651 = vst [vmem:[%s8637] ss:$2 sm:$0xff] %v8556
        %8652 = vst [vmem:[%s8639] ss:$2 sm:$0xff] %v8557
        %v8653 = vld.sshfl [vmem:[#allocation1] sm:$0xff pattern:$0x75316420]
        %v8654 = vld.sshfl [vmem:[#allocation1 + $0x8] sm:$0xff pattern:$0x75316420]
        %v8655 = vld.sshfl [vmem:[#allocation1 + $0x10] sm:$0xff pattern:$0x75316420]
        %v8656 = vld.sshfl [vmem:[#allocation1 + $0x18] sm:$0xff pattern:$0x75316420]
        %v8657 = vld.sshfl [vmem:[#allocation1 + $0x20] sm:$0xff pattern:$0x75316420]
        %v8658 = vld.sshfl [vmem:[#allocation1 + $0x28] sm:$0xff pattern:$0x75316420]
        %v8659 = vld.sshfl [vmem:[#allocation1 + $0x30] sm:$0xff pattern:$0x75316420]
        %v8660 = vld.sshfl [vmem:[#allocation1 + $0x38] sm:$0xff pattern:$0x75316420]
        %8661 = vst [vmem:[#allocation1] ss:$2 sm:$0xff] %v8558
        %v8662 = vld.sshfl [vmem:[#allocation1] sm:$0xff pattern:$0x75316420]
        %v8663 = vld.sshfl [vmem:[#allocation1 + $0x8] sm:$0xff pattern:$0x75316420]
        %8691 = vst [vmem:[#allocation1] ss:$2 sm:$0xff] %v8559
        %s8692 = scalar_lea.vmem [#allocation1], 16
        %8693 = vst [vmem:[%s8692] ss:$2 sm:$0xff] %v8560
        %s8694 = scalar_lea.vmem [#allocation1], 32
        %8695 = vst [vmem:[%s8694] ss:$2 sm:$0xff] %v8561
        %s8696 = scalar_lea.vmem [#allocation1], 48
        %8697 = vst [vmem:[%s8696] ss:$2 sm:$0xff] %v8562
        %v8698 = vld.sshfl [vmem:[#allocation1] sm:$0xff pattern:$0x75316420]
        %v8699 = vld.sshfl [vmem:[#allocation1 + $0x8] sm:$0xff pattern:$0x75316420]
        %v8700 = vld.sshfl [vmem:[#allocation1 + $0x10] sm:$0xff pattern:$0x75316420]
        %v8701 = vld.sshfl [vmem:[#allocation1 + $0x18] sm:$0xff pattern:$0x75316420]
        %v8702 = vld.sshfl [vmem:[#allocation1 + $0x20] sm:$0xff pattern:$0x75316420]
        %v8703 = vld.sshfl [vmem:[#allocation1 + $0x28] sm:$0xff pattern:$0x75316420]
        %v8704 = vld.sshfl [vmem:[#allocation1 + $0x30] sm:$0xff pattern:$0x75316420]
        %v8705 = vld.sshfl [vmem:[#allocation1 + $0x38] sm:$0xff pattern:$0x75316420]
        %8706 = vst [vmem:[#allocation1] ss:$2 sm:$0xff] %v8563
        %8707 = vst [vmem:[%s8692] ss:$2 sm:$0xff] %v8564
        %8708 = vst [vmem:[%s8694] ss:$2 sm:$0xff] %v8565
        %8709 = vst [vmem:[%s8696] ss:$2 sm:$0xff] %v8566
        %v8710 = vld.sshfl [vmem:[#allocation1] sm:$0xff pattern:$0x75316420]
        %v8711 = vld.sshfl [vmem:[#allocation1 + $0x8] sm:$0xff pattern:$0x75316420]
        %v8712 = vld.sshfl [vmem:[#allocation1 + $0x10] sm:$0xff pattern:$0x75316420]
        %v8713 = vld.sshfl [vmem:[#allocation1 + $0x18] sm:$0xff pattern:$0x75316420]
        %v8714 = vld.sshfl [vmem:[#allocation1 + $0x20] sm:$0xff pattern:$0x75316420]
        %v8715 = vld.sshfl [vmem:[#allocation1 + $0x28] sm:$0xff pattern:$0x75316420]
        %v8716 = vld.sshfl [vmem:[#allocation1 + $0x30] sm:$0xff pattern:$0x75316420]
        %v8717 = vld.sshfl [vmem:[#allocation1 + $0x38] sm:$0xff pattern:$0x75316420]
        %8718 = vst [vmem:[#allocation1] ss:$2 sm:$0xff] %v8567
        %v8719 = vld.sshfl [vmem:[#allocation1] sm:$0xff pattern:$0x75316420]
        %v8720 = vld.sshfl [vmem:[#allocation1 + $0x8] sm:$0xff pattern:$0x75316420]
        %v8739 = vsel %vm4822, %v8584, 0.0
        %v8740 = vrot.slane %v8586, 7
        %v8741 = vsel %vm4825, %v8740, %v8739
        %v8742 = vrot.slane %v8588, 6
        %v8743 = vsel %vm4828, %v8742, %v8741
        %v8744 = vrot.slane %v8590, 5
        %v8745 = vsel %vm4831, %v8744, %v8743
        %v8746 = vrot.slane %v8596, 4
        %v8747 = vsel %vm4834, %v8746, %v8745
        %v8748 = vrot.slane %v8598, 3
        %v8749 = vsel %vm4837, %v8748, %v8747
        %v8750 = vrot.slane %v8600, 2
        %v8751 = vsel %vm4840, %v8750, %v8749
        %v8752 = vrot.slane %v8602, 1
        %v8753 = vsel %vm4843, %v8752, %v8751
        %v8754 = vsel %vm4822, %v8585, 0.0
        %v8755 = vrot.slane %v8587, 7
        %v8756 = vsel %vm4825, %v8755, %v8754
        %v8757 = vrot.slane %v8589, 6
        %v8758 = vsel %vm4828, %v8757, %v8756
        %v8759 = vrot.slane %v8591, 5
        %v8760 = vsel %vm4831, %v8759, %v8758
        %v8761 = vrot.slane %v8597, 4
        %v8762 = vsel %vm4834, %v8761, %v8760
        %v8763 = vrot.slane %v8599, 3
        %v8764 = vsel %vm4837, %v8763, %v8762
        %v8765 = vrot.slane %v8601, 2
        %v8766 = vsel %vm4840, %v8765, %v8764
        %v8767 = vrot.slane %v8603, 1
        %v8768 = vsel %vm4843, %v8767, %v8766
        %v8769 = vsel %vm4822, %v8605, 0.0
        %v8770 = vrot.slane %v8641, 7
        %v8771 = vsel %vm4825, %v8770, %v8769
        %v8772 = vrot.slane %v8643, 6
        %v8773 = vsel %vm4828, %v8772, %v8771
        %v8774 = vrot.slane %v8645, 5
        %v8775 = vsel %vm4831, %v8774, %v8773
        %v8776 = vrot.slane %v8647, 4
        %v8777 = vsel %vm4834, %v8776, %v8775
        %v8778 = vrot.slane %v8653, 3
        %v8779 = vsel %vm4837, %v8778, %v8777
        %v8780 = vrot.slane %v8655, 2
        %v8781 = vsel %vm4840, %v8780, %v8779
        %v8782 = vrot.slane %v8657, 1
        %v8783 = vsel %vm4843, %v8782, %v8781
        %v8784 = vsel %vm4822, %v8606, 0.0
        %v8785 = vrot.slane %v8642, 7
        %v8786 = vsel %vm4825, %v8785, %v8784
        %v8787 = vrot.slane %v8644, 6
        %v8788 = vsel %vm4828, %v8787, %v8786
        %v8789 = vrot.slane %v8646, 5
        %v8790 = vsel %vm4831, %v8789, %v8788
        %v8791 = vrot.slane %v8648, 4
        %v8792 = vsel %vm4834, %v8791, %v8790
        %v8793 = vrot.slane %v8654, 3
        %v8794 = vsel %vm4837, %v8793, %v8792
        %v8795 = vrot.slane %v8656, 2
        %v8796 = vsel %vm4840, %v8795, %v8794
        %v8797 = vrot.slane %v8658, 1
        %v8798 = vsel %vm4843, %v8797, %v8796
        %v8799 = vsel %vm4822, %v8659, 0.0
        %v8800 = vrot.slane %v8662, 7
        %v8801 = vsel %vm4825, %v8800, %v8799
        %v8802 = vrot.slane %v8698, 6
        %v8803 = vsel %vm4828, %v8802, %v8801
        %v8804 = vrot.slane %v8700, 5
        %v8805 = vsel %vm4831, %v8804, %v8803
        %v8806 = vrot.slane %v8702, 4
        %v8807 = vsel %vm4834, %v8806, %v8805
        %v8808 = vrot.slane %v8704, 3
        %v8809 = vsel %vm4837, %v8808, %v8807
        %v8810 = vrot.slane %v8710, 2
        %v8811 = vsel %vm4840, %v8810, %v8809
        %v8812 = vrot.slane %v8712, 1
        %v8813 = vsel %vm4843, %v8812, %v8811
        %v8814 = vsel %vm4822, %v8660, 0.0
        %v8815 = vrot.slane %v8663, 7
        %v8816 = vsel %vm4825, %v8815, %v8814
        %v8817 = vrot.slane %v8699, 6
        %v8818 = vsel %vm4828, %v8817, %v8816
        %v8819 = vrot.slane %v8701, 5
        %v8820 = vsel %vm4831, %v8819, %v8818
        %v8821 = vrot.slane %v8703, 4
        %v8822 = vsel %vm4834, %v8821, %v8820
        %v8823 = vrot.slane %v8705, 3
        %v8824 = vsel %vm4837, %v8823, %v8822
        %v8825 = vrot.slane %v8711, 2
        %v8826 = vsel %vm4840, %v8825, %v8824
        %v8827 = vrot.slane %v8713, 1
        %v8828 = vsel %vm4843, %v8827, %v8826
        %v8829 = vsel %vm4822, %v8714, 0.0
        %v8830 = vrot.slane %v8716, 7
        %v8831 = vsel %vm4825, %v8830, %v8829
        %v8832 = vrot.slane %v8719, 6
        %v8833 = vsel %vm4828, %v8832, %v8831
        %v8834 = vrot.slane %v8584, 6
        %v8835 = vsel %vm4831, %v8834, %v8833
        %v8836 = vrot.slane %v8586, 5
        %v8837 = vsel %vm4834, %v8836, %v8835
        %v8838 = vrot.slane %v8588, 4
        %v8839 = vsel %vm4837, %v8838, %v8837
        %v8840 = vrot.slane %v8590, 3
        %v8841 = vsel %vm4840, %v8840, %v8839
        %v8842 = vrot.slane %v8596, 2
        %v8843 = vsel %vm4843, %v8842, %v8841
        %v8844 = vsel %vm4822, %v8715, 0.0
        %v8845 = vrot.slane %v8717, 7
        %v8846 = vsel %vm4825, %v8845, %v8844
        %v8847 = vrot.slane %v8720, 6
        %v8848 = vsel %vm4828, %v8847, %v8846
        %v8849 = vrot.slane %v8585, 6
        %v8850 = vsel %vm4831, %v8849, %v8848
        %v8851 = vrot.slane %v8587, 5
        %v8852 = vsel %vm4834, %v8851, %v8850
        %v8853 = vrot.slane %v8589, 4
        %v8854 = vsel %vm4837, %v8853, %v8852
        %v8855 = vrot.slane %v8591, 3
        %v8856 = vsel %vm4840, %v8855, %v8854
        %v8857 = vrot.slane %v8597, 2
        %v8858 = vsel %vm4843, %v8857, %v8856
        %v8859 = vrot.slane %v8598, 1
        %v8860 = vsel %vm4822, %v8859, 0.0
        %v8861 = vsel %vm4825, %v8600, %v8860
        %v8862 = vrot.slane %v8602, 7
        %v8863 = vsel %vm4828, %v8862, %v8861
        %v8864 = vrot.slane %v8605, 6
        %v8865 = vsel %vm4831, %v8864, %v8863
        %v8866 = vrot.slane %v8641, 5
        %v8867 = vsel %vm4834, %v8866, %v8865
        %v8868 = vrot.slane %v8643, 4
        %v8869 = vsel %vm4837, %v8868, %v8867
        %v8870 = vrot.slane %v8645, 3
        %v8871 = vsel %vm4840, %v8870, %v8869
        %v8872 = vrot.slane %v8647, 2
        %v8873 = vsel %vm4843, %v8872, %v8871
        %v8874 = vrot.slane %v8599, 1
        %v8875 = vsel %vm4822, %v8874, 0.0
        %v8876 = vsel %vm4825, %v8601, %v8875
        %v8877 = vrot.slane %v8603, 7
        %v8878 = vsel %vm4828, %v8877, %v8876
        %v8879 = vrot.slane %v8606, 6
        %v8880 = vsel %vm4831, %v8879, %v8878
        %v8881 = vrot.slane %v8642, 5
        %v8882 = vsel %vm4834, %v8881, %v8880
        %v8883 = vrot.slane %v8644, 4
        %v8884 = vsel %vm4837, %v8883, %v8882
        %v8885 = vrot.slane %v8646, 3
        %v8886 = vsel %vm4840, %v8885, %v8884
        %v8887 = vrot.slane %v8648, 2
        %v8888 = vsel %vm4843, %v8887, %v8886
        %v8889 = vrot.slane %v8653, 1
        %v8890 = vsel %vm4822, %v8889, 0.0
        %v8891 = vsel %vm4825, %v8655, %v8890
        %v8892 = vrot.slane %v8657, 7
        %v8893 = vsel %vm4828, %v8892, %v8891
        %v8894 = vrot.slane %v8659, 6
        %v8895 = vsel %vm4831, %v8894, %v8893
        %v8896 = vrot.slane %v8662, 5
        %v8897 = vsel %vm4834, %v8896, %v8895
        %v8898 = vrot.slane %v8698, 4
        %v8899 = vsel %vm4837, %v8898, %v8897
        %v8900 = vrot.slane %v8700, 3
        %v8901 = vsel %vm4840, %v8900, %v8899
        %v8902 = vrot.slane %v8702, 2
        %v8903 = vsel %vm4843, %v8902, %v8901
        %v8904 = vrot.slane %v8654, 1
        %v8905 = vsel %vm4822, %v8904, 0.0
        %v8906 = vsel %vm4825, %v8656, %v8905
        %v8907 = vrot.slane %v8658, 7
        %v8908 = vsel %vm4828, %v8907, %v8906
        %v8909 = vrot.slane %v8660, 6
        %v8910 = vsel %vm4831, %v8909, %v8908
        %v8911 = vrot.slane %v8663, 5
        %v8912 = vsel %vm4834, %v8911, %v8910
        %v8913 = vrot.slane %v8699, 4
        %v8914 = vsel %vm4837, %v8913, %v8912
        %v8915 = vrot.slane %v8701, 3
        %v8916 = vsel %vm4840, %v8915, %v8914
        %v8917 = vrot.slane %v8703, 2
        %v8918 = vsel %vm4843, %v8917, %v8916
        %v8919 = vrot.slane %v8704, 1
        %v8920 = vsel %vm4822, %v8919, 0.0
        %v8921 = vsel %vm4825, %v8710, %v8920
        %v8922 = vrot.slane %v8712, 7
        %v8923 = vsel %vm4828, %v8922, %v8921
        %v8924 = vrot.slane %v8714, 6
        %v8925 = vsel %vm4831, %v8924, %v8923
        %v8926 = vrot.slane %v8716, 5
        %v8927 = vsel %vm4834, %v8926, %v8925
        %v8928 = vrot.slane %v8719, 4
        %v8929 = vsel %vm4837, %v8928, %v8927
        %v8930 = vrot.slane %v8584, 4
        %v8931 = vsel %vm4840, %v8930, %v8929
        %v8932 = vrot.slane %v8586, 3
        %v8933 = vsel %vm4843, %v8932, %v8931
        %v8934 = vrot.slane %v8705, 1
        %v8935 = vsel %vm4822, %v8934, 0.0
        %v8936 = vsel %vm4825, %v8711, %v8935
        %v8937 = vrot.slane %v8713, 7
        %v8938 = vsel %vm4828, %v8937, %v8936
        %v8939 = vrot.slane %v8715, 6
        %v8940 = vsel %vm4831, %v8939, %v8938
        %v8941 = vrot.slane %v8717, 5
        %v8942 = vsel %vm4834, %v8941, %v8940
        %v8943 = vrot.slane %v8720, 4
        %v8944 = vsel %vm4837, %v8943, %v8942
        %v8945 = vrot.slane %v8585, 4
        %v8946 = vsel %vm4840, %v8945, %v8944
        %v8947 = vrot.slane %v8587, 3
        %v8948 = vsel %vm4843, %v8947, %v8946
        %v8949 = vrot.slane %v8588, 2
        %v8950 = vsel %vm4822, %v8949, 0.0
        %v8951 = vrot.slane %v8590, 1
        %v8952 = vsel %vm4825, %v8951, %v8950
        %v8953 = vsel %vm4828, %v8596, %v8952
        %v8954 = vrot.slane %v8598, 7
        %v8955 = vsel %vm4831, %v8954, %v8953
        %v8956 = vrot.slane %v8600, 6
        %v8957 = vsel %vm4834, %v8956, %v8955
        %v8958 = vrot.slane %v8602, 5
        %v8959 = vsel %vm4837, %v8958, %v8957
        %v8960 = vrot.slane %v8605, 4
        %v8961 = vsel %vm4840, %v8960, %v8959
        %v8962 = vrot.slane %v8641, 3
        %v8963 = vsel %vm4843, %v8962, %v8961
        %v8964 = vrot.slane %v8589, 2
        %v8965 = vsel %vm4822, %v8964, 0.0
        %v8966 = vrot.slane %v8591, 1
        %v8967 = vsel %vm4825, %v8966, %v8965
        %v8968 = vsel %vm4828, %v8597, %v8967
        %v8969 = vrot.slane %v8599, 7
        %v8970 = vsel %vm4831, %v8969, %v8968
        %v8971 = vrot.slane %v8601, 6
        %v8972 = vsel %vm4834, %v8971, %v8970
        %v8973 = vrot.slane %v8603, 5
        %v8974 = vsel %vm4837, %v8973, %v8972
        %v8975 = vrot.slane %v8606, 4
        %v8976 = vsel %vm4840, %v8975, %v8974
        %v8977 = vrot.slane %v8642, 3
        %v8978 = vsel %vm4843, %v8977, %v8976
        %v8979 = vrot.slane %v8643, 2
        %v8980 = vsel %vm4822, %v8979, 0.0
        %v8981 = vrot.slane %v8645, 1
        %v8982 = vsel %vm4825, %v8981, %v8980
        %v8983 = vsel %vm4828, %v8647, %v8982
        %v8984 = vrot.slane %v8653, 7
        %v8985 = vsel %vm4831, %v8984, %v8983
        %v8986 = vrot.slane %v8655, 6
        %v8987 = vsel %vm4834, %v8986, %v8985
        %v8988 = vrot.slane %v8657, 5
        %v8989 = vsel %vm4837, %v8988, %v8987
        %v8990 = vrot.slane %v8659, 4
        %v8991 = vsel %vm4840, %v8990, %v8989
        %v8992 = vrot.slane %v8662, 3
        %v8993 = vsel %vm4843, %v8992, %v8991
        %v8994 = vrot.slane %v8644, 2
        %v8995 = vsel %vm4822, %v8994, 0.0
        %v8996 = vrot.slane %v8646, 1
        %v8997 = vsel %vm4825, %v8996, %v8995
        %v8998 = vsel %vm4828, %v8648, %v8997
        %v8999 = vrot.slane %v8654, 7
        %v9000 = vsel %vm4831, %v8999, %v8998
        %v9001 = vrot.slane %v8656, 6
        %v9002 = vsel %vm4834, %v9001, %v9000
        %v9003 = vrot.slane %v8658, 5
        %v9004 = vsel %vm4837, %v9003, %v9002
        %v9005 = vrot.slane %v8660, 4
        %v9006 = vsel %vm4840, %v9005, %v9004
        %v9007 = vrot.slane %v8663, 3
        %v9008 = vsel %vm4843, %v9007, %v9006
        %v9009 = vrot.slane %v8698, 2
        %v9010 = vsel %vm4822, %v9009, 0.0
        %v9011 = vrot.slane %v8700, 1
        %v9012 = vsel %vm4825, %v9011, %v9010
        %v9013 = vsel %vm4828, %v8702, %v9012
        %v9014 = vrot.slane %v8704, 7
        %v9015 = vsel %vm4831, %v9014, %v9013
        %v9016 = vrot.slane %v8710, 6
        %v9017 = vsel %vm4834, %v9016, %v9015
        %v9018 = vrot.slane %v8712, 5
        %v9019 = vsel %vm4837, %v9018, %v9017
        %v9020 = vrot.slane %v8714, 4
        %v9021 = vsel %vm4840, %v9020, %v9019
        %v9022 = vrot.slane %v8716, 3
        %v9023 = vsel %vm4843, %v9022, %v9021
        %v9024 = vrot.slane %v8699, 2
        %v9025 = vsel %vm4822, %v9024, 0.0
        %v9026 = vrot.slane %v8701, 1
        %v9027 = vsel %vm4825, %v9026, %v9025
        %v9028 = vsel %vm4828, %v8703, %v9027
        %v9029 = vrot.slane %v8705, 7
        %v9030 = vsel %vm4831, %v9029, %v9028
        %v9031 = vrot.slane %v8711, 6
        %v9032 = vsel %vm4834, %v9031, %v9030
        %v9033 = vrot.slane %v8713, 5
        %v9034 = vsel %vm4837, %v9033, %v9032
        %v9035 = vrot.slane %v8715, 4
        %v9036 = vsel %vm4840, %v9035, %v9034
        %v9037 = vrot.slane %v8717, 3
        %v9038 = vsel %vm4843, %v9037, %v9036
        %v9039 = vrot.slane %v8719, 2
        %v9040 = vsel %vm4822, %v9039, 0.0
        %v9041 = vrot.slane %v8584, 2
        %v9042 = vsel %vm4825, %v9041, %v9040
        %v9043 = vrot.slane %v8586, 1
        %v9044 = vsel %vm4828, %v9043, %v9042
        %v9045 = vsel %vm4831, %v8588, %v9044
        %v9046 = vrot.slane %v8590, 7
        %v9047 = vsel %vm4834, %v9046, %v9045
        %v9048 = vrot.slane %v8596, 6
        %v9049 = vsel %vm4837, %v9048, %v9047
        %v9050 = vrot.slane %v8598, 5
        %v9051 = vsel %vm4840, %v9050, %v9049
        %v9052 = vrot.slane %v8600, 4
        %v9053 = vsel %vm4843, %v9052, %v9051
        %v9054 = vrot.slane %v8720, 2
        %v9055 = vsel %vm4822, %v9054, 0.0
        %v9056 = vrot.slane %v8585, 2
        %v9057 = vsel %vm4825, %v9056, %v9055
        %v9058 = vrot.slane %v8587, 1
        %v9059 = vsel %vm4828, %v9058, %v9057
        %v9060 = vsel %vm4831, %v8589, %v9059
        %v9061 = vrot.slane %v8591, 7
        %v9062 = vsel %vm4834, %v9061, %v9060
        %v9063 = vrot.slane %v8597, 6
        %v9064 = vsel %vm4837, %v9063, %v9062
        %v9065 = vrot.slane %v8599, 5
        %v9066 = vsel %vm4840, %v9065, %v9064
        %v9067 = vrot.slane %v8601, 4
        %v9068 = vsel %vm4843, %v9067, %v9066
        %v9069 = vrot.slane %v8602, 3
        %v9070 = vsel %vm4822, %v9069, 0.0
        %v9071 = vrot.slane %v8605, 2
        %v9072 = vsel %vm4825, %v9071, %v9070
        %v9073 = vrot.slane %v8641, 1
        %v9074 = vsel %vm4828, %v9073, %v9072
        %v9075 = vsel %vm4831, %v8643, %v9074
        %v9076 = vrot.slane %v8645, 7
        %v9077 = vsel %vm4834, %v9076, %v9075
        %v9078 = vrot.slane %v8647, 6
        %v9079 = vsel %vm4837, %v9078, %v9077
        %v9080 = vrot.slane %v8653, 5
        %v9081 = vsel %vm4840, %v9080, %v9079
        %v9082 = vrot.slane %v8655, 4
        %v9083 = vsel %vm4843, %v9082, %v9081
        %v9084 = vrot.slane %v8603, 3
        %v9085 = vsel %vm4822, %v9084, 0.0
        %v9086 = vrot.slane %v8606, 2
        %v9087 = vsel %vm4825, %v9086, %v9085
        %v9088 = vrot.slane %v8642, 1
        %v9089 = vsel %vm4828, %v9088, %v9087
        %v9090 = vsel %vm4831, %v8644, %v9089
        %v9091 = vrot.slane %v8646, 7
        %v9092 = vsel %vm4834, %v9091, %v9090
        %v9093 = vrot.slane %v8648, 6
        %v9094 = vsel %vm4837, %v9093, %v9092
        %v9095 = vrot.slane %v8654, 5
        %v9096 = vsel %vm4840, %v9095, %v9094
        %v9097 = vrot.slane %v8656, 4
        %v9098 = vsel %vm4843, %v9097, %v9096
        %v9099 = vrot.slane %v8657, 3
        %v9100 = vsel %vm4822, %v9099, 0.0
        %v9101 = vrot.slane %v8659, 2
        %v9102 = vsel %vm4825, %v9101, %v9100
        %v9103 = vrot.slane %v8662, 1
        %v9104 = vsel %vm4828, %v9103, %v9102
        %v9105 = vsel %vm4831, %v8698, %v9104
        %v9106 = vrot.slane %v8700, 7
        %v9107 = vsel %vm4834, %v9106, %v9105
        %v9108 = vrot.slane %v8702, 6
        %v9109 = vsel %vm4837, %v9108, %v9107
        %v9110 = vrot.slane %v8704, 5
        %v9111 = vsel %vm4840, %v9110, %v9109
        %v9112 = vrot.slane %v8710, 4
        %v9113 = vsel %vm4843, %v9112, %v9111
        %v9114 = vrot.slane %v8658, 3
        %v9115 = vsel %vm4822, %v9114, 0.0
        %v9116 = vrot.slane %v8660, 2
        %v9117 = vsel %vm4825, %v9116, %v9115
        %v9118 = vrot.slane %v8663, 1
        %v9119 = vsel %vm4828, %v9118, %v9117
        %v9120 = vsel %vm4831, %v8699, %v9119
        %v9121 = vrot.slane %v8701, 7
        %v9122 = vsel %vm4834, %v9121, %v9120
        %v9123 = vrot.slane %v8703, 6
        %v9124 = vsel %vm4837, %v9123, %v9122
        %v9125 = vrot.slane %v8705, 5
        %v9126 = vsel %vm4840, %v9125, %v9124
        %v9127 = vrot.slane %v8711, 4
        %v9128 = vsel %vm4843, %v9127, %v9126
        %v9129 = vrot.slane %v8712, 3
        %v9130 = vsel %vm4822, %v9129, 0.0
        %v9131 = vrot.slane %v8714, 2
        %v9132 = vsel %vm4825, %v9131, %v9130
        %v9133 = vrot.slane %v8716, 1
        %v9134 = vsel %vm4828, %v9133, %v9132
        %v9135 = vsel %vm4831, %v8719, %v9134
        %v9136 = vrot.slane %v8713, 3
        %v9137 = vsel %vm4822, %v9136, 0.0
        %v9138 = vrot.slane %v8715, 2
        %v9139 = vsel %vm4825, %v9138, %v9137
        %v9140 = vrot.slane %v8717, 1
        %v9141 = vsel %vm4828, %v9140, %v9139
        %v9142 = vsel %vm4831, %v8720, %v9141
        %v9144 = vsel %vm787, %v9135, 0
        %v9147 = vsel %vm787, %v9142, 0
        %9149 = vmatpush.msra.mxu0 0.0
        %9150 = vmatpush.msra.mxu0 0.0
        %9151 = vmatpush.msra.mxu0 %v9144
        %9152 = vmatpush.msra.mxu0 %v9113
        %9153 = vmatpush.msra.mxu0 %v9083
        %9154 = vmatpush.msra.mxu0 %v9053
        %9155 = vmatpush.msra.mxu0 %v9023
        %9156 = vmatpush.msra.mxu0 %v8993
        %9157 = vmatpush.msra.mxu0 %v8963
        %9158 = vmatpush.msra.mxu0 %v8933
        %9159 = vmatpush.msra.mxu0 %v8903
        %9160 = vmatpush.msra.mxu0 %v8873
        %9161 = vmatpush.msra.mxu0 %v8843
        %9162 = vmatpush.msra.mxu0 %v8813
        %9163 = vmatpush.msra.mxu0 %v8783
        %9164 = vmatpush.msra.mxu0 %v8753
        %9165 = vmatmul.f32.gmra.mxu0 %v5241
        %v9166 = vpop.f32.mrf.mxu0
        %v9167 = vadd.f32 %v5237, %v9166
        %9168 = vdwg.mxu0
        %9169 = vmatpush.msra.mxu0 0.0
        %9170 = vmatpush.msra.mxu0 0.0
        %9171 = vmatpush.msra.mxu0 %v9147
        %9172 = vmatpush.msra.mxu0 %v9128
        %9173 = vmatpush.msra.mxu0 %v9098
        %9174 = vmatpush.msra.mxu0 %v9068
        %9175 = vmatpush.msra.mxu0 %v9038
        %9176 = vmatpush.msra.mxu0 %v9008
        %9177 = vmatpush.msra.mxu0 %v8978
        %9178 = vmatpush.msra.mxu0 %v8948
        %9179 = vmatpush.msra.mxu0 %v8918
        %9180 = vmatpush.msra.mxu0 %v8888
        %9181 = vmatpush.msra.mxu0 %v8858
        %9182 = vmatpush.msra.mxu0 %v8828
        %9183 = vmatpush.msra.mxu0 %v8798
        %9184 = vmatpush.msra.mxu0 %v8768
        %9185 = vmatmul.f32.gmra.mxu0 %v5241
        %v9186 = vpop.f32.mrf.mxu0
        %v9187 = vadd.f32 %v5237, %v9186
        %9188 = vdwg.mxu0
        %9189 = vst [vmem:[%s245 + $0x60] sm:$0xff] %v9167
        %9190 = vst [vmem:[%s245 + $0x68] sm:$0xff] %v9187
        %v9191 = vld [vmem:[%s3766] sm:$0xff]
        %v9192 = vld [vmem:[%s3766 + $0x8] sm:$0xff]
        %v9193 = vld [vmem:[%s3766 + $0x10] sm:$0xff]
        %v9194 = vld [vmem:[%s3766 + $0x18] sm:$0xff]
        %v9195 = vld [vmem:[%s3766 + $0x20] sm:$0xff]
        %v9196 = vld [vmem:[%s3766 + $0x28] sm:$0xff]
        %v9197 = vld [vmem:[%s3766 + $0x30] sm:$0xff]
        %v9198 = vld [vmem:[%s3766 + $0x38] sm:$0xff]
        %v9199 = vld [vmem:[%s3766 + $0x40] sm:$0xff]
        %v9200 = vld [vmem:[%s4189] sm:$0xff]
        %v9201 = vld [vmem:[%s4189 + $0x8] sm:$0xff]
        %v9202 = vld [vmem:[%s4189 + $0x10] sm:$0xff]
        %v9203 = vld [vmem:[%s4189 + $0x18] sm:$0xff]
        %v9204 = vld [vmem:[%s4189 + $0x20] sm:$0xff]
        %v9205 = vld [vmem:[%s4189 + $0x28] sm:$0xff]
        %v9206 = vld [vmem:[%s4189 + $0x30] sm:$0xff]
        %v9207 = vld [vmem:[%s4189 + $0x38] sm:$0xff]
        %v9208 = vld [vmem:[%s4189 + $0x40] sm:$0xff]
        %v9209 = vld [vmem:[%s4612] sm:$0xff]
        %v9210 = vld [vmem:[%s4612 + $0x8] sm:$0xff]
        %v9211 = vld [vmem:[%s4612 + $0x10] sm:$0xff]
        %v9212 = vld [vmem:[%s4612 + $0x18] sm:$0xff]
        %v9213 = vld [vmem:[%s4612 + $0x20] sm:$0xff]
        %v9214 = vld [vmem:[%s4612 + $0x28] sm:$0xff]
        %v9215 = vld [vmem:[%s4612 + $0x30] sm:$0xff]
        %v9216 = vld [vmem:[%s4612 + $0x38] sm:$0xff]
        %v9217 = vld [vmem:[%s4612 + $0x40] sm:$0xff]
        %9227 = vst [vmem:[#allocation1] ss:$2 sm:$0xff] %v9191
        %s9228 = scalar_lea.vmem [#allocation1], 16
        %9229 = vst [vmem:[%s9228] ss:$2 sm:$0xff] %v9192
        %s9230 = scalar_lea.vmem [#allocation1], 32
        %9231 = vst [vmem:[%s9230] ss:$2 sm:$0xff] %v9193
        %s9232 = scalar_lea.vmem [#allocation1], 48
        %9233 = vst [vmem:[%s9232] ss:$2 sm:$0xff] %v9194
        %v9234 = vld.sshfl [vmem:[#allocation1] sm:$0xff pattern:$0x75316420]
        %v9235 = vld.sshfl [vmem:[#allocation1 + $0x8] sm:$0xff pattern:$0x75316420]
        %v9236 = vld.sshfl [vmem:[#allocation1 + $0x10] sm:$0xff pattern:$0x75316420]
        %v9237 = vld.sshfl [vmem:[#allocation1 + $0x18] sm:$0xff pattern:$0x75316420]
        %v9238 = vld.sshfl [vmem:[#allocation1 + $0x20] sm:$0xff pattern:$0x75316420]
        %v9239 = vld.sshfl [vmem:[#allocation1 + $0x28] sm:$0xff pattern:$0x75316420]
        %v9240 = vld.sshfl [vmem:[#allocation1 + $0x30] sm:$0xff pattern:$0x75316420]
        %v9241 = vld.sshfl [vmem:[#allocation1 + $0x38] sm:$0xff pattern:$0x75316420]
        %9242 = vst [vmem:[#allocation1] ss:$2 sm:$0xff] %v9195
        %9243 = vst [vmem:[%s9228] ss:$2 sm:$0xff] %v9196
        %9244 = vst [vmem:[%s9230] ss:$2 sm:$0xff] %v9197
        %9245 = vst [vmem:[%s9232] ss:$2 sm:$0xff] %v9198
        %v9246 = vld.sshfl [vmem:[#allocation1] sm:$0xff pattern:$0x75316420]
        %v9247 = vld.sshfl [vmem:[#allocation1 + $0x8] sm:$0xff pattern:$0x75316420]
        %v9248 = vld.sshfl [vmem:[#allocation1 + $0x10] sm:$0xff pattern:$0x75316420]
        %v9249 = vld.sshfl [vmem:[#allocation1 + $0x18] sm:$0xff pattern:$0x75316420]
        %v9250 = vld.sshfl [vmem:[#allocation1 + $0x20] sm:$0xff pattern:$0x75316420]
        %v9251 = vld.sshfl [vmem:[#allocation1 + $0x28] sm:$0xff pattern:$0x75316420]
        %v9252 = vld.sshfl [vmem:[#allocation1 + $0x30] sm:$0xff pattern:$0x75316420]
        %v9253 = vld.sshfl [vmem:[#allocation1 + $0x38] sm:$0xff pattern:$0x75316420]
        %9254 = vst [vmem:[#allocation1] ss:$2 sm:$0xff] %v9199
        %v9255 = vld.sshfl [vmem:[#allocation1] sm:$0xff pattern:$0x75316420]
        %v9256 = vld.sshfl [vmem:[#allocation1 + $0x8] sm:$0xff pattern:$0x75316420]
        %9284 = vst [vmem:[#allocation1] ss:$2 sm:$0xff] %v9200
        %s9285 = scalar_lea.vmem [#allocation1], 16
        %9286 = vst [vmem:[%s9285] ss:$2 sm:$0xff] %v9201
        %s9287 = scalar_lea.vmem [#allocation1], 32
        %9288 = vst [vmem:[%s9287] ss:$2 sm:$0xff] %v9202
        %s9289 = scalar_lea.vmem [#allocation1], 48
        %9290 = vst [vmem:[%s9289] ss:$2 sm:$0xff] %v9203
        %v9291 = vld.sshfl [vmem:[#allocation1] sm:$0xff pattern:$0x75316420]
        %v9292 = vld.sshfl [vmem:[#allocation1 + $0x8] sm:$0xff pattern:$0x75316420]
        %v9293 = vld.sshfl [vmem:[#allocation1 + $0x10] sm:$0xff pattern:$0x75316420]
        %v9294 = vld.sshfl [vmem:[#allocation1 + $0x18] sm:$0xff pattern:$0x75316420]
        %v9295 = vld.sshfl [vmem:[#allocation1 + $0x20] sm:$0xff pattern:$0x75316420]
        %v9296 = vld.sshfl [vmem:[#allocation1 + $0x28] sm:$0xff pattern:$0x75316420]
        %v9297 = vld.sshfl [vmem:[#allocation1 + $0x30] sm:$0xff pattern:$0x75316420]
        %v9298 = vld.sshfl [vmem:[#allocation1 + $0x38] sm:$0xff pattern:$0x75316420]
        %9299 = vst [vmem:[#allocation1] ss:$2 sm:$0xff] %v9204
        %9300 = vst [vmem:[%s9285] ss:$2 sm:$0xff] %v9205
        %9301 = vst [vmem:[%s9287] ss:$2 sm:$0xff] %v9206
        %9302 = vst [vmem:[%s9289] ss:$2 sm:$0xff] %v9207
        %v9303 = vld.sshfl [vmem:[#allocation1] sm:$0xff pattern:$0x75316420]
        %v9304 = vld.sshfl [vmem:[#allocation1 + $0x8] sm:$0xff pattern:$0x75316420]
        %v9305 = vld.sshfl [vmem:[#allocation1 + $0x10] sm:$0xff pattern:$0x75316420]
        %v9306 = vld.sshfl [vmem:[#allocation1 + $0x18] sm:$0xff pattern:$0x75316420]
        %v9307 = vld.sshfl [vmem:[#allocation1 + $0x20] sm:$0xff pattern:$0x75316420]
        %v9308 = vld.sshfl [vmem:[#allocation1 + $0x28] sm:$0xff pattern:$0x75316420]
        %v9309 = vld.sshfl [vmem:[#allocation1 + $0x30] sm:$0xff pattern:$0x75316420]
        %v9310 = vld.sshfl [vmem:[#allocation1 + $0x38] sm:$0xff pattern:$0x75316420]
        %9311 = vst [vmem:[#allocation1] ss:$2 sm:$0xff] %v9208
        %v9312 = vld.sshfl [vmem:[#allocation1] sm:$0xff pattern:$0x75316420]
        %v9313 = vld.sshfl [vmem:[#allocation1 + $0x8] sm:$0xff pattern:$0x75316420]
        %9341 = vst [vmem:[#allocation1] ss:$2 sm:$0xff] %v9209
        %s9342 = scalar_lea.vmem [#allocation1], 16
        %9343 = vst [vmem:[%s9342] ss:$2 sm:$0xff] %v9210
        %s9344 = scalar_lea.vmem [#allocation1], 32
        %9345 = vst [vmem:[%s9344] ss:$2 sm:$0xff] %v9211
        %s9346 = scalar_lea.vmem [#allocation1], 48
        %9347 = vst [vmem:[%s9346] ss:$2 sm:$0xff] %v9212
        %v9348 = vld.sshfl [vmem:[#allocation1] sm:$0xff pattern:$0x75316420]
        %v9349 = vld.sshfl [vmem:[#allocation1 + $0x8] sm:$0xff pattern:$0x75316420]
        %v9350 = vld.sshfl [vmem:[#allocation1 + $0x10] sm:$0xff pattern:$0x75316420]
        %v9351 = vld.sshfl [vmem:[#allocation1 + $0x18] sm:$0xff pattern:$0x75316420]
        %v9352 = vld.sshfl [vmem:[#allocation1 + $0x20] sm:$0xff pattern:$0x75316420]
        %v9353 = vld.sshfl [vmem:[#allocation1 + $0x28] sm:$0xff pattern:$0x75316420]
        %v9354 = vld.sshfl [vmem:[#allocation1 + $0x30] sm:$0xff pattern:$0x75316420]
        %v9355 = vld.sshfl [vmem:[#allocation1 + $0x38] sm:$0xff pattern:$0x75316420]
        %9356 = vst [vmem:[#allocation1] ss:$2 sm:$0xff] %v9213
        %9357 = vst [vmem:[%s9342] ss:$2 sm:$0xff] %v9214
        %9358 = vst [vmem:[%s9344] ss:$2 sm:$0xff] %v9215
        %9359 = vst [vmem:[%s9346] ss:$2 sm:$0xff] %v9216
        %v9360 = vld.sshfl [vmem:[#allocation1] sm:$0xff pattern:$0x75316420]
        %v9361 = vld.sshfl [vmem:[#allocation1 + $0x8] sm:$0xff pattern:$0x75316420]
        %v9362 = vld.sshfl [vmem:[#allocation1 + $0x10] sm:$0xff pattern:$0x75316420]
        %v9363 = vld.sshfl [vmem:[#allocation1 + $0x18] sm:$0xff pattern:$0x75316420]
        %v9364 = vld.sshfl [vmem:[#allocation1 + $0x20] sm:$0xff pattern:$0x75316420]
        %v9365 = vld.sshfl [vmem:[#allocation1 + $0x28] sm:$0xff pattern:$0x75316420]
        %v9366 = vld.sshfl [vmem:[#allocation1 + $0x30] sm:$0xff pattern:$0x75316420]
        %v9367 = vld.sshfl [vmem:[#allocation1 + $0x38] sm:$0xff pattern:$0x75316420]
        %9368 = vst [vmem:[#allocation1] ss:$2 sm:$0xff] %v9217
        %v9369 = vld.sshfl [vmem:[#allocation1] sm:$0xff pattern:$0x75316420]
        %v9370 = vld.sshfl [vmem:[#allocation1 + $0x8] sm:$0xff pattern:$0x75316420]
        %v9389 = vsel %vm4822, %v9234, 0.0
        %v9390 = vrot.slane %v9236, 7
        %v9391 = vsel %vm4825, %v9390, %v9389
        %v9392 = vrot.slane %v9238, 6
        %v9393 = vsel %vm4828, %v9392, %v9391
        %v9394 = vrot.slane %v9240, 5
        %v9395 = vsel %vm4831, %v9394, %v9393
        %v9396 = vrot.slane %v9246, 4
        %v9397 = vsel %vm4834, %v9396, %v9395
        %v9398 = vrot.slane %v9248, 3
        %v9399 = vsel %vm4837, %v9398, %v9397
        %v9400 = vrot.slane %v9250, 2
        %v9401 = vsel %vm4840, %v9400, %v9399
        %v9402 = vrot.slane %v9252, 1
        %v9403 = vsel %vm4843, %v9402, %v9401
        %v9404 = vsel %vm4822, %v9235, 0.0
        %v9405 = vrot.slane %v9237, 7
        %v9406 = vsel %vm4825, %v9405, %v9404
        %v9407 = vrot.slane %v9239, 6
        %v9408 = vsel %vm4828, %v9407, %v9406
        %v9409 = vrot.slane %v9241, 5
        %v9410 = vsel %vm4831, %v9409, %v9408
        %v9411 = vrot.slane %v9247, 4
        %v9412 = vsel %vm4834, %v9411, %v9410
        %v9413 = vrot.slane %v9249, 3
        %v9414 = vsel %vm4837, %v9413, %v9412
        %v9415 = vrot.slane %v9251, 2
        %v9416 = vsel %vm4840, %v9415, %v9414
        %v9417 = vrot.slane %v9253, 1
        %v9418 = vsel %vm4843, %v9417, %v9416
        %v9419 = vsel %vm4822, %v9255, 0.0
        %v9420 = vrot.slane %v9291, 7
        %v9421 = vsel %vm4825, %v9420, %v9419
        %v9422 = vrot.slane %v9293, 6
        %v9423 = vsel %vm4828, %v9422, %v9421
        %v9424 = vrot.slane %v9295, 5
        %v9425 = vsel %vm4831, %v9424, %v9423
        %v9426 = vrot.slane %v9297, 4
        %v9427 = vsel %vm4834, %v9426, %v9425
        %v9428 = vrot.slane %v9303, 3
        %v9429 = vsel %vm4837, %v9428, %v9427
        %v9430 = vrot.slane %v9305, 2
        %v9431 = vsel %vm4840, %v9430, %v9429
        %v9432 = vrot.slane %v9307, 1
        %v9433 = vsel %vm4843, %v9432, %v9431
        %v9434 = vsel %vm4822, %v9256, 0.0
        %v9435 = vrot.slane %v9292, 7
        %v9436 = vsel %vm4825, %v9435, %v9434
        %v9437 = vrot.slane %v9294, 6
        %v9438 = vsel %vm4828, %v9437, %v9436
        %v9439 = vrot.slane %v9296, 5
        %v9440 = vsel %vm4831, %v9439, %v9438
        %v9441 = vrot.slane %v9298, 4
        %v9442 = vsel %vm4834, %v9441, %v9440
        %v9443 = vrot.slane %v9304, 3
        %v9444 = vsel %vm4837, %v9443, %v9442
        %v9445 = vrot.slane %v9306, 2
        %v9446 = vsel %vm4840, %v9445, %v9444
        %v9447 = vrot.slane %v9308, 1
        %v9448 = vsel %vm4843, %v9447, %v9446
        %v9449 = vsel %vm4822, %v9309, 0.0
        %v9450 = vrot.slane %v9312, 7
        %v9451 = vsel %vm4825, %v9450, %v9449
        %v9452 = vrot.slane %v9348, 6
        %v9453 = vsel %vm4828, %v9452, %v9451
        %v9454 = vrot.slane %v9350, 5
        %v9455 = vsel %vm4831, %v9454, %v9453
        %v9456 = vrot.slane %v9352, 4
        %v9457 = vsel %vm4834, %v9456, %v9455
        %v9458 = vrot.slane %v9354, 3
        %v9459 = vsel %vm4837, %v9458, %v9457
        %v9460 = vrot.slane %v9360, 2
        %v9461 = vsel %vm4840, %v9460, %v9459
        %v9462 = vrot.slane %v9362, 1
        %v9463 = vsel %vm4843, %v9462, %v9461
        %v9464 = vsel %vm4822, %v9310, 0.0
        %v9465 = vrot.slane %v9313, 7
        %v9466 = vsel %vm4825, %v9465, %v9464
        %v9467 = vrot.slane %v9349, 6
        %v9468 = vsel %vm4828, %v9467, %v9466
        %v9469 = vrot.slane %v9351, 5
        %v9470 = vsel %vm4831, %v9469, %v9468
        %v9471 = vrot.slane %v9353, 4
        %v9472 = vsel %vm4834, %v9471, %v9470
        %v9473 = vrot.slane %v9355, 3
        %v9474 = vsel %vm4837, %v9473, %v9472
        %v9475 = vrot.slane %v9361, 2
        %v9476 = vsel %vm4840, %v9475, %v9474
        %v9477 = vrot.slane %v9363, 1
        %v9478 = vsel %vm4843, %v9477, %v9476
        %v9479 = vsel %vm4822, %v9364, 0.0
        %v9480 = vrot.slane %v9366, 7
        %v9481 = vsel %vm4825, %v9480, %v9479
        %v9482 = vrot.slane %v9369, 6
        %v9483 = vsel %vm4828, %v9482, %v9481
        %v9484 = vrot.slane %v9234, 6
        %v9485 = vsel %vm4831, %v9484, %v9483
        %v9486 = vrot.slane %v9236, 5
        %v9487 = vsel %vm4834, %v9486, %v9485
        %v9488 = vrot.slane %v9238, 4
        %v9489 = vsel %vm4837, %v9488, %v9487
        %v9490 = vrot.slane %v9240, 3
        %v9491 = vsel %vm4840, %v9490, %v9489
        %v9492 = vrot.slane %v9246, 2
        %v9493 = vsel %vm4843, %v9492, %v9491
        %v9494 = vsel %vm4822, %v9365, 0.0
        %v9495 = vrot.slane %v9367, 7
        %v9496 = vsel %vm4825, %v9495, %v9494
        %v9497 = vrot.slane %v9370, 6
        %v9498 = vsel %vm4828, %v9497, %v9496
        %v9499 = vrot.slane %v9235, 6
        %v9500 = vsel %vm4831, %v9499, %v9498
        %v9501 = vrot.slane %v9237, 5
        %v9502 = vsel %vm4834, %v9501, %v9500
        %v9503 = vrot.slane %v9239, 4
        %v9504 = vsel %vm4837, %v9503, %v9502
        %v9505 = vrot.slane %v9241, 3
        %v9506 = vsel %vm4840, %v9505, %v9504
        %v9507 = vrot.slane %v9247, 2
        %v9508 = vsel %vm4843, %v9507, %v9506
        %v9509 = vrot.slane %v9248, 1
        %v9510 = vsel %vm4822, %v9509, 0.0
        %v9511 = vsel %vm4825, %v9250, %v9510
        %v9512 = vrot.slane %v9252, 7
        %v9513 = vsel %vm4828, %v9512, %v9511
        %v9514 = vrot.slane %v9255, 6
        %v9515 = vsel %vm4831, %v9514, %v9513
        %v9516 = vrot.slane %v9291, 5
        %v9517 = vsel %vm4834, %v9516, %v9515
        %v9518 = vrot.slane %v9293, 4
        %v9519 = vsel %vm4837, %v9518, %v9517
        %v9520 = vrot.slane %v9295, 3
        %v9521 = vsel %vm4840, %v9520, %v9519
        %v9522 = vrot.slane %v9297, 2
        %v9523 = vsel %vm4843, %v9522, %v9521
        %v9524 = vrot.slane %v9249, 1
        %v9525 = vsel %vm4822, %v9524, 0.0
        %v9526 = vsel %vm4825, %v9251, %v9525
        %v9527 = vrot.slane %v9253, 7
        %v9528 = vsel %vm4828, %v9527, %v9526
        %v9529 = vrot.slane %v9256, 6
        %v9530 = vsel %vm4831, %v9529, %v9528
        %v9531 = vrot.slane %v9292, 5
        %v9532 = vsel %vm4834, %v9531, %v9530
        %v9533 = vrot.slane %v9294, 4
        %v9534 = vsel %vm4837, %v9533, %v9532
        %v9535 = vrot.slane %v9296, 3
        %v9536 = vsel %vm4840, %v9535, %v9534
        %v9537 = vrot.slane %v9298, 2
        %v9538 = vsel %vm4843, %v9537, %v9536
        %v9539 = vrot.slane %v9303, 1
        %v9540 = vsel %vm4822, %v9539, 0.0
        %v9541 = vsel %vm4825, %v9305, %v9540
        %v9542 = vrot.slane %v9307, 7
        %v9543 = vsel %vm4828, %v9542, %v9541
        %v9544 = vrot.slane %v9309, 6
        %v9545 = vsel %vm4831, %v9544, %v9543
        %v9546 = vrot.slane %v9312, 5
        %v9547 = vsel %vm4834, %v9546, %v9545
        %v9548 = vrot.slane %v9348, 4
        %v9549 = vsel %vm4837, %v9548, %v9547
        %v9550 = vrot.slane %v9350, 3
        %v9551 = vsel %vm4840, %v9550, %v9549
        %v9552 = vrot.slane %v9352, 2
        %v9553 = vsel %vm4843, %v9552, %v9551
        %v9554 = vrot.slane %v9304, 1
        %v9555 = vsel %vm4822, %v9554, 0.0
        %v9556 = vsel %vm4825, %v9306, %v9555
        %v9557 = vrot.slane %v9308, 7
        %v9558 = vsel %vm4828, %v9557, %v9556
        %v9559 = vrot.slane %v9310, 6
        %v9560 = vsel %vm4831, %v9559, %v9558
        %v9561 = vrot.slane %v9313, 5
        %v9562 = vsel %vm4834, %v9561, %v9560
        %v9563 = vrot.slane %v9349, 4
        %v9564 = vsel %vm4837, %v9563, %v9562
        %v9565 = vrot.slane %v9351, 3
        %v9566 = vsel %vm4840, %v9565, %v9564
        %v9567 = vrot.slane %v9353, 2
        %v9568 = vsel %vm4843, %v9567, %v9566
        %v9569 = vrot.slane %v9354, 1
        %v9570 = vsel %vm4822, %v9569, 0.0
        %v9571 = vsel %vm4825, %v9360, %v9570
        %v9572 = vrot.slane %v9362, 7
        %v9573 = vsel %vm4828, %v9572, %v9571
        %v9574 = vrot.slane %v9364, 6
        %v9575 = vsel %vm4831, %v9574, %v9573
        %v9576 = vrot.slane %v9366, 5
        %v9577 = vsel %vm4834, %v9576, %v9575
        %v9578 = vrot.slane %v9369, 4
        %v9579 = vsel %vm4837, %v9578, %v9577
        %v9580 = vrot.slane %v9234, 4
        %v9581 = vsel %vm4840, %v9580, %v9579
        %v9582 = vrot.slane %v9236, 3
        %v9583 = vsel %vm4843, %v9582, %v9581
        %v9584 = vrot.slane %v9355, 1
        %v9585 = vsel %vm4822, %v9584, 0.0
        %v9586 = vsel %vm4825, %v9361, %v9585
        %v9587 = vrot.slane %v9363, 7
        %v9588 = vsel %vm4828, %v9587, %v9586
        %v9589 = vrot.slane %v9365, 6
        %v9590 = vsel %vm4831, %v9589, %v9588
        %v9591 = vrot.slane %v9367, 5
        %v9592 = vsel %vm4834, %v9591, %v9590
        %v9593 = vrot.slane %v9370, 4
        %v9594 = vsel %vm4837, %v9593, %v9592
        %v9595 = vrot.slane %v9235, 4
        %v9596 = vsel %vm4840, %v9595, %v9594
        %v9597 = vrot.slane %v9237, 3
        %v9598 = vsel %vm4843, %v9597, %v9596
        %v9599 = vrot.slane %v9238, 2
        %v9600 = vsel %vm4822, %v9599, 0.0
        %v9601 = vrot.slane %v9240, 1
        %v9602 = vsel %vm4825, %v9601, %v9600
        %v9603 = vsel %vm4828, %v9246, %v9602
        %v9604 = vrot.slane %v9248, 7
        %v9605 = vsel %vm4831, %v9604, %v9603
        %v9606 = vrot.slane %v9250, 6
        %v9607 = vsel %vm4834, %v9606, %v9605
        %v9608 = vrot.slane %v9252, 5
        %v9609 = vsel %vm4837, %v9608, %v9607
        %v9610 = vrot.slane %v9255, 4
        %v9611 = vsel %vm4840, %v9610, %v9609
        %v9612 = vrot.slane %v9291, 3
        %v9613 = vsel %vm4843, %v9612, %v9611
        %v9614 = vrot.slane %v9239, 2
        %v9615 = vsel %vm4822, %v9614, 0.0
        %v9616 = vrot.slane %v9241, 1
        %v9617 = vsel %vm4825, %v9616, %v9615
        %v9618 = vsel %vm4828, %v9247, %v9617
        %v9619 = vrot.slane %v9249, 7
        %v9620 = vsel %vm4831, %v9619, %v9618
        %v9621 = vrot.slane %v9251, 6
        %v9622 = vsel %vm4834, %v9621, %v9620
        %v9623 = vrot.slane %v9253, 5
        %v9624 = vsel %vm4837, %v9623, %v9622
        %v9625 = vrot.slane %v9256, 4
        %v9626 = vsel %vm4840, %v9625, %v9624
        %v9627 = vrot.slane %v9292, 3
        %v9628 = vsel %vm4843, %v9627, %v9626
        %v9629 = vrot.slane %v9293, 2
        %v9630 = vsel %vm4822, %v9629, 0.0
        %v9631 = vrot.slane %v9295, 1
        %v9632 = vsel %vm4825, %v9631, %v9630
        %v9633 = vsel %vm4828, %v9297, %v9632
        %v9634 = vrot.slane %v9303, 7
        %v9635 = vsel %vm4831, %v9634, %v9633
        %v9636 = vrot.slane %v9305, 6
        %v9637 = vsel %vm4834, %v9636, %v9635
        %v9638 = vrot.slane %v9307, 5
        %v9639 = vsel %vm4837, %v9638, %v9637
        %v9640 = vrot.slane %v9309, 4
        %v9641 = vsel %vm4840, %v9640, %v9639
        %v9642 = vrot.slane %v9312, 3
        %v9643 = vsel %vm4843, %v9642, %v9641
        %v9644 = vrot.slane %v9294, 2
        %v9645 = vsel %vm4822, %v9644, 0.0
        %v9646 = vrot.slane %v9296, 1
        %v9647 = vsel %vm4825, %v9646, %v9645
        %v9648 = vsel %vm4828, %v9298, %v9647
        %v9649 = vrot.slane %v9304, 7
        %v9650 = vsel %vm4831, %v9649, %v9648
        %v9651 = vrot.slane %v9306, 6
        %v9652 = vsel %vm4834, %v9651, %v9650
        %v9653 = vrot.slane %v9308, 5
        %v9654 = vsel %vm4837, %v9653, %v9652
        %v9655 = vrot.slane %v9310, 4
        %v9656 = vsel %vm4840, %v9655, %v9654
        %v9657 = vrot.slane %v9313, 3
        %v9658 = vsel %vm4843, %v9657, %v9656
        %v9659 = vrot.slane %v9348, 2
        %v9660 = vsel %vm4822, %v9659, 0.0
        %v9661 = vrot.slane %v9350, 1
        %v9662 = vsel %vm4825, %v9661, %v9660
        %v9663 = vsel %vm4828, %v9352, %v9662
        %v9664 = vrot.slane %v9354, 7
        %v9665 = vsel %vm4831, %v9664, %v9663
        %v9666 = vrot.slane %v9360, 6
        %v9667 = vsel %vm4834, %v9666, %v9665
        %v9668 = vrot.slane %v9362, 5
        %v9669 = vsel %vm4837, %v9668, %v9667
        %v9670 = vrot.slane %v9364, 4
        %v9671 = vsel %vm4840, %v9670, %v9669
        %v9672 = vrot.slane %v9366, 3
        %v9673 = vsel %vm4843, %v9672, %v9671
        %v9674 = vrot.slane %v9349, 2
        %v9675 = vsel %vm4822, %v9674, 0.0
        %v9676 = vrot.slane %v9351, 1
        %v9677 = vsel %vm4825, %v9676, %v9675
        %v9678 = vsel %vm4828, %v9353, %v9677
        %v9679 = vrot.slane %v9355, 7
        %v9680 = vsel %vm4831, %v9679, %v9678
        %v9681 = vrot.slane %v9361, 6
        %v9682 = vsel %vm4834, %v9681, %v9680
        %v9683 = vrot.slane %v9363, 5
        %v9684 = vsel %vm4837, %v9683, %v9682
        %v9685 = vrot.slane %v9365, 4
        %v9686 = vsel %vm4840, %v9685, %v9684
        %v9687 = vrot.slane %v9367, 3
        %v9688 = vsel %vm4843, %v9687, %v9686
        %v9689 = vrot.slane %v9369, 2
        %v9690 = vsel %vm4822, %v9689, 0.0
        %v9691 = vrot.slane %v9234, 2
        %v9692 = vsel %vm4825, %v9691, %v9690
        %v9693 = vrot.slane %v9236, 1
        %v9694 = vsel %vm4828, %v9693, %v9692
        %v9695 = vsel %vm4831, %v9238, %v9694
        %v9696 = vrot.slane %v9240, 7
        %v9697 = vsel %vm4834, %v9696, %v9695
        %v9698 = vrot.slane %v9246, 6
        %v9699 = vsel %vm4837, %v9698, %v9697
        %v9700 = vrot.slane %v9248, 5
        %v9701 = vsel %vm4840, %v9700, %v9699
        %v9702 = vrot.slane %v9250, 4
        %v9703 = vsel %vm4843, %v9702, %v9701
        %v9704 = vrot.slane %v9370, 2
        %v9705 = vsel %vm4822, %v9704, 0.0
        %v9706 = vrot.slane %v9235, 2
        %v9707 = vsel %vm4825, %v9706, %v9705
        %v9708 = vrot.slane %v9237, 1
        %v9709 = vsel %vm4828, %v9708, %v9707
        %v9710 = vsel %vm4831, %v9239, %v9709
        %v9711 = vrot.slane %v9241, 7
        %v9712 = vsel %vm4834, %v9711, %v9710
        %v9713 = vrot.slane %v9247, 6
        %v9714 = vsel %vm4837, %v9713, %v9712
        %v9715 = vrot.slane %v9249, 5
        %v9716 = vsel %vm4840, %v9715, %v9714
        %v9717 = vrot.slane %v9251, 4
        %v9718 = vsel %vm4843, %v9717, %v9716
        %v9719 = vrot.slane %v9252, 3
        %v9720 = vsel %vm4822, %v9719, 0.0
        %v9721 = vrot.slane %v9255, 2
        %v9722 = vsel %vm4825, %v9721, %v9720
        %v9723 = vrot.slane %v9291, 1
        %v9724 = vsel %vm4828, %v9723, %v9722
        %v9725 = vsel %vm4831, %v9293, %v9724
        %v9726 = vrot.slane %v9295, 7
        %v9727 = vsel %vm4834, %v9726, %v9725
        %v9728 = vrot.slane %v9297, 6
        %v9729 = vsel %vm4837, %v9728, %v9727
        %v9730 = vrot.slane %v9303, 5
        %v9731 = vsel %vm4840, %v9730, %v9729
        %v9732 = vrot.slane %v9305, 4
        %v9733 = vsel %vm4843, %v9732, %v9731
        %v9734 = vrot.slane %v9253, 3
        %v9735 = vsel %vm4822, %v9734, 0.0
        %v9736 = vrot.slane %v9256, 2
        %v9737 = vsel %vm4825, %v9736, %v9735
        %v9738 = vrot.slane %v9292, 1
        %v9739 = vsel %vm4828, %v9738, %v9737
        %v9740 = vsel %vm4831, %v9294, %v9739
        %v9741 = vrot.slane %v9296, 7
        %v9742 = vsel %vm4834, %v9741, %v9740
        %v9743 = vrot.slane %v9298, 6
        %v9744 = vsel %vm4837, %v9743, %v9742
        %v9745 = vrot.slane %v9304, 5
        %v9746 = vsel %vm4840, %v9745, %v9744
        %v9747 = vrot.slane %v9306, 4
        %v9748 = vsel %vm4843, %v9747, %v9746
        %v9749 = vrot.slane %v9307, 3
        %v9750 = vsel %vm4822, %v9749, 0.0
        %v9751 = vrot.slane %v9309, 2
        %v9752 = vsel %vm4825, %v9751, %v9750
        %v9753 = vrot.slane %v9312, 1
        %v9754 = vsel %vm4828, %v9753, %v9752
        %v9755 = vsel %vm4831, %v9348, %v9754
        %v9756 = vrot.slane %v9350, 7
        %v9757 = vsel %vm4834, %v9756, %v9755
        %v9758 = vrot.slane %v9352, 6
        %v9759 = vsel %vm4837, %v9758, %v9757
        %v9760 = vrot.slane %v9354, 5
        %v9761 = vsel %vm4840, %v9760, %v9759
        %v9762 = vrot.slane %v9360, 4
        %v9763 = vsel %vm4843, %v9762, %v9761
        %v9764 = vrot.slane %v9308, 3
        %v9765 = vsel %vm4822, %v9764, 0.0
        %v9766 = vrot.slane %v9310, 2
        %v9767 = vsel %vm4825, %v9766, %v9765
        %v9768 = vrot.slane %v9313, 1
        %v9769 = vsel %vm4828, %v9768, %v9767
        %v9770 = vsel %vm4831, %v9349, %v9769
        %v9771 = vrot.slane %v9351, 7
        %v9772 = vsel %vm4834, %v9771, %v9770
        %v9773 = vrot.slane %v9353, 6
        %v9774 = vsel %vm4837, %v9773, %v9772
        %v9775 = vrot.slane %v9355, 5
        %v9776 = vsel %vm4840, %v9775, %v9774
        %v9777 = vrot.slane %v9361, 4
        %v9778 = vsel %vm4843, %v9777, %v9776
        %v9779 = vrot.slane %v9362, 3
        %v9780 = vsel %vm4822, %v9779, 0.0
        %v9781 = vrot.slane %v9364, 2
        %v9782 = vsel %vm4825, %v9781, %v9780
        %v9783 = vrot.slane %v9366, 1
        %v9784 = vsel %vm4828, %v9783, %v9782
        %v9785 = vsel %vm4831, %v9369, %v9784
        %v9786 = vrot.slane %v9363, 3
        %v9787 = vsel %vm4822, %v9786, 0.0
        %v9788 = vrot.slane %v9365, 2
        %v9789 = vsel %vm4825, %v9788, %v9787
        %v9790 = vrot.slane %v9367, 1
        %v9791 = vsel %vm4828, %v9790, %v9789
        %v9792 = vsel %vm4831, %v9370, %v9791
        %v9794 = vsel %vm787, %v9785, 0
        %v9797 = vsel %vm787, %v9792, 0
        %9799 = vmatpush.msra.mxu0 0.0
        %9800 = vmatpush.msra.mxu0 0.0
        %9801 = vmatpush.msra.mxu0 %v9794
        %9802 = vmatpush.msra.mxu0 %v9763
        %9803 = vmatpush.msra.mxu0 %v9733
        %9804 = vmatpush.msra.mxu0 %v9703
        %9805 = vmatpush.msra.mxu0 %v9673
        %9806 = vmatpush.msra.mxu0 %v9643
        %9807 = vmatpush.msra.mxu0 %v9613
        %9808 = vmatpush.msra.mxu0 %v9583
        %9809 = vmatpush.msra.mxu0 %v9553
        %9810 = vmatpush.msra.mxu0 %v9523
        %9811 = vmatpush.msra.mxu0 %v9493
        %9812 = vmatpush.msra.mxu0 %v9463
        %9813 = vmatpush.msra.mxu0 %v9433
        %9814 = vmatpush.msra.mxu0 %v9403
        %9815 = vmatmul.f32.gmra.mxu0 %v5241
        %v9816 = vpop.f32.mrf.mxu0
        %v9817 = vadd.f32 %v5237, %v9816
        %9818 = vdwg.mxu0
        %9819 = vmatpush.msra.mxu0 0.0
        %9820 = vmatpush.msra.mxu0 0.0
        %9821 = vmatpush.msra.mxu0 %v9797
        %9822 = vmatpush.msra.mxu0 %v9778
        %9823 = vmatpush.msra.mxu0 %v9748
        %9824 = vmatpush.msra.mxu0 %v9718
        %9825 = vmatpush.msra.mxu0 %v9688
        %9826 = vmatpush.msra.mxu0 %v9658
        %9827 = vmatpush.msra.mxu0 %v9628
        %9828 = vmatpush.msra.mxu0 %v9598
        %9829 = vmatpush.msra.mxu0 %v9568
        %9830 = vmatpush.msra.mxu0 %v9538
        %9831 = vmatpush.msra.mxu0 %v9508
        %9832 = vmatpush.msra.mxu0 %v9478
        %9833 = vmatpush.msra.mxu0 %v9448
        %9834 = vmatpush.msra.mxu0 %v9418
        %9835 = vmatmul.f32.gmra.mxu0 %v5241
        %v9836 = vpop.f32.mrf.mxu0
        %v9837 = vadd.f32 %v5237, %v9836
        %9838 = vdwg.mxu0
        %9839 = vst [vmem:[%s245 + $0x70] sm:$0xff] %v9817
        %9840 = vst [vmem:[%s245 + $0x78] sm:$0xff] %v9837
        %s9841 = smul.u32 16, %s30
        %p9842 = scmp.lt.s32.totalorder %s29, 1
        %s9843 = scalar_select %p9842, %s29, 1
        %p9844 = scmp.lt.s32.totalorder %s9841, 31
        %s9845 = scalar_select %p9844, %s9841, 31
        %s9846 = smul.addr %s9843, 32
        %s9847 = sadd.s32 %s9845, %s9846
        %s9848 = smul.addr %s9847, 8
        %s9849 = scalar_lea.vmem %s5, %s9848
        // Predicated region
        $region41: #{upsample_conv_layer_3d.1} parent=35 // pred_check
          %p9850 = pneg %p146
        $region42: #{upsample_conv_layer_3d.1} parent=35 // pred_check_branch
          %9852 = sbr.rel (%p9850) target = $region44
        $region43: #{upsample_conv_layer_3d.1} parent=35 // pred_region
          %s9853 = smul.u32 16, %s30
        $region44: #{upsample_conv_layer_3d.1} parent=35 // pred_fallthru
          _
      $region36: #{upsample_conv_layer_3d.1} parent=5 // pred_fallthru
        _
      %p9854 = scmp.le.s32.totalorder 2, %s20
      // Predicated region
      $region45: #{upsample_conv_layer_3d.1} parent=5 // pred_check
        %p9855 = pneg %p9854
      $region46: #{upsample_conv_layer_3d.1} parent=5 // pred_check_branch
        %9857 = sbr.rel (%p9855) target = $region48
      $region47: #{upsample_conv_layer_3d.1} parent=5 // pred_region
        %s9858 = ssub.s32 %s20, 2
        // Predicated region
        $region49: #{upsample_conv_layer_3d.1} parent=47 // pred_check
          %p9859 = pneg %p152
        $region50: #{upsample_conv_layer_3d.1} parent=47 // pred_check_branch
          %9861 = sbr.rel (%p9859) target = $region52
        $region51: #{upsample_conv_layer_3d.1} parent=47 // pred_region
          %s9862 = smul.u32 16, %s32
          %p9863 = scmp.lt.s32.totalorder %s31, 1
          %s9864 = scalar_select %p9863, %s31, 1
          %p9865 = scmp.lt.s32.totalorder %s9862, 31
          %s9866 = scalar_select %p9865, %s9862, 31
          %s9867 = smul.addr %s9864, 32
          %s9868 = sadd.s32 %s9866, %s9867
          %s9869 = smul.addr %s9868, 8
          %s9870 = scalar_lea.vmem %s5, %s9869
        $region52: #{upsample_conv_layer_3d.1} parent=47 // pred_fallthru
          _
      $region48: #{upsample_conv_layer_3d.1} parent=5 // pred_fallthru
        _
    $region6: #{upsample_conv_layer_3d.1} parent=1 // loop_footer
      %s24 = sadd.s32 1, %s20
    $region7: #{upsample_conv_layer_3d.1} parent=1 // loop_footer_branch
      %19 = sbr.rel target = $region3
    $region8: #{upsample_conv_layer_3d.1} parent=1 // loop_exit
      _
    %9871 = vsyncpa [#allocation6], 1
    %s9872 = scalar_lea.sflag [#allocation6], 1
    %9873 = vsyncpa %s9872, 1

</llo_original>
